<compile_context>
chip_gen: v6e
topology: v6e:2x2x1
jax: 0.10.0
libtpu: 0.0.40
codegen_flags: <defaults>
</compile_context>

<pallas_src>
import math

import jax
import jax.numpy as jnp
import numpy as np
from jax.experimental import pallas as pl
from jax.experimental.pallas import tpu as pltpu

_PAD = 128          # lane-aligned zero halo on each side of the flat buffer
_PRECISION = jax.lax.Precision.HIGHEST


def _make_kernel(H, W):
    """Builds the per-batch-element kernel (H, W baked in as Python ints)."""
    HW = H * W

    def kernel(x_ref, w_in_ref, w_mid_ref, w_out_ref, o_ref, pad_ref, col_ref):
        # x_ref    : (1, c_pad, H*W)       channels-first flattened input
        # w_in_ref : (n_feat, 9*c_pad)     K-major weights (tap-major, cin fast)
        # w_mid_ref: (n_mid, n_feat, 9*n_feat)
        # w_out_ref: (out_chn, 9*n_feat)
        # o_ref    : (1, out_chn, H*W)     lane-dense output slab
        # pad_ref  : VMEM (n_feat, PAD + H*W + PAD)  flat feature buf w/ halo
        # col_ref  : VMEM (9*n_feat, H*W)            K-major im2col scratch
        c_pad = x_ref.shape[1]
        n_feat = w_in_ref.shape[0]
        n_mid = w_mid_ref.shape[0]
        max_c = pad_ref.shape[0]

        # Zero the two 128-lane halo pads (aligned full-width stores).  Done
        # every grid step so it stays correct if the batch axis is sharded
        # across TensorCores (each core has its own scratch).
        pad_ref[:, pl.ds(0, _PAD)] = jnp.zeros((max_c, _PAD), jnp.float32)
        pad_ref[:, pl.ds(_PAD + HW, _PAD)] = jnp.zeros((max_c, _PAD),
                                                       jnp.float32)

        # Column-validity masks (only the dx = +/-1 taps need them; the row
        # halo is covered by the zero pads above).  Computed once per step.
        col_idx = jax.lax.broadcasted_iota(jnp.int32, (1, HW), 1) % W
        mask_l = col_idx >= 1            # valid source column for dx = -1
        mask_r = col_idx <= (W - 2)      # valid source column for dx = +1

        def store_feat(v, c):
            # Interior store: lane offset _PAD (multiple of 128), full width.
            pad_ref[pl.ds(0, c), pl.ds(_PAD, HW)] = v

        def conv3x3(c, w_t):
            """3x3 'same' conv of the (c, H*W) slab held in pad_ref.

            Builds a K-major (9*c, H*W) im2col slab with aligned full-width
            stores and does a single MXU matmul with w_t of shape (cout, 9*c).
            """
            for ky in range(3):
                dy = ky - 1
                for kx in range(3):
                    dx = kx - 1
                    tap = ky * 3 + kx
                    d = dy * W + dx                      # flat pixel shift
                    slab = pad_ref[pl.ds(0, c), pl.ds(_PAD + d, HW)]
                    if dx == -1:
                        slab = jnp.where(mask_l, slab, 0.0)
                    elif dx == 1:
                        slab = jnp.where(mask_r, slab, 0.0)
                    col_ref[pl.ds(tap * c, c), :] = slab
            return jnp.dot(w_t, col_ref[pl.ds(0, 9 * c), :],
                           preferred_element_type=jnp.float32,
                           precision=_PRECISION)

        # ---- input conv + relu ---------------------------------------------
        store_feat(x_ref[0], c_pad)
        h = jnp.maximum(conv3x3(c_pad, w_in_ref[...]), 0.0)
        store_feat(h, n_feat)

        # ---- middle Conv_ReLU_Block(s) (n_mid is tiny -> static loop) -------
        for l in range(n_mid):
            h = jnp.maximum(conv3x3(n_feat, w_mid_ref[l]), 0.0)
            store_feat(h, n_feat)

        # ---- output conv + sigmoid + channel-normalization ------------------
        z = conv3x3(n_feat, w_out_ref[...])              # (out_chn, H*W)
        y = 1.0 / (1.0 + jnp.exp(-z))                    # sigmoid
        denom = jnp.sum(y, axis=0, keepdims=True) + 1e-9
        o_ref[0] = y / denom                             # exact divide

    return kernel


def representation_forward(x_nchw, w_in, w_mid, w_out):
    """x_nchw: (B, Cin, H, W) f32.  Weights in HWIO (mid stacked on axis 0).

    Returns (B, outChn, 1, H, W), matching the PyTorch module output.
    """
    B, c_in, H, W = x_nchw.shape
    n_feat = w_in.shape[3]
    out_chn = w_out.shape[3]
    n_mid = w_mid.shape[0]
    HW = H * W
    assert W + 1 <= _PAD, "row halo needs W + 1 <= 128 (add row tiling)"
    assert n_mid >= 1, "layers must be >= 3"

    c_pad = ((c_in + 7) // 8) * 8                      # 8-aligned input chans

    # Channels-first flattened input, channel-padded to c_pad with zeros.
    x_flat = x_nchw.reshape(B, c_in, HW)
    if c_pad > c_in:
        x_flat = jnp.pad(x_flat, ((0, 0), (0, c_pad - c_in), (0, 0)))

    # Weights: HWIO (kh, kw, ci, co) -> K-major (co, 9*ci), K = tap*ci + cin
    # (ky slowest, kx, cin fastest) - matches the kernel's tap order.
    def to_kmajor(w):
        return jnp.transpose(w, (3, 0, 1, 2)).reshape(w.shape[3],
                                                      9 * w.shape[2])

    w_in_pad = jnp.pad(w_in, ((0, 0), (0, 0), (0, c_pad - c_in), (0, 0)))
    w_in_t = to_kmajor(w_in_pad)                                   # (nF, 9*cp)
    w_mid_t = jnp.transpose(w_mid, (0, 4, 1, 2, 3)).reshape(
        n_mid, n_feat, 9 * n_feat)                                 # (L, nF, 9nF)
    w_out_t = to_kmajor(w_out)                                     # (oC, 9*nF)

    out_flat = pl.pallas_call(
        _make_kernel(H, W),
        out_shape=jax.ShapeDtypeStruct((B, out_chn, HW), jnp.float32),
        grid_spec=pltpu.PrefetchScalarGridSpec(
            num_scalar_prefetch=0,
            grid=(B,),
            in_specs=[
                pl.BlockSpec((1, c_pad, HW), lambda b: (b, 0, 0)),
                pl.BlockSpec((n_feat, 9 * c_pad), lambda b: (0, 0)),
                pl.BlockSpec((n_mid, n_feat, 9 * n_feat),
                             lambda b: (0, 0, 0)),
                pl.BlockSpec((out_chn, 9 * n_feat), lambda b: (0, 0)),
            ],
            out_specs=pl.BlockSpec((1, out_chn, HW), lambda b: (b, 0, 0)),
            scratch_shapes=[
                pltpu.VMEM((n_feat, _PAD + HW + _PAD), jnp.float32),
                pltpu.VMEM((9 * n_feat, HW), jnp.float32),
            ],
        ),
        compiler_params=pltpu.CompilerParams(
            dimension_semantics=("parallel",)),
    )(x_flat, w_in_t, w_mid_t, w_out_t)

    # (B, outChn, H*W) -> PyTorch output convention (B, outChn, 1, H, W).
    return out_flat.reshape(B, out_chn, 1, H, W)


def _jax_reference(x_nchw, w_in, w_mid, w_out):
    """Pure-JAX reference (lax conv), for correctness checking."""
    dn = ("NCHW", "HWIO", "NCHW")
    conv = lambda a, w: jax.lax.conv_general_dilated(
        a, w, window_strides=(1, 1), padding="SAME",
        dimension_numbers=dn, precision=_PRECISION)
    out = jax.nn.relu(conv(x_nchw, w_in))
    for l in range(w_mid.shape[0]):
        out = jax.nn.relu(conv(out, w_mid[l]))
    out = jax.nn.sigmoid(conv(out, w_out))
    s = jnp.sum(out, axis=1, keepdims=True)
    out = out / (s + 1e-9)
    return out.reshape(out.shape[0], out.shape[1], 1,
                       out.shape[2], out.shape[3])


if __name__ == "__main__":
    # Small deterministic problem mirroring the module defaults (inFeat=3,
    # outChn=5, layers=3 => one middle Conv_ReLU_Block), nFeat=32, 16x16.
    B, C_IN, H, W = 2, 3, 16, 16
    N_FEAT, OUT_CHN, LAYERS = 32, 5, 3
    N_MID = LAYERS - 2

    key = jax.random.PRNGKey(0)
    k_x, k_w0, k_w1, k_w2 = jax.random.split(key, 4)

    # Weight init mirrors the module: normal(0, sqrt(2 / (k*k*out_channels))).
    std_feat = math.sqrt(2.0 / (3 * 3 * N_FEAT))
    std_out = math.sqrt(2.0 / (3 * 3 * OUT_CHN))
    w_in = std_feat * jax.random.normal(k_w0, (3, 3, C_IN, N_FEAT), jnp.float32)
    w_mid = std_feat * jax.random.normal(
        k_w1, (N_MID, 3, 3, N_FEAT, N_FEAT), jnp.float32)
    w_out = std_out * jax.random.normal(k_w2, (3, 3, N_FEAT, OUT_CHN),
                                        jnp.float32)

    x = jax.random.normal(k_x, (B, C_IN, H, W), jnp.float32)

    out = representation_forward(x, w_in, w_mid, w_out)
    out = jax.block_until_ready(out)

    ref = jax.block_until_ready(_jax_reference(x, w_in, w_mid, w_out))
    assert out.shape == (B, OUT_CHN, 1, H, W), out.shape
    np.testing.assert_allclose(np.asarray(out), np.asarray(ref),
                               rtol=1e-4, atol=1e-4)
    print("KERNEL_OK")
</pallas_src>

<mosaic_0001>
module attributes {stable_mosaic.version = 11 : i64} {
  func.func @kernel(%arg0: i32, %arg1: memref<1x8x256xf32, #tpu.memory_space<vmem>>, %arg2: memref<32x72xf32, #tpu.memory_space<vmem>>, %arg3: memref<1x32x288xf32, #tpu.memory_space<vmem>>, %arg4: memref<5x288xf32, #tpu.memory_space<vmem>>, %arg5: memref<1x5x256xf32, #tpu.memory_space<vmem>>, %arg6: memref<32x512xf32, #tpu.memory_space<vmem>>, %arg7: memref<288x256xf32, #tpu.memory_space<vmem>>) attributes {dimension_semantics = [#tpu.dimension_semantics<parallel>], iteration_bounds = array<i64: 2>, scalar_prefetch = 0 : i64, scratch_operands = 2 : i64, tpu.core_type = #tpu.core_type<tc>, window_params = [{transform_indices = @transform_0, window_bounds = array<i64: 1, 8, 256>}, {pipeline_mode = #tpu.pipeline_mode<synchronous>, transform_indices = @transform_1, window_bounds = array<i64: 32, 72>}, {pipeline_mode = #tpu.pipeline_mode<synchronous>, transform_indices = @transform_2, window_bounds = array<i64: 1, 32, 288>}, {pipeline_mode = #tpu.pipeline_mode<synchronous>, transform_indices = @transform_3, window_bounds = array<i64: 5, 288>}, {transform_indices = @transform_4, window_bounds = array<i64: 1, 5, 256>}]} {
    %cst = arith.constant 0.000000e+00 : f32
    %0 = vector.broadcast %cst : f32 to vector<32x128xf32>
    %c0 = arith.constant 0 : index
    %c0_0 = arith.constant 0 : index
    %1 = vector.load %arg6[%c0, %c0_0] : memref<32x512xf32, #tpu.memory_space<vmem>>, vector<32x128xf32>
    tpu.vector_store %arg6[%c0, %c0_0], %0 {strides = array<i32>} : memref<32x512xf32, #tpu.memory_space<vmem>>, vector<32x128xf32>,
    %cst_1 = arith.constant 0.000000e+00 : f32
    %2 = vector.broadcast %cst_1 : f32 to vector<32x128xf32>
    %c0_2 = arith.constant 0 : index
    %c384 = arith.constant 384 : index
    %3 = vector.load %arg6[%c0_2, %c384] : memref<32x512xf32, #tpu.memory_space<vmem>>, vector<32x128xf32>
    tpu.vector_store %arg6[%c0_2, %c384], %2 {strides = array<i32>} : memref<32x512xf32, #tpu.memory_space<vmem>>, vector<32x128xf32>,
    %4 = tpu.iota {dimensions = array<i32: 1>} : vector<1x256xi32>
    %c16_i32 = arith.constant 16 : i32
    %c0_i32 = arith.constant 0 : i32
    %5 = arith.cmpi eq, %c16_i32, %c0_i32 : i32
    %c1_i32 = arith.constant 1 : i32
    %6 = arith.select %5, %c1_i32, %c16_i32 : i32
    %7 = vector.broadcast %6 : i32 to vector<1x256xi32>
    %8 = arith.remsi %4, %7 : vector<1x256xi32>
    %c0_i32_3 = arith.constant 0 : i32
    %9 = vector.broadcast %c0_i32_3 : i32 to vector<1x256xi32>
    %10 = arith.cmpi ne, %8, %9 : vector<1x256xi32>
    %c0_i32_4 = arith.constant 0 : i32
    %11 = vector.broadcast %c0_i32_4 : i32 to vector<1x256xi32>
    %12 = arith.cmpi slt, %8, %11 : vector<1x256xi32>
    %c0_i32_5 = arith.constant 0 : i32
    %13 = arith.cmpi slt, %6, %c0_i32_5 : i32
    %14 = vector.broadcast %13 : i1 to vector<1x256xi1>
    %15 = vector.broadcast %14 : vector<1x256xi1> to vector<1x256xi1>
    %16 = arith.xori %12, %15 : vector<1x256xi1>
    %17 = arith.andi %16, %10 : vector<1x256xi1>
    %18 = vector.broadcast %6 : i32 to vector<1x256xi32>
    %19 = arith.addi %8, %18 : vector<1x256xi32>
    %20 = arith.select %17, %19, %8 : vector<1x256xi1>, vector<1x256xi32>
    %c1_i32_6 = arith.constant 1 : i32
    %21 = vector.broadcast %c1_i32_6 : i32 to vector<1x256xi32>
    %22 = arith.cmpi sge, %20, %21 : vector<1x256xi32>
    %c14_i32 = arith.constant 14 : i32
    %23 = vector.broadcast %c14_i32 : i32 to vector<1x256xi32>
    %24 = arith.cmpi sle, %20, %23 : vector<1x256xi32>
    %c0_7 = arith.constant 0 : index
    %c0_8 = arith.constant 0 : index
    %c0_9 = arith.constant 0 : index
    %25 = vector.load %arg1[%c0_7, %c0_8, %c0_9] : memref<1x8x256xf32, #tpu.memory_space<vmem>>, vector<1x8x256xf32>
    %26 = vector.shape_cast %25 : vector<1x8x256xf32> to vector<8x256xf32>
    %c0_10 = arith.constant 0 : index
    %c128 = arith.constant 128 : index
    %27 = vector.load %arg6[%c0_10, %c128] : memref<32x512xf32, #tpu.memory_space<vmem>>, vector<8x256xf32>
    tpu.vector_store %arg6[%c0_10, %c128], %26 {strides = array<i32>} : memref<32x512xf32, #tpu.memory_space<vmem>>, vector<8x256xf32>,
    %c0_11 = arith.constant 0 : index
    %c0_12 = arith.constant 0 : index
    %28 = vector.load %arg2[%c0_11, %c0_12] : memref<32x72xf32, #tpu.memory_space<vmem>>, vector<32x72xf32>
    %c0_13 = arith.constant 0 : index
    %c111 = arith.constant 111 : index
    %29 = vector.load %arg6[%c0_13, %c111] : memref<32x512xf32, #tpu.memory_space<vmem>>, vector<8x256xf32>
    %cst_14 = arith.constant 0.000000e+00 : f32
    %30 = vector.shape_cast %22 : vector<1x256xi1> to vector<1x256xi1>
    %31 = vector.broadcast %30 : vector<1x256xi1> to vector<8x256xi1>
    %32 = vector.broadcast %cst_14 : f32 to vector<8x256xf32>
    %33 = arith.select %31, %29, %32 : vector<8x256xi1>, vector<8x256xf32>
    %c0_15 = arith.constant 0 : index
    %c0_16 = arith.constant 0 : index
    %34 = vector.load %arg7[%c0_15, %c0_16] : memref<288x256xf32, #tpu.memory_space<vmem>>, vector<8x256xf32>
    tpu.vector_store %arg7[%c0_15, %c0_16], %33 {strides = array<i32>} : memref<288x256xf32, #tpu.memory_space<vmem>>, vector<8x256xf32>,
    %c0_17 = arith.constant 0 : index
    %c112 = arith.constant 112 : index
    %35 = vector.load %arg6[%c0_17, %c112] : memref<32x512xf32, #tpu.memory_space<vmem>>, vector<8x256xf32>
    %c8 = arith.constant 8 : index
    %c0_18 = arith.constant 0 : index
    %36 = vector.load %arg7[%c8, %c0_18] : memref<288x256xf32, #tpu.memory_space<vmem>>, vector<8x256xf32>
    tpu.vector_store %arg7[%c8, %c0_18], %35 {strides = array<i32>} : memref<288x256xf32, #tpu.memory_space<vmem>>, vector<8x256xf32>,
    %c0_19 = arith.constant 0 : index
    %c113 = arith.constant 113 : index
    %37 = vector.load %arg6[%c0_19, %c113] : memref<32x512xf32, #tpu.memory_space<vmem>>, vector<8x256xf32>
    %cst_20 = arith.constant 0.000000e+00 : f32
    %38 = vector.shape_cast %24 : vector<1x256xi1> to vector<1x256xi1>
    %39 = vector.broadcast %38 : vector<1x256xi1> to vector<8x256xi1>
    %40 = vector.broadcast %cst_20 : f32 to vector<8x256xf32>
    %41 = arith.select %39, %37, %40 : vector<8x256xi1>, vector<8x256xf32>
    %c16 = arith.constant 16 : index
    %c0_21 = arith.constant 0 : index
    %42 = vector.load %arg7[%c16, %c0_21] : memref<288x256xf32, #tpu.memory_space<vmem>>, vector<8x256xf32>
    tpu.vector_store %arg7[%c16, %c0_21], %41 {strides = array<i32>} : memref<288x256xf32, #tpu.memory_space<vmem>>, vector<8x256xf32>,
    %c0_22 = arith.constant 0 : index
    %c127 = arith.constant 127 : index
    %43 = vector.load %arg6[%c0_22, %c127] : memref<32x512xf32, #tpu.memory_space<vmem>>, vector<8x256xf32>
    %cst_23 = arith.constant 0.000000e+00 : f32
    %44 = vector.shape_cast %22 : vector<1x256xi1> to vector<1x256xi1>
    %45 = vector.broadcast %44 : vector<1x256xi1> to vector<8x256xi1>
    %46 = vector.broadcast %cst_23 : f32 to vector<8x256xf32>
    %47 = arith.select %45, %43, %46 : vector<8x256xi1>, vector<8x256xf32>
    %c24 = arith.constant 24 : index
    %c0_24 = arith.constant 0 : index
    %48 = vector.load %arg7[%c24, %c0_24] : memref<288x256xf32, #tpu.memory_space<vmem>>, vector<8x256xf32>
    tpu.vector_store %arg7[%c24, %c0_24], %47 {strides = array<i32>} : memref<288x256xf32, #tpu.memory_space<vmem>>, vector<8x256xf32>,
    %c0_25 = arith.constant 0 : index
    %c128_26 = arith.constant 128 : index
    %49 = vector.load %arg6[%c0_25, %c128_26] : memref<32x512xf32, #tpu.memory_space<vmem>>, vector<8x256xf32>
    %c32 = arith.constant 32 : index
    %c0_27 = arith.constant 0 : index
    %50 = vector.load %arg7[%c32, %c0_27] : memref<288x256xf32, #tpu.memory_space<vmem>>, vector<8x256xf32>
    tpu.vector_store %arg7[%c32, %c0_27], %49 {strides = array<i32>} : memref<288x256xf32, #tpu.memory_space<vmem>>, vector<8x256xf32>,
    %c0_28 = arith.constant 0 : index
    %c129 = arith.constant 129 : index
    %51 = vector.load %arg6[%c0_28, %c129] : memref<32x512xf32, #tpu.memory_space<vmem>>, vector<8x256xf32>
    %cst_29 = arith.constant 0.000000e+00 : f32
    %52 = vector.shape_cast %24 : vector<1x256xi1> to vector<1x256xi1>
    %53 = vector.broadcast %52 : vector<1x256xi1> to vector<8x256xi1>
    %54 = vector.broadcast %cst_29 : f32 to vector<8x256xf32>
    %55 = arith.select %53, %51, %54 : vector<8x256xi1>, vector<8x256xf32>
    %c40 = arith.constant 40 : index
    %c0_30 = arith.constant 0 : index
    %56 = vector.load %arg7[%c40, %c0_30] : memref<288x256xf32, #tpu.memory_space<vmem>>, vector<8x256xf32>
    tpu.vector_store %arg7[%c40, %c0_30], %55 {strides = array<i32>} : memref<288x256xf32, #tpu.memory_space<vmem>>, vector<8x256xf32>,
    %c0_31 = arith.constant 0 : index
    %c143 = arith.constant 143 : index
    %57 = vector.load %arg6[%c0_31, %c143] : memref<32x512xf32, #tpu.memory_space<vmem>>, vector<8x256xf32>
    %cst_32 = arith.constant 0.000000e+00 : f32
    %58 = vector.shape_cast %22 : vector<1x256xi1> to vector<1x256xi1>
    %59 = vector.broadcast %58 : vector<1x256xi1> to vector<8x256xi1>
    %60 = vector.broadcast %cst_32 : f32 to vector<8x256xf32>
    %61 = arith.select %59, %57, %60 : vector<8x256xi1>, vector<8x256xf32>
    %c48 = arith.constant 48 : index
    %c0_33 = arith.constant 0 : index
    %62 = vector.load %arg7[%c48, %c0_33] : memref<288x256xf32, #tpu.memory_space<vmem>>, vector<8x256xf32>
    tpu.vector_store %arg7[%c48, %c0_33], %61 {strides = array<i32>} : memref<288x256xf32, #tpu.memory_space<vmem>>, vector<8x256xf32>,
    %c0_34 = arith.constant 0 : index
    %c144 = arith.constant 144 : index
    %63 = vector.load %arg6[%c0_34, %c144] : memref<32x512xf32, #tpu.memory_space<vmem>>, vector<8x256xf32>
    %c56 = arith.constant 56 : index
    %c0_35 = arith.constant 0 : index
    %64 = vector.load %arg7[%c56, %c0_35] : memref<288x256xf32, #tpu.memory_space<vmem>>, vector<8x256xf32>
    tpu.vector_store %arg7[%c56, %c0_35], %63 {strides = array<i32>} : memref<288x256xf32, #tpu.memory_space<vmem>>, vector<8x256xf32>,
    %c0_36 = arith.constant 0 : index
    %c145 = arith.constant 145 : index
    %65 = vector.load %arg6[%c0_36, %c145] : memref<32x512xf32, #tpu.memory_space<vmem>>, vector<8x256xf32>
    %cst_37 = arith.constant 0.000000e+00 : f32
    %66 = vector.shape_cast %24 : vector<1x256xi1> to vector<1x256xi1>
    %67 = vector.broadcast %66 : vector<1x256xi1> to vector<8x256xi1>
    %68 = vector.broadcast %cst_37 : f32 to vector<8x256xf32>
    %69 = arith.select %67, %65, %68 : vector<8x256xi1>, vector<8x256xf32>
    %c64 = arith.constant 64 : index
    %c0_38 = arith.constant 0 : index
    %70 = vector.load %arg7[%c64, %c0_38] : memref<288x256xf32, #tpu.memory_space<vmem>>, vector<8x256xf32>
    tpu.vector_store %arg7[%c64, %c0_38], %69 {strides = array<i32>} : memref<288x256xf32, #tpu.memory_space<vmem>>, vector<8x256xf32>,
    %c0_39 = arith.constant 0 : index
    %c0_40 = arith.constant 0 : index
    %71 = vector.load %arg7[%c0_39, %c0_40] : memref<288x256xf32, #tpu.memory_space<vmem>>, vector<72x256xf32>
    %cst_41 = arith.constant dense<0.000000e+00> : vector<32x256xf32>
    %72 = tpu.matmul %28, %71, %cst_41 {dimension_numbers = #tpu.dot_dimension_numbers<[1], [0], [0], [1], [0, 0, 1, 1], [], []>, precision = #tpu.contract_precision<fp32>} : vector<32x72xf32>, vector<72x256xf32>, vector<32x256xf32> -> vector<32x256xf32>
    %cst_42 = arith.constant 0.000000e+00 : f32
    %73 = vector.broadcast %cst_42 : f32 to vector<32x256xf32>
    %74 = arith.maximumf %72, %73 : vector<32x256xf32>
    %c0_43 = arith.constant 0 : index
    %c128_44 = arith.constant 128 : index
    %75 = vector.load %arg6[%c0_43, %c128_44] : memref<32x512xf32, #tpu.memory_space<vmem>>, vector<32x256xf32>
    tpu.vector_store %arg6[%c0_43, %c128_44], %74 {strides = array<i32>} : memref<32x512xf32, #tpu.memory_space<vmem>>, vector<32x256xf32>,
    %c0_45 = arith.constant 0 : index
    %c0_46 = arith.constant 0 : index
    %c0_47 = arith.constant 0 : index
    %76 = vector.load %arg3[%c0_45, %c0_46, %c0_47] : memref<1x32x288xf32, #tpu.memory_space<vmem>>, vector<1x32x288xf32>
    %77 = vector.shape_cast %76 : vector<1x32x288xf32> to vector<32x288xf32>
    %c0_48 = arith.constant 0 : index
    %c111_49 = arith.constant 111 : index
    %78 = vector.load %arg6[%c0_48, %c111_49] : memref<32x512xf32, #tpu.memory_space<vmem>>, vector<32x256xf32>
    %cst_50 = arith.constant 0.000000e+00 : f32
    %79 = vector.shape_cast %22 : vector<1x256xi1> to vector<1x256xi1>
    %80 = vector.broadcast %79 : vector<1x256xi1> to vector<32x256xi1>
    %81 = vector.broadcast %cst_50 : f32 to vector<32x256xf32>
    %82 = arith.select %80, %78, %81 : vector<32x256xi1>, vector<32x256xf32>
    %c0_51 = arith.constant 0 : index
    %c0_52 = arith.constant 0 : index
    %83 = vector.load %arg7[%c0_51, %c0_52] : memref<288x256xf32, #tpu.memory_space<vmem>>, vector<32x256xf32>
    tpu.vector_store %arg7[%c0_51, %c0_52], %82 {strides = array<i32>} : memref<288x256xf32, #tpu.memory_space<vmem>>, vector<32x256xf32>,
    %c0_53 = arith.constant 0 : index
    %c112_54 = arith.constant 112 : index
    %84 = vector.load %arg6[%c0_53, %c112_54] : memref<32x512xf32, #tpu.memory_space<vmem>>, vector<32x256xf32>
    %c32_55 = arith.constant 32 : index
    %c0_56 = arith.constant 0 : index
    %85 = vector.load %arg7[%c32_55, %c0_56] : memref<288x256xf32, #tpu.memory_space<vmem>>, vector<32x256xf32>
    tpu.vector_store %arg7[%c32_55, %c0_56], %84 {strides = array<i32>} : memref<288x256xf32, #tpu.memory_space<vmem>>, vector<32x256xf32>,
    %c0_57 = arith.constant 0 : index
    %c113_58 = arith.constant 113 : index
    %86 = vector.load %arg6[%c0_57, %c113_58] : memref<32x512xf32, #tpu.memory_space<vmem>>, vector<32x256xf32>
    %cst_59 = arith.constant 0.000000e+00 : f32
    %87 = vector.shape_cast %24 : vector<1x256xi1> to vector<1x256xi1>
    %88 = vector.broadcast %87 : vector<1x256xi1> to vector<32x256xi1>
    %89 = vector.broadcast %cst_59 : f32 to vector<32x256xf32>
    %90 = arith.select %88, %86, %89 : vector<32x256xi1>, vector<32x256xf32>
    %c64_60 = arith.constant 64 : index
    %c0_61 = arith.constant 0 : index
    %91 = vector.load %arg7[%c64_60, %c0_61] : memref<288x256xf32, #tpu.memory_space<vmem>>, vector<32x256xf32>
    tpu.vector_store %arg7[%c64_60, %c0_61], %90 {strides = array<i32>} : memref<288x256xf32, #tpu.memory_space<vmem>>, vector<32x256xf32>,
    %c0_62 = arith.constant 0 : index
    %c127_63 = arith.constant 127 : index
    %92 = vector.load %arg6[%c0_62, %c127_63] : memref<32x512xf32, #tpu.memory_space<vmem>>, vector<32x256xf32>
    %cst_64 = arith.constant 0.000000e+00 : f32
    %93 = vector.shape_cast %22 : vector<1x256xi1> to vector<1x256xi1>
    %94 = vector.broadcast %93 : vector<1x256xi1> to vector<32x256xi1>
    %95 = vector.broadcast %cst_64 : f32 to vector<32x256xf32>
    %96 = arith.select %94, %92, %95 : vector<32x256xi1>, vector<32x256xf32>
    %c96 = arith.constant 96 : index
    %c0_65 = arith.constant 0 : index
    %97 = vector.load %arg7[%c96, %c0_65] : memref<288x256xf32, #tpu.memory_space<vmem>>, vector<32x256xf32>
    tpu.vector_store %arg7[%c96, %c0_65], %96 {strides = array<i32>} : memref<288x256xf32, #tpu.memory_space<vmem>>, vector<32x256xf32>,
    %c0_66 = arith.constant 0 : index
    %c128_67 = arith.constant 128 : index
    %98 = vector.load %arg6[%c0_66, %c128_67] : memref<32x512xf32, #tpu.memory_space<vmem>>, vector<32x256xf32>
    %c128_68 = arith.constant 128 : index
    %c0_69 = arith.constant 0 : index
    %99 = vector.load %arg7[%c128_68, %c0_69] : memref<288x256xf32, #tpu.memory_space<vmem>>, vector<32x256xf32>
    tpu.vector_store %arg7[%c128_68, %c0_69], %98 {strides = array<i32>} : memref<288x256xf32, #tpu.memory_space<vmem>>, vector<32x256xf32>,
    %c0_70 = arith.constant 0 : index
    %c129_71 = arith.constant 129 : index
    %100 = vector.load %arg6[%c0_70, %c129_71] : memref<32x512xf32, #tpu.memory_space<vmem>>, vector<32x256xf32>
    %cst_72 = arith.constant 0.000000e+00 : f32
    %101 = vector.shape_cast %24 : vector<1x256xi1> to vector<1x256xi1>
    %102 = vector.broadcast %101 : vector<1x256xi1> to vector<32x256xi1>
    %103 = vector.broadcast %cst_72 : f32 to vector<32x256xf32>
    %104 = arith.select %102, %100, %103 : vector<32x256xi1>, vector<32x256xf32>
    %c160 = arith.constant 160 : index
    %c0_73 = arith.constant 0 : index
    %105 = vector.load %arg7[%c160, %c0_73] : memref<288x256xf32, #tpu.memory_space<vmem>>, vector<32x256xf32>
    tpu.vector_store %arg7[%c160, %c0_73], %104 {strides = array<i32>} : memref<288x256xf32, #tpu.memory_space<vmem>>, vector<32x256xf32>,
    %c0_74 = arith.constant 0 : index
    %c143_75 = arith.constant 143 : index
    %106 = vector.load %arg6[%c0_74, %c143_75] : memref<32x512xf32, #tpu.memory_space<vmem>>, vector<32x256xf32>
    %cst_76 = arith.constant 0.000000e+00 : f32
    %107 = vector.shape_cast %22 : vector<1x256xi1> to vector<1x256xi1>
    %108 = vector.broadcast %107 : vector<1x256xi1> to vector<32x256xi1>
    %109 = vector.broadcast %cst_76 : f32 to vector<32x256xf32>
    %110 = arith.select %108, %106, %109 : vector<32x256xi1>, vector<32x256xf32>
    %c192 = arith.constant 192 : index
    %c0_77 = arith.constant 0 : index
    %111 = vector.load %arg7[%c192, %c0_77] : memref<288x256xf32, #tpu.memory_space<vmem>>, vector<32x256xf32>
    tpu.vector_store %arg7[%c192, %c0_77], %110 {strides = array<i32>} : memref<288x256xf32, #tpu.memory_space<vmem>>, vector<32x256xf32>,
    %c0_78 = arith.constant 0 : index
    %c144_79 = arith.constant 144 : index
    %112 = vector.load %arg6[%c0_78, %c144_79] : memref<32x512xf32, #tpu.memory_space<vmem>>, vector<32x256xf32>
    %c224 = arith.constant 224 : index
    %c0_80 = arith.constant 0 : index
    %113 = vector.load %arg7[%c224, %c0_80] : memref<288x256xf32, #tpu.memory_space<vmem>>, vector<32x256xf32>
    tpu.vector_store %arg7[%c224, %c0_80], %112 {strides = array<i32>} : memref<288x256xf32, #tpu.memory_space<vmem>>, vector<32x256xf32>,
    %c0_81 = arith.constant 0 : index
    %c145_82 = arith.constant 145 : index
    %114 = vector.load %arg6[%c0_81, %c145_82] : memref<32x512xf32, #tpu.memory_space<vmem>>, vector<32x256xf32>
    %cst_83 = arith.constant 0.000000e+00 : f32
    %115 = vector.shape_cast %24 : vector<1x256xi1> to vector<1x256xi1>
    %116 = vector.broadcast %115 : vector<1x256xi1> to vector<32x256xi1>
    %117 = vector.broadcast %cst_83 : f32 to vector<32x256xf32>
    %118 = arith.select %116, %114, %117 : vector<32x256xi1>, vector<32x256xf32>
    %c256 = arith.constant 256 : index
    %c0_84 = arith.constant 0 : index
    %119 = vector.load %arg7[%c256, %c0_84] : memref<288x256xf32, #tpu.memory_space<vmem>>, vector<32x256xf32>
    tpu.vector_store %arg7[%c256, %c0_84], %118 {strides = array<i32>} : memref<288x256xf32, #tpu.memory_space<vmem>>, vector<32x256xf32>,
    %c0_85 = arith.constant 0 : index
    %c0_86 = arith.constant 0 : index
    %120 = vector.load %arg7[%c0_85, %c0_86] : memref<288x256xf32, #tpu.memory_space<vmem>>, vector<288x256xf32>
    %cst_87 = arith.constant dense<0.000000e+00> : vector<32x256xf32>
    %121 = tpu.matmul %77, %120, %cst_87 {dimension_numbers = #tpu.dot_dimension_numbers<[1], [0], [0], [1], [0, 0, 1, 1], [], []>, precision = #tpu.contract_precision<fp32>} : vector<32x288xf32>, vector<288x256xf32>, vector<32x256xf32> -> vector<32x256xf32>
    %cst_88 = arith.constant 0.000000e+00 : f32
    %122 = vector.broadcast %cst_88 : f32 to vector<32x256xf32>
    %123 = arith.maximumf %121, %122 : vector<32x256xf32>
    %c0_89 = arith.constant 0 : index
    %c128_90 = arith.constant 128 : index
    %124 = vector.load %arg6[%c0_89, %c128_90] : memref<32x512xf32, #tpu.memory_space<vmem>>, vector<32x256xf32>
    tpu.vector_store %arg6[%c0_89, %c128_90], %123 {strides = array<i32>} : memref<32x512xf32, #tpu.memory_space<vmem>>, vector<32x256xf32>,
    %c0_91 = arith.constant 0 : index
    %c0_92 = arith.constant 0 : index
    %125 = vector.load %arg4[%c0_91, %c0_92] : memref<5x288xf32, #tpu.memory_space<vmem>>, vector<5x288xf32>
    %c0_93 = arith.constant 0 : index
    %c111_94 = arith.constant 111 : index
    %126 = vector.load %arg6[%c0_93, %c111_94] : memref<32x512xf32, #tpu.memory_space<vmem>>, vector<32x256xf32>
    %cst_95 = arith.constant 0.000000e+00 : f32
    %127 = vector.shape_cast %22 : vector<1x256xi1> to vector<1x256xi1>
    %128 = vector.broadcast %127 : vector<1x256xi1> to vector<32x256xi1>
    %129 = vector.broadcast %cst_95 : f32 to vector<32x256xf32>
    %130 = arith.select %128, %126, %129 : vector<32x256xi1>, vector<32x256xf32>
    %c0_96 = arith.constant 0 : index
    %c0_97 = arith.constant 0 : index
    %131 = vector.load %arg7[%c0_96, %c0_97] : memref<288x256xf32, #tpu.memory_space<vmem>>, vector<32x256xf32>
    tpu.vector_store %arg7[%c0_96, %c0_97], %130 {strides = array<i32>} : memref<288x256xf32, #tpu.memory_space<vmem>>, vector<32x256xf32>,
    %c0_98 = arith.constant 0 : index
    %c112_99 = arith.constant 112 : index
    %132 = vector.load %arg6[%c0_98, %c112_99] : memref<32x512xf32, #tpu.memory_space<vmem>>, vector<32x256xf32>
    %c32_100 = arith.constant 32 : index
    %c0_101 = arith.constant 0 : index
    %133 = vector.load %arg7[%c32_100, %c0_101] : memref<288x256xf32, #tpu.memory_space<vmem>>, vector<32x256xf32>
    tpu.vector_store %arg7[%c32_100, %c0_101], %132 {strides = array<i32>} : memref<288x256xf32, #tpu.memory_space<vmem>>, vector<32x256xf32>,
    %c0_102 = arith.constant 0 : index
    %c113_103 = arith.constant 113 : index
    %134 = vector.load %arg6[%c0_102, %c113_103] : memref<32x512xf32, #tpu.memory_space<vmem>>, vector<32x256xf32>
    %cst_104 = arith.constant 0.000000e+00 : f32
    %135 = vector.shape_cast %24 : vector<1x256xi1> to vector<1x256xi1>
    %136 = vector.broadcast %135 : vector<1x256xi1> to vector<32x256xi1>
    %137 = vector.broadcast %cst_104 : f32 to vector<32x256xf32>
    %138 = arith.select %136, %134, %137 : vector<32x256xi1>, vector<32x256xf32>
    %c64_105 = arith.constant 64 : index
    %c0_106 = arith.constant 0 : index
    %139 = vector.load %arg7[%c64_105, %c0_106] : memref<288x256xf32, #tpu.memory_space<vmem>>, vector<32x256xf32>
    tpu.vector_store %arg7[%c64_105, %c0_106], %138 {strides = array<i32>} : memref<288x256xf32, #tpu.memory_space<vmem>>, vector<32x256xf32>,
    %c0_107 = arith.constant 0 : index
    %c127_108 = arith.constant 127 : index
    %140 = vector.load %arg6[%c0_107, %c127_108] : memref<32x512xf32, #tpu.memory_space<vmem>>, vector<32x256xf32>
    %cst_109 = arith.constant 0.000000e+00 : f32
    %141 = vector.shape_cast %22 : vector<1x256xi1> to vector<1x256xi1>
    %142 = vector.broadcast %141 : vector<1x256xi1> to vector<32x256xi1>
    %143 = vector.broadcast %cst_109 : f32 to vector<32x256xf32>
    %144 = arith.select %142, %140, %143 : vector<32x256xi1>, vector<32x256xf32>
    %c96_110 = arith.constant 96 : index
    %c0_111 = arith.constant 0 : index
    %145 = vector.load %arg7[%c96_110, %c0_111] : memref<288x256xf32, #tpu.memory_space<vmem>>, vector<32x256xf32>
    tpu.vector_store %arg7[%c96_110, %c0_111], %144 {strides = array<i32>} : memref<288x256xf32, #tpu.memory_space<vmem>>, vector<32x256xf32>,
    %c0_112 = arith.constant 0 : index
    %c128_113 = arith.constant 128 : index
    %146 = vector.load %arg6[%c0_112, %c128_113] : memref<32x512xf32, #tpu.memory_space<vmem>>, vector<32x256xf32>
    %c128_114 = arith.constant 128 : index
    %c0_115 = arith.constant 0 : index
    %147 = vector.load %arg7[%c128_114, %c0_115] : memref<288x256xf32, #tpu.memory_space<vmem>>, vector<32x256xf32>
    tpu.vector_store %arg7[%c128_114, %c0_115], %146 {strides = array<i32>} : memref<288x256xf32, #tpu.memory_space<vmem>>, vector<32x256xf32>,
    %c0_116 = arith.constant 0 : index
    %c129_117 = arith.constant 129 : index
    %148 = vector.load %arg6[%c0_116, %c129_117] : memref<32x512xf32, #tpu.memory_space<vmem>>, vector<32x256xf32>
    %cst_118 = arith.constant 0.000000e+00 : f32
    %149 = vector.shape_cast %24 : vector<1x256xi1> to vector<1x256xi1>
    %150 = vector.broadcast %149 : vector<1x256xi1> to vector<32x256xi1>
    %151 = vector.broadcast %cst_118 : f32 to vector<32x256xf32>
    %152 = arith.select %150, %148, %151 : vector<32x256xi1>, vector<32x256xf32>
    %c160_119 = arith.constant 160 : index
    %c0_120 = arith.constant 0 : index
    %153 = vector.load %arg7[%c160_119, %c0_120] : memref<288x256xf32, #tpu.memory_space<vmem>>, vector<32x256xf32>
    tpu.vector_store %arg7[%c160_119, %c0_120], %152 {strides = array<i32>} : memref<288x256xf32, #tpu.memory_space<vmem>>, vector<32x256xf32>,
    %c0_121 = arith.constant 0 : index
    %c143_122 = arith.constant 143 : index
    %154 = vector.load %arg6[%c0_121, %c143_122] : memref<32x512xf32, #tpu.memory_space<vmem>>, vector<32x256xf32>
    %cst_123 = arith.constant 0.000000e+00 : f32
    %155 = vector.shape_cast %22 : vector<1x256xi1> to vector<1x256xi1>
    %156 = vector.broadcast %155 : vector<1x256xi1> to vector<32x256xi1>
    %157 = vector.broadcast %cst_123 : f32 to vector<32x256xf32>
    %158 = arith.select %156, %154, %157 : vector<32x256xi1>, vector<32x256xf32>
    %c192_124 = arith.constant 192 : index
    %c0_125 = arith.constant 0 : index
    %159 = vector.load %arg7[%c192_124, %c0_125] : memref<288x256xf32, #tpu.memory_space<vmem>>, vector<32x256xf32>
    tpu.vector_store %arg7[%c192_124, %c0_125], %158 {strides = array<i32>} : memref<288x256xf32, #tpu.memory_space<vmem>>, vector<32x256xf32>,
    %c0_126 = arith.constant 0 : index
    %c144_127 = arith.constant 144 : index
    %160 = vector.load %arg6[%c0_126, %c144_127] : memref<32x512xf32, #tpu.memory_space<vmem>>, vector<32x256xf32>
    %c224_128 = arith.constant 224 : index
    %c0_129 = arith.constant 0 : index
    %161 = vector.load %arg7[%c224_128, %c0_129] : memref<288x256xf32, #tpu.memory_space<vmem>>, vector<32x256xf32>
    tpu.vector_store %arg7[%c224_128, %c0_129], %160 {strides = array<i32>} : memref<288x256xf32, #tpu.memory_space<vmem>>, vector<32x256xf32>,
    %c0_130 = arith.constant 0 : index
    %c145_131 = arith.constant 145 : index
    %162 = vector.load %arg6[%c0_130, %c145_131] : memref<32x512xf32, #tpu.memory_space<vmem>>, vector<32x256xf32>
    %cst_132 = arith.constant 0.000000e+00 : f32
    %163 = vector.shape_cast %24 : vector<1x256xi1> to vector<1x256xi1>
    %164 = vector.broadcast %163 : vector<1x256xi1> to vector<32x256xi1>
    %165 = vector.broadcast %cst_132 : f32 to vector<32x256xf32>
    %166 = arith.select %164, %162, %165 : vector<32x256xi1>, vector<32x256xf32>
    %c256_133 = arith.constant 256 : index
    %c0_134 = arith.constant 0 : index
    %167 = vector.load %arg7[%c256_133, %c0_134] : memref<288x256xf32, #tpu.memory_space<vmem>>, vector<32x256xf32>
    tpu.vector_store %arg7[%c256_133, %c0_134], %166 {strides = array<i32>} : memref<288x256xf32, #tpu.memory_space<vmem>>, vector<32x256xf32>,
    %c0_135 = arith.constant 0 : index
    %c0_136 = arith.constant 0 : index
    %168 = vector.load %arg7[%c0_135, %c0_136] : memref<288x256xf32, #tpu.memory_space<vmem>>, vector<288x256xf32>
    %cst_137 = arith.constant dense<0.000000e+00> : vector<5x256xf32>
    %169 = tpu.matmul %125, %168, %cst_137 {dimension_numbers = #tpu.dot_dimension_numbers<[1], [0], [0], [1], [0, 0, 1, 1], [], []>, precision = #tpu.contract_precision<fp32>} : vector<5x288xf32>, vector<288x256xf32>, vector<5x256xf32> -> vector<5x256xf32>
    %cst_138 = arith.constant 0.000000e+00 : f32
    %170 = vector.broadcast %cst_138 : f32 to vector<5x256xf32>
    %171 = arith.subf %170, %169 : vector<5x256xf32>
    %172 = math.exp %171 : vector<5x256xf32>
    %cst_139 = arith.constant 1.000000e+00 : f32
    %173 = vector.broadcast %cst_139 : f32 to vector<5x256xf32>
    %174 = arith.addf %173, %172 : vector<5x256xf32>
    %cst_140 = arith.constant 1.000000e+00 : f32
    %175 = vector.broadcast %cst_140 : f32 to vector<5x256xf32>
    %176 = arith.divf %175, %174 : vector<5x256xf32>
    %cst_141 = arith.constant dense<0.000000e+00> : vector<256xf32>
    %177 = vector.multi_reduction <add>, %176, %cst_141 [0] : vector<5x256xf32> to vector<256xf32>
    %178 = vector.shape_cast %177 : vector<256xf32> to vector<1x256xf32>
    %cst_142 = arith.constant 9.99999971E-10 : f32
    %179 = vector.broadcast %cst_142 : f32 to vector<1x256xf32>
    %180 = arith.addf %178, %179 : vector<1x256xf32>
    %181 = vector.broadcast %180 : vector<1x256xf32> to vector<5x256xf32>
    %182 = arith.divf %176, %181 : vector<5x256xf32>
    %c0_143 = arith.constant 0 : index
    %c0_144 = arith.constant 0 : index
    %c0_145 = arith.constant 0 : index
    %183 = vector.load %arg5[%c0_143, %c0_144, %c0_145] : memref<1x5x256xf32, #tpu.memory_space<vmem>>, vector<1x5x256xf32>
    %184 = vector.shape_cast %183 : vector<1x5x256xf32> to vector<5x256xf32>
    %185 = vector.shape_cast %182 : vector<5x256xf32> to vector<1x5x256xf32>
    tpu.vector_store %arg5[%c0_143, %c0_144, %c0_145], %185 {strides = array<i32>} : memref<1x5x256xf32, #tpu.memory_space<vmem>>, vector<1x5x256xf32>,
    return
  }
  func.func @transform_0(%arg0: i32) -> (i32, i32, i32) {
    %c0_i32 = arith.constant 0 : i32
    %c0_i32_0 = arith.constant 0 : i32
    %c0_i32_1 = arith.constant 0 : i32
    return %arg0, %c0_i32, %c0_i32_0 : i32, i32, i32
  }
  func.func @transform_1(%arg0: i32) -> (i32, i32) {
    %c0_i32 = arith.constant 0 : i32
    %c0_i32_0 = arith.constant 0 : i32
    %c0_i32_1 = arith.constant 0 : i32
    return %c0_i32, %c0_i32_0 : i32, i32
  }
  func.func @transform_2(%arg0: i32) -> (i32, i32, i32) {
    %c0_i32 = arith.constant 0 : i32
    %c0_i32_0 = arith.constant 0 : i32
    %c0_i32_1 = arith.constant 0 : i32
    %c0_i32_2 = arith.constant 0 : i32
    return %c0_i32, %c0_i32_0, %c0_i32_1 : i32, i32, i32
  }
  func.func @transform_3(%arg0: i32) -> (i32, i32) {
    %c0_i32 = arith.constant 0 : i32
    %c0_i32_0 = arith.constant 0 : i32
    %c0_i32_1 = arith.constant 0 : i32
    return %c0_i32, %c0_i32_0 : i32, i32
  }
  func.func @transform_4(%arg0: i32) -> (i32, i32, i32) {
    %c0_i32 = arith.constant 0 : i32
    %c0_i32_0 = arith.constant 0 : i32
    %c0_i32_1 = arith.constant 0 : i32
    return %arg0, %c0_i32, %c0_i32_0 : i32, i32, i32
  }
}

</mosaic_0001>

<llo_original>
// kernel: tpu_custom_call.1
$region0: #{tpu_custom_call.1}
  #allocation0 [shape = 'u32[]', space=smem, size = 0x4, offset = 0x4, fixed_abs, tag = 'smem constant byte address 0x4 - core index']
  #allocation1 [shape = 'u32[144,128]{1,0:T(1,128)}', space=vmem, size = 0x12000, scoped, tag = 'internal scratch']
  #allocation2 [shape = 'f32[32,512]{1,0:T(8,128)}', space=vmem, size = 0x10000, scoped, tag = 'scratch operand']
  #allocation3 [shape = 'f32[288,256]{1,0:T(8,128)}', space=vmem, size = 0x48000, scoped, tag = 'scratch operand']
  %s0 = inlined_call_operand.hbm [shape: f32[2,8,256], index: 0, kind: input, shape index: {}]
  %s1 = inlined_call_operand.hbm [shape: f32[32,72], index: 1, kind: input, shape index: {}]
  %s2 = inlined_call_operand.hbm [shape: f32[1,32,288], index: 2, kind: input, shape index: {}]
  %s3 = inlined_call_operand.hbm [shape: f32[5,288], index: 3, kind: input, shape index: {}]
  %s4 = inlined_call_operand.vmem [shape: f32[2,5,256], index: 4, kind: output, shape index: {}]
  %s5 = sld [smem:[#allocation0]]
  $region65: #{tpu_custom_call.1} parent=0
    _
  %s7 = ssub.s32 1, %s5
  %s8 = scalar_select 0, %s7, %s5
  $region1: #{tpu_custom_call.1} parent=0
    #allocation4 [shape = 'u8[16384]{0}', space=vmem, size = 0x4000, scoped, tag = 'input window, operand 0']
    #allocation5 [shape = 's32[2]{0}', space=sflag, size = 0x8, scoped, tag = 'scoped memory for tpu_custom_call.1']
    #allocation6 [shape = 'u8[16384]{0}', space=vmem, size = 0x4000, scoped, tag = 'input window, operand 1, single buffered']
    #allocation7 [shape = 's32[1]{0}', space=sflag, size = 0x4, scoped, tag = 'scoped memory for tpu_custom_call.1']
    #allocation8 [shape = 'u8[49152]{0}', space=vmem, size = 0xc000, scoped, tag = 'input window, operand 2, single buffered']
    #allocation9 [shape = 'u8[12288]{0}', space=vmem, size = 0x3000, scoped, tag = 'input window, operand 3, single buffered']
    #allocation10 [shape = 's32[1]{0}', space=sflag, size = 0x4, scoped, tag = 'scoped memory for tpu_custom_call.1']
    %9 = vsyncpa [#allocation5], 0
    %s10 = scalar_lea.sflag [#allocation5], 1
    %11 = vsyncpa %s10, 0
    %12 = vsyncpa [#allocation7], 0
    %13 = vsyncpa [#allocation10], 0
    loop: start=0, step=1, limit=4
    $region2: #{tpu_custom_call.1} parent=1 // loop_pre_header
      _
    $region3: #{tpu_custom_call.1} parent=1 // loop_header
      %s15 = sphi 0, %s19
      %p16 = scmp.ge.s32.totalorder %s15, 4
      %s25 = sphi 0, %s27
      %s28 = sphi 0, %s25
      %s29 = sphi 0, %s28
      %s45 = sphi 0, %s29
      %s49 = sphi 0, %s49
      %s51 = sphi 0, %s49
      %s52 = sphi 0, %s51
      %s66 = sphi 0, %s52
      %s70 = sphi 0, %s70
      %s72 = sphi 0, %s70
      %s73 = sphi 0, %s72
      %s87 = sphi 0, %s73
      %s91 = sphi 0, %s91
      %s93 = sphi 0, %s91
      %s94 = sphi 0, %s93
      %s108 = sphi 0, %s94
      %s114 = sphi 0, %s116
      %s117 = sphi 0, %s114
      %s118 = sphi 0, %s117
      %s134 = sphi 0, %s118
    $region4: #{tpu_custom_call.1} parent=1 // loop_header_branch
      %18 = sbr.rel (%p16) target = $region8
    $region5: #{tpu_custom_call.1} parent=1 // loop_body
      %s20 = ssub.s32 %s15, 1
      %s21 = ssub.s32 %s15, 2
      %s22 = sadd.s32 %s15, 1
      %s23 = ssub.s32 %s15, %s22
      %p24 = scmp.eq.s32.totalorder %s23, 0
      %s26 = sadd.s32 %s25, 1
      %s27 = scalar_select %p24, %s25, %s26
      %p30 = pneg %p24
      %p31 = scmp.eq.s32.totalorder %s15, 1
      %p32 = por %p30, %p31
      %p33 = scmp.ne.s32.totalorder %s25, %s28
      %p34 = scmp.eq.s32.totalorder %s15, 0
      %p35 = por %p33, %p34
      %p36 = scmp.ne.s32.totalorder %s25, %s28
      %p37 = scmp.eq.s32.totalorder %s20, 1
      %p38 = por %p36, %p37
      %p39 = scmp.ne.s32.totalorder %s28, %s29
      %p40 = scmp.eq.s32.totalorder %s20, 0
      %p41 = por %p39, %p40
      %p42 = scmp.ne.s32.totalorder %s28, %s29
      %p43 = scmp.eq.s32.totalorder %s21, 1
      %p44 = por %p42, %p43
      %p46 = scmp.ne.s32.totalorder %s29, %s45
      %p47 = scmp.eq.s32.totalorder %s21, 0
      %p48 = por %p46, %p47
      %s50 = sadd.s32 %s49, 1
      %p53 = scmp.eq.s32.totalorder %s15, 1
      %p54 = scmp.ne.s32.totalorder %s49, %s51
      %p55 = scmp.eq.s32.totalorder %s15, 0
      %p56 = por %p54, %p55
      %p57 = scmp.ne.s32.totalorder %s49, %s51
      %p58 = scmp.eq.s32.totalorder %s20, 1
      %p59 = por %p57, %p58
      %p60 = scmp.ne.s32.totalorder %s51, %s52
      %p61 = scmp.eq.s32.totalorder %s20, 0
      %p62 = por %p60, %p61
      %p63 = scmp.ne.s32.totalorder %s51, %s52
      %p64 = scmp.eq.s32.totalorder %s21, 1
      %p65 = por %p63, %p64
      %p67 = scmp.ne.s32.totalorder %s52, %s66
      %p68 = scmp.eq.s32.totalorder %s21, 0
      %p69 = por %p67, %p68
      %s71 = sadd.s32 %s70, 1
      %p74 = scmp.eq.s32.totalorder %s15, 1
      %p75 = scmp.ne.s32.totalorder %s70, %s72
      %p76 = scmp.eq.s32.totalorder %s15, 0
      %p77 = por %p75, %p76
      %p78 = scmp.ne.s32.totalorder %s70, %s72
      %p79 = scmp.eq.s32.totalorder %s20, 1
      %p80 = por %p78, %p79
      %p81 = scmp.ne.s32.totalorder %s72, %s73
      %p82 = scmp.eq.s32.totalorder %s20, 0
      %p83 = por %p81, %p82
      %p84 = scmp.ne.s32.totalorder %s72, %s73
      %p85 = scmp.eq.s32.totalorder %s21, 1
      %p86 = por %p84, %p85
      %p88 = scmp.ne.s32.totalorder %s73, %s87
      %p89 = scmp.eq.s32.totalorder %s21, 0
      %p90 = por %p88, %p89
      %s92 = sadd.s32 %s91, 1
      %p95 = scmp.eq.s32.totalorder %s15, 1
      %p96 = scmp.ne.s32.totalorder %s91, %s93
      %p97 = scmp.eq.s32.totalorder %s15, 0
      %p98 = por %p96, %p97
      %p99 = scmp.ne.s32.totalorder %s91, %s93
      %p100 = scmp.eq.s32.totalorder %s20, 1
      %p101 = por %p99, %p100
      %p102 = scmp.ne.s32.totalorder %s93, %s94
      %p103 = scmp.eq.s32.totalorder %s20, 0
      %p104 = por %p102, %p103
      %p105 = scmp.ne.s32.totalorder %s93, %s94
      %p106 = scmp.eq.s32.totalorder %s21, 1
      %p107 = por %p105, %p106
      %p109 = scmp.ne.s32.totalorder %s94, %s108
      %p110 = scmp.eq.s32.totalorder %s21, 0
      %p111 = por %p109, %p110
      %s112 = ssub.s32 %s15, %s22
      %p113 = scmp.eq.s32.totalorder %s112, 0
      %s115 = sadd.s32 %s114, 1
      %s116 = scalar_select %p113, %s114, %s115
      %p119 = pneg %p113
      %p120 = scmp.eq.s32.totalorder %s15, 1
      %p121 = por %p119, %p120
      %p122 = scmp.ne.s32.totalorder %s114, %s117
      %p123 = scmp.eq.s32.totalorder %s15, 0
      %p124 = por %p122, %p123
      %p125 = scmp.ne.s32.totalorder %s114, %s117
      %p126 = scmp.eq.s32.totalorder %s20, 1
      %p127 = por %p125, %p126
      %p128 = scmp.ne.s32.totalorder %s117, %s118
      %p129 = scmp.eq.s32.totalorder %s20, 0
      %p130 = por %p128, %p129
      %p131 = scmp.ne.s32.totalorder %s117, %s118
      %p132 = scmp.eq.s32.totalorder %s21, 1
      %p133 = por %p131, %p132
      %p135 = scmp.ne.s32.totalorder %s118, %s134
      %p136 = scmp.eq.s32.totalorder %s21, 0
      %p137 = por %p135, %p136
      %p138 = scmp.le.s32.totalorder 1, %s15
      %p139 = scmp.lt.s32.totalorder %s15, 3
      %p140 = pnand %p138, %p139
      %p141 = pneg %p140
      // Predicated region
      $region9: #{tpu_custom_call.1} parent=5 // pred_check
        _
      $region10: #{tpu_custom_call.1} parent=5 // pred_check_branch
        %143 = sbr.rel (%p140) target = $region12
      $region11: #{tpu_custom_call.1} parent=5 // pred_region
        %s144 = ssub.s32 %s15, 1
        // Predicated region
        $region13: #{tpu_custom_call.1} parent=11 // pred_check
          %p145 = pneg %p62
        $region14: #{tpu_custom_call.1} parent=11 // pred_check_branch
          %147 = sbr.rel (%p145) target = $region16
        $region15: #{tpu_custom_call.1} parent=11 // pred_region
          %s149 = ssub.s32 512, 512
          %150 = vsyncadd [#allocation7], %s149
          %s151 = sshll.u32 [#allocation6], 4
          %s152 = int_to_ptr.vmem [resolvable:$true] %s151
          %157 = dma.hbm_to_vmem [thread:$0]  %s1, 512, %s152, [#allocation7], 128, 128, 8
        $region16: #{tpu_custom_call.1} parent=11 // pred_fallthru
          _
        // Predicated region
        $region17: #{tpu_custom_call.1} parent=11 // pred_check
          %p158 = pneg %p83
        $region18: #{tpu_custom_call.1} parent=11 // pred_check_branch
          %160 = sbr.rel (%p158) target = $region20
        $region19: #{tpu_custom_call.1} parent=11 // pred_region
          %s162 = ssub.s32 1536, 1536
          %163 = vsyncadd [#allocation7], %s162
          %s164 = sshll.u32 [#allocation8], 4
          %s165 = int_to_ptr.vmem [resolvable:$true] %s164
          %170 = dma.hbm_to_vmem [thread:$0]  %s2, 1536, %s165, [#allocation7], 384, 384, 24
        $region20: #{tpu_custom_call.1} parent=11 // pred_fallthru
          _
        // Predicated region
        $region21: #{tpu_custom_call.1} parent=11 // pred_check
          %p171 = pneg %p104
        $region22: #{tpu_custom_call.1} parent=11 // pred_check_branch
          %173 = sbr.rel (%p171) target = $region24
        $region23: #{tpu_custom_call.1} parent=11 // pred_region
          %s175 = ssub.s32 384, 384
          %176 = vsyncadd [#allocation10], %s175
          %s178 = sshll.u32 [#allocation9], 4
          %s179 = int_to_ptr.vmem [resolvable:$true] %s178
          %181 = dma.hbm_to_vmem [thread:$0]  %s3, 384, %s179, [#allocation10]
        $region24: #{tpu_custom_call.1} parent=11 // pred_fallthru
          _
      $region12: #{tpu_custom_call.1} parent=5 // pred_fallthru
        _
      %p182 = scmp.lt.s32.totalorder %s15, 2
      // Predicated region
      $region25: #{tpu_custom_call.1} parent=5 // pred_check
        %p183 = pneg %p182
      $region26: #{tpu_custom_call.1} parent=5 // pred_check_branch
        %185 = sbr.rel (%p183) target = $region28
      $region27: #{tpu_custom_call.1} parent=5 // pred_region
        // Predicated region
        $region29: #{tpu_custom_call.1} parent=27 // pred_check
          %p186 = pneg %p35
        $region30: #{tpu_custom_call.1} parent=27 // pred_check_branch
          %188 = sbr.rel (%p186) target = $region32
        $region31: #{tpu_custom_call.1} parent=27 // pred_region
          %s189 = sand.u32 %s25, 1
          %s190 = scalar_lea.sflag [#allocation5], %s189
          %s191 = sand.u32 %s25, 1
          %s192 = smul.addr %s191, 16
          %s193 = scalar_lea.vmem [#allocation4], %s192
          %s195 = ssub.s32 256, 256
          %196 = vsyncadd %s190, %s195
          %s197 = smul.addr %s15, 2
          %s198 = smul.addr %s197, 128
          %s199 = scalar_lea.hbm %s0, %s198
          %s201 = sshll.u32 %s193, 4
          %s202 = int_to_ptr.vmem [resolvable:$true] %s201
          %204 = dma.hbm_to_vmem [thread:$0]  %s199, 256, %s202, %s190
        $region32: #{tpu_custom_call.1} parent=27 // pred_fallthru
          _
      $region28: #{tpu_custom_call.1} parent=5 // pred_fallthru
        _
      %p205 = scmp.le.s32.totalorder 1, %s15
      %p206 = scmp.lt.s32.totalorder %s15, 3
      %p207 = pnand %p205, %p206
      %p208 = pneg %p207
      // Predicated region
      $region33: #{tpu_custom_call.1} parent=5 // pred_check
        _
      $region34: #{tpu_custom_call.1} parent=5 // pred_check_branch
        %210 = sbr.rel (%p207) target = $region36
      $region35: #{tpu_custom_call.1} parent=5 // pred_region
        %s211 = ssub.s32 %s15, 1
        %s212 = sand.u32 %s28, 1
        %s213 = scalar_lea.sflag [#allocation5], %s212
        %s214 = sand.u32 %s28, 1
        %s215 = smul.addr %s214, 16
        %s216 = scalar_lea.vmem [#allocation4], %s215
        // Predicated region
        $region37: #{tpu_custom_call.1} parent=35 // pred_check
          %p217 = pneg %p41
        $region38: #{tpu_custom_call.1} parent=35 // pred_check_branch
          %219 = sbr.rel (%p217) target = $region40
        $region39: #{tpu_custom_call.1} parent=35 // pred_region
          %220 = dma.done %s213, 256
        $region40: #{tpu_custom_call.1} parent=35 // pred_fallthru
          _
        // Predicated region
        $region41: #{tpu_custom_call.1} parent=35 // pred_check
          %p221 = pneg %p62
        $region42: #{tpu_custom_call.1} parent=35 // pred_check_branch
          %223 = sbr.rel (%p221) target = $region44
        $region43: #{tpu_custom_call.1} parent=35 // pred_region
          %224 = dma.done [#allocation7], 512
        $region44: #{tpu_custom_call.1} parent=35 // pred_fallthru
          _
        // Predicated region
        $region45: #{tpu_custom_call.1} parent=35 // pred_check
          %p225 = pneg %p83
        $region46: #{tpu_custom_call.1} parent=35 // pred_check_branch
          %227 = sbr.rel (%p225) target = $region48
        $region47: #{tpu_custom_call.1} parent=35 // pred_region
          %228 = dma.done [#allocation7], 1536
        $region48: #{tpu_custom_call.1} parent=35 // pred_fallthru
          _
        // Predicated region
        $region49: #{tpu_custom_call.1} parent=35 // pred_check
          %p229 = pneg %p104
        $region50: #{tpu_custom_call.1} parent=35 // pred_check_branch
          %231 = sbr.rel (%p229) target = $region52
        $region51: #{tpu_custom_call.1} parent=35 // pred_region
          %232 = dma.done [#allocation10], 384
        $region52: #{tpu_custom_call.1} parent=35 // pred_fallthru
          _
        %s233 = sand.u32 %s28, 1
        %s234 = scalar_lea.sflag [#allocation5], %s233
        %s235 = sand.u32 %s28, 1
        %s236 = smul.addr %s235, 16
        %s237 = scalar_lea.vmem [#allocation4], %s236
        %p238 = pneg %p41
        %p239 = pneg %p38
        %p240 = pneg %p62
        %p241 = pneg %p59
        %p242 = pneg %p83
        %p243 = pneg %p80
        %p244 = pneg %p104
        %p245 = pneg %p101
        %p246 = pneg %p130
        %p247 = pneg %p127
        %p248 = scmp.lt.s32.totalorder %s20, 1
        %s249 = scalar_select %p248, %s20, 1
        %s250 = smul.addr %s249, 2
        %s251 = smul.addr %s250, 8
        %s252 = scalar_lea.vmem %s4, %s251
        %p253 = scmp.lt.s32.totalorder %s20, 1
        %s254 = scalar_select %p253, %s20, 1
        %s255 = smul.addr %s254, 2
        %s256 = smul.addr %s255, 8
        %s257 = scalar_lea.vmem %s4, %s256
        %258 = vst [vmem:[#allocation2] sm:$0xff] 0.0
        %259 = vst [vmem:[#allocation2 + $0x20] sm:$0xff] 0.0
        %260 = vst [vmem:[#allocation2 + $0x40] sm:$0xff] 0.0
        %261 = vst [vmem:[#allocation2 + $0x60] sm:$0xff] 0.0
        %262 = vst [vmem:[#allocation2 + $0x18] sm:$0xff] 0.0
        %263 = vst [vmem:[#allocation2 + $0x38] sm:$0xff] 0.0
        %264 = vst [vmem:[#allocation2 + $0x58] sm:$0xff] 0.0
        %265 = vst [vmem:[#allocation2 + $0x78] sm:$0xff] 0.0
        %v266 = vlaneseq
        %v267 = vand.u32 %v266, 127
        %v268 = vadd.s32 %v267, 128
        %vm269 = vcmp.lt.s32.totalorder %v267, 0
        %v270 = vsub.s32 0, %v267
        %v271 = vsel %vm269, %v270, %v267
        %v272 = vshrl.u32 %v271, 4
        %v273 = vand.u32 %v271, 15
        %v274 = vsub.s32 0, %v273
        %v275 = vsel %vm269, %v274, %v273
        %vm276 = vcmp.lt.s32.totalorder %v268, 0
        %v277 = vsub.s32 0, %v268
        %v278 = vsel %vm276, %v277, %v268
        %v279 = vshrl.u32 %v278, 4
        %v280 = vand.u32 %v278, 15
        %v281 = vsub.s32 0, %v280
        %v282 = vsel %vm276, %v281, %v280
        %vm283 = vcmp.ne.s32.totalorder %v275, 0
        %vm284 = vcmp.ne.s32.totalorder %v282, 0
        %vm285 = vcmp.lt.s32.totalorder %v275, 0
        %vm286 = vcmp.lt.s32.totalorder %v282, 0
        %vm287 = vmand %vm285, %vm283
        %vm288 = vmand %vm286, %vm284
        %v289 = vadd.s32 %v275, 16
        %v290 = vadd.s32 %v282, 16
        %v291 = vsel %vm287, %v289, %v275
        %v292 = vsel %vm288, %v290, %v282
        %vm293 = vcmp.ge.s32.totalorder %v291, 1
        %vm294 = vcmp.ge.s32.totalorder %v292, 1
        %vm295 = vcmp.le.s32.totalorder %v291, 14
        %vm296 = vcmp.le.s32.totalorder %v292, 14
        %v297 = vld [vmem:[%s216] sm:$0xff]
        %v298 = vld [vmem:[%s216 + $0x8] sm:$0xff]
        %299 = vst [vmem:[#allocation2 + $0x8] sm:$0xff] %v297
        %300 = vst [vmem:[#allocation2 + $0x10] sm:$0xff] %v298
        %v301 = vld [vmem:[#allocation6] sm:$0xff]
        %v302 = vld [vmem:[#allocation6 + $0x8] sm:$0xff]
        %v303 = vld [vmem:[#allocation6 + $0x10] sm:$0xff]
        %v304 = vld [vmem:[#allocation6 + $0x18] sm:$0xff]
        %v305 = vld [vmem:[#allocation2] sm:$0xff]
        %v306 = vld [vmem:[#allocation2 + $0x8] sm:$0xff]
        %v307 = vld [vmem:[#allocation2 + $0x10] sm:$0xff]
        %v308 = vsel %vm293, 1, 0
        %v309 = vsel %vm294, 1, 0
        %vm310 = vcmp.eq.s32.totalorder %v308, 1
        %vm311 = vcmp.eq.s32.totalorder %v309, 1
        %315 = vrot.lane.b32.xlu0 %v305, 17
        %v316 = vpop.permute.xlu0 %315
        %317 = vrot.lane.b32.xlu0 %v306, 17
        %v318 = vpop.permute.xlu0 %317
        %319 = vrot.lane.b32.xlu0 %v307, 17
        %v320 = vpop.permute.xlu0 %319
        %vm321 = vcmask 138240
        %v322 = vsel %vm321, %v316, %v318
        %v323 = vsel %vm321, %v318, %v320
        %v326 = vsel %vm310, %v322, 0.0
        %v327 = vsel %vm311, %v323, 0.0
        %328 = vst [vmem:[#allocation3] sm:$0xff] %v326
        %329 = vst [vmem:[#allocation3 + $0x8] sm:$0xff] %v327
        %v330 = vld [vmem:[#allocation2] sm:$0xff]
        %v331 = vld [vmem:[#allocation2 + $0x8] sm:$0xff]
        %v332 = vld [vmem:[#allocation2 + $0x10] sm:$0xff]
        %336 = vrot.lane.b32.xlu0 %v330, 16
        %v337 = vpop.permute.xlu0 %336
        %338 = vrot.lane.b32.xlu0 %v331, 16
        %v339 = vpop.permute.xlu0 %338
        %340 = vrot.lane.b32.xlu0 %v332, 16
        %v341 = vpop.permute.xlu0 %340
        %vm342 = vcmask 130048
        %v343 = vsel %vm342, %v337, %v339
        %v344 = vsel %vm342, %v339, %v341
        %347 = vst [vmem:[#allocation3 + $0x10] sm:$0xff] %v343
        %348 = vst [vmem:[#allocation3 + $0x18] sm:$0xff] %v344
        %v349 = vld [vmem:[#allocation2] sm:$0xff]
        %v350 = vld [vmem:[#allocation2 + $0x8] sm:$0xff]
        %v351 = vld [vmem:[#allocation2 + $0x10] sm:$0xff]
        %v352 = vsel %vm295, 1, 0
        %v353 = vsel %vm296, 1, 0
        %vm354 = vcmp.eq.s32.totalorder %v352, 1
        %vm355 = vcmp.eq.s32.totalorder %v353, 1
        %359 = vrot.lane.b32.xlu0 %v349, 15
        %v360 = vpop.permute.xlu0 %359
        %361 = vrot.lane.b32.xlu0 %v350, 15
        %v362 = vpop.permute.xlu0 %361
        %363 = vrot.lane.b32.xlu0 %v351, 15
        %v364 = vpop.permute.xlu0 %363
        %vm365 = vcmask 121856
        %v366 = vsel %vm365, %v360, %v362
        %v367 = vsel %vm365, %v362, %v364
        %v370 = vsel %vm354, %v366, 0.0
        %v371 = vsel %vm355, %v367, 0.0
        %372 = vst [vmem:[#allocation3 + $0x20] sm:$0xff] %v370
        %373 = vst [vmem:[#allocation3 + $0x28] sm:$0xff] %v371
        %v374 = vld [vmem:[#allocation2] sm:$0xff]
        %v375 = vld [vmem:[#allocation2 + $0x8] sm:$0xff]
        %v376 = vld [vmem:[#allocation2 + $0x10] sm:$0xff]
        %380 = vrot.lane.b32.xlu0 %v374, 1
        %v381 = vpop.permute.xlu0 %380
        %382 = vrot.lane.b32.xlu0 %v375, 1
        %v383 = vpop.permute.xlu0 %382
        %384 = vrot.lane.b32.xlu0 %v376, 1
        %v385 = vpop.permute.xlu0 %384
        %vm386 = vcmask 7168
        %v387 = vsel %vm386, %v381, %v383
        %v388 = vsel %vm386, %v383, %v385
        %v391 = vsel %vm310, %v387, 0.0
        %v392 = vsel %vm311, %v388, 0.0
        %393 = vst [vmem:[#allocation3 + $0x30] sm:$0xff] %v391
        %394 = vst [vmem:[#allocation3 + $0x38] sm:$0xff] %v392
        %v395 = vld [vmem:[#allocation2 + $0x8] sm:$0xff]
        %v396 = vld [vmem:[#allocation2 + $0x10] sm:$0xff]
        %397 = vst [vmem:[#allocation3 + $0x40] sm:$0xff] %v395
        %398 = vst [vmem:[#allocation3 + $0x48] sm:$0xff] %v396
        %v399 = vld [vmem:[#allocation2 + $0x8] sm:$0xff]
        %v400 = vld [vmem:[#allocation2 + $0x10] sm:$0xff]
        %v401 = vld [vmem:[#allocation2 + $0x18] sm:$0xff]
        %405 = vrot.lane.b32.xlu0 %v399, 127
        %v406 = vpop.permute.xlu0 %405
        %407 = vrot.lane.b32.xlu0 %v400, 127
        %v408 = vpop.permute.xlu0 %407
        %409 = vrot.lane.b32.xlu0 %v401, 127
        %v410 = vpop.permute.xlu0 %409
        %vm411 = vcmask 1039360
        %v412 = vsel %vm411, %v406, %v408
        %v413 = vsel %vm411, %v408, %v410
        %v416 = vsel %vm354, %v412, 0.0
        %v417 = vsel %vm355, %v413, 0.0
        %418 = vst [vmem:[#allocation3 + $0x50] sm:$0xff] %v416
        %419 = vst [vmem:[#allocation3 + $0x58] sm:$0xff] %v417
        %v420 = vld [vmem:[#allocation2 + $0x8] sm:$0xff]
        %v421 = vld [vmem:[#allocation2 + $0x10] sm:$0xff]
        %v422 = vld [vmem:[#allocation2 + $0x18] sm:$0xff]
        %426 = vrot.lane.b32.xlu0 %v420, 113
        %v427 = vpop.permute.xlu0 %426
        %428 = vrot.lane.b32.xlu0 %v421, 113
        %v429 = vpop.permute.xlu0 %428
        %430 = vrot.lane.b32.xlu0 %v422, 113
        %v431 = vpop.permute.xlu0 %430
        %vm432 = vcmask 924672
        %v433 = vsel %vm432, %v427, %v429
        %v434 = vsel %vm432, %v429, %v431
        %v437 = vsel %vm310, %v433, 0.0
        %v438 = vsel %vm311, %v434, 0.0
        %439 = vst [vmem:[#allocation3 + $0x60] sm:$0xff] %v437
        %440 = vst [vmem:[#allocation3 + $0x68] sm:$0xff] %v438
        %v441 = vld [vmem:[#allocation2 + $0x8] sm:$0xff]
        %v442 = vld [vmem:[#allocation2 + $0x10] sm:$0xff]
        %v443 = vld [vmem:[#allocation2 + $0x18] sm:$0xff]
        %447 = vrot.lane.b32.xlu0 %v441, 112
        %v448 = vpop.permute.xlu0 %447
        %449 = vrot.lane.b32.xlu0 %v442, 112
        %v450 = vpop.permute.xlu0 %449
        %451 = vrot.lane.b32.xlu0 %v443, 112
        %v452 = vpop.permute.xlu0 %451
        %vm453 = vcmask 916480
        %v454 = vsel %vm453, %v448, %v450
        %v455 = vsel %vm453, %v450, %v452
        %458 = vst [vmem:[#allocation3 + $0x70] sm:$0xff] %v454
        %459 = vst [vmem:[#allocation3 + $0x78] sm:$0xff] %v455
        %v460 = vld [vmem:[#allocation2 + $0x8] sm:$0xff]
        %v461 = vld [vmem:[#allocation2 + $0x10] sm:$0xff]
        %v462 = vld [vmem:[#allocation2 + $0x18] sm:$0xff]
        %466 = vrot.lane.b32.xlu0 %v460, 111
        %v467 = vpop.permute.xlu0 %466
        %468 = vrot.lane.b32.xlu0 %v461, 111
        %v469 = vpop.permute.xlu0 %468
        %470 = vrot.lane.b32.xlu0 %v462, 111
        %v471 = vpop.permute.xlu0 %470
        %vm472 = vcmask 908288
        %v473 = vsel %vm472, %v467, %v469
        %v474 = vsel %vm472, %v469, %v471
        %v477 = vsel %vm354, %v473, 0.0
        %v478 = vsel %vm355, %v474, 0.0
        %479 = vst [vmem:[#allocation3 + $0x80] sm:$0xff] %v477
        %480 = vst [vmem:[#allocation3 + $0x88] sm:$0xff] %v478
        %v481 = vld [vmem:[#allocation3] sm:$0xff]
        %v482 = vld [vmem:[#allocation3 + $0x8] sm:$0xff]
        %v483 = vld [vmem:[#allocation3 + $0x10] sm:$0xff]
        %v484 = vld [vmem:[#allocation3 + $0x18] sm:$0xff]
        %v485 = vld [vmem:[#allocation3 + $0x20] sm:$0xff]
        %v486 = vld [vmem:[#allocation3 + $0x28] sm:$0xff]
        %v487 = vld [vmem:[#allocation3 + $0x30] sm:$0xff]
        %v488 = vld [vmem:[#allocation3 + $0x38] sm:$0xff]
        %v489 = vld [vmem:[#allocation3 + $0x40] sm:$0xff]
        %v490 = vld [vmem:[#allocation3 + $0x48] sm:$0xff]
        %v491 = vld [vmem:[#allocation3 + $0x50] sm:$0xff]
        %v492 = vld [vmem:[#allocation3 + $0x58] sm:$0xff]
        %v493 = vld [vmem:[#allocation3 + $0x60] sm:$0xff]
        %v494 = vld [vmem:[#allocation3 + $0x68] sm:$0xff]
        %v495 = vld [vmem:[#allocation3 + $0x70] sm:$0xff]
        %v496 = vld [vmem:[#allocation3 + $0x78] sm:$0xff]
        %v497 = vld [vmem:[#allocation3 + $0x80] sm:$0xff]
        %v498 = vld [vmem:[#allocation3 + $0x88] sm:$0xff]
        %vm499 = vcmask 588800
        %v501 = vsel %vm499, %v301, 0
        %v504 = vsel %vm499, %v302, 0
        %v507 = vsel %vm499, %v303, 0
        %v510 = vsel %vm499, %v304, 0
        %512 = vmatprep.subr.mxu0 0.0
        %513 = vmatpush1.msra.mxu0 0.0
        %514 = vmatprep.subr.mxu0 0.0
        %515 = vmatpush1.msra.mxu0 0.0
        %516 = vmatprep.subr.mxu0 0.0
        %517 = vmatpush1.msra.mxu0 0.0
        %518 = vmatprep.subr.mxu0 0.0
        %519 = vmatpush1.msra.mxu0 0.0
        %520 = vmatprep.subr.mxu0 0.0
        %521 = vmatpush1.msra.mxu0 0.0
        %522 = vmatprep.subr.mxu0 0.0
        %523 = vmatpush1.msra.mxu0 0.0
        %524 = vmatprep.subr.mxu0 0.0
        %525 = vmatpush1.msra.mxu0 0.0
        %v526 = vand.u32 %v498, 4294901760
        %527 = vmatprep.subr.mxu0 %v526
        %v528 = vand.u32 %v497, 4294901760
        %529 = vmatpush1.msra.mxu0 %v528
        %v530 = vand.u32 %v496, 4294901760
        %531 = vmatprep.subr.mxu0 %v530
        %v532 = vand.u32 %v495, 4294901760
        %533 = vmatpush1.msra.mxu0 %v532
        %v534 = vand.u32 %v494, 4294901760
        %535 = vmatprep.subr.mxu0 %v534
        %v536 = vand.u32 %v493, 4294901760
        %537 = vmatpush1.msra.mxu0 %v536
        %v538 = vand.u32 %v492, 4294901760
        %539 = vmatprep.subr.mxu0 %v538
        %v540 = vand.u32 %v491, 4294901760
        %541 = vmatpush1.msra.mxu0 %v540
        %v542 = vand.u32 %v490, 4294901760
        %543 = vmatprep.subr.mxu0 %v542
        %v544 = vand.u32 %v489, 4294901760
        %545 = vmatpush1.msra.mxu0 %v544
        %v546 = vand.u32 %v488, 4294901760
        %547 = vmatprep.subr.mxu0 %v546
        %v548 = vand.u32 %v487, 4294901760
        %549 = vmatpush1.msra.mxu0 %v548
        %v550 = vand.u32 %v486, 4294901760
        %551 = vmatprep.subr.mxu0 %v550
        %v552 = vand.u32 %v485, 4294901760
        %553 = vmatpush1.msra.mxu0 %v552
        %v554 = vand.u32 %v484, 4294901760
        %555 = vmatprep.subr.mxu0 %v554
        %v556 = vand.u32 %v483, 4294901760
        %557 = vmatpush1.msra.mxu0 %v556
        %v558 = vand.u32 %v482, 4294901760
        %559 = vmatprep.subr.mxu0 %v558
        %v560 = vand.u32 %v481, 4294901760
        %561 = vmatpush1.msra.mxu0 %v560
        %562 = vmatprep.subr.mxu0 0.0
        %563 = vmatpush2.msra.mxu0 0.0
        %564 = vmatprep.subr.mxu0 0.0
        %565 = vmatpush2.msra.mxu0 0.0
        %566 = vmatprep.subr.mxu0 0.0
        %567 = vmatpush2.msra.mxu0 0.0
        %568 = vmatprep.subr.mxu0 0.0
        %569 = vmatpush2.msra.mxu0 0.0
        %570 = vmatprep.subr.mxu0 0.0
        %571 = vmatpush2.msra.mxu0 0.0
        %572 = vmatprep.subr.mxu0 0.0
        %573 = vmatpush2.msra.mxu0 0.0
        %574 = vmatprep.subr.mxu0 0.0
        %575 = vmatpush2.msra.mxu0 0.0
        %576 = vmatprep.subr.mxu0 0.0
        %577 = vmatpush2.msra.mxu0 0.0
        %578 = vmatprep.subr.mxu0 0.0
        %579 = vmatpush2.msra.mxu0 0.0
        %580 = vmatprep.subr.mxu0 0.0
        %581 = vmatpush2.msra.mxu0 0.0
        %582 = vmatprep.subr.mxu0 0.0
        %583 = vmatpush2.msra.mxu0 0.0
        %584 = vmatprep.subr.mxu0 0.0
        %585 = vmatpush2.msra.mxu0 0.0
        %586 = vmatprep.subr.mxu0 0.0
        %587 = vmatpush2.msra.mxu0 0.0
        %588 = vmatprep.subr.mxu0 0.0
        %589 = vmatpush2.msra.mxu0 0.0
        %590 = vmatprep.subr.mxu0 0.0
        %591 = vmatpush2.msra.mxu0 0.0
        %592 = vmatprep.subr.mxu0 0.0
        %593 = vmatpush2.msra.mxu0 0.0
        %594 = vmatprep.mubr.f32.mxu0 0.0
        %v595 = vand.u32 %v501, 4294901760
        %v596 = vsub.f32 %v501, %v595
        %v597 = vand.u32 %v596, 4294901760
        %v598 = vsub.f32 %v596, %v597
        %v599 = vand.u32 %v598, 4294901760
        %600 = vmatmul.mubr.f32.gmra.mxu0 %v599
        %v601 = vpop.f32.mrf.mxu0
        %v602 = vadd.f32 0.0, %v601
        %v603 = vpop.f32.mrf.mxu0
        %v604 = vadd.f32 0.0, %v603
        %605 = vmatprep.mubr.f32.mxu0 0.0
        %v606 = vand.u32 %v504, 4294901760
        %v607 = vsub.f32 %v504, %v606
        %v608 = vand.u32 %v607, 4294901760
        %v609 = vsub.f32 %v607, %v608
        %v610 = vand.u32 %v609, 4294901760
        %611 = vmatmul.mubr.f32.gmra.mxu0 %v610
        %v612 = vpop.f32.mrf.mxu0
        %v613 = vadd.f32 0.0, %v612
        %v614 = vpop.f32.mrf.mxu0
        %v615 = vadd.f32 0.0, %v614
        %616 = vmatprep.mubr.f32.mxu0 0.0
        %v617 = vand.u32 %v507, 4294901760
        %v618 = vsub.f32 %v507, %v617
        %v619 = vand.u32 %v618, 4294901760
        %v620 = vsub.f32 %v618, %v619
        %v621 = vand.u32 %v620, 4294901760
        %622 = vmatmul.mubr.f32.gmra.mxu0 %v621
        %v623 = vpop.f32.mrf.mxu0
        %v624 = vadd.f32 0.0, %v623
        %v625 = vpop.f32.mrf.mxu0
        %v626 = vadd.f32 0.0, %v625
        %627 = vmatprep.mubr.f32.mxu0 0.0
        %v628 = vand.u32 %v510, 4294901760
        %v629 = vsub.f32 %v510, %v628
        %v630 = vand.u32 %v629, 4294901760
        %v631 = vsub.f32 %v629, %v630
        %v632 = vand.u32 %v631, 4294901760
        %633 = vmatmul.mubr.f32.gmra.mxu0 %v632
        %v634 = vpop.f32.mrf.mxu0
        %v635 = vadd.f32 0.0, %v634
        %v636 = vpop.f32.mrf.mxu0
        %v637 = vadd.f32 0.0, %v636
        %638 = vdwg.mxu0
        %639 = vmatprep.subr.mxu0 0.0
        %640 = vmatpush1.msra.mxu0 0.0
        %641 = vmatprep.subr.mxu0 0.0
        %642 = vmatpush1.msra.mxu0 0.0
        %643 = vmatprep.subr.mxu0 0.0
        %644 = vmatpush1.msra.mxu0 0.0
        %645 = vmatprep.subr.mxu0 0.0
        %646 = vmatpush1.msra.mxu0 0.0
        %647 = vmatprep.subr.mxu0 0.0
        %648 = vmatpush1.msra.mxu0 0.0
        %649 = vmatprep.subr.mxu0 0.0
        %650 = vmatpush1.msra.mxu0 0.0
        %651 = vmatprep.subr.mxu0 0.0
        %652 = vmatpush1.msra.mxu0 0.0
        %v653 = vand.u32 %v498, 4294901760
        %v654 = vsub.f32 %v498, %v653
        %v655 = vand.u32 %v654, 4294901760
        %v656 = vsub.f32 %v654, %v655
        %v657 = vand.u32 %v656, 4294901760
        %658 = vmatprep.subr.mxu0 %v657
        %v659 = vand.u32 %v497, 4294901760
        %v660 = vsub.f32 %v497, %v659
        %v661 = vand.u32 %v660, 4294901760
        %v662 = vsub.f32 %v660, %v661
        %v663 = vand.u32 %v662, 4294901760
        %664 = vmatpush1.msra.mxu0 %v663
        %v665 = vand.u32 %v496, 4294901760
        %v666 = vsub.f32 %v496, %v665
        %v667 = vand.u32 %v666, 4294901760
        %v668 = vsub.f32 %v666, %v667
        %v669 = vand.u32 %v668, 4294901760
        %670 = vmatprep.subr.mxu0 %v669
        %v671 = vand.u32 %v495, 4294901760
        %v672 = vsub.f32 %v495, %v671
        %v673 = vand.u32 %v672, 4294901760
        %v674 = vsub.f32 %v672, %v673
        %v675 = vand.u32 %v674, 4294901760
        %676 = vmatpush1.msra.mxu0 %v675
        %v677 = vand.u32 %v494, 4294901760
        %v678 = vsub.f32 %v494, %v677
        %v679 = vand.u32 %v678, 4294901760
        %v680 = vsub.f32 %v678, %v679
        %v681 = vand.u32 %v680, 4294901760
        %682 = vmatprep.subr.mxu0 %v681
        %v683 = vand.u32 %v493, 4294901760
        %v684 = vsub.f32 %v493, %v683
        %v685 = vand.u32 %v684, 4294901760
        %v686 = vsub.f32 %v684, %v685
        %v687 = vand.u32 %v686, 4294901760
        %688 = vmatpush1.msra.mxu0 %v687
        %v689 = vand.u32 %v492, 4294901760
        %v690 = vsub.f32 %v492, %v689
        %v691 = vand.u32 %v690, 4294901760
        %v692 = vsub.f32 %v690, %v691
        %v693 = vand.u32 %v692, 4294901760
        %694 = vmatprep.subr.mxu0 %v693
        %v695 = vand.u32 %v491, 4294901760
        %v696 = vsub.f32 %v491, %v695
        %v697 = vand.u32 %v696, 4294901760
        %v698 = vsub.f32 %v696, %v697
        %v699 = vand.u32 %v698, 4294901760
        %700 = vmatpush1.msra.mxu0 %v699
        %v701 = vand.u32 %v490, 4294901760
        %v702 = vsub.f32 %v490, %v701
        %v703 = vand.u32 %v702, 4294901760
        %v704 = vsub.f32 %v702, %v703
        %v705 = vand.u32 %v704, 4294901760
        %706 = vmatprep.subr.mxu0 %v705
        %v707 = vand.u32 %v489, 4294901760
        %v708 = vsub.f32 %v489, %v707
        %v709 = vand.u32 %v708, 4294901760
        %v710 = vsub.f32 %v708, %v709
        %v711 = vand.u32 %v710, 4294901760
        %712 = vmatpush1.msra.mxu0 %v711
        %v713 = vand.u32 %v488, 4294901760
        %v714 = vsub.f32 %v488, %v713
        %v715 = vand.u32 %v714, 4294901760
        %v716 = vsub.f32 %v714, %v715
        %v717 = vand.u32 %v716, 4294901760
        %718 = vmatprep.subr.mxu0 %v717
        %v719 = vand.u32 %v487, 4294901760
        %v720 = vsub.f32 %v487, %v719
        %v721 = vand.u32 %v720, 4294901760
        %v722 = vsub.f32 %v720, %v721
        %v723 = vand.u32 %v722, 4294901760
        %724 = vmatpush1.msra.mxu0 %v723
        %v725 = vand.u32 %v486, 4294901760
        %v726 = vsub.f32 %v486, %v725
        %v727 = vand.u32 %v726, 4294901760
        %v728 = vsub.f32 %v726, %v727
        %v729 = vand.u32 %v728, 4294901760
        %730 = vmatprep.subr.mxu0 %v729
        %v731 = vand.u32 %v485, 4294901760
        %v732 = vsub.f32 %v485, %v731
        %v733 = vand.u32 %v732, 4294901760
        %v734 = vsub.f32 %v732, %v733
        %v735 = vand.u32 %v734, 4294901760
        %736 = vmatpush1.msra.mxu0 %v735
        %v737 = vand.u32 %v484, 4294901760
        %v738 = vsub.f32 %v484, %v737
        %v739 = vand.u32 %v738, 4294901760
        %v740 = vsub.f32 %v738, %v739
        %v741 = vand.u32 %v740, 4294901760
        %742 = vmatprep.subr.mxu0 %v741
        %v743 = vand.u32 %v483, 4294901760
        %v744 = vsub.f32 %v483, %v743
        %v745 = vand.u32 %v744, 4294901760
        %v746 = vsub.f32 %v744, %v745
        %v747 = vand.u32 %v746, 4294901760
        %748 = vmatpush1.msra.mxu0 %v747
        %v749 = vand.u32 %v482, 4294901760
        %v750 = vsub.f32 %v482, %v749
        %v751 = vand.u32 %v750, 4294901760
        %v752 = vsub.f32 %v750, %v751
        %v753 = vand.u32 %v752, 4294901760
        %754 = vmatprep.subr.mxu0 %v753
        %v755 = vand.u32 %v481, 4294901760
        %v756 = vsub.f32 %v481, %v755
        %v757 = vand.u32 %v756, 4294901760
        %v758 = vsub.f32 %v756, %v757
        %v759 = vand.u32 %v758, 4294901760
        %760 = vmatpush1.msra.mxu0 %v759
        %761 = vmatprep.subr.mxu0 0.0
        %762 = vmatpush2.msra.mxu0 0.0
        %763 = vmatprep.subr.mxu0 0.0
        %764 = vmatpush2.msra.mxu0 0.0
        %765 = vmatprep.subr.mxu0 0.0
        %766 = vmatpush2.msra.mxu0 0.0
        %767 = vmatprep.subr.mxu0 0.0
        %768 = vmatpush2.msra.mxu0 0.0
        %769 = vmatprep.subr.mxu0 0.0
        %770 = vmatpush2.msra.mxu0 0.0
        %771 = vmatprep.subr.mxu0 0.0
        %772 = vmatpush2.msra.mxu0 0.0
        %773 = vmatprep.subr.mxu0 0.0
        %774 = vmatpush2.msra.mxu0 0.0
        %775 = vmatprep.subr.mxu0 0.0
        %776 = vmatpush2.msra.mxu0 0.0
        %777 = vmatprep.subr.mxu0 0.0
        %778 = vmatpush2.msra.mxu0 0.0
        %779 = vmatprep.subr.mxu0 0.0
        %780 = vmatpush2.msra.mxu0 0.0
        %781 = vmatprep.subr.mxu0 0.0
        %782 = vmatpush2.msra.mxu0 0.0
        %783 = vmatprep.subr.mxu0 0.0
        %784 = vmatpush2.msra.mxu0 0.0
        %785 = vmatprep.subr.mxu0 0.0
        %786 = vmatpush2.msra.mxu0 0.0
        %787 = vmatprep.subr.mxu0 0.0
        %788 = vmatpush2.msra.mxu0 0.0
        %789 = vmatprep.subr.mxu0 0.0
        %790 = vmatpush2.msra.mxu0 0.0
        %791 = vmatprep.subr.mxu0 0.0
        %792 = vmatpush2.msra.mxu0 0.0
        %793 = vmatprep.mubr.f32.mxu0 0.0
        %v794 = vand.u32 %v501, 4294901760
        %795 = vmatmul.mubr.f32.gmra.mxu0 %v794
        %v796 = vpop.f32.mrf.mxu0
        %v797 = vadd.f32 %v602, %v796
        %v798 = vpop.f32.mrf.mxu0
        %v799 = vadd.f32 %v604, %v798
        %800 = vmatprep.mubr.f32.mxu0 0.0
        %v801 = vand.u32 %v504, 4294901760
        %802 = vmatmul.mubr.f32.gmra.mxu0 %v801
        %v803 = vpop.f32.mrf.mxu0
        %v804 = vadd.f32 %v613, %v803
        %v805 = vpop.f32.mrf.mxu0
        %v806 = vadd.f32 %v615, %v805
        %807 = vmatprep.mubr.f32.mxu0 0.0
        %v808 = vand.u32 %v507, 4294901760
        %809 = vmatmul.mubr.f32.gmra.mxu0 %v808
        %v810 = vpop.f32.mrf.mxu0
        %v811 = vadd.f32 %v624, %v810
        %v812 = vpop.f32.mrf.mxu0
        %v813 = vadd.f32 %v626, %v812
        %814 = vmatprep.mubr.f32.mxu0 0.0
        %v815 = vand.u32 %v510, 4294901760
        %816 = vmatmul.mubr.f32.gmra.mxu0 %v815
        %v817 = vpop.f32.mrf.mxu0
        %v818 = vadd.f32 %v635, %v817
        %v819 = vpop.f32.mrf.mxu0
        %v820 = vadd.f32 %v637, %v819
        %821 = vdwg.mxu0
        %822 = vmatprep.subr.mxu0 0.0
        %823 = vmatpush1.msra.mxu0 0.0
        %824 = vmatprep.subr.mxu0 0.0
        %825 = vmatpush1.msra.mxu0 0.0
        %826 = vmatprep.subr.mxu0 0.0
        %827 = vmatpush1.msra.mxu0 0.0
        %828 = vmatprep.subr.mxu0 0.0
        %829 = vmatpush1.msra.mxu0 0.0
        %830 = vmatprep.subr.mxu0 0.0
        %831 = vmatpush1.msra.mxu0 0.0
        %832 = vmatprep.subr.mxu0 0.0
        %833 = vmatpush1.msra.mxu0 0.0
        %834 = vmatprep.subr.mxu0 0.0
        %835 = vmatpush1.msra.mxu0 0.0
        %v836 = vand.u32 %v498, 4294901760
        %v837 = vsub.f32 %v498, %v836
        %838 = vmatprep.subr.mxu0 %v837
        %v839 = vand.u32 %v497, 4294901760
        %v840 = vsub.f32 %v497, %v839
        %841 = vmatpush1.msra.mxu0 %v840
        %v842 = vand.u32 %v496, 4294901760
        %v843 = vsub.f32 %v496, %v842
        %844 = vmatprep.subr.mxu0 %v843
        %v845 = vand.u32 %v495, 4294901760
        %v846 = vsub.f32 %v495, %v845
        %847 = vmatpush1.msra.mxu0 %v846
        %v848 = vand.u32 %v494, 4294901760
        %v849 = vsub.f32 %v494, %v848
        %850 = vmatprep.subr.mxu0 %v849
        %v851 = vand.u32 %v493, 4294901760
        %v852 = vsub.f32 %v493, %v851
        %853 = vmatpush1.msra.mxu0 %v852
        %v854 = vand.u32 %v492, 4294901760
        %v855 = vsub.f32 %v492, %v854
        %856 = vmatprep.subr.mxu0 %v855
        %v857 = vand.u32 %v491, 4294901760
        %v858 = vsub.f32 %v491, %v857
        %859 = vmatpush1.msra.mxu0 %v858
        %v860 = vand.u32 %v490, 4294901760
        %v861 = vsub.f32 %v490, %v860
        %862 = vmatprep.subr.mxu0 %v861
        %v863 = vand.u32 %v489, 4294901760
        %v864 = vsub.f32 %v489, %v863
        %865 = vmatpush1.msra.mxu0 %v864
        %v866 = vand.u32 %v488, 4294901760
        %v867 = vsub.f32 %v488, %v866
        %868 = vmatprep.subr.mxu0 %v867
        %v869 = vand.u32 %v487, 4294901760
        %v870 = vsub.f32 %v487, %v869
        %871 = vmatpush1.msra.mxu0 %v870
        %v872 = vand.u32 %v486, 4294901760
        %v873 = vsub.f32 %v486, %v872
        %874 = vmatprep.subr.mxu0 %v873
        %v875 = vand.u32 %v485, 4294901760
        %v876 = vsub.f32 %v485, %v875
        %877 = vmatpush1.msra.mxu0 %v876
        %v878 = vand.u32 %v484, 4294901760
        %v879 = vsub.f32 %v484, %v878
        %880 = vmatprep.subr.mxu0 %v879
        %v881 = vand.u32 %v483, 4294901760
        %v882 = vsub.f32 %v483, %v881
        %883 = vmatpush1.msra.mxu0 %v882
        %v884 = vand.u32 %v482, 4294901760
        %v885 = vsub.f32 %v482, %v884
        %886 = vmatprep.subr.mxu0 %v885
        %v887 = vand.u32 %v481, 4294901760
        %v888 = vsub.f32 %v481, %v887
        %889 = vmatpush1.msra.mxu0 %v888
        %890 = vmatprep.subr.mxu0 0.0
        %891 = vmatpush2.msra.mxu0 0.0
        %892 = vmatprep.subr.mxu0 0.0
        %893 = vmatpush2.msra.mxu0 0.0
        %894 = vmatprep.subr.mxu0 0.0
        %895 = vmatpush2.msra.mxu0 0.0
        %896 = vmatprep.subr.mxu0 0.0
        %897 = vmatpush2.msra.mxu0 0.0
        %898 = vmatprep.subr.mxu0 0.0
        %899 = vmatpush2.msra.mxu0 0.0
        %900 = vmatprep.subr.mxu0 0.0
        %901 = vmatpush2.msra.mxu0 0.0
        %902 = vmatprep.subr.mxu0 0.0
        %903 = vmatpush2.msra.mxu0 0.0
        %904 = vmatprep.subr.mxu0 0.0
        %905 = vmatpush2.msra.mxu0 0.0
        %906 = vmatprep.subr.mxu0 0.0
        %907 = vmatpush2.msra.mxu0 0.0
        %908 = vmatprep.subr.mxu0 0.0
        %909 = vmatpush2.msra.mxu0 0.0
        %910 = vmatprep.subr.mxu0 0.0
        %911 = vmatpush2.msra.mxu0 0.0
        %912 = vmatprep.subr.mxu0 0.0
        %913 = vmatpush2.msra.mxu0 0.0
        %914 = vmatprep.subr.mxu0 0.0
        %915 = vmatpush2.msra.mxu0 0.0
        %916 = vmatprep.subr.mxu0 0.0
        %917 = vmatpush2.msra.mxu0 0.0
        %918 = vmatprep.subr.mxu0 0.0
        %919 = vmatpush2.msra.mxu0 0.0
        %920 = vmatprep.subr.mxu0 0.0
        %921 = vmatpush2.msra.mxu0 0.0
        %922 = vmatprep.mubr.f32.mxu0 0.0
        %v923 = vand.u32 %v501, 4294901760
        %v924 = vsub.f32 %v501, %v923
        %925 = vmatmul.mubr.f32.gmra.mxu0 %v924
        %v926 = vpop.f32.mrf.mxu0
        %v927 = vadd.f32 %v797, %v926
        %v928 = vpop.f32.mrf.mxu0
        %v929 = vadd.f32 %v799, %v928
        %930 = vmatprep.mubr.f32.mxu0 0.0
        %v931 = vand.u32 %v504, 4294901760
        %v932 = vsub.f32 %v504, %v931
        %933 = vmatmul.mubr.f32.gmra.mxu0 %v932
        %v934 = vpop.f32.mrf.mxu0
        %v935 = vadd.f32 %v804, %v934
        %v936 = vpop.f32.mrf.mxu0
        %v937 = vadd.f32 %v806, %v936
        %938 = vmatprep.mubr.f32.mxu0 0.0
        %v939 = vand.u32 %v507, 4294901760
        %v940 = vsub.f32 %v507, %v939
        %941 = vmatmul.mubr.f32.gmra.mxu0 %v940
        %v942 = vpop.f32.mrf.mxu0
        %v943 = vadd.f32 %v811, %v942
        %v944 = vpop.f32.mrf.mxu0
        %v945 = vadd.f32 %v813, %v944
        %946 = vmatprep.mubr.f32.mxu0 0.0
        %v947 = vand.u32 %v510, 4294901760
        %v948 = vsub.f32 %v510, %v947
        %949 = vmatmul.mubr.f32.gmra.mxu0 %v948
        %v950 = vpop.f32.mrf.mxu0
        %v951 = vadd.f32 %v818, %v950
        %v952 = vpop.f32.mrf.mxu0
        %v953 = vadd.f32 %v820, %v952
        %954 = vdwg.mxu0
        %955 = vmatprep.subr.mxu0 0.0
        %956 = vmatpush1.msra.mxu0 0.0
        %957 = vmatprep.subr.mxu0 0.0
        %958 = vmatpush1.msra.mxu0 0.0
        %959 = vmatprep.subr.mxu0 0.0
        %960 = vmatpush1.msra.mxu0 0.0
        %961 = vmatprep.subr.mxu0 0.0
        %962 = vmatpush1.msra.mxu0 0.0
        %963 = vmatprep.subr.mxu0 0.0
        %964 = vmatpush1.msra.mxu0 0.0
        %965 = vmatprep.subr.mxu0 0.0
        %966 = vmatpush1.msra.mxu0 0.0
        %967 = vmatprep.subr.mxu0 0.0
        %968 = vmatpush1.msra.mxu0 0.0
        %v969 = vand.u32 %v498, 4294901760
        %970 = vmatprep.subr.mxu0 %v969
        %v971 = vand.u32 %v497, 4294901760
        %972 = vmatpush1.msra.mxu0 %v971
        %v973 = vand.u32 %v496, 4294901760
        %974 = vmatprep.subr.mxu0 %v973
        %v975 = vand.u32 %v495, 4294901760
        %976 = vmatpush1.msra.mxu0 %v975
        %v977 = vand.u32 %v494, 4294901760
        %978 = vmatprep.subr.mxu0 %v977
        %v979 = vand.u32 %v493, 4294901760
        %980 = vmatpush1.msra.mxu0 %v979
        %v981 = vand.u32 %v492, 4294901760
        %982 = vmatprep.subr.mxu0 %v981
        %v983 = vand.u32 %v491, 4294901760
        %984 = vmatpush1.msra.mxu0 %v983
        %v985 = vand.u32 %v490, 4294901760
        %986 = vmatprep.subr.mxu0 %v985
        %v987 = vand.u32 %v489, 4294901760
        %988 = vmatpush1.msra.mxu0 %v987
        %v989 = vand.u32 %v488, 4294901760
        %990 = vmatprep.subr.mxu0 %v989
        %v991 = vand.u32 %v487, 4294901760
        %992 = vmatpush1.msra.mxu0 %v991
        %v993 = vand.u32 %v486, 4294901760
        %994 = vmatprep.subr.mxu0 %v993
        %v995 = vand.u32 %v485, 4294901760
        %996 = vmatpush1.msra.mxu0 %v995
        %v997 = vand.u32 %v484, 4294901760
        %998 = vmatprep.subr.mxu0 %v997
        %v999 = vand.u32 %v483, 4294901760
        %1000 = vmatpush1.msra.mxu0 %v999
        %v1001 = vand.u32 %v482, 4294901760
        %1002 = vmatprep.subr.mxu0 %v1001
        %v1003 = vand.u32 %v481, 4294901760
        %1004 = vmatpush1.msra.mxu0 %v1003
        %1005 = vmatprep.subr.mxu0 0.0
        %1006 = vmatpush2.msra.mxu0 0.0
        %1007 = vmatprep.subr.mxu0 0.0
        %1008 = vmatpush2.msra.mxu0 0.0
        %1009 = vmatprep.subr.mxu0 0.0
        %1010 = vmatpush2.msra.mxu0 0.0
        %1011 = vmatprep.subr.mxu0 0.0
        %1012 = vmatpush2.msra.mxu0 0.0
        %1013 = vmatprep.subr.mxu0 0.0
        %1014 = vmatpush2.msra.mxu0 0.0
        %1015 = vmatprep.subr.mxu0 0.0
        %1016 = vmatpush2.msra.mxu0 0.0
        %1017 = vmatprep.subr.mxu0 0.0
        %1018 = vmatpush2.msra.mxu0 0.0
        %1019 = vmatprep.subr.mxu0 0.0
        %1020 = vmatpush2.msra.mxu0 0.0
        %1021 = vmatprep.subr.mxu0 0.0
        %1022 = vmatpush2.msra.mxu0 0.0
        %1023 = vmatprep.subr.mxu0 0.0
        %1024 = vmatpush2.msra.mxu0 0.0
        %1025 = vmatprep.subr.mxu0 0.0
        %1026 = vmatpush2.msra.mxu0 0.0
        %1027 = vmatprep.subr.mxu0 0.0
        %1028 = vmatpush2.msra.mxu0 0.0
        %1029 = vmatprep.subr.mxu0 0.0
        %1030 = vmatpush2.msra.mxu0 0.0
        %1031 = vmatprep.subr.mxu0 0.0
        %1032 = vmatpush2.msra.mxu0 0.0
        %1033 = vmatprep.subr.mxu0 0.0
        %1034 = vmatpush2.msra.mxu0 0.0
        %1035 = vmatprep.subr.mxu0 0.0
        %1036 = vmatpush2.msra.mxu0 0.0
        %1037 = vmatprep.mubr.f32.mxu0 0.0
        %v1038 = vand.u32 %v501, 4294901760
        %v1039 = vsub.f32 %v501, %v1038
        %v1040 = vand.u32 %v1039, 4294901760
        %1041 = vmatmul.mubr.f32.gmra.mxu0 %v1040
        %v1042 = vpop.f32.mrf.mxu0
        %v1043 = vadd.f32 %v927, %v1042
        %v1044 = vpop.f32.mrf.mxu0
        %v1045 = vadd.f32 %v929, %v1044
        %1046 = vmatprep.mubr.f32.mxu0 0.0
        %v1047 = vand.u32 %v504, 4294901760
        %v1048 = vsub.f32 %v504, %v1047
        %v1049 = vand.u32 %v1048, 4294901760
        %1050 = vmatmul.mubr.f32.gmra.mxu0 %v1049
        %v1051 = vpop.f32.mrf.mxu0
        %v1052 = vadd.f32 %v935, %v1051
        %v1053 = vpop.f32.mrf.mxu0
        %v1054 = vadd.f32 %v937, %v1053
        %1055 = vmatprep.mubr.f32.mxu0 0.0
        %v1056 = vand.u32 %v507, 4294901760
        %v1057 = vsub.f32 %v507, %v1056
        %v1058 = vand.u32 %v1057, 4294901760
        %1059 = vmatmul.mubr.f32.gmra.mxu0 %v1058
        %v1060 = vpop.f32.mrf.mxu0
        %v1061 = vadd.f32 %v943, %v1060
        %v1062 = vpop.f32.mrf.mxu0
        %v1063 = vadd.f32 %v945, %v1062
        %1064 = vmatprep.mubr.f32.mxu0 0.0
        %v1065 = vand.u32 %v510, 4294901760
        %v1066 = vsub.f32 %v510, %v1065
        %v1067 = vand.u32 %v1066, 4294901760
        %1068 = vmatmul.mubr.f32.gmra.mxu0 %v1067
        %v1069 = vpop.f32.mrf.mxu0
        %v1070 = vadd.f32 %v951, %v1069
        %v1071 = vpop.f32.mrf.mxu0
        %v1072 = vadd.f32 %v953, %v1071
        %1073 = vdwg.mxu0
        %1074 = vmatprep.subr.mxu0 0.0
        %1075 = vmatpush1.msra.mxu0 0.0
        %1076 = vmatprep.subr.mxu0 0.0
        %1077 = vmatpush1.msra.mxu0 0.0
        %1078 = vmatprep.subr.mxu0 0.0
        %1079 = vmatpush1.msra.mxu0 0.0
        %1080 = vmatprep.subr.mxu0 0.0
        %1081 = vmatpush1.msra.mxu0 0.0
        %1082 = vmatprep.subr.mxu0 0.0
        %1083 = vmatpush1.msra.mxu0 0.0
        %1084 = vmatprep.subr.mxu0 0.0
        %1085 = vmatpush1.msra.mxu0 0.0
        %1086 = vmatprep.subr.mxu0 0.0
        %1087 = vmatpush1.msra.mxu0 0.0
        %v1088 = vand.u32 %v498, 4294901760
        %v1089 = vsub.f32 %v498, %v1088
        %v1090 = vand.u32 %v1089, 4294901760
        %1091 = vmatprep.subr.mxu0 %v1090
        %v1092 = vand.u32 %v497, 4294901760
        %v1093 = vsub.f32 %v497, %v1092
        %v1094 = vand.u32 %v1093, 4294901760
        %1095 = vmatpush1.msra.mxu0 %v1094
        %v1096 = vand.u32 %v496, 4294901760
        %v1097 = vsub.f32 %v496, %v1096
        %v1098 = vand.u32 %v1097, 4294901760
        %1099 = vmatprep.subr.mxu0 %v1098
        %v1100 = vand.u32 %v495, 4294901760
        %v1101 = vsub.f32 %v495, %v1100
        %v1102 = vand.u32 %v1101, 4294901760
        %1103 = vmatpush1.msra.mxu0 %v1102
        %v1104 = vand.u32 %v494, 4294901760
        %v1105 = vsub.f32 %v494, %v1104
        %v1106 = vand.u32 %v1105, 4294901760
        %1107 = vmatprep.subr.mxu0 %v1106
        %v1108 = vand.u32 %v493, 4294901760
        %v1109 = vsub.f32 %v493, %v1108
        %v1110 = vand.u32 %v1109, 4294901760
        %1111 = vmatpush1.msra.mxu0 %v1110
        %v1112 = vand.u32 %v492, 4294901760
        %v1113 = vsub.f32 %v492, %v1112
        %v1114 = vand.u32 %v1113, 4294901760
        %1115 = vmatprep.subr.mxu0 %v1114
        %v1116 = vand.u32 %v491, 4294901760
        %v1117 = vsub.f32 %v491, %v1116
        %v1118 = vand.u32 %v1117, 4294901760
        %1119 = vmatpush1.msra.mxu0 %v1118
        %v1120 = vand.u32 %v490, 4294901760
        %v1121 = vsub.f32 %v490, %v1120
        %v1122 = vand.u32 %v1121, 4294901760
        %1123 = vmatprep.subr.mxu0 %v1122
        %v1124 = vand.u32 %v489, 4294901760
        %v1125 = vsub.f32 %v489, %v1124
        %v1126 = vand.u32 %v1125, 4294901760
        %1127 = vmatpush1.msra.mxu0 %v1126
        %v1128 = vand.u32 %v488, 4294901760
        %v1129 = vsub.f32 %v488, %v1128
        %v1130 = vand.u32 %v1129, 4294901760
        %1131 = vmatprep.subr.mxu0 %v1130
        %v1132 = vand.u32 %v487, 4294901760
        %v1133 = vsub.f32 %v487, %v1132
        %v1134 = vand.u32 %v1133, 4294901760
        %1135 = vmatpush1.msra.mxu0 %v1134
        %v1136 = vand.u32 %v486, 4294901760
        %v1137 = vsub.f32 %v486, %v1136
        %v1138 = vand.u32 %v1137, 4294901760
        %1139 = vmatprep.subr.mxu0 %v1138
        %v1140 = vand.u32 %v485, 4294901760
        %v1141 = vsub.f32 %v485, %v1140
        %v1142 = vand.u32 %v1141, 4294901760
        %1143 = vmatpush1.msra.mxu0 %v1142
        %v1144 = vand.u32 %v484, 4294901760
        %v1145 = vsub.f32 %v484, %v1144
        %v1146 = vand.u32 %v1145, 4294901760
        %1147 = vmatprep.subr.mxu0 %v1146
        %v1148 = vand.u32 %v483, 4294901760
        %v1149 = vsub.f32 %v483, %v1148
        %v1150 = vand.u32 %v1149, 4294901760
        %1151 = vmatpush1.msra.mxu0 %v1150
        %v1152 = vand.u32 %v482, 4294901760
        %v1153 = vsub.f32 %v482, %v1152
        %v1154 = vand.u32 %v1153, 4294901760
        %1155 = vmatprep.subr.mxu0 %v1154
        %v1156 = vand.u32 %v481, 4294901760
        %v1157 = vsub.f32 %v481, %v1156
        %v1158 = vand.u32 %v1157, 4294901760
        %1159 = vmatpush1.msra.mxu0 %v1158
        %1160 = vmatprep.subr.mxu0 0.0
        %1161 = vmatpush2.msra.mxu0 0.0
        %1162 = vmatprep.subr.mxu0 0.0
        %1163 = vmatpush2.msra.mxu0 0.0
        %1164 = vmatprep.subr.mxu0 0.0
        %1165 = vmatpush2.msra.mxu0 0.0
        %1166 = vmatprep.subr.mxu0 0.0
        %1167 = vmatpush2.msra.mxu0 0.0
        %1168 = vmatprep.subr.mxu0 0.0
        %1169 = vmatpush2.msra.mxu0 0.0
        %1170 = vmatprep.subr.mxu0 0.0
        %1171 = vmatpush2.msra.mxu0 0.0
        %1172 = vmatprep.subr.mxu0 0.0
        %1173 = vmatpush2.msra.mxu0 0.0
        %1174 = vmatprep.subr.mxu0 0.0
        %1175 = vmatpush2.msra.mxu0 0.0
        %1176 = vmatprep.subr.mxu0 0.0
        %1177 = vmatpush2.msra.mxu0 0.0
        %1178 = vmatprep.subr.mxu0 0.0
        %1179 = vmatpush2.msra.mxu0 0.0
        %1180 = vmatprep.subr.mxu0 0.0
        %1181 = vmatpush2.msra.mxu0 0.0
        %1182 = vmatprep.subr.mxu0 0.0
        %1183 = vmatpush2.msra.mxu0 0.0
        %1184 = vmatprep.subr.mxu0 0.0
        %1185 = vmatpush2.msra.mxu0 0.0
        %1186 = vmatprep.subr.mxu0 0.0
        %1187 = vmatpush2.msra.mxu0 0.0
        %1188 = vmatprep.subr.mxu0 0.0
        %1189 = vmatpush2.msra.mxu0 0.0
        %1190 = vmatprep.subr.mxu0 0.0
        %1191 = vmatpush2.msra.mxu0 0.0
        %1192 = vmatprep.mubr.f32.mxu0 0.0
        %v1193 = vand.u32 %v501, 4294901760
        %1194 = vmatmul.mubr.f32.gmra.mxu0 %v1193
        %v1195 = vpop.f32.mrf.mxu0
        %v1196 = vadd.f32 %v1043, %v1195
        %v1197 = vpop.f32.mrf.mxu0
        %v1198 = vadd.f32 %v1045, %v1197
        %1199 = vmatprep.mubr.f32.mxu0 0.0
        %v1200 = vand.u32 %v504, 4294901760
        %1201 = vmatmul.mubr.f32.gmra.mxu0 %v1200
        %v1202 = vpop.f32.mrf.mxu0
        %v1203 = vadd.f32 %v1052, %v1202
        %v1204 = vpop.f32.mrf.mxu0
        %v1205 = vadd.f32 %v1054, %v1204
        %1206 = vmatprep.mubr.f32.mxu0 0.0
        %v1207 = vand.u32 %v507, 4294901760
        %1208 = vmatmul.mubr.f32.gmra.mxu0 %v1207
        %v1209 = vpop.f32.mrf.mxu0
        %v1210 = vadd.f32 %v1061, %v1209
        %v1211 = vpop.f32.mrf.mxu0
        %v1212 = vadd.f32 %v1063, %v1211
        %1213 = vmatprep.mubr.f32.mxu0 0.0
        %v1214 = vand.u32 %v510, 4294901760
        %1215 = vmatmul.mubr.f32.gmra.mxu0 %v1214
        %v1216 = vpop.f32.mrf.mxu0
        %v1217 = vadd.f32 %v1070, %v1216
        %v1218 = vpop.f32.mrf.mxu0
        %v1219 = vadd.f32 %v1072, %v1218
        %1220 = vdwg.mxu0
        %1221 = vmatprep.subr.mxu0 0.0
        %1222 = vmatpush1.msra.mxu0 0.0
        %1223 = vmatprep.subr.mxu0 0.0
        %1224 = vmatpush1.msra.mxu0 0.0
        %1225 = vmatprep.subr.mxu0 0.0
        %1226 = vmatpush1.msra.mxu0 0.0
        %1227 = vmatprep.subr.mxu0 0.0
        %1228 = vmatpush1.msra.mxu0 0.0
        %1229 = vmatprep.subr.mxu0 0.0
        %1230 = vmatpush1.msra.mxu0 0.0
        %1231 = vmatprep.subr.mxu0 0.0
        %1232 = vmatpush1.msra.mxu0 0.0
        %1233 = vmatprep.subr.mxu0 0.0
        %1234 = vmatpush1.msra.mxu0 0.0
        %v1235 = vand.u32 %v498, 4294901760
        %1236 = vmatprep.subr.mxu0 %v1235
        %v1237 = vand.u32 %v497, 4294901760
        %1238 = vmatpush1.msra.mxu0 %v1237
        %v1239 = vand.u32 %v496, 4294901760
        %1240 = vmatprep.subr.mxu0 %v1239
        %v1241 = vand.u32 %v495, 4294901760
        %1242 = vmatpush1.msra.mxu0 %v1241
        %v1243 = vand.u32 %v494, 4294901760
        %1244 = vmatprep.subr.mxu0 %v1243
        %v1245 = vand.u32 %v493, 4294901760
        %1246 = vmatpush1.msra.mxu0 %v1245
        %v1247 = vand.u32 %v492, 4294901760
        %1248 = vmatprep.subr.mxu0 %v1247
        %v1249 = vand.u32 %v491, 4294901760
        %1250 = vmatpush1.msra.mxu0 %v1249
        %v1251 = vand.u32 %v490, 4294901760
        %1252 = vmatprep.subr.mxu0 %v1251
        %v1253 = vand.u32 %v489, 4294901760
        %1254 = vmatpush1.msra.mxu0 %v1253
        %v1255 = vand.u32 %v488, 4294901760
        %1256 = vmatprep.subr.mxu0 %v1255
        %v1257 = vand.u32 %v487, 4294901760
        %1258 = vmatpush1.msra.mxu0 %v1257
        %v1259 = vand.u32 %v486, 4294901760
        %1260 = vmatprep.subr.mxu0 %v1259
        %v1261 = vand.u32 %v485, 4294901760
        %1262 = vmatpush1.msra.mxu0 %v1261
        %v1263 = vand.u32 %v484, 4294901760
        %1264 = vmatprep.subr.mxu0 %v1263
        %v1265 = vand.u32 %v483, 4294901760
        %1266 = vmatpush1.msra.mxu0 %v1265
        %v1267 = vand.u32 %v482, 4294901760
        %1268 = vmatprep.subr.mxu0 %v1267
        %v1269 = vand.u32 %v481, 4294901760
        %1270 = vmatpush1.msra.mxu0 %v1269
        %1271 = vmatprep.subr.mxu0 0.0
        %1272 = vmatpush2.msra.mxu0 0.0
        %1273 = vmatprep.subr.mxu0 0.0
        %1274 = vmatpush2.msra.mxu0 0.0
        %1275 = vmatprep.subr.mxu0 0.0
        %1276 = vmatpush2.msra.mxu0 0.0
        %1277 = vmatprep.subr.mxu0 0.0
        %1278 = vmatpush2.msra.mxu0 0.0
        %1279 = vmatprep.subr.mxu0 0.0
        %1280 = vmatpush2.msra.mxu0 0.0
        %1281 = vmatprep.subr.mxu0 0.0
        %1282 = vmatpush2.msra.mxu0 0.0
        %1283 = vmatprep.subr.mxu0 0.0
        %1284 = vmatpush2.msra.mxu0 0.0
        %1285 = vmatprep.subr.mxu0 0.0
        %1286 = vmatpush2.msra.mxu0 0.0
        %1287 = vmatprep.subr.mxu0 0.0
        %1288 = vmatpush2.msra.mxu0 0.0
        %1289 = vmatprep.subr.mxu0 0.0
        %1290 = vmatpush2.msra.mxu0 0.0
        %1291 = vmatprep.subr.mxu0 0.0
        %1292 = vmatpush2.msra.mxu0 0.0
        %1293 = vmatprep.subr.mxu0 0.0
        %1294 = vmatpush2.msra.mxu0 0.0
        %1295 = vmatprep.subr.mxu0 0.0
        %1296 = vmatpush2.msra.mxu0 0.0
        %1297 = vmatprep.subr.mxu0 0.0
        %1298 = vmatpush2.msra.mxu0 0.0
        %1299 = vmatprep.subr.mxu0 0.0
        %1300 = vmatpush2.msra.mxu0 0.0
        %1301 = vmatprep.subr.mxu0 0.0
        %1302 = vmatpush2.msra.mxu0 0.0
        %1303 = vmatprep.mubr.f32.mxu0 0.0
        %v1304 = vand.u32 %v501, 4294901760
        %1305 = vmatmul.mubr.f32.gmra.mxu0 %v1304
        %v1306 = vpop.f32.mrf.mxu0
        %v1307 = vadd.f32 %v1196, %v1306
        %v1308 = vpop.f32.mrf.mxu0
        %v1309 = vadd.f32 %v1198, %v1308
        %1310 = vmatprep.mubr.f32.mxu0 0.0
        %v1311 = vand.u32 %v504, 4294901760
        %1312 = vmatmul.mubr.f32.gmra.mxu0 %v1311
        %v1313 = vpop.f32.mrf.mxu0
        %v1314 = vadd.f32 %v1203, %v1313
        %v1315 = vpop.f32.mrf.mxu0
        %v1316 = vadd.f32 %v1205, %v1315
        %1317 = vmatprep.mubr.f32.mxu0 0.0
        %v1318 = vand.u32 %v507, 4294901760
        %1319 = vmatmul.mubr.f32.gmra.mxu0 %v1318
        %v1320 = vpop.f32.mrf.mxu0
        %v1321 = vadd.f32 %v1210, %v1320
        %v1322 = vpop.f32.mrf.mxu0
        %v1323 = vadd.f32 %v1212, %v1322
        %1324 = vmatprep.mubr.f32.mxu0 0.0
        %v1325 = vand.u32 %v510, 4294901760
        %1326 = vmatmul.mubr.f32.gmra.mxu0 %v1325
        %v1327 = vpop.f32.mrf.mxu0
        %v1328 = vadd.f32 %v1217, %v1327
        %v1329 = vpop.f32.mrf.mxu0
        %v1330 = vadd.f32 %v1219, %v1329
        %1331 = vdwg.mxu0
        %v1332 = vmax.f32 %v1307, 0.0
        %v1333 = vmax.f32 %v1309, 0.0
        %v1334 = vmax.f32 %v1314, 0.0
        %v1335 = vmax.f32 %v1316, 0.0
        %v1336 = vmax.f32 %v1321, 0.0
        %v1337 = vmax.f32 %v1323, 0.0
        %v1338 = vmax.f32 %v1328, 0.0
        %v1339 = vmax.f32 %v1330, 0.0
        %1340 = vst [vmem:[#allocation2 + $0x8] sm:$0xff] %v1332
        %1341 = vst [vmem:[#allocation2 + $0x10] sm:$0xff] %v1333
        %1342 = vst [vmem:[#allocation2 + $0x28] sm:$0xff] %v1334
        %1343 = vst [vmem:[#allocation2 + $0x30] sm:$0xff] %v1335
        %1344 = vst [vmem:[#allocation2 + $0x48] sm:$0xff] %v1336
        %1345 = vst [vmem:[#allocation2 + $0x50] sm:$0xff] %v1337
        %1346 = vst [vmem:[#allocation2 + $0x68] sm:$0xff] %v1338
        %1347 = vst [vmem:[#allocation2 + $0x70] sm:$0xff] %v1339
        %v1348 = vld [vmem:[#allocation8] sm:$0xff]
        %v1349 = vld [vmem:[#allocation8 + $0x8] sm:$0xff]
        %v1350 = vld [vmem:[#allocation8 + $0x10] sm:$0xff]
        %v1351 = vld [vmem:[#allocation8 + $0x18] sm:$0xff]
        %v1352 = vld [vmem:[#allocation8 + $0x20] sm:$0xff]
        %v1353 = vld [vmem:[#allocation8 + $0x28] sm:$0xff]
        %v1354 = vld [vmem:[#allocation8 + $0x30] sm:$0xff]
        %v1355 = vld [vmem:[#allocation8 + $0x38] sm:$0xff]
        %v1356 = vld [vmem:[#allocation8 + $0x40] sm:$0xff]
        %v1357 = vld [vmem:[#allocation8 + $0x48] sm:$0xff]
        %v1358 = vld [vmem:[#allocation8 + $0x50] sm:$0xff]
        %v1359 = vld [vmem:[#allocation8 + $0x58] sm:$0xff]
        %v1360 = vld [vmem:[#allocation2] sm:$0xff]
        %v1361 = vld [vmem:[#allocation2 + $0x8] sm:$0xff]
        %v1362 = vld [vmem:[#allocation2 + $0x10] sm:$0xff]
        %v1363 = vld [vmem:[#allocation2 + $0x20] sm:$0xff]
        %v1364 = vld [vmem:[#allocation2 + $0x28] sm:$0xff]
        %v1365 = vld [vmem:[#allocation2 + $0x30] sm:$0xff]
        %v1366 = vld [vmem:[#allocation2 + $0x40] sm:$0xff]
        %v1367 = vld [vmem:[#allocation2 + $0x48] sm:$0xff]
        %v1368 = vld [vmem:[#allocation2 + $0x50] sm:$0xff]
        %v1369 = vld [vmem:[#allocation2 + $0x60] sm:$0xff]
        %v1370 = vld [vmem:[#allocation2 + $0x68] sm:$0xff]
        %v1371 = vld [vmem:[#allocation2 + $0x70] sm:$0xff]
        %1384 = vrot.lane.b32.xlu0 %v1360, 17
        %v1385 = vpop.permute.xlu0 %1384
        %1386 = vrot.lane.b32.xlu0 %v1361, 17
        %v1387 = vpop.permute.xlu0 %1386
        %1388 = vrot.lane.b32.xlu0 %v1362, 17
        %v1389 = vpop.permute.xlu0 %1388
        %1390 = vrot.lane.b32.xlu0 %v1363, 17
        %v1391 = vpop.permute.xlu0 %1390
        %1392 = vrot.lane.b32.xlu0 %v1364, 17
        %v1393 = vpop.permute.xlu0 %1392
        %1394 = vrot.lane.b32.xlu0 %v1365, 17
        %v1395 = vpop.permute.xlu0 %1394
        %1396 = vrot.lane.b32.xlu0 %v1366, 17
        %v1397 = vpop.permute.xlu0 %1396
        %1398 = vrot.lane.b32.xlu0 %v1367, 17
        %v1399 = vpop.permute.xlu0 %1398
        %1400 = vrot.lane.b32.xlu0 %v1368, 17
        %v1401 = vpop.permute.xlu0 %1400
        %1402 = vrot.lane.b32.xlu0 %v1369, 17
        %v1403 = vpop.permute.xlu0 %1402
        %1404 = vrot.lane.b32.xlu0 %v1370, 17
        %v1405 = vpop.permute.xlu0 %1404
        %1406 = vrot.lane.b32.xlu0 %v1371, 17
        %v1407 = vpop.permute.xlu0 %1406
        %v1408 = vsel %vm321, %v1385, %v1387
        %v1409 = vsel %vm321, %v1387, %v1389
        %v1410 = vsel %vm321, %v1391, %v1393
        %v1411 = vsel %vm321, %v1393, %v1395
        %v1412 = vsel %vm321, %v1397, %v1399
        %v1413 = vsel %vm321, %v1399, %v1401
        %v1414 = vsel %vm321, %v1403, %v1405
        %v1415 = vsel %vm321, %v1405, %v1407
        %v1424 = vsel %vm310, %v1408, 0.0
        %v1425 = vsel %vm311, %v1409, 0.0
        %v1426 = vsel %vm310, %v1410, 0.0
        %v1427 = vsel %vm311, %v1411, 0.0
        %v1428 = vsel %vm310, %v1412, 0.0
        %v1429 = vsel %vm311, %v1413, 0.0
        %v1430 = vsel %vm310, %v1414, 0.0
        %v1431 = vsel %vm311, %v1415, 0.0
        %1432 = vst [vmem:[#allocation3] sm:$0xff] %v1424
        %1433 = vst [vmem:[#allocation3 + $0x8] sm:$0xff] %v1425
        %1434 = vst [vmem:[#allocation3 + $0x10] sm:$0xff] %v1426
        %1435 = vst [vmem:[#allocation3 + $0x18] sm:$0xff] %v1427
        %1436 = vst [vmem:[#allocation3 + $0x20] sm:$0xff] %v1428
        %1437 = vst [vmem:[#allocation3 + $0x28] sm:$0xff] %v1429
        %1438 = vst [vmem:[#allocation3 + $0x30] sm:$0xff] %v1430
        %1439 = vst [vmem:[#allocation3 + $0x38] sm:$0xff] %v1431
        %v1440 = vld [vmem:[#allocation2] sm:$0xff]
        %v1441 = vld [vmem:[#allocation2 + $0x8] sm:$0xff]
        %v1442 = vld [vmem:[#allocation2 + $0x10] sm:$0xff]
        %v1443 = vld [vmem:[#allocation2 + $0x20] sm:$0xff]
        %v1444 = vld [vmem:[#allocation2 + $0x28] sm:$0xff]
        %v1445 = vld [vmem:[#allocation2 + $0x30] sm:$0xff]
        %v1446 = vld [vmem:[#allocation2 + $0x40] sm:$0xff]
        %v1447 = vld [vmem:[#allocation2 + $0x48] sm:$0xff]
        %v1448 = vld [vmem:[#allocation2 + $0x50] sm:$0xff]
        %v1449 = vld [vmem:[#allocation2 + $0x60] sm:$0xff]
        %v1450 = vld [vmem:[#allocation2 + $0x68] sm:$0xff]
        %v1451 = vld [vmem:[#allocation2 + $0x70] sm:$0xff]
        %1464 = vrot.lane.b32.xlu0 %v1440, 16
        %v1465 = vpop.permute.xlu0 %1464
        %1466 = vrot.lane.b32.xlu0 %v1441, 16
        %v1467 = vpop.permute.xlu0 %1466
        %1468 = vrot.lane.b32.xlu0 %v1442, 16
        %v1469 = vpop.permute.xlu0 %1468
        %1470 = vrot.lane.b32.xlu0 %v1443, 16
        %v1471 = vpop.permute.xlu0 %1470
        %1472 = vrot.lane.b32.xlu0 %v1444, 16
        %v1473 = vpop.permute.xlu0 %1472
        %1474 = vrot.lane.b32.xlu0 %v1445, 16
        %v1475 = vpop.permute.xlu0 %1474
        %1476 = vrot.lane.b32.xlu0 %v1446, 16
        %v1477 = vpop.permute.xlu0 %1476
        %1478 = vrot.lane.b32.xlu0 %v1447, 16
        %v1479 = vpop.permute.xlu0 %1478
        %1480 = vrot.lane.b32.xlu0 %v1448, 16
        %v1481 = vpop.permute.xlu0 %1480
        %1482 = vrot.lane.b32.xlu0 %v1449, 16
        %v1483 = vpop.permute.xlu0 %1482
        %1484 = vrot.lane.b32.xlu0 %v1450, 16
        %v1485 = vpop.permute.xlu0 %1484
        %1486 = vrot.lane.b32.xlu0 %v1451, 16
        %v1487 = vpop.permute.xlu0 %1486
        %v1488 = vsel %vm342, %v1465, %v1467
        %v1489 = vsel %vm342, %v1467, %v1469
        %v1490 = vsel %vm342, %v1471, %v1473
        %v1491 = vsel %vm342, %v1473, %v1475
        %v1492 = vsel %vm342, %v1477, %v1479
        %v1493 = vsel %vm342, %v1479, %v1481
        %v1494 = vsel %vm342, %v1483, %v1485
        %v1495 = vsel %vm342, %v1485, %v1487
        %1504 = vst [vmem:[#allocation3 + $0x40] sm:$0xff] %v1488
        %1505 = vst [vmem:[#allocation3 + $0x48] sm:$0xff] %v1489
        %1506 = vst [vmem:[#allocation3 + $0x50] sm:$0xff] %v1490
        %1507 = vst [vmem:[#allocation3 + $0x58] sm:$0xff] %v1491
        %1508 = vst [vmem:[#allocation3 + $0x60] sm:$0xff] %v1492
        %1509 = vst [vmem:[#allocation3 + $0x68] sm:$0xff] %v1493
        %1510 = vst [vmem:[#allocation3 + $0x70] sm:$0xff] %v1494
        %1511 = vst [vmem:[#allocation3 + $0x78] sm:$0xff] %v1495
        %v1512 = vld [vmem:[#allocation2] sm:$0xff]
        %v1513 = vld [vmem:[#allocation2 + $0x8] sm:$0xff]
        %v1514 = vld [vmem:[#allocation2 + $0x10] sm:$0xff]
        %v1515 = vld [vmem:[#allocation2 + $0x20] sm:$0xff]
        %v1516 = vld [vmem:[#allocation2 + $0x28] sm:$0xff]
        %v1517 = vld [vmem:[#allocation2 + $0x30] sm:$0xff]
        %v1518 = vld [vmem:[#allocation2 + $0x40] sm:$0xff]
        %v1519 = vld [vmem:[#allocation2 + $0x48] sm:$0xff]
        %v1520 = vld [vmem:[#allocation2 + $0x50] sm:$0xff]
        %v1521 = vld [vmem:[#allocation2 + $0x60] sm:$0xff]
        %v1522 = vld [vmem:[#allocation2 + $0x68] sm:$0xff]
        %v1523 = vld [vmem:[#allocation2 + $0x70] sm:$0xff]
        %1536 = vrot.lane.b32.xlu0 %v1512, 15
        %v1537 = vpop.permute.xlu0 %1536
        %1538 = vrot.lane.b32.xlu0 %v1513, 15
        %v1539 = vpop.permute.xlu0 %1538
        %1540 = vrot.lane.b32.xlu0 %v1514, 15
        %v1541 = vpop.permute.xlu0 %1540
        %1542 = vrot.lane.b32.xlu0 %v1515, 15
        %v1543 = vpop.permute.xlu0 %1542
        %1544 = vrot.lane.b32.xlu0 %v1516, 15
        %v1545 = vpop.permute.xlu0 %1544
        %1546 = vrot.lane.b32.xlu0 %v1517, 15
        %v1547 = vpop.permute.xlu0 %1546
        %1548 = vrot.lane.b32.xlu0 %v1518, 15
        %v1549 = vpop.permute.xlu0 %1548
        %1550 = vrot.lane.b32.xlu0 %v1519, 15
        %v1551 = vpop.permute.xlu0 %1550
        %1552 = vrot.lane.b32.xlu0 %v1520, 15
        %v1553 = vpop.permute.xlu0 %1552
        %1554 = vrot.lane.b32.xlu0 %v1521, 15
        %v1555 = vpop.permute.xlu0 %1554
        %1556 = vrot.lane.b32.xlu0 %v1522, 15
        %v1557 = vpop.permute.xlu0 %1556
        %1558 = vrot.lane.b32.xlu0 %v1523, 15
        %v1559 = vpop.permute.xlu0 %1558
        %v1560 = vsel %vm365, %v1537, %v1539
        %v1561 = vsel %vm365, %v1539, %v1541
        %v1562 = vsel %vm365, %v1543, %v1545
        %v1563 = vsel %vm365, %v1545, %v1547
        %v1564 = vsel %vm365, %v1549, %v1551
        %v1565 = vsel %vm365, %v1551, %v1553
        %v1566 = vsel %vm365, %v1555, %v1557
        %v1567 = vsel %vm365, %v1557, %v1559
        %v1576 = vsel %vm354, %v1560, 0.0
        %v1577 = vsel %vm355, %v1561, 0.0
        %v1578 = vsel %vm354, %v1562, 0.0
        %v1579 = vsel %vm355, %v1563, 0.0
        %v1580 = vsel %vm354, %v1564, 0.0
        %v1581 = vsel %vm355, %v1565, 0.0
        %v1582 = vsel %vm354, %v1566, 0.0
        %v1583 = vsel %vm355, %v1567, 0.0
        %1584 = vst [vmem:[#allocation3 + $0x80] sm:$0xff] %v1576
        %1585 = vst [vmem:[#allocation3 + $0x88] sm:$0xff] %v1577
        %1586 = vst [vmem:[#allocation3 + $0x90] sm:$0xff] %v1578
        %1587 = vst [vmem:[#allocation3 + $0x98] sm:$0xff] %v1579
        %1588 = vst [vmem:[#allocation3 + $0xa0] sm:$0xff] %v1580
        %1589 = vst [vmem:[#allocation3 + $0xa8] sm:$0xff] %v1581
        %1590 = vst [vmem:[#allocation3 + $0xb0] sm:$0xff] %v1582
        %1591 = vst [vmem:[#allocation3 + $0xb8] sm:$0xff] %v1583
        %v1592 = vld [vmem:[#allocation2] sm:$0xff]
        %v1593 = vld [vmem:[#allocation2 + $0x8] sm:$0xff]
        %v1594 = vld [vmem:[#allocation2 + $0x10] sm:$0xff]
        %v1595 = vld [vmem:[#allocation2 + $0x20] sm:$0xff]
        %v1596 = vld [vmem:[#allocation2 + $0x28] sm:$0xff]
        %v1597 = vld [vmem:[#allocation2 + $0x30] sm:$0xff]
        %v1598 = vld [vmem:[#allocation2 + $0x40] sm:$0xff]
        %v1599 = vld [vmem:[#allocation2 + $0x48] sm:$0xff]
        %v1600 = vld [vmem:[#allocation2 + $0x50] sm:$0xff]
        %v1601 = vld [vmem:[#allocation2 + $0x60] sm:$0xff]
        %v1602 = vld [vmem:[#allocation2 + $0x68] sm:$0xff]
        %v1603 = vld [vmem:[#allocation2 + $0x70] sm:$0xff]
        %1616 = vrot.lane.b32.xlu0 %v1592, 1
        %v1617 = vpop.permute.xlu0 %1616
        %1618 = vrot.lane.b32.xlu0 %v1593, 1
        %v1619 = vpop.permute.xlu0 %1618
        %1620 = vrot.lane.b32.xlu0 %v1594, 1
        %v1621 = vpop.permute.xlu0 %1620
        %1622 = vrot.lane.b32.xlu0 %v1595, 1
        %v1623 = vpop.permute.xlu0 %1622
        %1624 = vrot.lane.b32.xlu0 %v1596, 1
        %v1625 = vpop.permute.xlu0 %1624
        %1626 = vrot.lane.b32.xlu0 %v1597, 1
        %v1627 = vpop.permute.xlu0 %1626
        %1628 = vrot.lane.b32.xlu0 %v1598, 1
        %v1629 = vpop.permute.xlu0 %1628
        %1630 = vrot.lane.b32.xlu0 %v1599, 1
        %v1631 = vpop.permute.xlu0 %1630
        %1632 = vrot.lane.b32.xlu0 %v1600, 1
        %v1633 = vpop.permute.xlu0 %1632
        %1634 = vrot.lane.b32.xlu0 %v1601, 1
        %v1635 = vpop.permute.xlu0 %1634
        %1636 = vrot.lane.b32.xlu0 %v1602, 1
        %v1637 = vpop.permute.xlu0 %1636
        %1638 = vrot.lane.b32.xlu0 %v1603, 1
        %v1639 = vpop.permute.xlu0 %1638
        %v1640 = vsel %vm386, %v1617, %v1619
        %v1641 = vsel %vm386, %v1619, %v1621
        %v1642 = vsel %vm386, %v1623, %v1625
        %v1643 = vsel %vm386, %v1625, %v1627
        %v1644 = vsel %vm386, %v1629, %v1631
        %v1645 = vsel %vm386, %v1631, %v1633
        %v1646 = vsel %vm386, %v1635, %v1637
        %v1647 = vsel %vm386, %v1637, %v1639
        %v1656 = vsel %vm310, %v1640, 0.0
        %v1657 = vsel %vm311, %v1641, 0.0
        %v1658 = vsel %vm310, %v1642, 0.0
        %v1659 = vsel %vm311, %v1643, 0.0
        %v1660 = vsel %vm310, %v1644, 0.0
        %v1661 = vsel %vm311, %v1645, 0.0
        %v1662 = vsel %vm310, %v1646, 0.0
        %v1663 = vsel %vm311, %v1647, 0.0
        %1664 = vst [vmem:[#allocation3 + $0xc0] sm:$0xff] %v1656
        %1665 = vst [vmem:[#allocation3 + $0xc8] sm:$0xff] %v1657
        %1666 = vst [vmem:[#allocation3 + $0xd0] sm:$0xff] %v1658
        %1667 = vst [vmem:[#allocation3 + $0xd8] sm:$0xff] %v1659
        %1668 = vst [vmem:[#allocation3 + $0xe0] sm:$0xff] %v1660
        %1669 = vst [vmem:[#allocation3 + $0xe8] sm:$0xff] %v1661
        %1670 = vst [vmem:[#allocation3 + $0xf0] sm:$0xff] %v1662
        %1671 = vst [vmem:[#allocation3 + $0xf8] sm:$0xff] %v1663
        %v1672 = vld [vmem:[#allocation2 + $0x8] sm:$0xff]
        %v1673 = vld [vmem:[#allocation2 + $0x10] sm:$0xff]
        %v1674 = vld [vmem:[#allocation2 + $0x28] sm:$0xff]
        %v1675 = vld [vmem:[#allocation2 + $0x30] sm:$0xff]
        %v1676 = vld [vmem:[#allocation2 + $0x48] sm:$0xff]
        %v1677 = vld [vmem:[#allocation2 + $0x50] sm:$0xff]
        %v1678 = vld [vmem:[#allocation2 + $0x68] sm:$0xff]
        %v1679 = vld [vmem:[#allocation2 + $0x70] sm:$0xff]
        %1680 = vst [vmem:[#allocation3 + $0x100] sm:$0xff] %v1672
        %1681 = vst [vmem:[#allocation3 + $0x108] sm:$0xff] %v1673
        %1682 = vst [vmem:[#allocation3 + $0x110] sm:$0xff] %v1674
        %1683 = vst [vmem:[#allocation3 + $0x118] sm:$0xff] %v1675
        %1684 = vst [vmem:[#allocation3 + $0x120] sm:$0xff] %v1676
        %1685 = vst [vmem:[#allocation3 + $0x128] sm:$0xff] %v1677
        %1686 = vst [vmem:[#allocation3 + $0x130] sm:$0xff] %v1678
        %1687 = vst [vmem:[#allocation3 + $0x138] sm:$0xff] %v1679
        %v1688 = vld [vmem:[#allocation2 + $0x8] sm:$0xff]
        %v1689 = vld [vmem:[#allocation2 + $0x10] sm:$0xff]
        %v1690 = vld [vmem:[#allocation2 + $0x18] sm:$0xff]
        %v1691 = vld [vmem:[#allocation2 + $0x28] sm:$0xff]
        %v1692 = vld [vmem:[#allocation2 + $0x30] sm:$0xff]
        %v1693 = vld [vmem:[#allocation2 + $0x38] sm:$0xff]
        %v1694 = vld [vmem:[#allocation2 + $0x48] sm:$0xff]
        %v1695 = vld [vmem:[#allocation2 + $0x50] sm:$0xff]
        %v1696 = vld [vmem:[#allocation2 + $0x58] sm:$0xff]
        %v1697 = vld [vmem:[#allocation2 + $0x68] sm:$0xff]
        %v1698 = vld [vmem:[#allocation2 + $0x70] sm:$0xff]
        %v1699 = vld [vmem:[#allocation2 + $0x78] sm:$0xff]
        %1712 = vrot.lane.b32.xlu0 %v1688, 127
        %v1713 = vpop.permute.xlu0 %1712
        %1714 = vrot.lane.b32.xlu0 %v1689, 127
        %v1715 = vpop.permute.xlu0 %1714
        %1716 = vrot.lane.b32.xlu0 %v1690, 127
        %v1717 = vpop.permute.xlu0 %1716
        %1718 = vrot.lane.b32.xlu0 %v1691, 127
        %v1719 = vpop.permute.xlu0 %1718
        %1720 = vrot.lane.b32.xlu0 %v1692, 127
        %v1721 = vpop.permute.xlu0 %1720
        %1722 = vrot.lane.b32.xlu0 %v1693, 127
        %v1723 = vpop.permute.xlu0 %1722
        %1724 = vrot.lane.b32.xlu0 %v1694, 127
        %v1725 = vpop.permute.xlu0 %1724
        %1726 = vrot.lane.b32.xlu0 %v1695, 127
        %v1727 = vpop.permute.xlu0 %1726
        %1728 = vrot.lane.b32.xlu0 %v1696, 127
        %v1729 = vpop.permute.xlu0 %1728
        %1730 = vrot.lane.b32.xlu0 %v1697, 127
        %v1731 = vpop.permute.xlu0 %1730
        %1732 = vrot.lane.b32.xlu0 %v1698, 127
        %v1733 = vpop.permute.xlu0 %1732
        %1734 = vrot.lane.b32.xlu0 %v1699, 127
        %v1735 = vpop.permute.xlu0 %1734
        %v1736 = vsel %vm411, %v1713, %v1715
        %v1737 = vsel %vm411, %v1715, %v1717
        %v1738 = vsel %vm411, %v1719, %v1721
        %v1739 = vsel %vm411, %v1721, %v1723
        %v1740 = vsel %vm411, %v1725, %v1727
        %v1741 = vsel %vm411, %v1727, %v1729
        %v1742 = vsel %vm411, %v1731, %v1733
        %v1743 = vsel %vm411, %v1733, %v1735
        %v1752 = vsel %vm354, %v1736, 0.0
        %v1753 = vsel %vm355, %v1737, 0.0
        %v1754 = vsel %vm354, %v1738, 0.0
        %v1755 = vsel %vm355, %v1739, 0.0
        %v1756 = vsel %vm354, %v1740, 0.0
        %v1757 = vsel %vm355, %v1741, 0.0
        %v1758 = vsel %vm354, %v1742, 0.0
        %v1759 = vsel %vm355, %v1743, 0.0
        %1760 = vst [vmem:[#allocation3 + $0x140] sm:$0xff] %v1752
        %1761 = vst [vmem:[#allocation3 + $0x148] sm:$0xff] %v1753
        %1762 = vst [vmem:[#allocation3 + $0x150] sm:$0xff] %v1754
        %1763 = vst [vmem:[#allocation3 + $0x158] sm:$0xff] %v1755
        %1764 = vst [vmem:[#allocation3 + $0x160] sm:$0xff] %v1756
        %1765 = vst [vmem:[#allocation3 + $0x168] sm:$0xff] %v1757
        %1766 = vst [vmem:[#allocation3 + $0x170] sm:$0xff] %v1758
        %1767 = vst [vmem:[#allocation3 + $0x178] sm:$0xff] %v1759
        %v1768 = vld [vmem:[#allocation2 + $0x8] sm:$0xff]
        %v1769 = vld [vmem:[#allocation2 + $0x10] sm:$0xff]
        %v1770 = vld [vmem:[#allocation2 + $0x18] sm:$0xff]
        %v1771 = vld [vmem:[#allocation2 + $0x28] sm:$0xff]
        %v1772 = vld [vmem:[#allocation2 + $0x30] sm:$0xff]
        %v1773 = vld [vmem:[#allocation2 + $0x38] sm:$0xff]
        %v1774 = vld [vmem:[#allocation2 + $0x48] sm:$0xff]
        %v1775 = vld [vmem:[#allocation2 + $0x50] sm:$0xff]
        %v1776 = vld [vmem:[#allocation2 + $0x58] sm:$0xff]
        %v1777 = vld [vmem:[#allocation2 + $0x68] sm:$0xff]
        %v1778 = vld [vmem:[#allocation2 + $0x70] sm:$0xff]
        %v1779 = vld [vmem:[#allocation2 + $0x78] sm:$0xff]
        %1792 = vrot.lane.b32.xlu0 %v1768, 113
        %v1793 = vpop.permute.xlu0 %1792
        %1794 = vrot.lane.b32.xlu0 %v1769, 113
        %v1795 = vpop.permute.xlu0 %1794
        %1796 = vrot.lane.b32.xlu0 %v1770, 113
        %v1797 = vpop.permute.xlu0 %1796
        %1798 = vrot.lane.b32.xlu0 %v1771, 113
        %v1799 = vpop.permute.xlu0 %1798
        %1800 = vrot.lane.b32.xlu0 %v1772, 113
        %v1801 = vpop.permute.xlu0 %1800
        %1802 = vrot.lane.b32.xlu0 %v1773, 113
        %v1803 = vpop.permute.xlu0 %1802
        %1804 = vrot.lane.b32.xlu0 %v1774, 113
        %v1805 = vpop.permute.xlu0 %1804
        %1806 = vrot.lane.b32.xlu0 %v1775, 113
        %v1807 = vpop.permute.xlu0 %1806
        %1808 = vrot.lane.b32.xlu0 %v1776, 113
        %v1809 = vpop.permute.xlu0 %1808
        %1810 = vrot.lane.b32.xlu0 %v1777, 113
        %v1811 = vpop.permute.xlu0 %1810
        %1812 = vrot.lane.b32.xlu0 %v1778, 113
        %v1813 = vpop.permute.xlu0 %1812
        %1814 = vrot.lane.b32.xlu0 %v1779, 113
        %v1815 = vpop.permute.xlu0 %1814
        %v1816 = vsel %vm432, %v1793, %v1795
        %v1817 = vsel %vm432, %v1795, %v1797
        %v1818 = vsel %vm432, %v1799, %v1801
        %v1819 = vsel %vm432, %v1801, %v1803
        %v1820 = vsel %vm432, %v1805, %v1807
        %v1821 = vsel %vm432, %v1807, %v1809
        %v1822 = vsel %vm432, %v1811, %v1813
        %v1823 = vsel %vm432, %v1813, %v1815
        %v1832 = vsel %vm310, %v1816, 0.0
        %v1833 = vsel %vm311, %v1817, 0.0
        %v1834 = vsel %vm310, %v1818, 0.0
        %v1835 = vsel %vm311, %v1819, 0.0
        %v1836 = vsel %vm310, %v1820, 0.0
        %v1837 = vsel %vm311, %v1821, 0.0
        %v1838 = vsel %vm310, %v1822, 0.0
        %v1839 = vsel %vm311, %v1823, 0.0
        %1840 = vst [vmem:[#allocation3 + $0x180] sm:$0xff] %v1832
        %1841 = vst [vmem:[#allocation3 + $0x188] sm:$0xff] %v1833
        %1842 = vst [vmem:[#allocation3 + $0x190] sm:$0xff] %v1834
        %1843 = vst [vmem:[#allocation3 + $0x198] sm:$0xff] %v1835
        %1844 = vst [vmem:[#allocation3 + $0x1a0] sm:$0xff] %v1836
        %1845 = vst [vmem:[#allocation3 + $0x1a8] sm:$0xff] %v1837
        %1846 = vst [vmem:[#allocation3 + $0x1b0] sm:$0xff] %v1838
        %1847 = vst [vmem:[#allocation3 + $0x1b8] sm:$0xff] %v1839
        %v1848 = vld [vmem:[#allocation2 + $0x8] sm:$0xff]
        %v1849 = vld [vmem:[#allocation2 + $0x10] sm:$0xff]
        %v1850 = vld [vmem:[#allocation2 + $0x18] sm:$0xff]
        %v1851 = vld [vmem:[#allocation2 + $0x28] sm:$0xff]
        %v1852 = vld [vmem:[#allocation2 + $0x30] sm:$0xff]
        %v1853 = vld [vmem:[#allocation2 + $0x38] sm:$0xff]
        %v1854 = vld [vmem:[#allocation2 + $0x48] sm:$0xff]
        %v1855 = vld [vmem:[#allocation2 + $0x50] sm:$0xff]
        %v1856 = vld [vmem:[#allocation2 + $0x58] sm:$0xff]
        %v1857 = vld [vmem:[#allocation2 + $0x68] sm:$0xff]
        %v1858 = vld [vmem:[#allocation2 + $0x70] sm:$0xff]
        %v1859 = vld [vmem:[#allocation2 + $0x78] sm:$0xff]
        %1872 = vrot.lane.b32.xlu0 %v1848, 112
        %v1873 = vpop.permute.xlu0 %1872
        %1874 = vrot.lane.b32.xlu0 %v1849, 112
        %v1875 = vpop.permute.xlu0 %1874
        %1876 = vrot.lane.b32.xlu0 %v1850, 112
        %v1877 = vpop.permute.xlu0 %1876
        %1878 = vrot.lane.b32.xlu0 %v1851, 112
        %v1879 = vpop.permute.xlu0 %1878
        %1880 = vrot.lane.b32.xlu0 %v1852, 112
        %v1881 = vpop.permute.xlu0 %1880
        %1882 = vrot.lane.b32.xlu0 %v1853, 112
        %v1883 = vpop.permute.xlu0 %1882
        %1884 = vrot.lane.b32.xlu0 %v1854, 112
        %v1885 = vpop.permute.xlu0 %1884
        %1886 = vrot.lane.b32.xlu0 %v1855, 112
        %v1887 = vpop.permute.xlu0 %1886
        %1888 = vrot.lane.b32.xlu0 %v1856, 112
        %v1889 = vpop.permute.xlu0 %1888
        %1890 = vrot.lane.b32.xlu0 %v1857, 112
        %v1891 = vpop.permute.xlu0 %1890
        %1892 = vrot.lane.b32.xlu0 %v1858, 112
        %v1893 = vpop.permute.xlu0 %1892
        %1894 = vrot.lane.b32.xlu0 %v1859, 112
        %v1895 = vpop.permute.xlu0 %1894
        %v1896 = vsel %vm453, %v1873, %v1875
        %v1897 = vsel %vm453, %v1875, %v1877
        %v1898 = vsel %vm453, %v1879, %v1881
        %v1899 = vsel %vm453, %v1881, %v1883
        %v1900 = vsel %vm453, %v1885, %v1887
        %v1901 = vsel %vm453, %v1887, %v1889
        %v1902 = vsel %vm453, %v1891, %v1893
        %v1903 = vsel %vm453, %v1893, %v1895
        %1912 = vst [vmem:[#allocation3 + $0x1c0] sm:$0xff] %v1896
        %1913 = vst [vmem:[#allocation3 + $0x1c8] sm:$0xff] %v1897
        %1914 = vst [vmem:[#allocation3 + $0x1d0] sm:$0xff] %v1898
        %1915 = vst [vmem:[#allocation3 + $0x1d8] sm:$0xff] %v1899
        %1916 = vst [vmem:[#allocation3 + $0x1e0] sm:$0xff] %v1900
        %1917 = vst [vmem:[#allocation3 + $0x1e8] sm:$0xff] %v1901
        %1918 = vst [vmem:[#allocation3 + $0x1f0] sm:$0xff] %v1902
        %1919 = vst [vmem:[#allocation3 + $0x1f8] sm:$0xff] %v1903
        %v1920 = vld [vmem:[#allocation2 + $0x8] sm:$0xff]
        %v1921 = vld [vmem:[#allocation2 + $0x10] sm:$0xff]
        %v1922 = vld [vmem:[#allocation2 + $0x18] sm:$0xff]
        %v1923 = vld [vmem:[#allocation2 + $0x28] sm:$0xff]
        %v1924 = vld [vmem:[#allocation2 + $0x30] sm:$0xff]
        %v1925 = vld [vmem:[#allocation2 + $0x38] sm:$0xff]
        %v1926 = vld [vmem:[#allocation2 + $0x48] sm:$0xff]
        %v1927 = vld [vmem:[#allocation2 + $0x50] sm:$0xff]
        %v1928 = vld [vmem:[#allocation2 + $0x58] sm:$0xff]
        %v1929 = vld [vmem:[#allocation2 + $0x68] sm:$0xff]
        %v1930 = vld [vmem:[#allocation2 + $0x70] sm:$0xff]
        %v1931 = vld [vmem:[#allocation2 + $0x78] sm:$0xff]
        %1944 = vrot.lane.b32.xlu0 %v1920, 111
        %v1945 = vpop.permute.xlu0 %1944
        %1946 = vrot.lane.b32.xlu0 %v1921, 111
        %v1947 = vpop.permute.xlu0 %1946
        %1948 = vrot.lane.b32.xlu0 %v1922, 111
        %v1949 = vpop.permute.xlu0 %1948
        %1950 = vrot.lane.b32.xlu0 %v1923, 111
        %v1951 = vpop.permute.xlu0 %1950
        %1952 = vrot.lane.b32.xlu0 %v1924, 111
        %v1953 = vpop.permute.xlu0 %1952
        %1954 = vrot.lane.b32.xlu0 %v1925, 111
        %v1955 = vpop.permute.xlu0 %1954
        %1956 = vrot.lane.b32.xlu0 %v1926, 111
        %v1957 = vpop.permute.xlu0 %1956
        %1958 = vrot.lane.b32.xlu0 %v1927, 111
        %v1959 = vpop.permute.xlu0 %1958
        %1960 = vrot.lane.b32.xlu0 %v1928, 111
        %v1961 = vpop.permute.xlu0 %1960
        %1962 = vrot.lane.b32.xlu0 %v1929, 111
        %v1963 = vpop.permute.xlu0 %1962
        %1964 = vrot.lane.b32.xlu0 %v1930, 111
        %v1965 = vpop.permute.xlu0 %1964
        %1966 = vrot.lane.b32.xlu0 %v1931, 111
        %v1967 = vpop.permute.xlu0 %1966
        %v1968 = vsel %vm472, %v1945, %v1947
        %v1969 = vsel %vm472, %v1947, %v1949
        %v1970 = vsel %vm472, %v1951, %v1953
        %v1971 = vsel %vm472, %v1953, %v1955
        %v1972 = vsel %vm472, %v1957, %v1959
        %v1973 = vsel %vm472, %v1959, %v1961
        %v1974 = vsel %vm472, %v1963, %v1965
        %v1975 = vsel %vm472, %v1965, %v1967
        %v1984 = vsel %vm354, %v1968, 0.0
        %v1985 = vsel %vm355, %v1969, 0.0
        %v1986 = vsel %vm354, %v1970, 0.0
        %v1987 = vsel %vm355, %v1971, 0.0
        %v1988 = vsel %vm354, %v1972, 0.0
        %v1989 = vsel %vm355, %v1973, 0.0
        %v1990 = vsel %vm354, %v1974, 0.0
        %v1991 = vsel %vm355, %v1975, 0.0
        %1992 = vst [vmem:[#allocation3 + $0x200] sm:$0xff] %v1984
        %1993 = vst [vmem:[#allocation3 + $0x208] sm:$0xff] %v1985
        %1994 = vst [vmem:[#allocation3 + $0x210] sm:$0xff] %v1986
        %1995 = vst [vmem:[#allocation3 + $0x218] sm:$0xff] %v1987
        %1996 = vst [vmem:[#allocation3 + $0x220] sm:$0xff] %v1988
        %1997 = vst [vmem:[#allocation3 + $0x228] sm:$0xff] %v1989
        %1998 = vst [vmem:[#allocation3 + $0x230] sm:$0xff] %v1990
        %1999 = vst [vmem:[#allocation3 + $0x238] sm:$0xff] %v1991
        %v2000 = vld [vmem:[#allocation3] sm:$0xff]
        %v2001 = vld [vmem:[#allocation3 + $0x8] sm:$0xff]
        %v2002 = vld [vmem:[#allocation3 + $0x10] sm:$0xff]
        %v2003 = vld [vmem:[#allocation3 + $0x18] sm:$0xff]
        %v2004 = vld [vmem:[#allocation3 + $0x20] sm:$0xff]
        %v2005 = vld [vmem:[#allocation3 + $0x28] sm:$0xff]
        %v2006 = vld [vmem:[#allocation3 + $0x30] sm:$0xff]
        %v2007 = vld [vmem:[#allocation3 + $0x38] sm:$0xff]
        %v2008 = vld [vmem:[#allocation3 + $0x40] sm:$0xff]
        %v2009 = vld [vmem:[#allocation3 + $0x48] sm:$0xff]
        %v2010 = vld [vmem:[#allocation3 + $0x50] sm:$0xff]
        %v2011 = vld [vmem:[#allocation3 + $0x58] sm:$0xff]
        %v2012 = vld [vmem:[#allocation3 + $0x60] sm:$0xff]
        %v2013 = vld [vmem:[#allocation3 + $0x68] sm:$0xff]
        %v2014 = vld [vmem:[#allocation3 + $0x70] sm:$0xff]
        %v2015 = vld [vmem:[#allocation3 + $0x78] sm:$0xff]
        %v2016 = vld [vmem:[#allocation3 + $0x80] sm:$0xff]
        %v2017 = vld [vmem:[#allocation3 + $0x88] sm:$0xff]
        %v2018 = vld [vmem:[#allocation3 + $0x90] sm:$0xff]
        %v2019 = vld [vmem:[#allocation3 + $0x98] sm:$0xff]
        %v2020 = vld [vmem:[#allocation3 + $0xa0] sm:$0xff]
        %v2021 = vld [vmem:[#allocation3 + $0xa8] sm:$0xff]
        %v2022 = vld [vmem:[#allocation3 + $0xb0] sm:$0xff]
        %v2023 = vld [vmem:[#allocation3 + $0xb8] sm:$0xff]
        %v2024 = vld [vmem:[#allocation3 + $0xc0] sm:$0xff]
        %v2025 = vld [vmem:[#allocation3 + $0xc8] sm:$0xff]
        %v2026 = vld [vmem:[#allocation3 + $0xd0] sm:$0xff]
        %v2027 = vld [vmem:[#allocation3 + $0xd8] sm:$0xff]
        %v2028 = vld [vmem:[#allocation3 + $0xe0] sm:$0xff]
        %v2029 = vld [vmem:[#allocation3 + $0xe8] sm:$0xff]
        %v2030 = vld [vmem:[#allocation3 + $0xf0] sm:$0xff]
        %v2031 = vld [vmem:[#allocation3 + $0xf8] sm:$0xff]
        %v2032 = vld [vmem:[#allocation3 + $0x100] sm:$0xff]
        %v2033 = vld [vmem:[#allocation3 + $0x108] sm:$0xff]
        %v2034 = vld [vmem:[#allocation3 + $0x110] sm:$0xff]
        %v2035 = vld [vmem:[#allocation3 + $0x118] sm:$0xff]
        %v2036 = vld [vmem:[#allocation3 + $0x120] sm:$0xff]
        %v2037 = vld [vmem:[#allocation3 + $0x128] sm:$0xff]
        %v2038 = vld [vmem:[#allocation3 + $0x130] sm:$0xff]
        %v2039 = vld [vmem:[#allocation3 + $0x138] sm:$0xff]
        %v2040 = vld [vmem:[#allocation3 + $0x140] sm:$0xff]
        %v2041 = vld [vmem:[#allocation3 + $0x148] sm:$0xff]
        %v2042 = vld [vmem:[#allocation3 + $0x150] sm:$0xff]
        %v2043 = vld [vmem:[#allocation3 + $0x158] sm:$0xff]
        %v2044 = vld [vmem:[#allocation3 + $0x160] sm:$0xff]
        %v2045 = vld [vmem:[#allocation3 + $0x168] sm:$0xff]
        %v2046 = vld [vmem:[#allocation3 + $0x170] sm:$0xff]
        %v2047 = vld [vmem:[#allocation3 + $0x178] sm:$0xff]
        %v2048 = vld [vmem:[#allocation3 + $0x180] sm:$0xff]
        %v2049 = vld [vmem:[#allocation3 + $0x188] sm:$0xff]
        %v2050 = vld [vmem:[#allocation3 + $0x190] sm:$0xff]
        %v2051 = vld [vmem:[#allocation3 + $0x198] sm:$0xff]
        %v2052 = vld [vmem:[#allocation3 + $0x1a0] sm:$0xff]
        %v2053 = vld [vmem:[#allocation3 + $0x1a8] sm:$0xff]
        %v2054 = vld [vmem:[#allocation3 + $0x1b0] sm:$0xff]
        %v2055 = vld [vmem:[#allocation3 + $0x1b8] sm:$0xff]
        %v2056 = vld [vmem:[#allocation3 + $0x1c0] sm:$0xff]
        %v2057 = vld [vmem:[#allocation3 + $0x1c8] sm:$0xff]
        %v2058 = vld [vmem:[#allocation3 + $0x1d0] sm:$0xff]
        %v2059 = vld [vmem:[#allocation3 + $0x1d8] sm:$0xff]
        %v2060 = vld [vmem:[#allocation3 + $0x1e0] sm:$0xff]
        %v2061 = vld [vmem:[#allocation3 + $0x1e8] sm:$0xff]
        %v2062 = vld [vmem:[#allocation3 + $0x1f0] sm:$0xff]
        %v2063 = vld [vmem:[#allocation3 + $0x1f8] sm:$0xff]
        %v2064 = vld [vmem:[#allocation3 + $0x200] sm:$0xff]
        %v2065 = vld [vmem:[#allocation3 + $0x208] sm:$0xff]
        %v2066 = vld [vmem:[#allocation3 + $0x210] sm:$0xff]
        %v2067 = vld [vmem:[#allocation3 + $0x218] sm:$0xff]
        %v2068 = vld [vmem:[#allocation3 + $0x220] sm:$0xff]
        %v2069 = vld [vmem:[#allocation3 + $0x228] sm:$0xff]
        %v2070 = vld [vmem:[#allocation3 + $0x230] sm:$0xff]
        %v2071 = vld [vmem:[#allocation3 + $0x238] sm:$0xff]
        %vm2072 = vcmask 261120
        %v2074 = vsel %vm2072, %v1350, 0
        %v2077 = vsel %vm2072, %v1353, 0
        %v2080 = vsel %vm2072, %v1356, 0
        %v2083 = vsel %vm2072, %v1359, 0
        %v2085 = vand.u32 %v2031, 4294901760
        %2086 = vmatprep.subr.mxu0 %v2085
        %v2087 = vand.u32 %v2030, 4294901760
        %2088 = vmatpush1.msra.mxu0 %v2087
        %v2089 = vand.u32 %v2029, 4294901760
        %2090 = vmatprep.subr.mxu0 %v2089
        %v2091 = vand.u32 %v2028, 4294901760
        %2092 = vmatpush1.msra.mxu0 %v2091
        %v2093 = vand.u32 %v2027, 4294901760
        %2094 = vmatprep.subr.mxu0 %v2093
        %v2095 = vand.u32 %v2026, 4294901760
        %2096 = vmatpush1.msra.mxu0 %v2095
        %v2097 = vand.u32 %v2025, 4294901760
        %2098 = vmatprep.subr.mxu0 %v2097
        %v2099 = vand.u32 %v2024, 4294901760
        %2100 = vmatpush1.msra.mxu0 %v2099
        %v2101 = vand.u32 %v2023, 4294901760
        %2102 = vmatprep.subr.mxu0 %v2101
        %v2103 = vand.u32 %v2022, 4294901760
        %2104 = vmatpush1.msra.mxu0 %v2103
        %v2105 = vand.u32 %v2021, 4294901760
        %2106 = vmatprep.subr.mxu0 %v2105
        %v2107 = vand.u32 %v2020, 4294901760
        %2108 = vmatpush1.msra.mxu0 %v2107
        %v2109 = vand.u32 %v2019, 4294901760
        %2110 = vmatprep.subr.mxu0 %v2109
        %v2111 = vand.u32 %v2018, 4294901760
        %2112 = vmatpush1.msra.mxu0 %v2111
        %v2113 = vand.u32 %v2017, 4294901760
        %2114 = vmatprep.subr.mxu0 %v2113
        %v2115 = vand.u32 %v2016, 4294901760
        %2116 = vmatpush1.msra.mxu0 %v2115
        %v2117 = vand.u32 %v2015, 4294901760
        %2118 = vmatprep.subr.mxu0 %v2117
        %v2119 = vand.u32 %v2014, 4294901760
        %2120 = vmatpush1.msra.mxu0 %v2119
        %v2121 = vand.u32 %v2013, 4294901760
        %2122 = vmatprep.subr.mxu0 %v2121
        %v2123 = vand.u32 %v2012, 4294901760
        %2124 = vmatpush1.msra.mxu0 %v2123
        %v2125 = vand.u32 %v2011, 4294901760
        %2126 = vmatprep.subr.mxu0 %v2125
        %v2127 = vand.u32 %v2010, 4294901760
        %2128 = vmatpush1.msra.mxu0 %v2127
        %v2129 = vand.u32 %v2009, 4294901760
        %2130 = vmatprep.subr.mxu0 %v2129
        %v2131 = vand.u32 %v2008, 4294901760
        %2132 = vmatpush1.msra.mxu0 %v2131
        %v2133 = vand.u32 %v2007, 4294901760
        %2134 = vmatprep.subr.mxu0 %v2133
        %v2135 = vand.u32 %v2006, 4294901760
        %2136 = vmatpush1.msra.mxu0 %v2135
        %v2137 = vand.u32 %v2005, 4294901760
        %2138 = vmatprep.subr.mxu0 %v2137
        %v2139 = vand.u32 %v2004, 4294901760
        %2140 = vmatpush1.msra.mxu0 %v2139
        %v2141 = vand.u32 %v2003, 4294901760
        %2142 = vmatprep.subr.mxu0 %v2141
        %v2143 = vand.u32 %v2002, 4294901760
        %2144 = vmatpush1.msra.mxu0 %v2143
        %v2145 = vand.u32 %v2001, 4294901760
        %2146 = vmatprep.subr.mxu0 %v2145
        %v2147 = vand.u32 %v2000, 4294901760
        %2148 = vmatpush1.msra.mxu0 %v2147
        %v2149 = vand.u32 %v2063, 4294901760
        %2150 = vmatprep.subr.mxu0 %v2149
        %v2151 = vand.u32 %v2062, 4294901760
        %2152 = vmatpush2.msra.mxu0 %v2151
        %v2153 = vand.u32 %v2061, 4294901760
        %2154 = vmatprep.subr.mxu0 %v2153
        %v2155 = vand.u32 %v2060, 4294901760
        %2156 = vmatpush2.msra.mxu0 %v2155
        %v2157 = vand.u32 %v2059, 4294901760
        %2158 = vmatprep.subr.mxu0 %v2157
        %v2159 = vand.u32 %v2058, 4294901760
        %2160 = vmatpush2.msra.mxu0 %v2159
        %v2161 = vand.u32 %v2057, 4294901760
        %2162 = vmatprep.subr.mxu0 %v2161
        %v2163 = vand.u32 %v2056, 4294901760
        %2164 = vmatpush2.msra.mxu0 %v2163
        %v2165 = vand.u32 %v2055, 4294901760
        %2166 = vmatprep.subr.mxu0 %v2165
        %v2167 = vand.u32 %v2054, 4294901760
        %2168 = vmatpush2.msra.mxu0 %v2167
        %v2169 = vand.u32 %v2053, 4294901760
        %2170 = vmatprep.subr.mxu0 %v2169
        %v2171 = vand.u32 %v2052, 4294901760
        %2172 = vmatpush2.msra.mxu0 %v2171
        %v2173 = vand.u32 %v2051, 4294901760
        %2174 = vmatprep.subr.mxu0 %v2173
        %v2175 = vand.u32 %v2050, 4294901760
        %2176 = vmatpush2.msra.mxu0 %v2175
        %v2177 = vand.u32 %v2049, 4294901760
        %2178 = vmatprep.subr.mxu0 %v2177
        %v2179 = vand.u32 %v2048, 4294901760
        %2180 = vmatpush2.msra.mxu0 %v2179
        %v2181 = vand.u32 %v2047, 4294901760
        %2182 = vmatprep.subr.mxu0 %v2181
        %v2183 = vand.u32 %v2046, 4294901760
        %2184 = vmatpush2.msra.mxu0 %v2183
        %v2185 = vand.u32 %v2045, 4294901760
        %2186 = vmatprep.subr.mxu0 %v2185
        %v2187 = vand.u32 %v2044, 4294901760
        %2188 = vmatpush2.msra.mxu0 %v2187
        %v2189 = vand.u32 %v2043, 4294901760
        %2190 = vmatprep.subr.mxu0 %v2189
        %v2191 = vand.u32 %v2042, 4294901760
        %2192 = vmatpush2.msra.mxu0 %v2191
        %v2193 = vand.u32 %v2041, 4294901760
        %2194 = vmatprep.subr.mxu0 %v2193
        %v2195 = vand.u32 %v2040, 4294901760
        %2196 = vmatpush2.msra.mxu0 %v2195
        %v2197 = vand.u32 %v2039, 4294901760
        %2198 = vmatprep.subr.mxu0 %v2197
        %v2199 = vand.u32 %v2038, 4294901760
        %2200 = vmatpush2.msra.mxu0 %v2199
        %v2201 = vand.u32 %v2037, 4294901760
        %2202 = vmatprep.subr.mxu0 %v2201
        %v2203 = vand.u32 %v2036, 4294901760
        %2204 = vmatpush2.msra.mxu0 %v2203
        %v2205 = vand.u32 %v2035, 4294901760
        %2206 = vmatprep.subr.mxu0 %v2205
        %v2207 = vand.u32 %v2034, 4294901760
        %2208 = vmatpush2.msra.mxu0 %v2207
        %v2209 = vand.u32 %v2033, 4294901760
        %2210 = vmatprep.subr.mxu0 %v2209
        %v2211 = vand.u32 %v2032, 4294901760
        %2212 = vmatpush2.msra.mxu0 %v2211
        %v2213 = vand.u32 %v1349, 4294901760
        %v2214 = vsub.f32 %v1349, %v2213
        %v2215 = vand.u32 %v2214, 4294901760
        %v2216 = vsub.f32 %v2214, %v2215
        %v2217 = vand.u32 %v2216, 4294901760
        %2218 = vmatprep.mubr.f32.mxu0 %v2217
        %v2219 = vand.u32 %v1348, 4294901760
        %v2220 = vsub.f32 %v1348, %v2219
        %v2221 = vand.u32 %v2220, 4294901760
        %v2222 = vsub.f32 %v2220, %v2221
        %v2223 = vand.u32 %v2222, 4294901760
        %2224 = vmatmul.mubr.f32.gmra.mxu0 %v2223
        %v2225 = vpop.f32.mrf.mxu0
        %v2226 = vadd.f32 0.0, %v2225
        %v2227 = vpop.f32.mrf.mxu0
        %v2228 = vadd.f32 0.0, %v2227
        %v2229 = vand.u32 %v1352, 4294901760
        %v2230 = vsub.f32 %v1352, %v2229
        %v2231 = vand.u32 %v2230, 4294901760
        %v2232 = vsub.f32 %v2230, %v2231
        %v2233 = vand.u32 %v2232, 4294901760
        %2234 = vmatprep.mubr.f32.mxu0 %v2233
        %v2235 = vand.u32 %v1351, 4294901760
        %v2236 = vsub.f32 %v1351, %v2235
        %v2237 = vand.u32 %v2236, 4294901760
        %v2238 = vsub.f32 %v2236, %v2237
        %v2239 = vand.u32 %v2238, 4294901760
        %2240 = vmatmul.mubr.f32.gmra.mxu0 %v2239
        %v2241 = vpop.f32.mrf.mxu0
        %v2242 = vadd.f32 0.0, %v2241
        %v2243 = vpop.f32.mrf.mxu0
        %v2244 = vadd.f32 0.0, %v2243
        %v2245 = vand.u32 %v1355, 4294901760
        %v2246 = vsub.f32 %v1355, %v2245
        %v2247 = vand.u32 %v2246, 4294901760
        %v2248 = vsub.f32 %v2246, %v2247
        %v2249 = vand.u32 %v2248, 4294901760
        %2250 = vmatprep.mubr.f32.mxu0 %v2249
        %v2251 = vand.u32 %v1354, 4294901760
        %v2252 = vsub.f32 %v1354, %v2251
        %v2253 = vand.u32 %v2252, 4294901760
        %v2254 = vsub.f32 %v2252, %v2253
        %v2255 = vand.u32 %v2254, 4294901760
        %2256 = vmatmul.mubr.f32.gmra.mxu0 %v2255
        %v2257 = vpop.f32.mrf.mxu0
        %v2258 = vadd.f32 0.0, %v2257
        %v2259 = vpop.f32.mrf.mxu0
        %v2260 = vadd.f32 0.0, %v2259
        %v2261 = vand.u32 %v1358, 4294901760
        %v2262 = vsub.f32 %v1358, %v2261
        %v2263 = vand.u32 %v2262, 4294901760
        %v2264 = vsub.f32 %v2262, %v2263
        %v2265 = vand.u32 %v2264, 4294901760
        %2266 = vmatprep.mubr.f32.mxu0 %v2265
        %v2267 = vand.u32 %v1357, 4294901760
        %v2268 = vsub.f32 %v1357, %v2267
        %v2269 = vand.u32 %v2268, 4294901760
        %v2270 = vsub.f32 %v2268, %v2269
        %v2271 = vand.u32 %v2270, 4294901760
        %2272 = vmatmul.mubr.f32.gmra.mxu0 %v2271
        %v2273 = vpop.f32.mrf.mxu0
        %v2274 = vadd.f32 0.0, %v2273
        %v2275 = vpop.f32.mrf.mxu0
        %v2276 = vadd.f32 0.0, %v2275
        %2277 = vdwg.mxu0
        %v2278 = vand.u32 %v2031, 4294901760
        %v2279 = vsub.f32 %v2031, %v2278
        %v2280 = vand.u32 %v2279, 4294901760
        %v2281 = vsub.f32 %v2279, %v2280
        %v2282 = vand.u32 %v2281, 4294901760
        %2283 = vmatprep.subr.mxu0 %v2282
        %v2284 = vand.u32 %v2030, 4294901760
        %v2285 = vsub.f32 %v2030, %v2284
        %v2286 = vand.u32 %v2285, 4294901760
        %v2287 = vsub.f32 %v2285, %v2286
        %v2288 = vand.u32 %v2287, 4294901760
        %2289 = vmatpush1.msra.mxu0 %v2288
        %v2290 = vand.u32 %v2029, 4294901760
        %v2291 = vsub.f32 %v2029, %v2290
        %v2292 = vand.u32 %v2291, 4294901760
        %v2293 = vsub.f32 %v2291, %v2292
        %v2294 = vand.u32 %v2293, 4294901760
        %2295 = vmatprep.subr.mxu0 %v2294
        %v2296 = vand.u32 %v2028, 4294901760
        %v2297 = vsub.f32 %v2028, %v2296
        %v2298 = vand.u32 %v2297, 4294901760
        %v2299 = vsub.f32 %v2297, %v2298
        %v2300 = vand.u32 %v2299, 4294901760
        %2301 = vmatpush1.msra.mxu0 %v2300
        %v2302 = vand.u32 %v2027, 4294901760
        %v2303 = vsub.f32 %v2027, %v2302
        %v2304 = vand.u32 %v2303, 4294901760
        %v2305 = vsub.f32 %v2303, %v2304
        %v2306 = vand.u32 %v2305, 4294901760
        %2307 = vmatprep.subr.mxu0 %v2306
        %v2308 = vand.u32 %v2026, 4294901760
        %v2309 = vsub.f32 %v2026, %v2308
        %v2310 = vand.u32 %v2309, 4294901760
        %v2311 = vsub.f32 %v2309, %v2310
        %v2312 = vand.u32 %v2311, 4294901760
        %2313 = vmatpush1.msra.mxu0 %v2312
        %v2314 = vand.u32 %v2025, 4294901760
        %v2315 = vsub.f32 %v2025, %v2314
        %v2316 = vand.u32 %v2315, 4294901760
        %v2317 = vsub.f32 %v2315, %v2316
        %v2318 = vand.u32 %v2317, 4294901760
        %2319 = vmatprep.subr.mxu0 %v2318
        %v2320 = vand.u32 %v2024, 4294901760
        %v2321 = vsub.f32 %v2024, %v2320
        %v2322 = vand.u32 %v2321, 4294901760
        %v2323 = vsub.f32 %v2321, %v2322
        %v2324 = vand.u32 %v2323, 4294901760
        %2325 = vmatpush1.msra.mxu0 %v2324
        %v2326 = vand.u32 %v2023, 4294901760
        %v2327 = vsub.f32 %v2023, %v2326
        %v2328 = vand.u32 %v2327, 4294901760
        %v2329 = vsub.f32 %v2327, %v2328
        %v2330 = vand.u32 %v2329, 4294901760
        %2331 = vmatprep.subr.mxu0 %v2330
        %v2332 = vand.u32 %v2022, 4294901760
        %v2333 = vsub.f32 %v2022, %v2332
        %v2334 = vand.u32 %v2333, 4294901760
        %v2335 = vsub.f32 %v2333, %v2334
        %v2336 = vand.u32 %v2335, 4294901760
        %2337 = vmatpush1.msra.mxu0 %v2336
        %v2338 = vand.u32 %v2021, 4294901760
        %v2339 = vsub.f32 %v2021, %v2338
        %v2340 = vand.u32 %v2339, 4294901760
        %v2341 = vsub.f32 %v2339, %v2340
        %v2342 = vand.u32 %v2341, 4294901760
        %2343 = vmatprep.subr.mxu0 %v2342
        %v2344 = vand.u32 %v2020, 4294901760
        %v2345 = vsub.f32 %v2020, %v2344
        %v2346 = vand.u32 %v2345, 4294901760
        %v2347 = vsub.f32 %v2345, %v2346
        %v2348 = vand.u32 %v2347, 4294901760
        %2349 = vmatpush1.msra.mxu0 %v2348
        %v2350 = vand.u32 %v2019, 4294901760
        %v2351 = vsub.f32 %v2019, %v2350
        %v2352 = vand.u32 %v2351, 4294901760
        %v2353 = vsub.f32 %v2351, %v2352
        %v2354 = vand.u32 %v2353, 4294901760
        %2355 = vmatprep.subr.mxu0 %v2354
        %v2356 = vand.u32 %v2018, 4294901760
        %v2357 = vsub.f32 %v2018, %v2356
        %v2358 = vand.u32 %v2357, 4294901760
        %v2359 = vsub.f32 %v2357, %v2358
        %v2360 = vand.u32 %v2359, 4294901760
        %2361 = vmatpush1.msra.mxu0 %v2360
        %v2362 = vand.u32 %v2017, 4294901760
        %v2363 = vsub.f32 %v2017, %v2362
        %v2364 = vand.u32 %v2363, 4294901760
        %v2365 = vsub.f32 %v2363, %v2364
        %v2366 = vand.u32 %v2365, 4294901760
        %2367 = vmatprep.subr.mxu0 %v2366
        %v2368 = vand.u32 %v2016, 4294901760
        %v2369 = vsub.f32 %v2016, %v2368
        %v2370 = vand.u32 %v2369, 4294901760
        %v2371 = vsub.f32 %v2369, %v2370
        %v2372 = vand.u32 %v2371, 4294901760
        %2373 = vmatpush1.msra.mxu0 %v2372
        %v2374 = vand.u32 %v2015, 4294901760
        %v2375 = vsub.f32 %v2015, %v2374
        %v2376 = vand.u32 %v2375, 4294901760
        %v2377 = vsub.f32 %v2375, %v2376
        %v2378 = vand.u32 %v2377, 4294901760
        %2379 = vmatprep.subr.mxu0 %v2378
        %v2380 = vand.u32 %v2014, 4294901760
        %v2381 = vsub.f32 %v2014, %v2380
        %v2382 = vand.u32 %v2381, 4294901760
        %v2383 = vsub.f32 %v2381, %v2382
        %v2384 = vand.u32 %v2383, 4294901760
        %2385 = vmatpush1.msra.mxu0 %v2384
        %v2386 = vand.u32 %v2013, 4294901760
        %v2387 = vsub.f32 %v2013, %v2386
        %v2388 = vand.u32 %v2387, 4294901760
        %v2389 = vsub.f32 %v2387, %v2388
        %v2390 = vand.u32 %v2389, 4294901760
        %2391 = vmatprep.subr.mxu0 %v2390
        %v2392 = vand.u32 %v2012, 4294901760
        %v2393 = vsub.f32 %v2012, %v2392
        %v2394 = vand.u32 %v2393, 4294901760
        %v2395 = vsub.f32 %v2393, %v2394
        %v2396 = vand.u32 %v2395, 4294901760
        %2397 = vmatpush1.msra.mxu0 %v2396
        %v2398 = vand.u32 %v2011, 4294901760
        %v2399 = vsub.f32 %v2011, %v2398
        %v2400 = vand.u32 %v2399, 4294901760
        %v2401 = vsub.f32 %v2399, %v2400
        %v2402 = vand.u32 %v2401, 4294901760
        %2403 = vmatprep.subr.mxu0 %v2402
        %v2404 = vand.u32 %v2010, 4294901760
        %v2405 = vsub.f32 %v2010, %v2404
        %v2406 = vand.u32 %v2405, 4294901760
        %v2407 = vsub.f32 %v2405, %v2406
        %v2408 = vand.u32 %v2407, 4294901760
        %2409 = vmatpush1.msra.mxu0 %v2408
        %v2410 = vand.u32 %v2009, 4294901760
        %v2411 = vsub.f32 %v2009, %v2410
        %v2412 = vand.u32 %v2411, 4294901760
        %v2413 = vsub.f32 %v2411, %v2412
        %v2414 = vand.u32 %v2413, 4294901760
        %2415 = vmatprep.subr.mxu0 %v2414
        %v2416 = vand.u32 %v2008, 4294901760
        %v2417 = vsub.f32 %v2008, %v2416
        %v2418 = vand.u32 %v2417, 4294901760
        %v2419 = vsub.f32 %v2417, %v2418
        %v2420 = vand.u32 %v2419, 4294901760
        %2421 = vmatpush1.msra.mxu0 %v2420
        %v2422 = vand.u32 %v2007, 4294901760
        %v2423 = vsub.f32 %v2007, %v2422
        %v2424 = vand.u32 %v2423, 4294901760
        %v2425 = vsub.f32 %v2423, %v2424
        %v2426 = vand.u32 %v2425, 4294901760
        %2427 = vmatprep.subr.mxu0 %v2426
        %v2428 = vand.u32 %v2006, 4294901760
        %v2429 = vsub.f32 %v2006, %v2428
        %v2430 = vand.u32 %v2429, 4294901760
        %v2431 = vsub.f32 %v2429, %v2430
        %v2432 = vand.u32 %v2431, 4294901760
        %2433 = vmatpush1.msra.mxu0 %v2432
        %v2434 = vand.u32 %v2005, 4294901760
        %v2435 = vsub.f32 %v2005, %v2434
        %v2436 = vand.u32 %v2435, 4294901760
        %v2437 = vsub.f32 %v2435, %v2436
        %v2438 = vand.u32 %v2437, 4294901760
        %2439 = vmatprep.subr.mxu0 %v2438
        %v2440 = vand.u32 %v2004, 4294901760
        %v2441 = vsub.f32 %v2004, %v2440
        %v2442 = vand.u32 %v2441, 4294901760
        %v2443 = vsub.f32 %v2441, %v2442
        %v2444 = vand.u32 %v2443, 4294901760
        %2445 = vmatpush1.msra.mxu0 %v2444
        %v2446 = vand.u32 %v2003, 4294901760
        %v2447 = vsub.f32 %v2003, %v2446
        %v2448 = vand.u32 %v2447, 4294901760
        %v2449 = vsub.f32 %v2447, %v2448
        %v2450 = vand.u32 %v2449, 4294901760
        %2451 = vmatprep.subr.mxu0 %v2450
        %v2452 = vand.u32 %v2002, 4294901760
        %v2453 = vsub.f32 %v2002, %v2452
        %v2454 = vand.u32 %v2453, 4294901760
        %v2455 = vsub.f32 %v2453, %v2454
        %v2456 = vand.u32 %v2455, 4294901760
        %2457 = vmatpush1.msra.mxu0 %v2456
        %v2458 = vand.u32 %v2001, 4294901760
        %v2459 = vsub.f32 %v2001, %v2458
        %v2460 = vand.u32 %v2459, 4294901760
        %v2461 = vsub.f32 %v2459, %v2460
        %v2462 = vand.u32 %v2461, 4294901760
        %2463 = vmatprep.subr.mxu0 %v2462
        %v2464 = vand.u32 %v2000, 4294901760
        %v2465 = vsub.f32 %v2000, %v2464
        %v2466 = vand.u32 %v2465, 4294901760
        %v2467 = vsub.f32 %v2465, %v2466
        %v2468 = vand.u32 %v2467, 4294901760
        %2469 = vmatpush1.msra.mxu0 %v2468
        %v2470 = vand.u32 %v2063, 4294901760
        %v2471 = vsub.f32 %v2063, %v2470
        %v2472 = vand.u32 %v2471, 4294901760
        %v2473 = vsub.f32 %v2471, %v2472
        %v2474 = vand.u32 %v2473, 4294901760
        %2475 = vmatprep.subr.mxu0 %v2474
        %v2476 = vand.u32 %v2062, 4294901760
        %v2477 = vsub.f32 %v2062, %v2476
        %v2478 = vand.u32 %v2477, 4294901760
        %v2479 = vsub.f32 %v2477, %v2478
        %v2480 = vand.u32 %v2479, 4294901760
        %2481 = vmatpush2.msra.mxu0 %v2480
        %v2482 = vand.u32 %v2061, 4294901760
        %v2483 = vsub.f32 %v2061, %v2482
        %v2484 = vand.u32 %v2483, 4294901760
        %v2485 = vsub.f32 %v2483, %v2484
        %v2486 = vand.u32 %v2485, 4294901760
        %2487 = vmatprep.subr.mxu0 %v2486
        %v2488 = vand.u32 %v2060, 4294901760
        %v2489 = vsub.f32 %v2060, %v2488
        %v2490 = vand.u32 %v2489, 4294901760
        %v2491 = vsub.f32 %v2489, %v2490
        %v2492 = vand.u32 %v2491, 4294901760
        %2493 = vmatpush2.msra.mxu0 %v2492
        %v2494 = vand.u32 %v2059, 4294901760
        %v2495 = vsub.f32 %v2059, %v2494
        %v2496 = vand.u32 %v2495, 4294901760
        %v2497 = vsub.f32 %v2495, %v2496
        %v2498 = vand.u32 %v2497, 4294901760
        %2499 = vmatprep.subr.mxu0 %v2498
        %v2500 = vand.u32 %v2058, 4294901760
        %v2501 = vsub.f32 %v2058, %v2500
        %v2502 = vand.u32 %v2501, 4294901760
        %v2503 = vsub.f32 %v2501, %v2502
        %v2504 = vand.u32 %v2503, 4294901760
        %2505 = vmatpush2.msra.mxu0 %v2504
        %v2506 = vand.u32 %v2057, 4294901760
        %v2507 = vsub.f32 %v2057, %v2506
        %v2508 = vand.u32 %v2507, 4294901760
        %v2509 = vsub.f32 %v2507, %v2508
        %v2510 = vand.u32 %v2509, 4294901760
        %2511 = vmatprep.subr.mxu0 %v2510
        %v2512 = vand.u32 %v2056, 4294901760
        %v2513 = vsub.f32 %v2056, %v2512
        %v2514 = vand.u32 %v2513, 4294901760
        %v2515 = vsub.f32 %v2513, %v2514
        %v2516 = vand.u32 %v2515, 4294901760
        %2517 = vmatpush2.msra.mxu0 %v2516
        %v2518 = vand.u32 %v2055, 4294901760
        %v2519 = vsub.f32 %v2055, %v2518
        %v2520 = vand.u32 %v2519, 4294901760
        %v2521 = vsub.f32 %v2519, %v2520
        %v2522 = vand.u32 %v2521, 4294901760
        %2523 = vmatprep.subr.mxu0 %v2522
        %v2524 = vand.u32 %v2054, 4294901760
        %v2525 = vsub.f32 %v2054, %v2524
        %v2526 = vand.u32 %v2525, 4294901760
        %v2527 = vsub.f32 %v2525, %v2526
        %v2528 = vand.u32 %v2527, 4294901760
        %2529 = vmatpush2.msra.mxu0 %v2528
        %v2530 = vand.u32 %v2053, 4294901760
        %v2531 = vsub.f32 %v2053, %v2530
        %v2532 = vand.u32 %v2531, 4294901760
        %v2533 = vsub.f32 %v2531, %v2532
        %v2534 = vand.u32 %v2533, 4294901760
        %2535 = vmatprep.subr.mxu0 %v2534
        %v2536 = vand.u32 %v2052, 4294901760
        %v2537 = vsub.f32 %v2052, %v2536
        %v2538 = vand.u32 %v2537, 4294901760
        %v2539 = vsub.f32 %v2537, %v2538
        %v2540 = vand.u32 %v2539, 4294901760
        %2541 = vmatpush2.msra.mxu0 %v2540
        %v2542 = vand.u32 %v2051, 4294901760
        %v2543 = vsub.f32 %v2051, %v2542
        %v2544 = vand.u32 %v2543, 4294901760
        %v2545 = vsub.f32 %v2543, %v2544
        %v2546 = vand.u32 %v2545, 4294901760
        %2547 = vmatprep.subr.mxu0 %v2546
        %v2548 = vand.u32 %v2050, 4294901760
        %v2549 = vsub.f32 %v2050, %v2548
        %v2550 = vand.u32 %v2549, 4294901760
        %v2551 = vsub.f32 %v2549, %v2550
        %v2552 = vand.u32 %v2551, 4294901760
        %2553 = vmatpush2.msra.mxu0 %v2552
        %v2554 = vand.u32 %v2049, 4294901760
        %v2555 = vsub.f32 %v2049, %v2554
        %v2556 = vand.u32 %v2555, 4294901760
        %v2557 = vsub.f32 %v2555, %v2556
        %v2558 = vand.u32 %v2557, 4294901760
        %2559 = vmatprep.subr.mxu0 %v2558
        %v2560 = vand.u32 %v2048, 4294901760
        %v2561 = vsub.f32 %v2048, %v2560
        %v2562 = vand.u32 %v2561, 4294901760
        %v2563 = vsub.f32 %v2561, %v2562
        %v2564 = vand.u32 %v2563, 4294901760
        %2565 = vmatpush2.msra.mxu0 %v2564
        %v2566 = vand.u32 %v2047, 4294901760
        %v2567 = vsub.f32 %v2047, %v2566
        %v2568 = vand.u32 %v2567, 4294901760
        %v2569 = vsub.f32 %v2567, %v2568
        %v2570 = vand.u32 %v2569, 4294901760
        %2571 = vmatprep.subr.mxu0 %v2570
        %v2572 = vand.u32 %v2046, 4294901760
        %v2573 = vsub.f32 %v2046, %v2572
        %v2574 = vand.u32 %v2573, 4294901760
        %v2575 = vsub.f32 %v2573, %v2574
        %v2576 = vand.u32 %v2575, 4294901760
        %2577 = vmatpush2.msra.mxu0 %v2576
        %v2578 = vand.u32 %v2045, 4294901760
        %v2579 = vsub.f32 %v2045, %v2578
        %v2580 = vand.u32 %v2579, 4294901760
        %v2581 = vsub.f32 %v2579, %v2580
        %v2582 = vand.u32 %v2581, 4294901760
        %2583 = vmatprep.subr.mxu0 %v2582
        %v2584 = vand.u32 %v2044, 4294901760
        %v2585 = vsub.f32 %v2044, %v2584
        %v2586 = vand.u32 %v2585, 4294901760
        %v2587 = vsub.f32 %v2585, %v2586
        %v2588 = vand.u32 %v2587, 4294901760
        %2589 = vmatpush2.msra.mxu0 %v2588
        %v2590 = vand.u32 %v2043, 4294901760
        %v2591 = vsub.f32 %v2043, %v2590
        %v2592 = vand.u32 %v2591, 4294901760
        %v2593 = vsub.f32 %v2591, %v2592
        %v2594 = vand.u32 %v2593, 4294901760
        %2595 = vmatprep.subr.mxu0 %v2594
        %v2596 = vand.u32 %v2042, 4294901760
        %v2597 = vsub.f32 %v2042, %v2596
        %v2598 = vand.u32 %v2597, 4294901760
        %v2599 = vsub.f32 %v2597, %v2598
        %v2600 = vand.u32 %v2599, 4294901760
        %2601 = vmatpush2.msra.mxu0 %v2600
        %v2602 = vand.u32 %v2041, 4294901760
        %v2603 = vsub.f32 %v2041, %v2602
        %v2604 = vand.u32 %v2603, 4294901760
        %v2605 = vsub.f32 %v2603, %v2604
        %v2606 = vand.u32 %v2605, 4294901760
        %2607 = vmatprep.subr.mxu0 %v2606
        %v2608 = vand.u32 %v2040, 4294901760
        %v2609 = vsub.f32 %v2040, %v2608
        %v2610 = vand.u32 %v2609, 4294901760
        %v2611 = vsub.f32 %v2609, %v2610
        %v2612 = vand.u32 %v2611, 4294901760
        %2613 = vmatpush2.msra.mxu0 %v2612
        %v2614 = vand.u32 %v2039, 4294901760
        %v2615 = vsub.f32 %v2039, %v2614
        %v2616 = vand.u32 %v2615, 4294901760
        %v2617 = vsub.f32 %v2615, %v2616
        %v2618 = vand.u32 %v2617, 4294901760
        %2619 = vmatprep.subr.mxu0 %v2618
        %v2620 = vand.u32 %v2038, 4294901760
        %v2621 = vsub.f32 %v2038, %v2620
        %v2622 = vand.u32 %v2621, 4294901760
        %v2623 = vsub.f32 %v2621, %v2622
        %v2624 = vand.u32 %v2623, 4294901760
        %2625 = vmatpush2.msra.mxu0 %v2624
        %v2626 = vand.u32 %v2037, 4294901760
        %v2627 = vsub.f32 %v2037, %v2626
        %v2628 = vand.u32 %v2627, 4294901760
        %v2629 = vsub.f32 %v2627, %v2628
        %v2630 = vand.u32 %v2629, 4294901760
        %2631 = vmatprep.subr.mxu0 %v2630
        %v2632 = vand.u32 %v2036, 4294901760
        %v2633 = vsub.f32 %v2036, %v2632
        %v2634 = vand.u32 %v2633, 4294901760
        %v2635 = vsub.f32 %v2633, %v2634
        %v2636 = vand.u32 %v2635, 4294901760
        %2637 = vmatpush2.msra.mxu0 %v2636
        %v2638 = vand.u32 %v2035, 4294901760
        %v2639 = vsub.f32 %v2035, %v2638
        %v2640 = vand.u32 %v2639, 4294901760
        %v2641 = vsub.f32 %v2639, %v2640
        %v2642 = vand.u32 %v2641, 4294901760
        %2643 = vmatprep.subr.mxu0 %v2642
        %v2644 = vand.u32 %v2034, 4294901760
        %v2645 = vsub.f32 %v2034, %v2644
        %v2646 = vand.u32 %v2645, 4294901760
        %v2647 = vsub.f32 %v2645, %v2646
        %v2648 = vand.u32 %v2647, 4294901760
        %2649 = vmatpush2.msra.mxu0 %v2648
        %v2650 = vand.u32 %v2033, 4294901760
        %v2651 = vsub.f32 %v2033, %v2650
        %v2652 = vand.u32 %v2651, 4294901760
        %v2653 = vsub.f32 %v2651, %v2652
        %v2654 = vand.u32 %v2653, 4294901760
        %2655 = vmatprep.subr.mxu0 %v2654
        %v2656 = vand.u32 %v2032, 4294901760
        %v2657 = vsub.f32 %v2032, %v2656
        %v2658 = vand.u32 %v2657, 4294901760
        %v2659 = vsub.f32 %v2657, %v2658
        %v2660 = vand.u32 %v2659, 4294901760
        %2661 = vmatpush2.msra.mxu0 %v2660
        %v2662 = vand.u32 %v1349, 4294901760
        %2663 = vmatprep.mubr.f32.mxu0 %v2662
        %v2664 = vand.u32 %v1348, 4294901760
        %2665 = vmatmul.mubr.f32.gmra.mxu0 %v2664
        %v2666 = vpop.f32.mrf.mxu0
        %v2667 = vadd.f32 %v2226, %v2666
        %v2668 = vpop.f32.mrf.mxu0
        %v2669 = vadd.f32 %v2228, %v2668
        %v2670 = vand.u32 %v1352, 4294901760
        %2671 = vmatprep.mubr.f32.mxu0 %v2670
        %v2672 = vand.u32 %v1351, 4294901760
        %2673 = vmatmul.mubr.f32.gmra.mxu0 %v2672
        %v2674 = vpop.f32.mrf.mxu0
        %v2675 = vadd.f32 %v2242, %v2674
        %v2676 = vpop.f32.mrf.mxu0
        %v2677 = vadd.f32 %v2244, %v2676
        %v2678 = vand.u32 %v1355, 4294901760
        %2679 = vmatprep.mubr.f32.mxu0 %v2678
        %v2680 = vand.u32 %v1354, 4294901760
        %2681 = vmatmul.mubr.f32.gmra.mxu0 %v2680
        %v2682 = vpop.f32.mrf.mxu0
        %v2683 = vadd.f32 %v2258, %v2682
        %v2684 = vpop.f32.mrf.mxu0
        %v2685 = vadd.f32 %v2260, %v2684
        %v2686 = vand.u32 %v1358, 4294901760
        %2687 = vmatprep.mubr.f32.mxu0 %v2686
        %v2688 = vand.u32 %v1357, 4294901760
        %2689 = vmatmul.mubr.f32.gmra.mxu0 %v2688
        %v2690 = vpop.f32.mrf.mxu0
        %v2691 = vadd.f32 %v2274, %v2690
        %v2692 = vpop.f32.mrf.mxu0
        %v2693 = vadd.f32 %v2276, %v2692
        %2694 = vdwg.mxu0
        %v2695 = vand.u32 %v2031, 4294901760
        %v2696 = vsub.f32 %v2031, %v2695
        %2697 = vmatprep.subr.mxu0 %v2696
        %v2698 = vand.u32 %v2030, 4294901760
        %v2699 = vsub.f32 %v2030, %v2698
        %2700 = vmatpush1.msra.mxu0 %v2699
        %v2701 = vand.u32 %v2029, 4294901760
        %v2702 = vsub.f32 %v2029, %v2701
        %2703 = vmatprep.subr.mxu0 %v2702
        %v2704 = vand.u32 %v2028, 4294901760
        %v2705 = vsub.f32 %v2028, %v2704
        %2706 = vmatpush1.msra.mxu0 %v2705
        %v2707 = vand.u32 %v2027, 4294901760
        %v2708 = vsub.f32 %v2027, %v2707
        %2709 = vmatprep.subr.mxu0 %v2708
        %v2710 = vand.u32 %v2026, 4294901760
        %v2711 = vsub.f32 %v2026, %v2710
        %2712 = vmatpush1.msra.mxu0 %v2711
        %v2713 = vand.u32 %v2025, 4294901760
        %v2714 = vsub.f32 %v2025, %v2713
        %2715 = vmatprep.subr.mxu0 %v2714
        %v2716 = vand.u32 %v2024, 4294901760
        %v2717 = vsub.f32 %v2024, %v2716
        %2718 = vmatpush1.msra.mxu0 %v2717
        %v2719 = vand.u32 %v2023, 4294901760
        %v2720 = vsub.f32 %v2023, %v2719
        %2721 = vmatprep.subr.mxu0 %v2720
        %v2722 = vand.u32 %v2022, 4294901760
        %v2723 = vsub.f32 %v2022, %v2722
        %2724 = vmatpush1.msra.mxu0 %v2723
        %v2725 = vand.u32 %v2021, 4294901760
        %v2726 = vsub.f32 %v2021, %v2725
        %2727 = vmatprep.subr.mxu0 %v2726
        %v2728 = vand.u32 %v2020, 4294901760
        %v2729 = vsub.f32 %v2020, %v2728
        %2730 = vmatpush1.msra.mxu0 %v2729
        %v2731 = vand.u32 %v2019, 4294901760
        %v2732 = vsub.f32 %v2019, %v2731
        %2733 = vmatprep.subr.mxu0 %v2732
        %v2734 = vand.u32 %v2018, 4294901760
        %v2735 = vsub.f32 %v2018, %v2734
        %2736 = vmatpush1.msra.mxu0 %v2735
        %v2737 = vand.u32 %v2017, 4294901760
        %v2738 = vsub.f32 %v2017, %v2737
        %2739 = vmatprep.subr.mxu0 %v2738
        %v2740 = vand.u32 %v2016, 4294901760
        %v2741 = vsub.f32 %v2016, %v2740
        %2742 = vmatpush1.msra.mxu0 %v2741
        %v2743 = vand.u32 %v2015, 4294901760
        %v2744 = vsub.f32 %v2015, %v2743
        %2745 = vmatprep.subr.mxu0 %v2744
        %v2746 = vand.u32 %v2014, 4294901760
        %v2747 = vsub.f32 %v2014, %v2746
        %2748 = vmatpush1.msra.mxu0 %v2747
        %v2749 = vand.u32 %v2013, 4294901760
        %v2750 = vsub.f32 %v2013, %v2749
        %2751 = vmatprep.subr.mxu0 %v2750
        %v2752 = vand.u32 %v2012, 4294901760
        %v2753 = vsub.f32 %v2012, %v2752
        %2754 = vmatpush1.msra.mxu0 %v2753
        %v2755 = vand.u32 %v2011, 4294901760
        %v2756 = vsub.f32 %v2011, %v2755
        %2757 = vmatprep.subr.mxu0 %v2756
        %v2758 = vand.u32 %v2010, 4294901760
        %v2759 = vsub.f32 %v2010, %v2758
        %2760 = vmatpush1.msra.mxu0 %v2759
        %v2761 = vand.u32 %v2009, 4294901760
        %v2762 = vsub.f32 %v2009, %v2761
        %2763 = vmatprep.subr.mxu0 %v2762
        %v2764 = vand.u32 %v2008, 4294901760
        %v2765 = vsub.f32 %v2008, %v2764
        %2766 = vmatpush1.msra.mxu0 %v2765
        %v2767 = vand.u32 %v2007, 4294901760
        %v2768 = vsub.f32 %v2007, %v2767
        %2769 = vmatprep.subr.mxu0 %v2768
        %v2770 = vand.u32 %v2006, 4294901760
        %v2771 = vsub.f32 %v2006, %v2770
        %2772 = vmatpush1.msra.mxu0 %v2771
        %v2773 = vand.u32 %v2005, 4294901760
        %v2774 = vsub.f32 %v2005, %v2773
        %2775 = vmatprep.subr.mxu0 %v2774
        %v2776 = vand.u32 %v2004, 4294901760
        %v2777 = vsub.f32 %v2004, %v2776
        %2778 = vmatpush1.msra.mxu0 %v2777
        %v2779 = vand.u32 %v2003, 4294901760
        %v2780 = vsub.f32 %v2003, %v2779
        %2781 = vmatprep.subr.mxu0 %v2780
        %v2782 = vand.u32 %v2002, 4294901760
        %v2783 = vsub.f32 %v2002, %v2782
        %2784 = vmatpush1.msra.mxu0 %v2783
        %v2785 = vand.u32 %v2001, 4294901760
        %v2786 = vsub.f32 %v2001, %v2785
        %2787 = vmatprep.subr.mxu0 %v2786
        %v2788 = vand.u32 %v2000, 4294901760
        %v2789 = vsub.f32 %v2000, %v2788
        %2790 = vmatpush1.msra.mxu0 %v2789
        %v2791 = vand.u32 %v2063, 4294901760
        %v2792 = vsub.f32 %v2063, %v2791
        %2793 = vmatprep.subr.mxu0 %v2792
        %v2794 = vand.u32 %v2062, 4294901760
        %v2795 = vsub.f32 %v2062, %v2794
        %2796 = vmatpush2.msra.mxu0 %v2795
        %v2797 = vand.u32 %v2061, 4294901760
        %v2798 = vsub.f32 %v2061, %v2797
        %2799 = vmatprep.subr.mxu0 %v2798
        %v2800 = vand.u32 %v2060, 4294901760
        %v2801 = vsub.f32 %v2060, %v2800
        %2802 = vmatpush2.msra.mxu0 %v2801
        %v2803 = vand.u32 %v2059, 4294901760
        %v2804 = vsub.f32 %v2059, %v2803
        %2805 = vmatprep.subr.mxu0 %v2804
        %v2806 = vand.u32 %v2058, 4294901760
        %v2807 = vsub.f32 %v2058, %v2806
        %2808 = vmatpush2.msra.mxu0 %v2807
        %v2809 = vand.u32 %v2057, 4294901760
        %v2810 = vsub.f32 %v2057, %v2809
        %2811 = vmatprep.subr.mxu0 %v2810
        %v2812 = vand.u32 %v2056, 4294901760
        %v2813 = vsub.f32 %v2056, %v2812
        %2814 = vmatpush2.msra.mxu0 %v2813
        %v2815 = vand.u32 %v2055, 4294901760
        %v2816 = vsub.f32 %v2055, %v2815
        %2817 = vmatprep.subr.mxu0 %v2816
        %v2818 = vand.u32 %v2054, 4294901760
        %v2819 = vsub.f32 %v2054, %v2818
        %2820 = vmatpush2.msra.mxu0 %v2819
        %v2821 = vand.u32 %v2053, 4294901760
        %v2822 = vsub.f32 %v2053, %v2821
        %2823 = vmatprep.subr.mxu0 %v2822
        %v2824 = vand.u32 %v2052, 4294901760
        %v2825 = vsub.f32 %v2052, %v2824
        %2826 = vmatpush2.msra.mxu0 %v2825
        %v2827 = vand.u32 %v2051, 4294901760
        %v2828 = vsub.f32 %v2051, %v2827
        %2829 = vmatprep.subr.mxu0 %v2828
        %v2830 = vand.u32 %v2050, 4294901760
        %v2831 = vsub.f32 %v2050, %v2830
        %2832 = vmatpush2.msra.mxu0 %v2831
        %v2833 = vand.u32 %v2049, 4294901760
        %v2834 = vsub.f32 %v2049, %v2833
        %2835 = vmatprep.subr.mxu0 %v2834
        %v2836 = vand.u32 %v2048, 4294901760
        %v2837 = vsub.f32 %v2048, %v2836
        %2838 = vmatpush2.msra.mxu0 %v2837
        %v2839 = vand.u32 %v2047, 4294901760
        %v2840 = vsub.f32 %v2047, %v2839
        %2841 = vmatprep.subr.mxu0 %v2840
        %v2842 = vand.u32 %v2046, 4294901760
        %v2843 = vsub.f32 %v2046, %v2842
        %2844 = vmatpush2.msra.mxu0 %v2843
        %v2845 = vand.u32 %v2045, 4294901760
        %v2846 = vsub.f32 %v2045, %v2845
        %2847 = vmatprep.subr.mxu0 %v2846
        %v2848 = vand.u32 %v2044, 4294901760
        %v2849 = vsub.f32 %v2044, %v2848
        %2850 = vmatpush2.msra.mxu0 %v2849
        %v2851 = vand.u32 %v2043, 4294901760
        %v2852 = vsub.f32 %v2043, %v2851
        %2853 = vmatprep.subr.mxu0 %v2852
        %v2854 = vand.u32 %v2042, 4294901760
        %v2855 = vsub.f32 %v2042, %v2854
        %2856 = vmatpush2.msra.mxu0 %v2855
        %v2857 = vand.u32 %v2041, 4294901760
        %v2858 = vsub.f32 %v2041, %v2857
        %2859 = vmatprep.subr.mxu0 %v2858
        %v2860 = vand.u32 %v2040, 4294901760
        %v2861 = vsub.f32 %v2040, %v2860
        %2862 = vmatpush2.msra.mxu0 %v2861
        %v2863 = vand.u32 %v2039, 4294901760
        %v2864 = vsub.f32 %v2039, %v2863
        %2865 = vmatprep.subr.mxu0 %v2864
        %v2866 = vand.u32 %v2038, 4294901760
        %v2867 = vsub.f32 %v2038, %v2866
        %2868 = vmatpush2.msra.mxu0 %v2867
        %v2869 = vand.u32 %v2037, 4294901760
        %v2870 = vsub.f32 %v2037, %v2869
        %2871 = vmatprep.subr.mxu0 %v2870
        %v2872 = vand.u32 %v2036, 4294901760
        %v2873 = vsub.f32 %v2036, %v2872
        %2874 = vmatpush2.msra.mxu0 %v2873
        %v2875 = vand.u32 %v2035, 4294901760
        %v2876 = vsub.f32 %v2035, %v2875
        %2877 = vmatprep.subr.mxu0 %v2876
        %v2878 = vand.u32 %v2034, 4294901760
        %v2879 = vsub.f32 %v2034, %v2878
        %2880 = vmatpush2.msra.mxu0 %v2879
        %v2881 = vand.u32 %v2033, 4294901760
        %v2882 = vsub.f32 %v2033, %v2881
        %2883 = vmatprep.subr.mxu0 %v2882
        %v2884 = vand.u32 %v2032, 4294901760
        %v2885 = vsub.f32 %v2032, %v2884
        %2886 = vmatpush2.msra.mxu0 %v2885
        %v2887 = vand.u32 %v1349, 4294901760
        %v2888 = vsub.f32 %v1349, %v2887
        %2889 = vmatprep.mubr.f32.mxu0 %v2888
        %v2890 = vand.u32 %v1348, 4294901760
        %v2891 = vsub.f32 %v1348, %v2890
        %2892 = vmatmul.mubr.f32.gmra.mxu0 %v2891
        %v2893 = vpop.f32.mrf.mxu0
        %v2894 = vadd.f32 %v2667, %v2893
        %v2895 = vpop.f32.mrf.mxu0
        %v2896 = vadd.f32 %v2669, %v2895
        %v2897 = vand.u32 %v1352, 4294901760
        %v2898 = vsub.f32 %v1352, %v2897
        %2899 = vmatprep.mubr.f32.mxu0 %v2898
        %v2900 = vand.u32 %v1351, 4294901760
        %v2901 = vsub.f32 %v1351, %v2900
        %2902 = vmatmul.mubr.f32.gmra.mxu0 %v2901
        %v2903 = vpop.f32.mrf.mxu0
        %v2904 = vadd.f32 %v2675, %v2903
        %v2905 = vpop.f32.mrf.mxu0
        %v2906 = vadd.f32 %v2677, %v2905
        %v2907 = vand.u32 %v1355, 4294901760
        %v2908 = vsub.f32 %v1355, %v2907
        %2909 = vmatprep.mubr.f32.mxu0 %v2908
        %v2910 = vand.u32 %v1354, 4294901760
        %v2911 = vsub.f32 %v1354, %v2910
        %2912 = vmatmul.mubr.f32.gmra.mxu0 %v2911
        %v2913 = vpop.f32.mrf.mxu0
        %v2914 = vadd.f32 %v2683, %v2913
        %v2915 = vpop.f32.mrf.mxu0
        %v2916 = vadd.f32 %v2685, %v2915
        %v2917 = vand.u32 %v1358, 4294901760
        %v2918 = vsub.f32 %v1358, %v2917
        %2919 = vmatprep.mubr.f32.mxu0 %v2918
        %v2920 = vand.u32 %v1357, 4294901760
        %v2921 = vsub.f32 %v1357, %v2920
        %2922 = vmatmul.mubr.f32.gmra.mxu0 %v2921
        %v2923 = vpop.f32.mrf.mxu0
        %v2924 = vadd.f32 %v2691, %v2923
        %v2925 = vpop.f32.mrf.mxu0
        %v2926 = vadd.f32 %v2693, %v2925
        %2927 = vdwg.mxu0
        %v2928 = vand.u32 %v2031, 4294901760
        %2929 = vmatprep.subr.mxu0 %v2928
        %v2930 = vand.u32 %v2030, 4294901760
        %2931 = vmatpush1.msra.mxu0 %v2930
        %v2932 = vand.u32 %v2029, 4294901760
        %2933 = vmatprep.subr.mxu0 %v2932
        %v2934 = vand.u32 %v2028, 4294901760
        %2935 = vmatpush1.msra.mxu0 %v2934
        %v2936 = vand.u32 %v2027, 4294901760
        %2937 = vmatprep.subr.mxu0 %v2936
        %v2938 = vand.u32 %v2026, 4294901760
        %2939 = vmatpush1.msra.mxu0 %v2938
        %v2940 = vand.u32 %v2025, 4294901760
        %2941 = vmatprep.subr.mxu0 %v2940
        %v2942 = vand.u32 %v2024, 4294901760
        %2943 = vmatpush1.msra.mxu0 %v2942
        %v2944 = vand.u32 %v2023, 4294901760
        %2945 = vmatprep.subr.mxu0 %v2944
        %v2946 = vand.u32 %v2022, 4294901760
        %2947 = vmatpush1.msra.mxu0 %v2946
        %v2948 = vand.u32 %v2021, 4294901760
        %2949 = vmatprep.subr.mxu0 %v2948
        %v2950 = vand.u32 %v2020, 4294901760
        %2951 = vmatpush1.msra.mxu0 %v2950
        %v2952 = vand.u32 %v2019, 4294901760
        %2953 = vmatprep.subr.mxu0 %v2952
        %v2954 = vand.u32 %v2018, 4294901760
        %2955 = vmatpush1.msra.mxu0 %v2954
        %v2956 = vand.u32 %v2017, 4294901760
        %2957 = vmatprep.subr.mxu0 %v2956
        %v2958 = vand.u32 %v2016, 4294901760
        %2959 = vmatpush1.msra.mxu0 %v2958
        %v2960 = vand.u32 %v2015, 4294901760
        %2961 = vmatprep.subr.mxu0 %v2960
        %v2962 = vand.u32 %v2014, 4294901760
        %2963 = vmatpush1.msra.mxu0 %v2962
        %v2964 = vand.u32 %v2013, 4294901760
        %2965 = vmatprep.subr.mxu0 %v2964
        %v2966 = vand.u32 %v2012, 4294901760
        %2967 = vmatpush1.msra.mxu0 %v2966
        %v2968 = vand.u32 %v2011, 4294901760
        %2969 = vmatprep.subr.mxu0 %v2968
        %v2970 = vand.u32 %v2010, 4294901760
        %2971 = vmatpush1.msra.mxu0 %v2970
        %v2972 = vand.u32 %v2009, 4294901760
        %2973 = vmatprep.subr.mxu0 %v2972
        %v2974 = vand.u32 %v2008, 4294901760
        %2975 = vmatpush1.msra.mxu0 %v2974
        %v2976 = vand.u32 %v2007, 4294901760
        %2977 = vmatprep.subr.mxu0 %v2976
        %v2978 = vand.u32 %v2006, 4294901760
        %2979 = vmatpush1.msra.mxu0 %v2978
        %v2980 = vand.u32 %v2005, 4294901760
        %2981 = vmatprep.subr.mxu0 %v2980
        %v2982 = vand.u32 %v2004, 4294901760
        %2983 = vmatpush1.msra.mxu0 %v2982
        %v2984 = vand.u32 %v2003, 4294901760
        %2985 = vmatprep.subr.mxu0 %v2984
        %v2986 = vand.u32 %v2002, 4294901760
        %2987 = vmatpush1.msra.mxu0 %v2986
        %v2988 = vand.u32 %v2001, 4294901760
        %2989 = vmatprep.subr.mxu0 %v2988
        %v2990 = vand.u32 %v2000, 4294901760
        %2991 = vmatpush1.msra.mxu0 %v2990
        %v2992 = vand.u32 %v2063, 4294901760
        %2993 = vmatprep.subr.mxu0 %v2992
        %v2994 = vand.u32 %v2062, 4294901760
        %2995 = vmatpush2.msra.mxu0 %v2994
        %v2996 = vand.u32 %v2061, 4294901760
        %2997 = vmatprep.subr.mxu0 %v2996
        %v2998 = vand.u32 %v2060, 4294901760
        %2999 = vmatpush2.msra.mxu0 %v2998
        %v3000 = vand.u32 %v2059, 4294901760
        %3001 = vmatprep.subr.mxu0 %v3000
        %v3002 = vand.u32 %v2058, 4294901760
        %3003 = vmatpush2.msra.mxu0 %v3002
        %v3004 = vand.u32 %v2057, 4294901760
        %3005 = vmatprep.subr.mxu0 %v3004
        %v3006 = vand.u32 %v2056, 4294901760
        %3007 = vmatpush2.msra.mxu0 %v3006
        %v3008 = vand.u32 %v2055, 4294901760
        %3009 = vmatprep.subr.mxu0 %v3008
        %v3010 = vand.u32 %v2054, 4294901760
        %3011 = vmatpush2.msra.mxu0 %v3010
        %v3012 = vand.u32 %v2053, 4294901760
        %3013 = vmatprep.subr.mxu0 %v3012
        %v3014 = vand.u32 %v2052, 4294901760
        %3015 = vmatpush2.msra.mxu0 %v3014
        %v3016 = vand.u32 %v2051, 4294901760
        %3017 = vmatprep.subr.mxu0 %v3016
        %v3018 = vand.u32 %v2050, 4294901760
        %3019 = vmatpush2.msra.mxu0 %v3018
        %v3020 = vand.u32 %v2049, 4294901760
        %3021 = vmatprep.subr.mxu0 %v3020
        %v3022 = vand.u32 %v2048, 4294901760
        %3023 = vmatpush2.msra.mxu0 %v3022
        %v3024 = vand.u32 %v2047, 4294901760
        %3025 = vmatprep.subr.mxu0 %v3024
        %v3026 = vand.u32 %v2046, 4294901760
        %3027 = vmatpush2.msra.mxu0 %v3026
        %v3028 = vand.u32 %v2045, 4294901760
        %3029 = vmatprep.subr.mxu0 %v3028
        %v3030 = vand.u32 %v2044, 4294901760
        %3031 = vmatpush2.msra.mxu0 %v3030
        %v3032 = vand.u32 %v2043, 4294901760
        %3033 = vmatprep.subr.mxu0 %v3032
        %v3034 = vand.u32 %v2042, 4294901760
        %3035 = vmatpush2.msra.mxu0 %v3034
        %v3036 = vand.u32 %v2041, 4294901760
        %3037 = vmatprep.subr.mxu0 %v3036
        %v3038 = vand.u32 %v2040, 4294901760
        %3039 = vmatpush2.msra.mxu0 %v3038
        %v3040 = vand.u32 %v2039, 4294901760
        %3041 = vmatprep.subr.mxu0 %v3040
        %v3042 = vand.u32 %v2038, 4294901760
        %3043 = vmatpush2.msra.mxu0 %v3042
        %v3044 = vand.u32 %v2037, 4294901760
        %3045 = vmatprep.subr.mxu0 %v3044
        %v3046 = vand.u32 %v2036, 4294901760
        %3047 = vmatpush2.msra.mxu0 %v3046
        %v3048 = vand.u32 %v2035, 4294901760
        %3049 = vmatprep.subr.mxu0 %v3048
        %v3050 = vand.u32 %v2034, 4294901760
        %3051 = vmatpush2.msra.mxu0 %v3050
        %v3052 = vand.u32 %v2033, 4294901760
        %3053 = vmatprep.subr.mxu0 %v3052
        %v3054 = vand.u32 %v2032, 4294901760
        %3055 = vmatpush2.msra.mxu0 %v3054
        %v3056 = vand.u32 %v1349, 4294901760
        %v3057 = vsub.f32 %v1349, %v3056
        %v3058 = vand.u32 %v3057, 4294901760
        %3059 = vmatprep.mubr.f32.mxu0 %v3058
        %v3060 = vand.u32 %v1348, 4294901760
        %v3061 = vsub.f32 %v1348, %v3060
        %v3062 = vand.u32 %v3061, 4294901760
        %3063 = vmatmul.mubr.f32.gmra.mxu0 %v3062
        %v3064 = vpop.f32.mrf.mxu0
        %v3065 = vadd.f32 %v2894, %v3064
        %v3066 = vpop.f32.mrf.mxu0
        %v3067 = vadd.f32 %v2896, %v3066
        %v3068 = vand.u32 %v1352, 4294901760
        %v3069 = vsub.f32 %v1352, %v3068
        %v3070 = vand.u32 %v3069, 4294901760
        %3071 = vmatprep.mubr.f32.mxu0 %v3070
        %v3072 = vand.u32 %v1351, 4294901760
        %v3073 = vsub.f32 %v1351, %v3072
        %v3074 = vand.u32 %v3073, 4294901760
        %3075 = vmatmul.mubr.f32.gmra.mxu0 %v3074
        %v3076 = vpop.f32.mrf.mxu0
        %v3077 = vadd.f32 %v2904, %v3076
        %v3078 = vpop.f32.mrf.mxu0
        %v3079 = vadd.f32 %v2906, %v3078
        %v3080 = vand.u32 %v1355, 4294901760
        %v3081 = vsub.f32 %v1355, %v3080
        %v3082 = vand.u32 %v3081, 4294901760
        %3083 = vmatprep.mubr.f32.mxu0 %v3082
        %v3084 = vand.u32 %v1354, 4294901760
        %v3085 = vsub.f32 %v1354, %v3084
        %v3086 = vand.u32 %v3085, 4294901760
        %3087 = vmatmul.mubr.f32.gmra.mxu0 %v3086
        %v3088 = vpop.f32.mrf.mxu0
        %v3089 = vadd.f32 %v2914, %v3088
        %v3090 = vpop.f32.mrf.mxu0
        %v3091 = vadd.f32 %v2916, %v3090
        %v3092 = vand.u32 %v1358, 4294901760
        %v3093 = vsub.f32 %v1358, %v3092
        %v3094 = vand.u32 %v3093, 4294901760
        %3095 = vmatprep.mubr.f32.mxu0 %v3094
        %v3096 = vand.u32 %v1357, 4294901760
        %v3097 = vsub.f32 %v1357, %v3096
        %v3098 = vand.u32 %v3097, 4294901760
        %3099 = vmatmul.mubr.f32.gmra.mxu0 %v3098
        %v3100 = vpop.f32.mrf.mxu0
        %v3101 = vadd.f32 %v2924, %v3100
        %v3102 = vpop.f32.mrf.mxu0
        %v3103 = vadd.f32 %v2926, %v3102
        %3104 = vdwg.mxu0
        %v3105 = vand.u32 %v2031, 4294901760
        %v3106 = vsub.f32 %v2031, %v3105
        %v3107 = vand.u32 %v3106, 4294901760
        %3108 = vmatprep.subr.mxu0 %v3107
        %v3109 = vand.u32 %v2030, 4294901760
        %v3110 = vsub.f32 %v2030, %v3109
        %v3111 = vand.u32 %v3110, 4294901760
        %3112 = vmatpush1.msra.mxu0 %v3111
        %v3113 = vand.u32 %v2029, 4294901760
        %v3114 = vsub.f32 %v2029, %v3113
        %v3115 = vand.u32 %v3114, 4294901760
        %3116 = vmatprep.subr.mxu0 %v3115
        %v3117 = vand.u32 %v2028, 4294901760
        %v3118 = vsub.f32 %v2028, %v3117
        %v3119 = vand.u32 %v3118, 4294901760
        %3120 = vmatpush1.msra.mxu0 %v3119
        %v3121 = vand.u32 %v2027, 4294901760
        %v3122 = vsub.f32 %v2027, %v3121
        %v3123 = vand.u32 %v3122, 4294901760
        %3124 = vmatprep.subr.mxu0 %v3123
        %v3125 = vand.u32 %v2026, 4294901760
        %v3126 = vsub.f32 %v2026, %v3125
        %v3127 = vand.u32 %v3126, 4294901760
        %3128 = vmatpush1.msra.mxu0 %v3127
        %v3129 = vand.u32 %v2025, 4294901760
        %v3130 = vsub.f32 %v2025, %v3129
        %v3131 = vand.u32 %v3130, 4294901760
        %3132 = vmatprep.subr.mxu0 %v3131
        %v3133 = vand.u32 %v2024, 4294901760
        %v3134 = vsub.f32 %v2024, %v3133
        %v3135 = vand.u32 %v3134, 4294901760
        %3136 = vmatpush1.msra.mxu0 %v3135
        %v3137 = vand.u32 %v2023, 4294901760
        %v3138 = vsub.f32 %v2023, %v3137
        %v3139 = vand.u32 %v3138, 4294901760
        %3140 = vmatprep.subr.mxu0 %v3139
        %v3141 = vand.u32 %v2022, 4294901760
        %v3142 = vsub.f32 %v2022, %v3141
        %v3143 = vand.u32 %v3142, 4294901760
        %3144 = vmatpush1.msra.mxu0 %v3143
        %v3145 = vand.u32 %v2021, 4294901760
        %v3146 = vsub.f32 %v2021, %v3145
        %v3147 = vand.u32 %v3146, 4294901760
        %3148 = vmatprep.subr.mxu0 %v3147
        %v3149 = vand.u32 %v2020, 4294901760
        %v3150 = vsub.f32 %v2020, %v3149
        %v3151 = vand.u32 %v3150, 4294901760
        %3152 = vmatpush1.msra.mxu0 %v3151
        %v3153 = vand.u32 %v2019, 4294901760
        %v3154 = vsub.f32 %v2019, %v3153
        %v3155 = vand.u32 %v3154, 4294901760
        %3156 = vmatprep.subr.mxu0 %v3155
        %v3157 = vand.u32 %v2018, 4294901760
        %v3158 = vsub.f32 %v2018, %v3157
        %v3159 = vand.u32 %v3158, 4294901760
        %3160 = vmatpush1.msra.mxu0 %v3159
        %v3161 = vand.u32 %v2017, 4294901760
        %v3162 = vsub.f32 %v2017, %v3161
        %v3163 = vand.u32 %v3162, 4294901760
        %3164 = vmatprep.subr.mxu0 %v3163
        %v3165 = vand.u32 %v2016, 4294901760
        %v3166 = vsub.f32 %v2016, %v3165
        %v3167 = vand.u32 %v3166, 4294901760
        %3168 = vmatpush1.msra.mxu0 %v3167
        %v3169 = vand.u32 %v2015, 4294901760
        %v3170 = vsub.f32 %v2015, %v3169
        %v3171 = vand.u32 %v3170, 4294901760
        %3172 = vmatprep.subr.mxu0 %v3171
        %v3173 = vand.u32 %v2014, 4294901760
        %v3174 = vsub.f32 %v2014, %v3173
        %v3175 = vand.u32 %v3174, 4294901760
        %3176 = vmatpush1.msra.mxu0 %v3175
        %v3177 = vand.u32 %v2013, 4294901760
        %v3178 = vsub.f32 %v2013, %v3177
        %v3179 = vand.u32 %v3178, 4294901760
        %3180 = vmatprep.subr.mxu0 %v3179
        %v3181 = vand.u32 %v2012, 4294901760
        %v3182 = vsub.f32 %v2012, %v3181
        %v3183 = vand.u32 %v3182, 4294901760
        %3184 = vmatpush1.msra.mxu0 %v3183
        %v3185 = vand.u32 %v2011, 4294901760
        %v3186 = vsub.f32 %v2011, %v3185
        %v3187 = vand.u32 %v3186, 4294901760
        %3188 = vmatprep.subr.mxu0 %v3187
        %v3189 = vand.u32 %v2010, 4294901760
        %v3190 = vsub.f32 %v2010, %v3189
        %v3191 = vand.u32 %v3190, 4294901760
        %3192 = vmatpush1.msra.mxu0 %v3191
        %v3193 = vand.u32 %v2009, 4294901760
        %v3194 = vsub.f32 %v2009, %v3193
        %v3195 = vand.u32 %v3194, 4294901760
        %3196 = vmatprep.subr.mxu0 %v3195
        %v3197 = vand.u32 %v2008, 4294901760
        %v3198 = vsub.f32 %v2008, %v3197
        %v3199 = vand.u32 %v3198, 4294901760
        %3200 = vmatpush1.msra.mxu0 %v3199
        %v3201 = vand.u32 %v2007, 4294901760
        %v3202 = vsub.f32 %v2007, %v3201
        %v3203 = vand.u32 %v3202, 4294901760
        %3204 = vmatprep.subr.mxu0 %v3203
        %v3205 = vand.u32 %v2006, 4294901760
        %v3206 = vsub.f32 %v2006, %v3205
        %v3207 = vand.u32 %v3206, 4294901760
        %3208 = vmatpush1.msra.mxu0 %v3207
        %v3209 = vand.u32 %v2005, 4294901760
        %v3210 = vsub.f32 %v2005, %v3209
        %v3211 = vand.u32 %v3210, 4294901760
        %3212 = vmatprep.subr.mxu0 %v3211
        %v3213 = vand.u32 %v2004, 4294901760
        %v3214 = vsub.f32 %v2004, %v3213
        %v3215 = vand.u32 %v3214, 4294901760
        %3216 = vmatpush1.msra.mxu0 %v3215
        %v3217 = vand.u32 %v2003, 4294901760
        %v3218 = vsub.f32 %v2003, %v3217
        %v3219 = vand.u32 %v3218, 4294901760
        %3220 = vmatprep.subr.mxu0 %v3219
        %v3221 = vand.u32 %v2002, 4294901760
        %v3222 = vsub.f32 %v2002, %v3221
        %v3223 = vand.u32 %v3222, 4294901760
        %3224 = vmatpush1.msra.mxu0 %v3223
        %v3225 = vand.u32 %v2001, 4294901760
        %v3226 = vsub.f32 %v2001, %v3225
        %v3227 = vand.u32 %v3226, 4294901760
        %3228 = vmatprep.subr.mxu0 %v3227
        %v3229 = vand.u32 %v2000, 4294901760
        %v3230 = vsub.f32 %v2000, %v3229
        %v3231 = vand.u32 %v3230, 4294901760
        %3232 = vmatpush1.msra.mxu0 %v3231
        %v3233 = vand.u32 %v2063, 4294901760
        %v3234 = vsub.f32 %v2063, %v3233
        %v3235 = vand.u32 %v3234, 4294901760
        %3236 = vmatprep.subr.mxu0 %v3235
        %v3237 = vand.u32 %v2062, 4294901760
        %v3238 = vsub.f32 %v2062, %v3237
        %v3239 = vand.u32 %v3238, 4294901760
        %3240 = vmatpush2.msra.mxu0 %v3239
        %v3241 = vand.u32 %v2061, 4294901760
        %v3242 = vsub.f32 %v2061, %v3241
        %v3243 = vand.u32 %v3242, 4294901760
        %3244 = vmatprep.subr.mxu0 %v3243
        %v3245 = vand.u32 %v2060, 4294901760
        %v3246 = vsub.f32 %v2060, %v3245
        %v3247 = vand.u32 %v3246, 4294901760
        %3248 = vmatpush2.msra.mxu0 %v3247
        %v3249 = vand.u32 %v2059, 4294901760
        %v3250 = vsub.f32 %v2059, %v3249
        %v3251 = vand.u32 %v3250, 4294901760
        %3252 = vmatprep.subr.mxu0 %v3251
        %v3253 = vand.u32 %v2058, 4294901760
        %v3254 = vsub.f32 %v2058, %v3253
        %v3255 = vand.u32 %v3254, 4294901760
        %3256 = vmatpush2.msra.mxu0 %v3255
        %v3257 = vand.u32 %v2057, 4294901760
        %v3258 = vsub.f32 %v2057, %v3257
        %v3259 = vand.u32 %v3258, 4294901760
        %3260 = vmatprep.subr.mxu0 %v3259
        %v3261 = vand.u32 %v2056, 4294901760
        %v3262 = vsub.f32 %v2056, %v3261
        %v3263 = vand.u32 %v3262, 4294901760
        %3264 = vmatpush2.msra.mxu0 %v3263
        %v3265 = vand.u32 %v2055, 4294901760
        %v3266 = vsub.f32 %v2055, %v3265
        %v3267 = vand.u32 %v3266, 4294901760
        %3268 = vmatprep.subr.mxu0 %v3267
        %v3269 = vand.u32 %v2054, 4294901760
        %v3270 = vsub.f32 %v2054, %v3269
        %v3271 = vand.u32 %v3270, 4294901760
        %3272 = vmatpush2.msra.mxu0 %v3271
        %v3273 = vand.u32 %v2053, 4294901760
        %v3274 = vsub.f32 %v2053, %v3273
        %v3275 = vand.u32 %v3274, 4294901760
        %3276 = vmatprep.subr.mxu0 %v3275
        %v3277 = vand.u32 %v2052, 4294901760
        %v3278 = vsub.f32 %v2052, %v3277
        %v3279 = vand.u32 %v3278, 4294901760
        %3280 = vmatpush2.msra.mxu0 %v3279
        %v3281 = vand.u32 %v2051, 4294901760
        %v3282 = vsub.f32 %v2051, %v3281
        %v3283 = vand.u32 %v3282, 4294901760
        %3284 = vmatprep.subr.mxu0 %v3283
        %v3285 = vand.u32 %v2050, 4294901760
        %v3286 = vsub.f32 %v2050, %v3285
        %v3287 = vand.u32 %v3286, 4294901760
        %3288 = vmatpush2.msra.mxu0 %v3287
        %v3289 = vand.u32 %v2049, 4294901760
        %v3290 = vsub.f32 %v2049, %v3289
        %v3291 = vand.u32 %v3290, 4294901760
        %3292 = vmatprep.subr.mxu0 %v3291
        %v3293 = vand.u32 %v2048, 4294901760
        %v3294 = vsub.f32 %v2048, %v3293
        %v3295 = vand.u32 %v3294, 4294901760
        %3296 = vmatpush2.msra.mxu0 %v3295
        %v3297 = vand.u32 %v2047, 4294901760
        %v3298 = vsub.f32 %v2047, %v3297
        %v3299 = vand.u32 %v3298, 4294901760
        %3300 = vmatprep.subr.mxu0 %v3299
        %v3301 = vand.u32 %v2046, 4294901760
        %v3302 = vsub.f32 %v2046, %v3301
        %v3303 = vand.u32 %v3302, 4294901760
        %3304 = vmatpush2.msra.mxu0 %v3303
        %v3305 = vand.u32 %v2045, 4294901760
        %v3306 = vsub.f32 %v2045, %v3305
        %v3307 = vand.u32 %v3306, 4294901760
        %3308 = vmatprep.subr.mxu0 %v3307
        %v3309 = vand.u32 %v2044, 4294901760
        %v3310 = vsub.f32 %v2044, %v3309
        %v3311 = vand.u32 %v3310, 4294901760
        %3312 = vmatpush2.msra.mxu0 %v3311
        %v3313 = vand.u32 %v2043, 4294901760
        %v3314 = vsub.f32 %v2043, %v3313
        %v3315 = vand.u32 %v3314, 4294901760
        %3316 = vmatprep.subr.mxu0 %v3315
        %v3317 = vand.u32 %v2042, 4294901760
        %v3318 = vsub.f32 %v2042, %v3317
        %v3319 = vand.u32 %v3318, 4294901760
        %3320 = vmatpush2.msra.mxu0 %v3319
        %v3321 = vand.u32 %v2041, 4294901760
        %v3322 = vsub.f32 %v2041, %v3321
        %v3323 = vand.u32 %v3322, 4294901760
        %3324 = vmatprep.subr.mxu0 %v3323
        %v3325 = vand.u32 %v2040, 4294901760
        %v3326 = vsub.f32 %v2040, %v3325
        %v3327 = vand.u32 %v3326, 4294901760
        %3328 = vmatpush2.msra.mxu0 %v3327
        %v3329 = vand.u32 %v2039, 4294901760
        %v3330 = vsub.f32 %v2039, %v3329
        %v3331 = vand.u32 %v3330, 4294901760
        %3332 = vmatprep.subr.mxu0 %v3331
        %v3333 = vand.u32 %v2038, 4294901760
        %v3334 = vsub.f32 %v2038, %v3333
        %v3335 = vand.u32 %v3334, 4294901760
        %3336 = vmatpush2.msra.mxu0 %v3335
        %v3337 = vand.u32 %v2037, 4294901760
        %v3338 = vsub.f32 %v2037, %v3337
        %v3339 = vand.u32 %v3338, 4294901760
        %3340 = vmatprep.subr.mxu0 %v3339
        %v3341 = vand.u32 %v2036, 4294901760
        %v3342 = vsub.f32 %v2036, %v3341
        %v3343 = vand.u32 %v3342, 4294901760
        %3344 = vmatpush2.msra.mxu0 %v3343
        %v3345 = vand.u32 %v2035, 4294901760
        %v3346 = vsub.f32 %v2035, %v3345
        %v3347 = vand.u32 %v3346, 4294901760
        %3348 = vmatprep.subr.mxu0 %v3347
        %v3349 = vand.u32 %v2034, 4294901760
        %v3350 = vsub.f32 %v2034, %v3349
        %v3351 = vand.u32 %v3350, 4294901760
        %3352 = vmatpush2.msra.mxu0 %v3351
        %v3353 = vand.u32 %v2033, 4294901760
        %v3354 = vsub.f32 %v2033, %v3353
        %v3355 = vand.u32 %v3354, 4294901760
        %3356 = vmatprep.subr.mxu0 %v3355
        %v3357 = vand.u32 %v2032, 4294901760
        %v3358 = vsub.f32 %v2032, %v3357
        %v3359 = vand.u32 %v3358, 4294901760
        %3360 = vmatpush2.msra.mxu0 %v3359
        %v3361 = vand.u32 %v1349, 4294901760
        %3362 = vmatprep.mubr.f32.mxu0 %v3361
        %v3363 = vand.u32 %v1348, 4294901760
        %3364 = vmatmul.mubr.f32.gmra.mxu0 %v3363
        %v3365 = vpop.f32.mrf.mxu0
        %v3366 = vadd.f32 %v3065, %v3365
        %v3367 = vpop.f32.mrf.mxu0
        %v3368 = vadd.f32 %v3067, %v3367
        %v3369 = vand.u32 %v1352, 4294901760
        %3370 = vmatprep.mubr.f32.mxu0 %v3369
        %v3371 = vand.u32 %v1351, 4294901760
        %3372 = vmatmul.mubr.f32.gmra.mxu0 %v3371
        %v3373 = vpop.f32.mrf.mxu0
        %v3374 = vadd.f32 %v3077, %v3373
        %v3375 = vpop.f32.mrf.mxu0
        %v3376 = vadd.f32 %v3079, %v3375
        %v3377 = vand.u32 %v1355, 4294901760
        %3378 = vmatprep.mubr.f32.mxu0 %v3377
        %v3379 = vand.u32 %v1354, 4294901760
        %3380 = vmatmul.mubr.f32.gmra.mxu0 %v3379
        %v3381 = vpop.f32.mrf.mxu0
        %v3382 = vadd.f32 %v3089, %v3381
        %v3383 = vpop.f32.mrf.mxu0
        %v3384 = vadd.f32 %v3091, %v3383
        %v3385 = vand.u32 %v1358, 4294901760
        %3386 = vmatprep.mubr.f32.mxu0 %v3385
        %v3387 = vand.u32 %v1357, 4294901760
        %3388 = vmatmul.mubr.f32.gmra.mxu0 %v3387
        %v3389 = vpop.f32.mrf.mxu0
        %v3390 = vadd.f32 %v3101, %v3389
        %v3391 = vpop.f32.mrf.mxu0
        %v3392 = vadd.f32 %v3103, %v3391
        %3393 = vdwg.mxu0
        %v3394 = vand.u32 %v2031, 4294901760
        %3395 = vmatprep.subr.mxu0 %v3394
        %v3396 = vand.u32 %v2030, 4294901760
        %3397 = vmatpush1.msra.mxu0 %v3396
        %v3398 = vand.u32 %v2029, 4294901760
        %3399 = vmatprep.subr.mxu0 %v3398
        %v3400 = vand.u32 %v2028, 4294901760
        %3401 = vmatpush1.msra.mxu0 %v3400
        %v3402 = vand.u32 %v2027, 4294901760
        %3403 = vmatprep.subr.mxu0 %v3402
        %v3404 = vand.u32 %v2026, 4294901760
        %3405 = vmatpush1.msra.mxu0 %v3404
        %v3406 = vand.u32 %v2025, 4294901760
        %3407 = vmatprep.subr.mxu0 %v3406
        %v3408 = vand.u32 %v2024, 4294901760
        %3409 = vmatpush1.msra.mxu0 %v3408
        %v3410 = vand.u32 %v2023, 4294901760
        %3411 = vmatprep.subr.mxu0 %v3410
        %v3412 = vand.u32 %v2022, 4294901760
        %3413 = vmatpush1.msra.mxu0 %v3412
        %v3414 = vand.u32 %v2021, 4294901760
        %3415 = vmatprep.subr.mxu0 %v3414
        %v3416 = vand.u32 %v2020, 4294901760
        %3417 = vmatpush1.msra.mxu0 %v3416
        %v3418 = vand.u32 %v2019, 4294901760
        %3419 = vmatprep.subr.mxu0 %v3418
        %v3420 = vand.u32 %v2018, 4294901760
        %3421 = vmatpush1.msra.mxu0 %v3420
        %v3422 = vand.u32 %v2017, 4294901760
        %3423 = vmatprep.subr.mxu0 %v3422
        %v3424 = vand.u32 %v2016, 4294901760
        %3425 = vmatpush1.msra.mxu0 %v3424
        %v3426 = vand.u32 %v2015, 4294901760
        %3427 = vmatprep.subr.mxu0 %v3426
        %v3428 = vand.u32 %v2014, 4294901760
        %3429 = vmatpush1.msra.mxu0 %v3428
        %v3430 = vand.u32 %v2013, 4294901760
        %3431 = vmatprep.subr.mxu0 %v3430
        %v3432 = vand.u32 %v2012, 4294901760
        %3433 = vmatpush1.msra.mxu0 %v3432
        %v3434 = vand.u32 %v2011, 4294901760
        %3435 = vmatprep.subr.mxu0 %v3434
        %v3436 = vand.u32 %v2010, 4294901760
        %3437 = vmatpush1.msra.mxu0 %v3436
        %v3438 = vand.u32 %v2009, 4294901760
        %3439 = vmatprep.subr.mxu0 %v3438
        %v3440 = vand.u32 %v2008, 4294901760
        %3441 = vmatpush1.msra.mxu0 %v3440
        %v3442 = vand.u32 %v2007, 4294901760
        %3443 = vmatprep.subr.mxu0 %v3442
        %v3444 = vand.u32 %v2006, 4294901760
        %3445 = vmatpush1.msra.mxu0 %v3444
        %v3446 = vand.u32 %v2005, 4294901760
        %3447 = vmatprep.subr.mxu0 %v3446
        %v3448 = vand.u32 %v2004, 4294901760
        %3449 = vmatpush1.msra.mxu0 %v3448
        %v3450 = vand.u32 %v2003, 4294901760
        %3451 = vmatprep.subr.mxu0 %v3450
        %v3452 = vand.u32 %v2002, 4294901760
        %3453 = vmatpush1.msra.mxu0 %v3452
        %v3454 = vand.u32 %v2001, 4294901760
        %3455 = vmatprep.subr.mxu0 %v3454
        %v3456 = vand.u32 %v2000, 4294901760
        %3457 = vmatpush1.msra.mxu0 %v3456
        %v3458 = vand.u32 %v2063, 4294901760
        %3459 = vmatprep.subr.mxu0 %v3458
        %v3460 = vand.u32 %v2062, 4294901760
        %3461 = vmatpush2.msra.mxu0 %v3460
        %v3462 = vand.u32 %v2061, 4294901760
        %3463 = vmatprep.subr.mxu0 %v3462
        %v3464 = vand.u32 %v2060, 4294901760
        %3465 = vmatpush2.msra.mxu0 %v3464
        %v3466 = vand.u32 %v2059, 4294901760
        %3467 = vmatprep.subr.mxu0 %v3466
        %v3468 = vand.u32 %v2058, 4294901760
        %3469 = vmatpush2.msra.mxu0 %v3468
        %v3470 = vand.u32 %v2057, 4294901760
        %3471 = vmatprep.subr.mxu0 %v3470
        %v3472 = vand.u32 %v2056, 4294901760
        %3473 = vmatpush2.msra.mxu0 %v3472
        %v3474 = vand.u32 %v2055, 4294901760
        %3475 = vmatprep.subr.mxu0 %v3474
        %v3476 = vand.u32 %v2054, 4294901760
        %3477 = vmatpush2.msra.mxu0 %v3476
        %v3478 = vand.u32 %v2053, 4294901760
        %3479 = vmatprep.subr.mxu0 %v3478
        %v3480 = vand.u32 %v2052, 4294901760
        %3481 = vmatpush2.msra.mxu0 %v3480
        %v3482 = vand.u32 %v2051, 4294901760
        %3483 = vmatprep.subr.mxu0 %v3482
        %v3484 = vand.u32 %v2050, 4294901760
        %3485 = vmatpush2.msra.mxu0 %v3484
        %v3486 = vand.u32 %v2049, 4294901760
        %3487 = vmatprep.subr.mxu0 %v3486
        %v3488 = vand.u32 %v2048, 4294901760
        %3489 = vmatpush2.msra.mxu0 %v3488
        %v3490 = vand.u32 %v2047, 4294901760
        %3491 = vmatprep.subr.mxu0 %v3490
        %v3492 = vand.u32 %v2046, 4294901760
        %3493 = vmatpush2.msra.mxu0 %v3492
        %v3494 = vand.u32 %v2045, 4294901760
        %3495 = vmatprep.subr.mxu0 %v3494
        %v3496 = vand.u32 %v2044, 4294901760
        %3497 = vmatpush2.msra.mxu0 %v3496
        %v3498 = vand.u32 %v2043, 4294901760
        %3499 = vmatprep.subr.mxu0 %v3498
        %v3500 = vand.u32 %v2042, 4294901760
        %3501 = vmatpush2.msra.mxu0 %v3500
        %v3502 = vand.u32 %v2041, 4294901760
        %3503 = vmatprep.subr.mxu0 %v3502
        %v3504 = vand.u32 %v2040, 4294901760
        %3505 = vmatpush2.msra.mxu0 %v3504
        %v3506 = vand.u32 %v2039, 4294901760
        %3507 = vmatprep.subr.mxu0 %v3506
        %v3508 = vand.u32 %v2038, 4294901760
        %3509 = vmatpush2.msra.mxu0 %v3508
        %v3510 = vand.u32 %v2037, 4294901760
        %3511 = vmatprep.subr.mxu0 %v3510
        %v3512 = vand.u32 %v2036, 4294901760
        %3513 = vmatpush2.msra.mxu0 %v3512
        %v3514 = vand.u32 %v2035, 4294901760
        %3515 = vmatprep.subr.mxu0 %v3514
        %v3516 = vand.u32 %v2034, 4294901760
        %3517 = vmatpush2.msra.mxu0 %v3516
        %v3518 = vand.u32 %v2033, 4294901760
        %3519 = vmatprep.subr.mxu0 %v3518
        %v3520 = vand.u32 %v2032, 4294901760
        %3521 = vmatpush2.msra.mxu0 %v3520
        %v3522 = vand.u32 %v1349, 4294901760
        %3523 = vmatprep.mubr.f32.mxu0 %v3522
        %v3524 = vand.u32 %v1348, 4294901760
        %3525 = vmatmul.mubr.f32.gmra.mxu0 %v3524
        %v3526 = vpop.f32.mrf.mxu0
        %v3527 = vadd.f32 %v3366, %v3526
        %v3528 = vpop.f32.mrf.mxu0
        %v3529 = vadd.f32 %v3368, %v3528
        %v3530 = vand.u32 %v1352, 4294901760
        %3531 = vmatprep.mubr.f32.mxu0 %v3530
        %v3532 = vand.u32 %v1351, 4294901760
        %3533 = vmatmul.mubr.f32.gmra.mxu0 %v3532
        %v3534 = vpop.f32.mrf.mxu0
        %v3535 = vadd.f32 %v3374, %v3534
        %v3536 = vpop.f32.mrf.mxu0
        %v3537 = vadd.f32 %v3376, %v3536
        %v3538 = vand.u32 %v1355, 4294901760
        %3539 = vmatprep.mubr.f32.mxu0 %v3538
        %v3540 = vand.u32 %v1354, 4294901760
        %3541 = vmatmul.mubr.f32.gmra.mxu0 %v3540
        %v3542 = vpop.f32.mrf.mxu0
        %v3543 = vadd.f32 %v3382, %v3542
        %v3544 = vpop.f32.mrf.mxu0
        %v3545 = vadd.f32 %v3384, %v3544
        %v3546 = vand.u32 %v1358, 4294901760
        %3547 = vmatprep.mubr.f32.mxu0 %v3546
        %v3548 = vand.u32 %v1357, 4294901760
        %3549 = vmatmul.mubr.f32.gmra.mxu0 %v3548
        %v3550 = vpop.f32.mrf.mxu0
        %v3551 = vadd.f32 %v3390, %v3550
        %v3552 = vpop.f32.mrf.mxu0
        %v3553 = vadd.f32 %v3392, %v3552
        %3554 = vdwg.mxu0
        %3555 = vmatprep.subr.mxu0 0.0
        %3556 = vmatpush1.msra.mxu0 0.0
        %3557 = vmatprep.subr.mxu0 0.0
        %3558 = vmatpush1.msra.mxu0 0.0
        %3559 = vmatprep.subr.mxu0 0.0
        %3560 = vmatpush1.msra.mxu0 0.0
        %3561 = vmatprep.subr.mxu0 0.0
        %3562 = vmatpush1.msra.mxu0 0.0
        %3563 = vmatprep.subr.mxu0 0.0
        %3564 = vmatpush1.msra.mxu0 0.0
        %3565 = vmatprep.subr.mxu0 0.0
        %3566 = vmatpush1.msra.mxu0 0.0
        %3567 = vmatprep.subr.mxu0 0.0
        %3568 = vmatpush1.msra.mxu0 0.0
        %3569 = vmatprep.subr.mxu0 0.0
        %3570 = vmatpush1.msra.mxu0 0.0
        %3571 = vmatprep.subr.mxu0 0.0
        %3572 = vmatpush1.msra.mxu0 0.0
        %3573 = vmatprep.subr.mxu0 0.0
        %3574 = vmatpush1.msra.mxu0 0.0
        %3575 = vmatprep.subr.mxu0 0.0
        %3576 = vmatpush1.msra.mxu0 0.0
        %3577 = vmatprep.subr.mxu0 0.0
        %3578 = vmatpush1.msra.mxu0 0.0
        %v3579 = vand.u32 %v2071, 4294901760
        %3580 = vmatprep.subr.mxu0 %v3579
        %v3581 = vand.u32 %v2070, 4294901760
        %3582 = vmatpush1.msra.mxu0 %v3581
        %v3583 = vand.u32 %v2069, 4294901760
        %3584 = vmatprep.subr.mxu0 %v3583
        %v3585 = vand.u32 %v2068, 4294901760
        %3586 = vmatpush1.msra.mxu0 %v3585
        %v3587 = vand.u32 %v2067, 4294901760
        %3588 = vmatprep.subr.mxu0 %v3587
        %v3589 = vand.u32 %v2066, 4294901760
        %3590 = vmatpush1.msra.mxu0 %v3589
        %v3591 = vand.u32 %v2065, 4294901760
        %3592 = vmatprep.subr.mxu0 %v3591
        %v3593 = vand.u32 %v2064, 4294901760
        %3594 = vmatpush1.msra.mxu0 %v3593
        %3595 = vmatprep.subr.mxu0 0.0
        %3596 = vmatpush2.msra.mxu0 0.0
        %3597 = vmatprep.subr.mxu0 0.0
        %3598 = vmatpush2.msra.mxu0 0.0
        %3599 = vmatprep.subr.mxu0 0.0
        %3600 = vmatpush2.msra.mxu0 0.0
        %3601 = vmatprep.subr.mxu0 0.0
        %3602 = vmatpush2.msra.mxu0 0.0
        %3603 = vmatprep.subr.mxu0 0.0
        %3604 = vmatpush2.msra.mxu0 0.0
        %3605 = vmatprep.subr.mxu0 0.0
        %3606 = vmatpush2.msra.mxu0 0.0
        %3607 = vmatprep.subr.mxu0 0.0
        %3608 = vmatpush2.msra.mxu0 0.0
        %3609 = vmatprep.subr.mxu0 0.0
        %3610 = vmatpush2.msra.mxu0 0.0
        %3611 = vmatprep.subr.mxu0 0.0
        %3612 = vmatpush2.msra.mxu0 0.0
        %3613 = vmatprep.subr.mxu0 0.0
        %3614 = vmatpush2.msra.mxu0 0.0
        %3615 = vmatprep.subr.mxu0 0.0
        %3616 = vmatpush2.msra.mxu0 0.0
        %3617 = vmatprep.subr.mxu0 0.0
        %3618 = vmatpush2.msra.mxu0 0.0
        %3619 = vmatprep.subr.mxu0 0.0
        %3620 = vmatpush2.msra.mxu0 0.0
        %3621 = vmatprep.subr.mxu0 0.0
        %3622 = vmatpush2.msra.mxu0 0.0
        %3623 = vmatprep.subr.mxu0 0.0
        %3624 = vmatpush2.msra.mxu0 0.0
        %3625 = vmatprep.subr.mxu0 0.0
        %3626 = vmatpush2.msra.mxu0 0.0
        %3627 = vmatprep.mubr.f32.mxu0 0.0
        %v3628 = vand.u32 %v2074, 4294901760
        %v3629 = vsub.f32 %v2074, %v3628
        %v3630 = vand.u32 %v3629, 4294901760
        %v3631 = vsub.f32 %v3629, %v3630
        %v3632 = vand.u32 %v3631, 4294901760
        %3633 = vmatmul.mubr.f32.gmra.mxu0 %v3632
        %v3634 = vpop.f32.mrf.mxu0
        %v3635 = vadd.f32 %v3527, %v3634
        %v3636 = vpop.f32.mrf.mxu0
        %v3637 = vadd.f32 %v3529, %v3636
        %3638 = vmatprep.mubr.f32.mxu0 0.0
        %v3639 = vand.u32 %v2077, 4294901760
        %v3640 = vsub.f32 %v2077, %v3639
        %v3641 = vand.u32 %v3640, 4294901760
        %v3642 = vsub.f32 %v3640, %v3641
        %v3643 = vand.u32 %v3642, 4294901760
        %3644 = vmatmul.mubr.f32.gmra.mxu0 %v3643
        %v3645 = vpop.f32.mrf.mxu0
        %v3646 = vadd.f32 %v3535, %v3645
        %v3647 = vpop.f32.mrf.mxu0
        %v3648 = vadd.f32 %v3537, %v3647
        %3649 = vmatprep.mubr.f32.mxu0 0.0
        %v3650 = vand.u32 %v2080, 4294901760
        %v3651 = vsub.f32 %v2080, %v3650
        %v3652 = vand.u32 %v3651, 4294901760
        %v3653 = vsub.f32 %v3651, %v3652
        %v3654 = vand.u32 %v3653, 4294901760
        %3655 = vmatmul.mubr.f32.gmra.mxu0 %v3654
        %v3656 = vpop.f32.mrf.mxu0
        %v3657 = vadd.f32 %v3543, %v3656
        %v3658 = vpop.f32.mrf.mxu0
        %v3659 = vadd.f32 %v3545, %v3658
        %3660 = vmatprep.mubr.f32.mxu0 0.0
        %v3661 = vand.u32 %v2083, 4294901760
        %v3662 = vsub.f32 %v2083, %v3661
        %v3663 = vand.u32 %v3662, 4294901760
        %v3664 = vsub.f32 %v3662, %v3663
        %v3665 = vand.u32 %v3664, 4294901760
        %3666 = vmatmul.mubr.f32.gmra.mxu0 %v3665
        %v3667 = vpop.f32.mrf.mxu0
        %v3668 = vadd.f32 %v3551, %v3667
        %v3669 = vpop.f32.mrf.mxu0
        %v3670 = vadd.f32 %v3553, %v3669
        %3671 = vdwg.mxu0
        %3672 = vmatprep.subr.mxu0 0.0
        %3673 = vmatpush1.msra.mxu0 0.0
        %3674 = vmatprep.subr.mxu0 0.0
        %3675 = vmatpush1.msra.mxu0 0.0
        %3676 = vmatprep.subr.mxu0 0.0
        %3677 = vmatpush1.msra.mxu0 0.0
        %3678 = vmatprep.subr.mxu0 0.0
        %3679 = vmatpush1.msra.mxu0 0.0
        %3680 = vmatprep.subr.mxu0 0.0
        %3681 = vmatpush1.msra.mxu0 0.0
        %3682 = vmatprep.subr.mxu0 0.0
        %3683 = vmatpush1.msra.mxu0 0.0
        %3684 = vmatprep.subr.mxu0 0.0
        %3685 = vmatpush1.msra.mxu0 0.0
        %3686 = vmatprep.subr.mxu0 0.0
        %3687 = vmatpush1.msra.mxu0 0.0
        %3688 = vmatprep.subr.mxu0 0.0
        %3689 = vmatpush1.msra.mxu0 0.0
        %3690 = vmatprep.subr.mxu0 0.0
        %3691 = vmatpush1.msra.mxu0 0.0
        %3692 = vmatprep.subr.mxu0 0.0
        %3693 = vmatpush1.msra.mxu0 0.0
        %3694 = vmatprep.subr.mxu0 0.0
        %3695 = vmatpush1.msra.mxu0 0.0
        %v3696 = vand.u32 %v2071, 4294901760
        %v3697 = vsub.f32 %v2071, %v3696
        %v3698 = vand.u32 %v3697, 4294901760
        %v3699 = vsub.f32 %v3697, %v3698
        %v3700 = vand.u32 %v3699, 4294901760
        %3701 = vmatprep.subr.mxu0 %v3700
        %v3702 = vand.u32 %v2070, 4294901760
        %v3703 = vsub.f32 %v2070, %v3702
        %v3704 = vand.u32 %v3703, 4294901760
        %v3705 = vsub.f32 %v3703, %v3704
        %v3706 = vand.u32 %v3705, 4294901760
        %3707 = vmatpush1.msra.mxu0 %v3706
        %v3708 = vand.u32 %v2069, 4294901760
        %v3709 = vsub.f32 %v2069, %v3708
        %v3710 = vand.u32 %v3709, 4294901760
        %v3711 = vsub.f32 %v3709, %v3710
        %v3712 = vand.u32 %v3711, 4294901760
        %3713 = vmatprep.subr.mxu0 %v3712
        %v3714 = vand.u32 %v2068, 4294901760
        %v3715 = vsub.f32 %v2068, %v3714
        %v3716 = vand.u32 %v3715, 4294901760
        %v3717 = vsub.f32 %v3715, %v3716
        %v3718 = vand.u32 %v3717, 4294901760
        %3719 = vmatpush1.msra.mxu0 %v3718
        %v3720 = vand.u32 %v2067, 4294901760
        %v3721 = vsub.f32 %v2067, %v3720
        %v3722 = vand.u32 %v3721, 4294901760
        %v3723 = vsub.f32 %v3721, %v3722
        %v3724 = vand.u32 %v3723, 4294901760
        %3725 = vmatprep.subr.mxu0 %v3724
        %v3726 = vand.u32 %v2066, 4294901760
        %v3727 = vsub.f32 %v2066, %v3726
        %v3728 = vand.u32 %v3727, 4294901760
        %v3729 = vsub.f32 %v3727, %v3728
        %v3730 = vand.u32 %v3729, 4294901760
        %3731 = vmatpush1.msra.mxu0 %v3730
        %v3732 = vand.u32 %v2065, 4294901760
        %v3733 = vsub.f32 %v2065, %v3732
        %v3734 = vand.u32 %v3733, 4294901760
        %v3735 = vsub.f32 %v3733, %v3734
        %v3736 = vand.u32 %v3735, 4294901760
        %3737 = vmatprep.subr.mxu0 %v3736
        %v3738 = vand.u32 %v2064, 4294901760
        %v3739 = vsub.f32 %v2064, %v3738
        %v3740 = vand.u32 %v3739, 4294901760
        %v3741 = vsub.f32 %v3739, %v3740
        %v3742 = vand.u32 %v3741, 4294901760
        %3743 = vmatpush1.msra.mxu0 %v3742
        %3744 = vmatprep.subr.mxu0 0.0
        %3745 = vmatpush2.msra.mxu0 0.0
        %3746 = vmatprep.subr.mxu0 0.0
        %3747 = vmatpush2.msra.mxu0 0.0
        %3748 = vmatprep.subr.mxu0 0.0
        %3749 = vmatpush2.msra.mxu0 0.0
        %3750 = vmatprep.subr.mxu0 0.0
        %3751 = vmatpush2.msra.mxu0 0.0
        %3752 = vmatprep.subr.mxu0 0.0
        %3753 = vmatpush2.msra.mxu0 0.0
        %3754 = vmatprep.subr.mxu0 0.0
        %3755 = vmatpush2.msra.mxu0 0.0
        %3756 = vmatprep.subr.mxu0 0.0
        %3757 = vmatpush2.msra.mxu0 0.0
        %3758 = vmatprep.subr.mxu0 0.0
        %3759 = vmatpush2.msra.mxu0 0.0
        %3760 = vmatprep.subr.mxu0 0.0
        %3761 = vmatpush2.msra.mxu0 0.0
        %3762 = vmatprep.subr.mxu0 0.0
        %3763 = vmatpush2.msra.mxu0 0.0
        %3764 = vmatprep.subr.mxu0 0.0
        %3765 = vmatpush2.msra.mxu0 0.0
        %3766 = vmatprep.subr.mxu0 0.0
        %3767 = vmatpush2.msra.mxu0 0.0
        %3768 = vmatprep.subr.mxu0 0.0
        %3769 = vmatpush2.msra.mxu0 0.0
        %3770 = vmatprep.subr.mxu0 0.0
        %3771 = vmatpush2.msra.mxu0 0.0
        %3772 = vmatprep.subr.mxu0 0.0
        %3773 = vmatpush2.msra.mxu0 0.0
        %3774 = vmatprep.subr.mxu0 0.0
        %3775 = vmatpush2.msra.mxu0 0.0
        %3776 = vmatprep.mubr.f32.mxu0 0.0
        %v3777 = vand.u32 %v2074, 4294901760
        %3778 = vmatmul.mubr.f32.gmra.mxu0 %v3777
        %v3779 = vpop.f32.mrf.mxu0
        %v3780 = vadd.f32 %v3635, %v3779
        %v3781 = vpop.f32.mrf.mxu0
        %v3782 = vadd.f32 %v3637, %v3781
        %3783 = vmatprep.mubr.f32.mxu0 0.0
        %v3784 = vand.u32 %v2077, 4294901760
        %3785 = vmatmul.mubr.f32.gmra.mxu0 %v3784
        %v3786 = vpop.f32.mrf.mxu0
        %v3787 = vadd.f32 %v3646, %v3786
        %v3788 = vpop.f32.mrf.mxu0
        %v3789 = vadd.f32 %v3648, %v3788
        %3790 = vmatprep.mubr.f32.mxu0 0.0
        %v3791 = vand.u32 %v2080, 4294901760
        %3792 = vmatmul.mubr.f32.gmra.mxu0 %v3791
        %v3793 = vpop.f32.mrf.mxu0
        %v3794 = vadd.f32 %v3657, %v3793
        %v3795 = vpop.f32.mrf.mxu0
        %v3796 = vadd.f32 %v3659, %v3795
        %3797 = vmatprep.mubr.f32.mxu0 0.0
        %v3798 = vand.u32 %v2083, 4294901760
        %3799 = vmatmul.mubr.f32.gmra.mxu0 %v3798
        %v3800 = vpop.f32.mrf.mxu0
        %v3801 = vadd.f32 %v3668, %v3800
        %v3802 = vpop.f32.mrf.mxu0
        %v3803 = vadd.f32 %v3670, %v3802
        %3804 = vdwg.mxu0
        %3805 = vmatprep.subr.mxu0 0.0
        %3806 = vmatpush1.msra.mxu0 0.0
        %3807 = vmatprep.subr.mxu0 0.0
        %3808 = vmatpush1.msra.mxu0 0.0
        %3809 = vmatprep.subr.mxu0 0.0
        %3810 = vmatpush1.msra.mxu0 0.0
        %3811 = vmatprep.subr.mxu0 0.0
        %3812 = vmatpush1.msra.mxu0 0.0
        %3813 = vmatprep.subr.mxu0 0.0
        %3814 = vmatpush1.msra.mxu0 0.0
        %3815 = vmatprep.subr.mxu0 0.0
        %3816 = vmatpush1.msra.mxu0 0.0
        %3817 = vmatprep.subr.mxu0 0.0
        %3818 = vmatpush1.msra.mxu0 0.0
        %3819 = vmatprep.subr.mxu0 0.0
        %3820 = vmatpush1.msra.mxu0 0.0
        %3821 = vmatprep.subr.mxu0 0.0
        %3822 = vmatpush1.msra.mxu0 0.0
        %3823 = vmatprep.subr.mxu0 0.0
        %3824 = vmatpush1.msra.mxu0 0.0
        %3825 = vmatprep.subr.mxu0 0.0
        %3826 = vmatpush1.msra.mxu0 0.0
        %3827 = vmatprep.subr.mxu0 0.0
        %3828 = vmatpush1.msra.mxu0 0.0
        %v3829 = vand.u32 %v2071, 4294901760
        %v3830 = vsub.f32 %v2071, %v3829
        %3831 = vmatprep.subr.mxu0 %v3830
        %v3832 = vand.u32 %v2070, 4294901760
        %v3833 = vsub.f32 %v2070, %v3832
        %3834 = vmatpush1.msra.mxu0 %v3833
        %v3835 = vand.u32 %v2069, 4294901760
        %v3836 = vsub.f32 %v2069, %v3835
        %3837 = vmatprep.subr.mxu0 %v3836
        %v3838 = vand.u32 %v2068, 4294901760
        %v3839 = vsub.f32 %v2068, %v3838
        %3840 = vmatpush1.msra.mxu0 %v3839
        %v3841 = vand.u32 %v2067, 4294901760
        %v3842 = vsub.f32 %v2067, %v3841
        %3843 = vmatprep.subr.mxu0 %v3842
        %v3844 = vand.u32 %v2066, 4294901760
        %v3845 = vsub.f32 %v2066, %v3844
        %3846 = vmatpush1.msra.mxu0 %v3845
        %v3847 = vand.u32 %v2065, 4294901760
        %v3848 = vsub.f32 %v2065, %v3847
        %3849 = vmatprep.subr.mxu0 %v3848
        %v3850 = vand.u32 %v2064, 4294901760
        %v3851 = vsub.f32 %v2064, %v3850
        %3852 = vmatpush1.msra.mxu0 %v3851
        %3853 = vmatprep.subr.mxu0 0.0
        %3854 = vmatpush2.msra.mxu0 0.0
        %3855 = vmatprep.subr.mxu0 0.0
        %3856 = vmatpush2.msra.mxu0 0.0
        %3857 = vmatprep.subr.mxu0 0.0
        %3858 = vmatpush2.msra.mxu0 0.0
        %3859 = vmatprep.subr.mxu0 0.0
        %3860 = vmatpush2.msra.mxu0 0.0
        %3861 = vmatprep.subr.mxu0 0.0
        %3862 = vmatpush2.msra.mxu0 0.0
        %3863 = vmatprep.subr.mxu0 0.0
        %3864 = vmatpush2.msra.mxu0 0.0
        %3865 = vmatprep.subr.mxu0 0.0
        %3866 = vmatpush2.msra.mxu0 0.0
        %3867 = vmatprep.subr.mxu0 0.0
        %3868 = vmatpush2.msra.mxu0 0.0
        %3869 = vmatprep.subr.mxu0 0.0
        %3870 = vmatpush2.msra.mxu0 0.0
        %3871 = vmatprep.subr.mxu0 0.0
        %3872 = vmatpush2.msra.mxu0 0.0
        %3873 = vmatprep.subr.mxu0 0.0
        %3874 = vmatpush2.msra.mxu0 0.0
        %3875 = vmatprep.subr.mxu0 0.0
        %3876 = vmatpush2.msra.mxu0 0.0
        %3877 = vmatprep.subr.mxu0 0.0
        %3878 = vmatpush2.msra.mxu0 0.0
        %3879 = vmatprep.subr.mxu0 0.0
        %3880 = vmatpush2.msra.mxu0 0.0
        %3881 = vmatprep.subr.mxu0 0.0
        %3882 = vmatpush2.msra.mxu0 0.0
        %3883 = vmatprep.subr.mxu0 0.0
        %3884 = vmatpush2.msra.mxu0 0.0
        %3885 = vmatprep.mubr.f32.mxu0 0.0
        %v3886 = vand.u32 %v2074, 4294901760
        %v3887 = vsub.f32 %v2074, %v3886
        %3888 = vmatmul.mubr.f32.gmra.mxu0 %v3887
        %v3889 = vpop.f32.mrf.mxu0
        %v3890 = vadd.f32 %v3780, %v3889
        %v3891 = vpop.f32.mrf.mxu0
        %v3892 = vadd.f32 %v3782, %v3891
        %3893 = vmatprep.mubr.f32.mxu0 0.0
        %v3894 = vand.u32 %v2077, 4294901760
        %v3895 = vsub.f32 %v2077, %v3894
        %3896 = vmatmul.mubr.f32.gmra.mxu0 %v3895
        %v3897 = vpop.f32.mrf.mxu0
        %v3898 = vadd.f32 %v3787, %v3897
        %v3899 = vpop.f32.mrf.mxu0
        %v3900 = vadd.f32 %v3789, %v3899
        %3901 = vmatprep.mubr.f32.mxu0 0.0
        %v3902 = vand.u32 %v2080, 4294901760
        %v3903 = vsub.f32 %v2080, %v3902
        %3904 = vmatmul.mubr.f32.gmra.mxu0 %v3903
        %v3905 = vpop.f32.mrf.mxu0
        %v3906 = vadd.f32 %v3794, %v3905
        %v3907 = vpop.f32.mrf.mxu0
        %v3908 = vadd.f32 %v3796, %v3907
        %3909 = vmatprep.mubr.f32.mxu0 0.0
        %v3910 = vand.u32 %v2083, 4294901760
        %v3911 = vsub.f32 %v2083, %v3910
        %3912 = vmatmul.mubr.f32.gmra.mxu0 %v3911
        %v3913 = vpop.f32.mrf.mxu0
        %v3914 = vadd.f32 %v3801, %v3913
        %v3915 = vpop.f32.mrf.mxu0
        %v3916 = vadd.f32 %v3803, %v3915
        %3917 = vdwg.mxu0
        %3918 = vmatprep.subr.mxu0 0.0
        %3919 = vmatpush1.msra.mxu0 0.0
        %3920 = vmatprep.subr.mxu0 0.0
        %3921 = vmatpush1.msra.mxu0 0.0
        %3922 = vmatprep.subr.mxu0 0.0
        %3923 = vmatpush1.msra.mxu0 0.0
        %3924 = vmatprep.subr.mxu0 0.0
        %3925 = vmatpush1.msra.mxu0 0.0
        %3926 = vmatprep.subr.mxu0 0.0
        %3927 = vmatpush1.msra.mxu0 0.0
        %3928 = vmatprep.subr.mxu0 0.0
        %3929 = vmatpush1.msra.mxu0 0.0
        %3930 = vmatprep.subr.mxu0 0.0
        %3931 = vmatpush1.msra.mxu0 0.0
        %3932 = vmatprep.subr.mxu0 0.0
        %3933 = vmatpush1.msra.mxu0 0.0
        %3934 = vmatprep.subr.mxu0 0.0
        %3935 = vmatpush1.msra.mxu0 0.0
        %3936 = vmatprep.subr.mxu0 0.0
        %3937 = vmatpush1.msra.mxu0 0.0
        %3938 = vmatprep.subr.mxu0 0.0
        %3939 = vmatpush1.msra.mxu0 0.0
        %3940 = vmatprep.subr.mxu0 0.0
        %3941 = vmatpush1.msra.mxu0 0.0
        %v3942 = vand.u32 %v2071, 4294901760
        %3943 = vmatprep.subr.mxu0 %v3942
        %v3944 = vand.u32 %v2070, 4294901760
        %3945 = vmatpush1.msra.mxu0 %v3944
        %v3946 = vand.u32 %v2069, 4294901760
        %3947 = vmatprep.subr.mxu0 %v3946
        %v3948 = vand.u32 %v2068, 4294901760
        %3949 = vmatpush1.msra.mxu0 %v3948
        %v3950 = vand.u32 %v2067, 4294901760
        %3951 = vmatprep.subr.mxu0 %v3950
        %v3952 = vand.u32 %v2066, 4294901760
        %3953 = vmatpush1.msra.mxu0 %v3952
        %v3954 = vand.u32 %v2065, 4294901760
        %3955 = vmatprep.subr.mxu0 %v3954
        %v3956 = vand.u32 %v2064, 4294901760
        %3957 = vmatpush1.msra.mxu0 %v3956
        %3958 = vmatprep.subr.mxu0 0.0
        %3959 = vmatpush2.msra.mxu0 0.0
        %3960 = vmatprep.subr.mxu0 0.0
        %3961 = vmatpush2.msra.mxu0 0.0
        %3962 = vmatprep.subr.mxu0 0.0
        %3963 = vmatpush2.msra.mxu0 0.0
        %3964 = vmatprep.subr.mxu0 0.0
        %3965 = vmatpush2.msra.mxu0 0.0
        %3966 = vmatprep.subr.mxu0 0.0
        %3967 = vmatpush2.msra.mxu0 0.0
        %3968 = vmatprep.subr.mxu0 0.0
        %3969 = vmatpush2.msra.mxu0 0.0
        %3970 = vmatprep.subr.mxu0 0.0
        %3971 = vmatpush2.msra.mxu0 0.0
        %3972 = vmatprep.subr.mxu0 0.0
        %3973 = vmatpush2.msra.mxu0 0.0
        %3974 = vmatprep.subr.mxu0 0.0
        %3975 = vmatpush2.msra.mxu0 0.0
        %3976 = vmatprep.subr.mxu0 0.0
        %3977 = vmatpush2.msra.mxu0 0.0
        %3978 = vmatprep.subr.mxu0 0.0
        %3979 = vmatpush2.msra.mxu0 0.0
        %3980 = vmatprep.subr.mxu0 0.0
        %3981 = vmatpush2.msra.mxu0 0.0
        %3982 = vmatprep.subr.mxu0 0.0
        %3983 = vmatpush2.msra.mxu0 0.0
        %3984 = vmatprep.subr.mxu0 0.0
        %3985 = vmatpush2.msra.mxu0 0.0
        %3986 = vmatprep.subr.mxu0 0.0
        %3987 = vmatpush2.msra.mxu0 0.0
        %3988 = vmatprep.subr.mxu0 0.0
        %3989 = vmatpush2.msra.mxu0 0.0
        %3990 = vmatprep.mubr.f32.mxu0 0.0
        %v3991 = vand.u32 %v2074, 4294901760
        %v3992 = vsub.f32 %v2074, %v3991
        %v3993 = vand.u32 %v3992, 4294901760
        %3994 = vmatmul.mubr.f32.gmra.mxu0 %v3993
        %v3995 = vpop.f32.mrf.mxu0
        %v3996 = vadd.f32 %v3890, %v3995
        %v3997 = vpop.f32.mrf.mxu0
        %v3998 = vadd.f32 %v3892, %v3997
        %3999 = vmatprep.mubr.f32.mxu0 0.0
        %v4000 = vand.u32 %v2077, 4294901760
        %v4001 = vsub.f32 %v2077, %v4000
        %v4002 = vand.u32 %v4001, 4294901760
        %4003 = vmatmul.mubr.f32.gmra.mxu0 %v4002
        %v4004 = vpop.f32.mrf.mxu0
        %v4005 = vadd.f32 %v3898, %v4004
        %v4006 = vpop.f32.mrf.mxu0
        %v4007 = vadd.f32 %v3900, %v4006
        %4008 = vmatprep.mubr.f32.mxu0 0.0
        %v4009 = vand.u32 %v2080, 4294901760
        %v4010 = vsub.f32 %v2080, %v4009
        %v4011 = vand.u32 %v4010, 4294901760
        %4012 = vmatmul.mubr.f32.gmra.mxu0 %v4011
        %v4013 = vpop.f32.mrf.mxu0
        %v4014 = vadd.f32 %v3906, %v4013
        %v4015 = vpop.f32.mrf.mxu0
        %v4016 = vadd.f32 %v3908, %v4015
        %4017 = vmatprep.mubr.f32.mxu0 0.0
        %v4018 = vand.u32 %v2083, 4294901760
        %v4019 = vsub.f32 %v2083, %v4018
        %v4020 = vand.u32 %v4019, 4294901760
        %4021 = vmatmul.mubr.f32.gmra.mxu0 %v4020
        %v4022 = vpop.f32.mrf.mxu0
        %v4023 = vadd.f32 %v3914, %v4022
        %v4024 = vpop.f32.mrf.mxu0
        %v4025 = vadd.f32 %v3916, %v4024
        %4026 = vdwg.mxu0
        %4027 = vmatprep.subr.mxu0 0.0
        %4028 = vmatpush1.msra.mxu0 0.0
        %4029 = vmatprep.subr.mxu0 0.0
        %4030 = vmatpush1.msra.mxu0 0.0
        %4031 = vmatprep.subr.mxu0 0.0
        %4032 = vmatpush1.msra.mxu0 0.0
        %4033 = vmatprep.subr.mxu0 0.0
        %4034 = vmatpush1.msra.mxu0 0.0
        %4035 = vmatprep.subr.mxu0 0.0
        %4036 = vmatpush1.msra.mxu0 0.0
        %4037 = vmatprep.subr.mxu0 0.0
        %4038 = vmatpush1.msra.mxu0 0.0
        %4039 = vmatprep.subr.mxu0 0.0
        %4040 = vmatpush1.msra.mxu0 0.0
        %4041 = vmatprep.subr.mxu0 0.0
        %4042 = vmatpush1.msra.mxu0 0.0
        %4043 = vmatprep.subr.mxu0 0.0
        %4044 = vmatpush1.msra.mxu0 0.0
        %4045 = vmatprep.subr.mxu0 0.0
        %4046 = vmatpush1.msra.mxu0 0.0
        %4047 = vmatprep.subr.mxu0 0.0
        %4048 = vmatpush1.msra.mxu0 0.0
        %4049 = vmatprep.subr.mxu0 0.0
        %4050 = vmatpush1.msra.mxu0 0.0
        %v4051 = vand.u32 %v2071, 4294901760
        %v4052 = vsub.f32 %v2071, %v4051
        %v4053 = vand.u32 %v4052, 4294901760
        %4054 = vmatprep.subr.mxu0 %v4053
        %v4055 = vand.u32 %v2070, 4294901760
        %v4056 = vsub.f32 %v2070, %v4055
        %v4057 = vand.u32 %v4056, 4294901760
        %4058 = vmatpush1.msra.mxu0 %v4057
        %v4059 = vand.u32 %v2069, 4294901760
        %v4060 = vsub.f32 %v2069, %v4059
        %v4061 = vand.u32 %v4060, 4294901760
        %4062 = vmatprep.subr.mxu0 %v4061
        %v4063 = vand.u32 %v2068, 4294901760
        %v4064 = vsub.f32 %v2068, %v4063
        %v4065 = vand.u32 %v4064, 4294901760
        %4066 = vmatpush1.msra.mxu0 %v4065
        %v4067 = vand.u32 %v2067, 4294901760
        %v4068 = vsub.f32 %v2067, %v4067
        %v4069 = vand.u32 %v4068, 4294901760
        %4070 = vmatprep.subr.mxu0 %v4069
        %v4071 = vand.u32 %v2066, 4294901760
        %v4072 = vsub.f32 %v2066, %v4071
        %v4073 = vand.u32 %v4072, 4294901760
        %4074 = vmatpush1.msra.mxu0 %v4073
        %v4075 = vand.u32 %v2065, 4294901760
        %v4076 = vsub.f32 %v2065, %v4075
        %v4077 = vand.u32 %v4076, 4294901760
        %4078 = vmatprep.subr.mxu0 %v4077
        %v4079 = vand.u32 %v2064, 4294901760
        %v4080 = vsub.f32 %v2064, %v4079
        %v4081 = vand.u32 %v4080, 4294901760
        %4082 = vmatpush1.msra.mxu0 %v4081
        %4083 = vmatprep.subr.mxu0 0.0
        %4084 = vmatpush2.msra.mxu0 0.0
        %4085 = vmatprep.subr.mxu0 0.0
        %4086 = vmatpush2.msra.mxu0 0.0
        %4087 = vmatprep.subr.mxu0 0.0
        %4088 = vmatpush2.msra.mxu0 0.0
        %4089 = vmatprep.subr.mxu0 0.0
        %4090 = vmatpush2.msra.mxu0 0.0
        %4091 = vmatprep.subr.mxu0 0.0
        %4092 = vmatpush2.msra.mxu0 0.0
        %4093 = vmatprep.subr.mxu0 0.0
        %4094 = vmatpush2.msra.mxu0 0.0
        %4095 = vmatprep.subr.mxu0 0.0
        %4096 = vmatpush2.msra.mxu0 0.0
        %4097 = vmatprep.subr.mxu0 0.0
        %4098 = vmatpush2.msra.mxu0 0.0
        %4099 = vmatprep.subr.mxu0 0.0
        %4100 = vmatpush2.msra.mxu0 0.0
        %4101 = vmatprep.subr.mxu0 0.0
        %4102 = vmatpush2.msra.mxu0 0.0
        %4103 = vmatprep.subr.mxu0 0.0
        %4104 = vmatpush2.msra.mxu0 0.0
        %4105 = vmatprep.subr.mxu0 0.0
        %4106 = vmatpush2.msra.mxu0 0.0
        %4107 = vmatprep.subr.mxu0 0.0
        %4108 = vmatpush2.msra.mxu0 0.0
        %4109 = vmatprep.subr.mxu0 0.0
        %4110 = vmatpush2.msra.mxu0 0.0
        %4111 = vmatprep.subr.mxu0 0.0
        %4112 = vmatpush2.msra.mxu0 0.0
        %4113 = vmatprep.subr.mxu0 0.0
        %4114 = vmatpush2.msra.mxu0 0.0
        %4115 = vmatprep.mubr.f32.mxu0 0.0
        %v4116 = vand.u32 %v2074, 4294901760
        %4117 = vmatmul.mubr.f32.gmra.mxu0 %v4116
        %v4118 = vpop.f32.mrf.mxu0
        %v4119 = vadd.f32 %v3996, %v4118
        %v4120 = vpop.f32.mrf.mxu0
        %v4121 = vadd.f32 %v3998, %v4120
        %4122 = vmatprep.mubr.f32.mxu0 0.0
        %v4123 = vand.u32 %v2077, 4294901760
        %4124 = vmatmul.mubr.f32.gmra.mxu0 %v4123
        %v4125 = vpop.f32.mrf.mxu0
        %v4126 = vadd.f32 %v4005, %v4125
        %v4127 = vpop.f32.mrf.mxu0
        %v4128 = vadd.f32 %v4007, %v4127
        %4129 = vmatprep.mubr.f32.mxu0 0.0
        %v4130 = vand.u32 %v2080, 4294901760
        %4131 = vmatmul.mubr.f32.gmra.mxu0 %v4130
        %v4132 = vpop.f32.mrf.mxu0
        %v4133 = vadd.f32 %v4014, %v4132
        %v4134 = vpop.f32.mrf.mxu0
        %v4135 = vadd.f32 %v4016, %v4134
        %4136 = vmatprep.mubr.f32.mxu0 0.0
        %v4137 = vand.u32 %v2083, 4294901760
        %4138 = vmatmul.mubr.f32.gmra.mxu0 %v4137
        %v4139 = vpop.f32.mrf.mxu0
        %v4140 = vadd.f32 %v4023, %v4139
        %v4141 = vpop.f32.mrf.mxu0
        %v4142 = vadd.f32 %v4025, %v4141
        %4143 = vdwg.mxu0
        %4144 = vmatprep.subr.mxu0 0.0
        %4145 = vmatpush1.msra.mxu0 0.0
        %4146 = vmatprep.subr.mxu0 0.0
        %4147 = vmatpush1.msra.mxu0 0.0
        %4148 = vmatprep.subr.mxu0 0.0
        %4149 = vmatpush1.msra.mxu0 0.0
        %4150 = vmatprep.subr.mxu0 0.0
        %4151 = vmatpush1.msra.mxu0 0.0
        %4152 = vmatprep.subr.mxu0 0.0
        %4153 = vmatpush1.msra.mxu0 0.0
        %4154 = vmatprep.subr.mxu0 0.0
        %4155 = vmatpush1.msra.mxu0 0.0
        %4156 = vmatprep.subr.mxu0 0.0
        %4157 = vmatpush1.msra.mxu0 0.0
        %4158 = vmatprep.subr.mxu0 0.0
        %4159 = vmatpush1.msra.mxu0 0.0
        %4160 = vmatprep.subr.mxu0 0.0
        %4161 = vmatpush1.msra.mxu0 0.0
        %4162 = vmatprep.subr.mxu0 0.0
        %4163 = vmatpush1.msra.mxu0 0.0
        %4164 = vmatprep.subr.mxu0 0.0
        %4165 = vmatpush1.msra.mxu0 0.0
        %4166 = vmatprep.subr.mxu0 0.0
        %4167 = vmatpush1.msra.mxu0 0.0
        %v4168 = vand.u32 %v2071, 4294901760
        %4169 = vmatprep.subr.mxu0 %v4168
        %v4170 = vand.u32 %v2070, 4294901760
        %4171 = vmatpush1.msra.mxu0 %v4170
        %v4172 = vand.u32 %v2069, 4294901760
        %4173 = vmatprep.subr.mxu0 %v4172
        %v4174 = vand.u32 %v2068, 4294901760
        %4175 = vmatpush1.msra.mxu0 %v4174
        %v4176 = vand.u32 %v2067, 4294901760
        %4177 = vmatprep.subr.mxu0 %v4176
        %v4178 = vand.u32 %v2066, 4294901760
        %4179 = vmatpush1.msra.mxu0 %v4178
        %v4180 = vand.u32 %v2065, 4294901760
        %4181 = vmatprep.subr.mxu0 %v4180
        %v4182 = vand.u32 %v2064, 4294901760
        %4183 = vmatpush1.msra.mxu0 %v4182
        %4184 = vmatprep.subr.mxu0 0.0
        %4185 = vmatpush2.msra.mxu0 0.0
        %4186 = vmatprep.subr.mxu0 0.0
        %4187 = vmatpush2.msra.mxu0 0.0
        %4188 = vmatprep.subr.mxu0 0.0
        %4189 = vmatpush2.msra.mxu0 0.0
        %4190 = vmatprep.subr.mxu0 0.0
        %4191 = vmatpush2.msra.mxu0 0.0
        %4192 = vmatprep.subr.mxu0 0.0
        %4193 = vmatpush2.msra.mxu0 0.0
        %4194 = vmatprep.subr.mxu0 0.0
        %4195 = vmatpush2.msra.mxu0 0.0
        %4196 = vmatprep.subr.mxu0 0.0
        %4197 = vmatpush2.msra.mxu0 0.0
        %4198 = vmatprep.subr.mxu0 0.0
        %4199 = vmatpush2.msra.mxu0 0.0
        %4200 = vmatprep.subr.mxu0 0.0
        %4201 = vmatpush2.msra.mxu0 0.0
        %4202 = vmatprep.subr.mxu0 0.0
        %4203 = vmatpush2.msra.mxu0 0.0
        %4204 = vmatprep.subr.mxu0 0.0
        %4205 = vmatpush2.msra.mxu0 0.0
        %4206 = vmatprep.subr.mxu0 0.0
        %4207 = vmatpush2.msra.mxu0 0.0
        %4208 = vmatprep.subr.mxu0 0.0
        %4209 = vmatpush2.msra.mxu0 0.0
        %4210 = vmatprep.subr.mxu0 0.0
        %4211 = vmatpush2.msra.mxu0 0.0
        %4212 = vmatprep.subr.mxu0 0.0
        %4213 = vmatpush2.msra.mxu0 0.0
        %4214 = vmatprep.subr.mxu0 0.0
        %4215 = vmatpush2.msra.mxu0 0.0
        %4216 = vmatprep.mubr.f32.mxu0 0.0
        %v4217 = vand.u32 %v2074, 4294901760
        %4218 = vmatmul.mubr.f32.gmra.mxu0 %v4217
        %v4219 = vpop.f32.mrf.mxu0
        %v4220 = vadd.f32 %v4119, %v4219
        %v4221 = vpop.f32.mrf.mxu0
        %v4222 = vadd.f32 %v4121, %v4221
        %4223 = vmatprep.mubr.f32.mxu0 0.0
        %v4224 = vand.u32 %v2077, 4294901760
        %4225 = vmatmul.mubr.f32.gmra.mxu0 %v4224
        %v4226 = vpop.f32.mrf.mxu0
        %v4227 = vadd.f32 %v4126, %v4226
        %v4228 = vpop.f32.mrf.mxu0
        %v4229 = vadd.f32 %v4128, %v4228
        %4230 = vmatprep.mubr.f32.mxu0 0.0
        %v4231 = vand.u32 %v2080, 4294901760
        %4232 = vmatmul.mubr.f32.gmra.mxu0 %v4231
        %v4233 = vpop.f32.mrf.mxu0
        %v4234 = vadd.f32 %v4133, %v4233
        %v4235 = vpop.f32.mrf.mxu0
        %v4236 = vadd.f32 %v4135, %v4235
        %4237 = vmatprep.mubr.f32.mxu0 0.0
        %v4238 = vand.u32 %v2083, 4294901760
        %4239 = vmatmul.mubr.f32.gmra.mxu0 %v4238
        %v4240 = vpop.f32.mrf.mxu0
        %v4241 = vadd.f32 %v4140, %v4240
        %v4242 = vpop.f32.mrf.mxu0
        %v4243 = vadd.f32 %v4142, %v4242
        %4244 = vdwg.mxu0
        %v4245 = vmax.f32 %v4220, 0.0
        %v4246 = vmax.f32 %v4222, 0.0
        %v4247 = vmax.f32 %v4227, 0.0
        %v4248 = vmax.f32 %v4229, 0.0
        %v4249 = vmax.f32 %v4234, 0.0
        %v4250 = vmax.f32 %v4236, 0.0
        %v4251 = vmax.f32 %v4241, 0.0
        %v4252 = vmax.f32 %v4243, 0.0
        %4253 = vst [vmem:[#allocation2 + $0x8] sm:$0xff] %v4245
        %4254 = vst [vmem:[#allocation2 + $0x10] sm:$0xff] %v4246
        %4255 = vst [vmem:[#allocation2 + $0x28] sm:$0xff] %v4247
        %4256 = vst [vmem:[#allocation2 + $0x30] sm:$0xff] %v4248
        %4257 = vst [vmem:[#allocation2 + $0x48] sm:$0xff] %v4249
        %4258 = vst [vmem:[#allocation2 + $0x50] sm:$0xff] %v4250
        %4259 = vst [vmem:[#allocation2 + $0x68] sm:$0xff] %v4251
        %4260 = vst [vmem:[#allocation2 + $0x70] sm:$0xff] %v4252
        %v4261 = vld [vmem:[#allocation9] sm:$0x1f]
        %v4262 = vld [vmem:[#allocation9 + $0x8] sm:$0x1f]
        %v4263 = vld [vmem:[#allocation9 + $0x10] sm:$0x1f]
        %v4264 = vld [vmem:[#allocation2] sm:$0xff]
        %v4265 = vld [vmem:[#allocation2 + $0x8] sm:$0xff]
        %v4266 = vld [vmem:[#allocation2 + $0x10] sm:$0xff]
        %v4267 = vld [vmem:[#allocation2 + $0x20] sm:$0xff]
        %v4268 = vld [vmem:[#allocation2 + $0x28] sm:$0xff]
        %v4269 = vld [vmem:[#allocation2 + $0x30] sm:$0xff]
        %v4270 = vld [vmem:[#allocation2 + $0x40] sm:$0xff]
        %v4271 = vld [vmem:[#allocation2 + $0x48] sm:$0xff]
        %v4272 = vld [vmem:[#allocation2 + $0x50] sm:$0xff]
        %v4273 = vld [vmem:[#allocation2 + $0x60] sm:$0xff]
        %v4274 = vld [vmem:[#allocation2 + $0x68] sm:$0xff]
        %v4275 = vld [vmem:[#allocation2 + $0x70] sm:$0xff]
        %4288 = vrot.lane.b32.xlu0 %v4264, 17
        %v4289 = vpop.permute.xlu0 %4288
        %4290 = vrot.lane.b32.xlu0 %v4265, 17
        %v4291 = vpop.permute.xlu0 %4290
        %4292 = vrot.lane.b32.xlu0 %v4266, 17
        %v4293 = vpop.permute.xlu0 %4292
        %4294 = vrot.lane.b32.xlu0 %v4267, 17
        %v4295 = vpop.permute.xlu0 %4294
        %4296 = vrot.lane.b32.xlu0 %v4268, 17
        %v4297 = vpop.permute.xlu0 %4296
        %4298 = vrot.lane.b32.xlu0 %v4269, 17
        %v4299 = vpop.permute.xlu0 %4298
        %4300 = vrot.lane.b32.xlu0 %v4270, 17
        %v4301 = vpop.permute.xlu0 %4300
        %4302 = vrot.lane.b32.xlu0 %v4271, 17
        %v4303 = vpop.permute.xlu0 %4302
        %4304 = vrot.lane.b32.xlu0 %v4272, 17
        %v4305 = vpop.permute.xlu0 %4304
        %4306 = vrot.lane.b32.xlu0 %v4273, 17
        %v4307 = vpop.permute.xlu0 %4306
        %4308 = vrot.lane.b32.xlu0 %v4274, 17
        %v4309 = vpop.permute.xlu0 %4308
        %4310 = vrot.lane.b32.xlu0 %v4275, 17
        %v4311 = vpop.permute.xlu0 %4310
        %v4312 = vsel %vm321, %v4289, %v4291
        %v4313 = vsel %vm321, %v4291, %v4293
        %v4314 = vsel %vm321, %v4295, %v4297
        %v4315 = vsel %vm321, %v4297, %v4299
        %v4316 = vsel %vm321, %v4301, %v4303
        %v4317 = vsel %vm321, %v4303, %v4305
        %v4318 = vsel %vm321, %v4307, %v4309
        %v4319 = vsel %vm321, %v4309, %v4311
        %v4328 = vsel %vm310, %v4312, 0.0
        %v4329 = vsel %vm311, %v4313, 0.0
        %v4330 = vsel %vm310, %v4314, 0.0
        %v4331 = vsel %vm311, %v4315, 0.0
        %v4332 = vsel %vm310, %v4316, 0.0
        %v4333 = vsel %vm311, %v4317, 0.0
        %v4334 = vsel %vm310, %v4318, 0.0
        %v4335 = vsel %vm311, %v4319, 0.0
        %4336 = vst [vmem:[#allocation3] sm:$0xff] %v4328
        %4337 = vst [vmem:[#allocation3 + $0x8] sm:$0xff] %v4329
        %4338 = vst [vmem:[#allocation3 + $0x10] sm:$0xff] %v4330
        %4339 = vst [vmem:[#allocation3 + $0x18] sm:$0xff] %v4331
        %4340 = vst [vmem:[#allocation3 + $0x20] sm:$0xff] %v4332
        %4341 = vst [vmem:[#allocation3 + $0x28] sm:$0xff] %v4333
        %4342 = vst [vmem:[#allocation3 + $0x30] sm:$0xff] %v4334
        %4343 = vst [vmem:[#allocation3 + $0x38] sm:$0xff] %v4335
        %v4344 = vld [vmem:[#allocation2] sm:$0xff]
        %v4345 = vld [vmem:[#allocation2 + $0x8] sm:$0xff]
        %v4346 = vld [vmem:[#allocation2 + $0x10] sm:$0xff]
        %v4347 = vld [vmem:[#allocation2 + $0x20] sm:$0xff]
        %v4348 = vld [vmem:[#allocation2 + $0x28] sm:$0xff]
        %v4349 = vld [vmem:[#allocation2 + $0x30] sm:$0xff]
        %v4350 = vld [vmem:[#allocation2 + $0x40] sm:$0xff]
        %v4351 = vld [vmem:[#allocation2 + $0x48] sm:$0xff]
        %v4352 = vld [vmem:[#allocation2 + $0x50] sm:$0xff]
        %v4353 = vld [vmem:[#allocation2 + $0x60] sm:$0xff]
        %v4354 = vld [vmem:[#allocation2 + $0x68] sm:$0xff]
        %v4355 = vld [vmem:[#allocation2 + $0x70] sm:$0xff]
        %4368 = vrot.lane.b32.xlu0 %v4344, 16
        %v4369 = vpop.permute.xlu0 %4368
        %4370 = vrot.lane.b32.xlu0 %v4345, 16
        %v4371 = vpop.permute.xlu0 %4370
        %4372 = vrot.lane.b32.xlu0 %v4346, 16
        %v4373 = vpop.permute.xlu0 %4372
        %4374 = vrot.lane.b32.xlu0 %v4347, 16
        %v4375 = vpop.permute.xlu0 %4374
        %4376 = vrot.lane.b32.xlu0 %v4348, 16
        %v4377 = vpop.permute.xlu0 %4376
        %4378 = vrot.lane.b32.xlu0 %v4349, 16
        %v4379 = vpop.permute.xlu0 %4378
        %4380 = vrot.lane.b32.xlu0 %v4350, 16
        %v4381 = vpop.permute.xlu0 %4380
        %4382 = vrot.lane.b32.xlu0 %v4351, 16
        %v4383 = vpop.permute.xlu0 %4382
        %4384 = vrot.lane.b32.xlu0 %v4352, 16
        %v4385 = vpop.permute.xlu0 %4384
        %4386 = vrot.lane.b32.xlu0 %v4353, 16
        %v4387 = vpop.permute.xlu0 %4386
        %4388 = vrot.lane.b32.xlu0 %v4354, 16
        %v4389 = vpop.permute.xlu0 %4388
        %4390 = vrot.lane.b32.xlu0 %v4355, 16
        %v4391 = vpop.permute.xlu0 %4390
        %v4392 = vsel %vm342, %v4369, %v4371
        %v4393 = vsel %vm342, %v4371, %v4373
        %v4394 = vsel %vm342, %v4375, %v4377
        %v4395 = vsel %vm342, %v4377, %v4379
        %v4396 = vsel %vm342, %v4381, %v4383
        %v4397 = vsel %vm342, %v4383, %v4385
        %v4398 = vsel %vm342, %v4387, %v4389
        %v4399 = vsel %vm342, %v4389, %v4391
        %4408 = vst [vmem:[#allocation3 + $0x40] sm:$0xff] %v4392
        %4409 = vst [vmem:[#allocation3 + $0x48] sm:$0xff] %v4393
        %4410 = vst [vmem:[#allocation3 + $0x50] sm:$0xff] %v4394
        %4411 = vst [vmem:[#allocation3 + $0x58] sm:$0xff] %v4395
        %4412 = vst [vmem:[#allocation3 + $0x60] sm:$0xff] %v4396
        %4413 = vst [vmem:[#allocation3 + $0x68] sm:$0xff] %v4397
        %4414 = vst [vmem:[#allocation3 + $0x70] sm:$0xff] %v4398
        %4415 = vst [vmem:[#allocation3 + $0x78] sm:$0xff] %v4399
        %v4416 = vld [vmem:[#allocation2] sm:$0xff]
        %v4417 = vld [vmem:[#allocation2 + $0x8] sm:$0xff]
        %v4418 = vld [vmem:[#allocation2 + $0x10] sm:$0xff]
        %v4419 = vld [vmem:[#allocation2 + $0x20] sm:$0xff]
        %v4420 = vld [vmem:[#allocation2 + $0x28] sm:$0xff]
        %v4421 = vld [vmem:[#allocation2 + $0x30] sm:$0xff]
        %v4422 = vld [vmem:[#allocation2 + $0x40] sm:$0xff]
        %v4423 = vld [vmem:[#allocation2 + $0x48] sm:$0xff]
        %v4424 = vld [vmem:[#allocation2 + $0x50] sm:$0xff]
        %v4425 = vld [vmem:[#allocation2 + $0x60] sm:$0xff]
        %v4426 = vld [vmem:[#allocation2 + $0x68] sm:$0xff]
        %v4427 = vld [vmem:[#allocation2 + $0x70] sm:$0xff]
        %4440 = vrot.lane.b32.xlu0 %v4416, 15
        %v4441 = vpop.permute.xlu0 %4440
        %4442 = vrot.lane.b32.xlu0 %v4417, 15
        %v4443 = vpop.permute.xlu0 %4442
        %4444 = vrot.lane.b32.xlu0 %v4418, 15
        %v4445 = vpop.permute.xlu0 %4444
        %4446 = vrot.lane.b32.xlu0 %v4419, 15
        %v4447 = vpop.permute.xlu0 %4446
        %4448 = vrot.lane.b32.xlu0 %v4420, 15
        %v4449 = vpop.permute.xlu0 %4448
        %4450 = vrot.lane.b32.xlu0 %v4421, 15
        %v4451 = vpop.permute.xlu0 %4450
        %4452 = vrot.lane.b32.xlu0 %v4422, 15
        %v4453 = vpop.permute.xlu0 %4452
        %4454 = vrot.lane.b32.xlu0 %v4423, 15
        %v4455 = vpop.permute.xlu0 %4454
        %4456 = vrot.lane.b32.xlu0 %v4424, 15
        %v4457 = vpop.permute.xlu0 %4456
        %4458 = vrot.lane.b32.xlu0 %v4425, 15
        %v4459 = vpop.permute.xlu0 %4458
        %4460 = vrot.lane.b32.xlu0 %v4426, 15
        %v4461 = vpop.permute.xlu0 %4460
        %4462 = vrot.lane.b32.xlu0 %v4427, 15
        %v4463 = vpop.permute.xlu0 %4462
        %v4464 = vsel %vm365, %v4441, %v4443
        %v4465 = vsel %vm365, %v4443, %v4445
        %v4466 = vsel %vm365, %v4447, %v4449
        %v4467 = vsel %vm365, %v4449, %v4451
        %v4468 = vsel %vm365, %v4453, %v4455
        %v4469 = vsel %vm365, %v4455, %v4457
        %v4470 = vsel %vm365, %v4459, %v4461
        %v4471 = vsel %vm365, %v4461, %v4463
        %v4480 = vsel %vm354, %v4464, 0.0
        %v4481 = vsel %vm355, %v4465, 0.0
        %v4482 = vsel %vm354, %v4466, 0.0
        %v4483 = vsel %vm355, %v4467, 0.0
        %v4484 = vsel %vm354, %v4468, 0.0
        %v4485 = vsel %vm355, %v4469, 0.0
        %v4486 = vsel %vm354, %v4470, 0.0
        %v4487 = vsel %vm355, %v4471, 0.0
        %4488 = vst [vmem:[#allocation3 + $0x80] sm:$0xff] %v4480
        %4489 = vst [vmem:[#allocation3 + $0x88] sm:$0xff] %v4481
        %4490 = vst [vmem:[#allocation3 + $0x90] sm:$0xff] %v4482
        %4491 = vst [vmem:[#allocation3 + $0x98] sm:$0xff] %v4483
        %4492 = vst [vmem:[#allocation3 + $0xa0] sm:$0xff] %v4484
        %4493 = vst [vmem:[#allocation3 + $0xa8] sm:$0xff] %v4485
        %4494 = vst [vmem:[#allocation3 + $0xb0] sm:$0xff] %v4486
        %4495 = vst [vmem:[#allocation3 + $0xb8] sm:$0xff] %v4487
        %v4496 = vld [vmem:[#allocation2] sm:$0xff]
        %v4497 = vld [vmem:[#allocation2 + $0x8] sm:$0xff]
        %v4498 = vld [vmem:[#allocation2 + $0x10] sm:$0xff]
        %v4499 = vld [vmem:[#allocation2 + $0x20] sm:$0xff]
        %v4500 = vld [vmem:[#allocation2 + $0x28] sm:$0xff]
        %v4501 = vld [vmem:[#allocation2 + $0x30] sm:$0xff]
        %v4502 = vld [vmem:[#allocation2 + $0x40] sm:$0xff]
        %v4503 = vld [vmem:[#allocation2 + $0x48] sm:$0xff]
        %v4504 = vld [vmem:[#allocation2 + $0x50] sm:$0xff]
        %v4505 = vld [vmem:[#allocation2 + $0x60] sm:$0xff]
        %v4506 = vld [vmem:[#allocation2 + $0x68] sm:$0xff]
        %v4507 = vld [vmem:[#allocation2 + $0x70] sm:$0xff]
        %4520 = vrot.lane.b32.xlu0 %v4496, 1
        %v4521 = vpop.permute.xlu0 %4520
        %4522 = vrot.lane.b32.xlu0 %v4497, 1
        %v4523 = vpop.permute.xlu0 %4522
        %4524 = vrot.lane.b32.xlu0 %v4498, 1
        %v4525 = vpop.permute.xlu0 %4524
        %4526 = vrot.lane.b32.xlu0 %v4499, 1
        %v4527 = vpop.permute.xlu0 %4526
        %4528 = vrot.lane.b32.xlu0 %v4500, 1
        %v4529 = vpop.permute.xlu0 %4528
        %4530 = vrot.lane.b32.xlu0 %v4501, 1
        %v4531 = vpop.permute.xlu0 %4530
        %4532 = vrot.lane.b32.xlu0 %v4502, 1
        %v4533 = vpop.permute.xlu0 %4532
        %4534 = vrot.lane.b32.xlu0 %v4503, 1
        %v4535 = vpop.permute.xlu0 %4534
        %4536 = vrot.lane.b32.xlu0 %v4504, 1
        %v4537 = vpop.permute.xlu0 %4536
        %4538 = vrot.lane.b32.xlu0 %v4505, 1
        %v4539 = vpop.permute.xlu0 %4538
        %4540 = vrot.lane.b32.xlu0 %v4506, 1
        %v4541 = vpop.permute.xlu0 %4540
        %4542 = vrot.lane.b32.xlu0 %v4507, 1
        %v4543 = vpop.permute.xlu0 %4542
        %v4544 = vsel %vm386, %v4521, %v4523
        %v4545 = vsel %vm386, %v4523, %v4525
        %v4546 = vsel %vm386, %v4527, %v4529
        %v4547 = vsel %vm386, %v4529, %v4531
        %v4548 = vsel %vm386, %v4533, %v4535
        %v4549 = vsel %vm386, %v4535, %v4537
        %v4550 = vsel %vm386, %v4539, %v4541
        %v4551 = vsel %vm386, %v4541, %v4543
        %v4560 = vsel %vm310, %v4544, 0.0
        %v4561 = vsel %vm311, %v4545, 0.0
        %v4562 = vsel %vm310, %v4546, 0.0
        %v4563 = vsel %vm311, %v4547, 0.0
        %v4564 = vsel %vm310, %v4548, 0.0
        %v4565 = vsel %vm311, %v4549, 0.0
        %v4566 = vsel %vm310, %v4550, 0.0
        %v4567 = vsel %vm311, %v4551, 0.0
        %4568 = vst [vmem:[#allocation3 + $0xc0] sm:$0xff] %v4560
        %4569 = vst [vmem:[#allocation3 + $0xc8] sm:$0xff] %v4561
        %4570 = vst [vmem:[#allocation3 + $0xd0] sm:$0xff] %v4562
        %4571 = vst [vmem:[#allocation3 + $0xd8] sm:$0xff] %v4563
        %4572 = vst [vmem:[#allocation3 + $0xe0] sm:$0xff] %v4564
        %4573 = vst [vmem:[#allocation3 + $0xe8] sm:$0xff] %v4565
        %4574 = vst [vmem:[#allocation3 + $0xf0] sm:$0xff] %v4566
        %4575 = vst [vmem:[#allocation3 + $0xf8] sm:$0xff] %v4567
        %v4576 = vld [vmem:[#allocation2 + $0x8] sm:$0xff]
        %v4577 = vld [vmem:[#allocation2 + $0x10] sm:$0xff]
        %v4578 = vld [vmem:[#allocation2 + $0x28] sm:$0xff]
        %v4579 = vld [vmem:[#allocation2 + $0x30] sm:$0xff]
        %v4580 = vld [vmem:[#allocation2 + $0x48] sm:$0xff]
        %v4581 = vld [vmem:[#allocation2 + $0x50] sm:$0xff]
        %v4582 = vld [vmem:[#allocation2 + $0x68] sm:$0xff]
        %v4583 = vld [vmem:[#allocation2 + $0x70] sm:$0xff]
        %4584 = vst [vmem:[#allocation3 + $0x100] sm:$0xff] %v4576
        %4585 = vst [vmem:[#allocation3 + $0x108] sm:$0xff] %v4577
        %4586 = vst [vmem:[#allocation3 + $0x110] sm:$0xff] %v4578
        %4587 = vst [vmem:[#allocation3 + $0x118] sm:$0xff] %v4579
        %4588 = vst [vmem:[#allocation3 + $0x120] sm:$0xff] %v4580
        %4589 = vst [vmem:[#allocation3 + $0x128] sm:$0xff] %v4581
        %4590 = vst [vmem:[#allocation3 + $0x130] sm:$0xff] %v4582
        %4591 = vst [vmem:[#allocation3 + $0x138] sm:$0xff] %v4583
        %v4592 = vld [vmem:[#allocation2 + $0x8] sm:$0xff]
        %v4593 = vld [vmem:[#allocation2 + $0x10] sm:$0xff]
        %v4594 = vld [vmem:[#allocation2 + $0x18] sm:$0xff]
        %v4595 = vld [vmem:[#allocation2 + $0x28] sm:$0xff]
        %v4596 = vld [vmem:[#allocation2 + $0x30] sm:$0xff]
        %v4597 = vld [vmem:[#allocation2 + $0x38] sm:$0xff]
        %v4598 = vld [vmem:[#allocation2 + $0x48] sm:$0xff]
        %v4599 = vld [vmem:[#allocation2 + $0x50] sm:$0xff]
        %v4600 = vld [vmem:[#allocation2 + $0x58] sm:$0xff]
        %v4601 = vld [vmem:[#allocation2 + $0x68] sm:$0xff]
        %v4602 = vld [vmem:[#allocation2 + $0x70] sm:$0xff]
        %v4603 = vld [vmem:[#allocation2 + $0x78] sm:$0xff]
        %4616 = vrot.lane.b32.xlu0 %v4592, 127
        %v4617 = vpop.permute.xlu0 %4616
        %4618 = vrot.lane.b32.xlu0 %v4593, 127
        %v4619 = vpop.permute.xlu0 %4618
        %4620 = vrot.lane.b32.xlu0 %v4594, 127
        %v4621 = vpop.permute.xlu0 %4620
        %4622 = vrot.lane.b32.xlu0 %v4595, 127
        %v4623 = vpop.permute.xlu0 %4622
        %4624 = vrot.lane.b32.xlu0 %v4596, 127
        %v4625 = vpop.permute.xlu0 %4624
        %4626 = vrot.lane.b32.xlu0 %v4597, 127
        %v4627 = vpop.permute.xlu0 %4626
        %4628 = vrot.lane.b32.xlu0 %v4598, 127
        %v4629 = vpop.permute.xlu0 %4628
        %4630 = vrot.lane.b32.xlu0 %v4599, 127
        %v4631 = vpop.permute.xlu0 %4630
        %4632 = vrot.lane.b32.xlu0 %v4600, 127
        %v4633 = vpop.permute.xlu0 %4632
        %4634 = vrot.lane.b32.xlu0 %v4601, 127
        %v4635 = vpop.permute.xlu0 %4634
        %4636 = vrot.lane.b32.xlu0 %v4602, 127
        %v4637 = vpop.permute.xlu0 %4636
        %4638 = vrot.lane.b32.xlu0 %v4603, 127
        %v4639 = vpop.permute.xlu0 %4638
        %v4640 = vsel %vm411, %v4617, %v4619
        %v4641 = vsel %vm411, %v4619, %v4621
        %v4642 = vsel %vm411, %v4623, %v4625
        %v4643 = vsel %vm411, %v4625, %v4627
        %v4644 = vsel %vm411, %v4629, %v4631
        %v4645 = vsel %vm411, %v4631, %v4633
        %v4646 = vsel %vm411, %v4635, %v4637
        %v4647 = vsel %vm411, %v4637, %v4639
        %v4656 = vsel %vm354, %v4640, 0.0
        %v4657 = vsel %vm355, %v4641, 0.0
        %v4658 = vsel %vm354, %v4642, 0.0
        %v4659 = vsel %vm355, %v4643, 0.0
        %v4660 = vsel %vm354, %v4644, 0.0
        %v4661 = vsel %vm355, %v4645, 0.0
        %v4662 = vsel %vm354, %v4646, 0.0
        %v4663 = vsel %vm355, %v4647, 0.0
        %4664 = vst [vmem:[#allocation3 + $0x140] sm:$0xff] %v4656
        %4665 = vst [vmem:[#allocation3 + $0x148] sm:$0xff] %v4657
        %4666 = vst [vmem:[#allocation3 + $0x150] sm:$0xff] %v4658
        %4667 = vst [vmem:[#allocation3 + $0x158] sm:$0xff] %v4659
        %4668 = vst [vmem:[#allocation3 + $0x160] sm:$0xff] %v4660
        %4669 = vst [vmem:[#allocation3 + $0x168] sm:$0xff] %v4661
        %4670 = vst [vmem:[#allocation3 + $0x170] sm:$0xff] %v4662
        %4671 = vst [vmem:[#allocation3 + $0x178] sm:$0xff] %v4663
        %v4672 = vld [vmem:[#allocation2 + $0x8] sm:$0xff]
        %v4673 = vld [vmem:[#allocation2 + $0x10] sm:$0xff]
        %v4674 = vld [vmem:[#allocation2 + $0x18] sm:$0xff]
        %v4675 = vld [vmem:[#allocation2 + $0x28] sm:$0xff]
        %v4676 = vld [vmem:[#allocation2 + $0x30] sm:$0xff]
        %v4677 = vld [vmem:[#allocation2 + $0x38] sm:$0xff]
        %v4678 = vld [vmem:[#allocation2 + $0x48] sm:$0xff]
        %v4679 = vld [vmem:[#allocation2 + $0x50] sm:$0xff]
        %v4680 = vld [vmem:[#allocation2 + $0x58] sm:$0xff]
        %v4681 = vld [vmem:[#allocation2 + $0x68] sm:$0xff]
        %v4682 = vld [vmem:[#allocation2 + $0x70] sm:$0xff]
        %v4683 = vld [vmem:[#allocation2 + $0x78] sm:$0xff]
        %4696 = vrot.lane.b32.xlu0 %v4672, 113
        %v4697 = vpop.permute.xlu0 %4696
        %4698 = vrot.lane.b32.xlu0 %v4673, 113
        %v4699 = vpop.permute.xlu0 %4698
        %4700 = vrot.lane.b32.xlu0 %v4674, 113
        %v4701 = vpop.permute.xlu0 %4700
        %4702 = vrot.lane.b32.xlu0 %v4675, 113
        %v4703 = vpop.permute.xlu0 %4702
        %4704 = vrot.lane.b32.xlu0 %v4676, 113
        %v4705 = vpop.permute.xlu0 %4704
        %4706 = vrot.lane.b32.xlu0 %v4677, 113
        %v4707 = vpop.permute.xlu0 %4706
        %4708 = vrot.lane.b32.xlu0 %v4678, 113
        %v4709 = vpop.permute.xlu0 %4708
        %4710 = vrot.lane.b32.xlu0 %v4679, 113
        %v4711 = vpop.permute.xlu0 %4710
        %4712 = vrot.lane.b32.xlu0 %v4680, 113
        %v4713 = vpop.permute.xlu0 %4712
        %4714 = vrot.lane.b32.xlu0 %v4681, 113
        %v4715 = vpop.permute.xlu0 %4714
        %4716 = vrot.lane.b32.xlu0 %v4682, 113
        %v4717 = vpop.permute.xlu0 %4716
        %4718 = vrot.lane.b32.xlu0 %v4683, 113
        %v4719 = vpop.permute.xlu0 %4718
        %v4720 = vsel %vm432, %v4697, %v4699
        %v4721 = vsel %vm432, %v4699, %v4701
        %v4722 = vsel %vm432, %v4703, %v4705
        %v4723 = vsel %vm432, %v4705, %v4707
        %v4724 = vsel %vm432, %v4709, %v4711
        %v4725 = vsel %vm432, %v4711, %v4713
        %v4726 = vsel %vm432, %v4715, %v4717
        %v4727 = vsel %vm432, %v4717, %v4719
        %v4736 = vsel %vm310, %v4720, 0.0
        %v4737 = vsel %vm311, %v4721, 0.0
        %v4738 = vsel %vm310, %v4722, 0.0
        %v4739 = vsel %vm311, %v4723, 0.0
        %v4740 = vsel %vm310, %v4724, 0.0
        %v4741 = vsel %vm311, %v4725, 0.0
        %v4742 = vsel %vm310, %v4726, 0.0
        %v4743 = vsel %vm311, %v4727, 0.0
        %4744 = vst [vmem:[#allocation3 + $0x180] sm:$0xff] %v4736
        %4745 = vst [vmem:[#allocation3 + $0x188] sm:$0xff] %v4737
        %4746 = vst [vmem:[#allocation3 + $0x190] sm:$0xff] %v4738
        %4747 = vst [vmem:[#allocation3 + $0x198] sm:$0xff] %v4739
        %4748 = vst [vmem:[#allocation3 + $0x1a0] sm:$0xff] %v4740
        %4749 = vst [vmem:[#allocation3 + $0x1a8] sm:$0xff] %v4741
        %4750 = vst [vmem:[#allocation3 + $0x1b0] sm:$0xff] %v4742
        %4751 = vst [vmem:[#allocation3 + $0x1b8] sm:$0xff] %v4743
        %v4752 = vld [vmem:[#allocation2 + $0x8] sm:$0xff]
        %v4753 = vld [vmem:[#allocation2 + $0x10] sm:$0xff]
        %v4754 = vld [vmem:[#allocation2 + $0x18] sm:$0xff]
        %v4755 = vld [vmem:[#allocation2 + $0x28] sm:$0xff]
        %v4756 = vld [vmem:[#allocation2 + $0x30] sm:$0xff]
        %v4757 = vld [vmem:[#allocation2 + $0x38] sm:$0xff]
        %v4758 = vld [vmem:[#allocation2 + $0x48] sm:$0xff]
        %v4759 = vld [vmem:[#allocation2 + $0x50] sm:$0xff]
        %v4760 = vld [vmem:[#allocation2 + $0x58] sm:$0xff]
        %v4761 = vld [vmem:[#allocation2 + $0x68] sm:$0xff]
        %v4762 = vld [vmem:[#allocation2 + $0x70] sm:$0xff]
        %v4763 = vld [vmem:[#allocation2 + $0x78] sm:$0xff]
        %4776 = vrot.lane.b32.xlu0 %v4752, 112
        %v4777 = vpop.permute.xlu0 %4776
        %4778 = vrot.lane.b32.xlu0 %v4753, 112
        %v4779 = vpop.permute.xlu0 %4778
        %4780 = vrot.lane.b32.xlu0 %v4754, 112
        %v4781 = vpop.permute.xlu0 %4780
        %4782 = vrot.lane.b32.xlu0 %v4755, 112
        %v4783 = vpop.permute.xlu0 %4782
        %4784 = vrot.lane.b32.xlu0 %v4756, 112
        %v4785 = vpop.permute.xlu0 %4784
        %4786 = vrot.lane.b32.xlu0 %v4757, 112
        %v4787 = vpop.permute.xlu0 %4786
        %4788 = vrot.lane.b32.xlu0 %v4758, 112
        %v4789 = vpop.permute.xlu0 %4788
        %4790 = vrot.lane.b32.xlu0 %v4759, 112
        %v4791 = vpop.permute.xlu0 %4790
        %4792 = vrot.lane.b32.xlu0 %v4760, 112
        %v4793 = vpop.permute.xlu0 %4792
        %4794 = vrot.lane.b32.xlu0 %v4761, 112
        %v4795 = vpop.permute.xlu0 %4794
        %4796 = vrot.lane.b32.xlu0 %v4762, 112
        %v4797 = vpop.permute.xlu0 %4796
        %4798 = vrot.lane.b32.xlu0 %v4763, 112
        %v4799 = vpop.permute.xlu0 %4798
        %v4800 = vsel %vm453, %v4777, %v4779
        %v4801 = vsel %vm453, %v4779, %v4781
        %v4802 = vsel %vm453, %v4783, %v4785
        %v4803 = vsel %vm453, %v4785, %v4787
        %v4804 = vsel %vm453, %v4789, %v4791
        %v4805 = vsel %vm453, %v4791, %v4793
        %v4806 = vsel %vm453, %v4795, %v4797
        %v4807 = vsel %vm453, %v4797, %v4799
        %4816 = vst [vmem:[#allocation3 + $0x1c0] sm:$0xff] %v4800
        %4817 = vst [vmem:[#allocation3 + $0x1c8] sm:$0xff] %v4801
        %4818 = vst [vmem:[#allocation3 + $0x1d0] sm:$0xff] %v4802
        %4819 = vst [vmem:[#allocation3 + $0x1d8] sm:$0xff] %v4803
        %4820 = vst [vmem:[#allocation3 + $0x1e0] sm:$0xff] %v4804
        %4821 = vst [vmem:[#allocation3 + $0x1e8] sm:$0xff] %v4805
        %4822 = vst [vmem:[#allocation3 + $0x1f0] sm:$0xff] %v4806
        %4823 = vst [vmem:[#allocation3 + $0x1f8] sm:$0xff] %v4807
        %v4824 = vld [vmem:[#allocation2 + $0x8] sm:$0xff]
        %v4825 = vld [vmem:[#allocation2 + $0x10] sm:$0xff]
        %v4826 = vld [vmem:[#allocation2 + $0x18] sm:$0xff]
        %v4827 = vld [vmem:[#allocation2 + $0x28] sm:$0xff]
        %v4828 = vld [vmem:[#allocation2 + $0x30] sm:$0xff]
        %v4829 = vld [vmem:[#allocation2 + $0x38] sm:$0xff]
        %v4830 = vld [vmem:[#allocation2 + $0x48] sm:$0xff]
        %v4831 = vld [vmem:[#allocation2 + $0x50] sm:$0xff]
        %v4832 = vld [vmem:[#allocation2 + $0x58] sm:$0xff]
        %v4833 = vld [vmem:[#allocation2 + $0x68] sm:$0xff]
        %v4834 = vld [vmem:[#allocation2 + $0x70] sm:$0xff]
        %v4835 = vld [vmem:[#allocation2 + $0x78] sm:$0xff]
        %4848 = vrot.lane.b32.xlu0 %v4824, 111
        %v4849 = vpop.permute.xlu0 %4848
        %4850 = vrot.lane.b32.xlu0 %v4825, 111
        %v4851 = vpop.permute.xlu0 %4850
        %4852 = vrot.lane.b32.xlu0 %v4826, 111
        %v4853 = vpop.permute.xlu0 %4852
        %4854 = vrot.lane.b32.xlu0 %v4827, 111
        %v4855 = vpop.permute.xlu0 %4854
        %4856 = vrot.lane.b32.xlu0 %v4828, 111
        %v4857 = vpop.permute.xlu0 %4856
        %4858 = vrot.lane.b32.xlu0 %v4829, 111
        %v4859 = vpop.permute.xlu0 %4858
        %4860 = vrot.lane.b32.xlu0 %v4830, 111
        %v4861 = vpop.permute.xlu0 %4860
        %4862 = vrot.lane.b32.xlu0 %v4831, 111
        %v4863 = vpop.permute.xlu0 %4862
        %4864 = vrot.lane.b32.xlu0 %v4832, 111
        %v4865 = vpop.permute.xlu0 %4864
        %4866 = vrot.lane.b32.xlu0 %v4833, 111
        %v4867 = vpop.permute.xlu0 %4866
        %4868 = vrot.lane.b32.xlu0 %v4834, 111
        %v4869 = vpop.permute.xlu0 %4868
        %4870 = vrot.lane.b32.xlu0 %v4835, 111
        %v4871 = vpop.permute.xlu0 %4870
        %v4872 = vsel %vm472, %v4849, %v4851
        %v4873 = vsel %vm472, %v4851, %v4853
        %v4874 = vsel %vm472, %v4855, %v4857
        %v4875 = vsel %vm472, %v4857, %v4859
        %v4876 = vsel %vm472, %v4861, %v4863
        %v4877 = vsel %vm472, %v4863, %v4865
        %v4878 = vsel %vm472, %v4867, %v4869
        %v4879 = vsel %vm472, %v4869, %v4871
        %v4888 = vsel %vm354, %v4872, 0.0
        %v4889 = vsel %vm355, %v4873, 0.0
        %v4890 = vsel %vm354, %v4874, 0.0
        %v4891 = vsel %vm355, %v4875, 0.0
        %v4892 = vsel %vm354, %v4876, 0.0
        %v4893 = vsel %vm355, %v4877, 0.0
        %v4894 = vsel %vm354, %v4878, 0.0
        %v4895 = vsel %vm355, %v4879, 0.0
        %4896 = vst [vmem:[#allocation3 + $0x200] sm:$0xff] %v4888
        %4897 = vst [vmem:[#allocation3 + $0x208] sm:$0xff] %v4889
        %4898 = vst [vmem:[#allocation3 + $0x210] sm:$0xff] %v4890
        %4899 = vst [vmem:[#allocation3 + $0x218] sm:$0xff] %v4891
        %4900 = vst [vmem:[#allocation3 + $0x220] sm:$0xff] %v4892
        %4901 = vst [vmem:[#allocation3 + $0x228] sm:$0xff] %v4893
        %4902 = vst [vmem:[#allocation3 + $0x230] sm:$0xff] %v4894
        %4903 = vst [vmem:[#allocation3 + $0x238] sm:$0xff] %v4895
        %v4904 = vld [vmem:[#allocation3] sm:$0xff]
        %v4905 = vld [vmem:[#allocation3 + $0x8] sm:$0xff]
        %v4906 = vld [vmem:[#allocation3 + $0x10] sm:$0xff]
        %v4907 = vld [vmem:[#allocation3 + $0x18] sm:$0xff]
        %v4908 = vld [vmem:[#allocation3 + $0x20] sm:$0xff]
        %v4909 = vld [vmem:[#allocation3 + $0x28] sm:$0xff]
        %v4910 = vld [vmem:[#allocation3 + $0x30] sm:$0xff]
        %v4911 = vld [vmem:[#allocation3 + $0x38] sm:$0xff]
        %v4912 = vld [vmem:[#allocation3 + $0x40] sm:$0xff]
        %v4913 = vld [vmem:[#allocation3 + $0x48] sm:$0xff]
        %v4914 = vld [vmem:[#allocation3 + $0x50] sm:$0xff]
        %v4915 = vld [vmem:[#allocation3 + $0x58] sm:$0xff]
        %v4916 = vld [vmem:[#allocation3 + $0x60] sm:$0xff]
        %v4917 = vld [vmem:[#allocation3 + $0x68] sm:$0xff]
        %v4918 = vld [vmem:[#allocation3 + $0x70] sm:$0xff]
        %v4919 = vld [vmem:[#allocation3 + $0x78] sm:$0xff]
        %v4920 = vld [vmem:[#allocation3 + $0x80] sm:$0xff]
        %v4921 = vld [vmem:[#allocation3 + $0x88] sm:$0xff]
        %v4922 = vld [vmem:[#allocation3 + $0x90] sm:$0xff]
        %v4923 = vld [vmem:[#allocation3 + $0x98] sm:$0xff]
        %v4924 = vld [vmem:[#allocation3 + $0xa0] sm:$0xff]
        %v4925 = vld [vmem:[#allocation3 + $0xa8] sm:$0xff]
        %v4926 = vld [vmem:[#allocation3 + $0xb0] sm:$0xff]
        %v4927 = vld [vmem:[#allocation3 + $0xb8] sm:$0xff]
        %v4928 = vld [vmem:[#allocation3 + $0xc0] sm:$0xff]
        %v4929 = vld [vmem:[#allocation3 + $0xc8] sm:$0xff]
        %v4930 = vld [vmem:[#allocation3 + $0xd0] sm:$0xff]
        %v4931 = vld [vmem:[#allocation3 + $0xd8] sm:$0xff]
        %v4932 = vld [vmem:[#allocation3 + $0xe0] sm:$0xff]
        %v4933 = vld [vmem:[#allocation3 + $0xe8] sm:$0xff]
        %v4934 = vld [vmem:[#allocation3 + $0xf0] sm:$0xff]
        %v4935 = vld [vmem:[#allocation3 + $0xf8] sm:$0xff]
        %v4936 = vld [vmem:[#allocation3 + $0x100] sm:$0xff]
        %v4937 = vld [vmem:[#allocation3 + $0x108] sm:$0xff]
        %v4938 = vld [vmem:[#allocation3 + $0x110] sm:$0xff]
        %v4939 = vld [vmem:[#allocation3 + $0x118] sm:$0xff]
        %v4940 = vld [vmem:[#allocation3 + $0x120] sm:$0xff]
        %v4941 = vld [vmem:[#allocation3 + $0x128] sm:$0xff]
        %v4942 = vld [vmem:[#allocation3 + $0x130] sm:$0xff]
        %v4943 = vld [vmem:[#allocation3 + $0x138] sm:$0xff]
        %v4944 = vld [vmem:[#allocation3 + $0x140] sm:$0xff]
        %v4945 = vld [vmem:[#allocation3 + $0x148] sm:$0xff]
        %v4946 = vld [vmem:[#allocation3 + $0x150] sm:$0xff]
        %v4947 = vld [vmem:[#allocation3 + $0x158] sm:$0xff]
        %v4948 = vld [vmem:[#allocation3 + $0x160] sm:$0xff]
        %v4949 = vld [vmem:[#allocation3 + $0x168] sm:$0xff]
        %v4950 = vld [vmem:[#allocation3 + $0x170] sm:$0xff]
        %v4951 = vld [vmem:[#allocation3 + $0x178] sm:$0xff]
        %v4952 = vld [vmem:[#allocation3 + $0x180] sm:$0xff]
        %v4953 = vld [vmem:[#allocation3 + $0x188] sm:$0xff]
        %v4954 = vld [vmem:[#allocation3 + $0x190] sm:$0xff]
        %v4955 = vld [vmem:[#allocation3 + $0x198] sm:$0xff]
        %v4956 = vld [vmem:[#allocation3 + $0x1a0] sm:$0xff]
        %v4957 = vld [vmem:[#allocation3 + $0x1a8] sm:$0xff]
        %v4958 = vld [vmem:[#allocation3 + $0x1b0] sm:$0xff]
        %v4959 = vld [vmem:[#allocation3 + $0x1b8] sm:$0xff]
        %v4960 = vld [vmem:[#allocation3 + $0x1c0] sm:$0xff]
        %v4961 = vld [vmem:[#allocation3 + $0x1c8] sm:$0xff]
        %v4962 = vld [vmem:[#allocation3 + $0x1d0] sm:$0xff]
        %v4963 = vld [vmem:[#allocation3 + $0x1d8] sm:$0xff]
        %v4964 = vld [vmem:[#allocation3 + $0x1e0] sm:$0xff]
        %v4965 = vld [vmem:[#allocation3 + $0x1e8] sm:$0xff]
        %v4966 = vld [vmem:[#allocation3 + $0x1f0] sm:$0xff]
        %v4967 = vld [vmem:[#allocation3 + $0x1f8] sm:$0xff]
        %v4968 = vld [vmem:[#allocation3 + $0x200] sm:$0xff]
        %v4969 = vld [vmem:[#allocation3 + $0x208] sm:$0xff]
        %v4970 = vld [vmem:[#allocation3 + $0x210] sm:$0xff]
        %v4971 = vld [vmem:[#allocation3 + $0x218] sm:$0xff]
        %v4972 = vld [vmem:[#allocation3 + $0x220] sm:$0xff]
        %v4973 = vld [vmem:[#allocation3 + $0x228] sm:$0xff]
        %v4974 = vld [vmem:[#allocation3 + $0x230] sm:$0xff]
        %v4975 = vld [vmem:[#allocation3 + $0x238] sm:$0xff]
        %v4977 = vsel %vm2072, %v4263, 0
        %v4979 = vand.u32 %v4935, 4294901760
        %4980 = vmatprep.subr.mxu0 %v4979
        %v4981 = vand.u32 %v4934, 4294901760
        %4982 = vmatpush1.msra.mxu0 %v4981
        %v4983 = vand.u32 %v4933, 4294901760
        %4984 = vmatprep.subr.mxu0 %v4983
        %v4985 = vand.u32 %v4932, 4294901760
        %4986 = vmatpush1.msra.mxu0 %v4985
        %v4987 = vand.u32 %v4931, 4294901760
        %4988 = vmatprep.subr.mxu0 %v4987
        %v4989 = vand.u32 %v4930, 4294901760
        %4990 = vmatpush1.msra.mxu0 %v4989
        %v4991 = vand.u32 %v4929, 4294901760
        %4992 = vmatprep.subr.mxu0 %v4991
        %v4993 = vand.u32 %v4928, 4294901760
        %4994 = vmatpush1.msra.mxu0 %v4993
        %v4995 = vand.u32 %v4927, 4294901760
        %4996 = vmatprep.subr.mxu0 %v4995
        %v4997 = vand.u32 %v4926, 4294901760
        %4998 = vmatpush1.msra.mxu0 %v4997
        %v4999 = vand.u32 %v4925, 4294901760
        %5000 = vmatprep.subr.mxu0 %v4999
        %v5001 = vand.u32 %v4924, 4294901760
        %5002 = vmatpush1.msra.mxu0 %v5001
        %v5003 = vand.u32 %v4923, 4294901760
        %5004 = vmatprep.subr.mxu0 %v5003
        %v5005 = vand.u32 %v4922, 4294901760
        %5006 = vmatpush1.msra.mxu0 %v5005
        %v5007 = vand.u32 %v4921, 4294901760
        %5008 = vmatprep.subr.mxu0 %v5007
        %v5009 = vand.u32 %v4920, 4294901760
        %5010 = vmatpush1.msra.mxu0 %v5009
        %v5011 = vand.u32 %v4919, 4294901760
        %5012 = vmatprep.subr.mxu0 %v5011
        %v5013 = vand.u32 %v4918, 4294901760
        %5014 = vmatpush1.msra.mxu0 %v5013
        %v5015 = vand.u32 %v4917, 4294901760
        %5016 = vmatprep.subr.mxu0 %v5015
        %v5017 = vand.u32 %v4916, 4294901760
        %5018 = vmatpush1.msra.mxu0 %v5017
        %v5019 = vand.u32 %v4915, 4294901760
        %5020 = vmatprep.subr.mxu0 %v5019
        %v5021 = vand.u32 %v4914, 4294901760
        %5022 = vmatpush1.msra.mxu0 %v5021
        %v5023 = vand.u32 %v4913, 4294901760
        %5024 = vmatprep.subr.mxu0 %v5023
        %v5025 = vand.u32 %v4912, 4294901760
        %5026 = vmatpush1.msra.mxu0 %v5025
        %v5027 = vand.u32 %v4911, 4294901760
        %5028 = vmatprep.subr.mxu0 %v5027
        %v5029 = vand.u32 %v4910, 4294901760
        %5030 = vmatpush1.msra.mxu0 %v5029
        %v5031 = vand.u32 %v4909, 4294901760
        %5032 = vmatprep.subr.mxu0 %v5031
        %v5033 = vand.u32 %v4908, 4294901760
        %5034 = vmatpush1.msra.mxu0 %v5033
        %v5035 = vand.u32 %v4907, 4294901760
        %5036 = vmatprep.subr.mxu0 %v5035
        %v5037 = vand.u32 %v4906, 4294901760
        %5038 = vmatpush1.msra.mxu0 %v5037
        %v5039 = vand.u32 %v4905, 4294901760
        %5040 = vmatprep.subr.mxu0 %v5039
        %v5041 = vand.u32 %v4904, 4294901760
        %5042 = vmatpush1.msra.mxu0 %v5041
        %v5043 = vand.u32 %v4967, 4294901760
        %5044 = vmatprep.subr.mxu0 %v5043
        %v5045 = vand.u32 %v4966, 4294901760
        %5046 = vmatpush2.msra.mxu0 %v5045
        %v5047 = vand.u32 %v4965, 4294901760
        %5048 = vmatprep.subr.mxu0 %v5047
        %v5049 = vand.u32 %v4964, 4294901760
        %5050 = vmatpush2.msra.mxu0 %v5049
        %v5051 = vand.u32 %v4963, 4294901760
        %5052 = vmatprep.subr.mxu0 %v5051
        %v5053 = vand.u32 %v4962, 4294901760
        %5054 = vmatpush2.msra.mxu0 %v5053
        %v5055 = vand.u32 %v4961, 4294901760
        %5056 = vmatprep.subr.mxu0 %v5055
        %v5057 = vand.u32 %v4960, 4294901760
        %5058 = vmatpush2.msra.mxu0 %v5057
        %v5059 = vand.u32 %v4959, 4294901760
        %5060 = vmatprep.subr.mxu0 %v5059
        %v5061 = vand.u32 %v4958, 4294901760
        %5062 = vmatpush2.msra.mxu0 %v5061
        %v5063 = vand.u32 %v4957, 4294901760
        %5064 = vmatprep.subr.mxu0 %v5063
        %v5065 = vand.u32 %v4956, 4294901760
        %5066 = vmatpush2.msra.mxu0 %v5065
        %v5067 = vand.u32 %v4955, 4294901760
        %5068 = vmatprep.subr.mxu0 %v5067
        %v5069 = vand.u32 %v4954, 4294901760
        %5070 = vmatpush2.msra.mxu0 %v5069
        %v5071 = vand.u32 %v4953, 4294901760
        %5072 = vmatprep.subr.mxu0 %v5071
        %v5073 = vand.u32 %v4952, 4294901760
        %5074 = vmatpush2.msra.mxu0 %v5073
        %v5075 = vand.u32 %v4951, 4294901760
        %5076 = vmatprep.subr.mxu0 %v5075
        %v5077 = vand.u32 %v4950, 4294901760
        %5078 = vmatpush2.msra.mxu0 %v5077
        %v5079 = vand.u32 %v4949, 4294901760
        %5080 = vmatprep.subr.mxu0 %v5079
        %v5081 = vand.u32 %v4948, 4294901760
        %5082 = vmatpush2.msra.mxu0 %v5081
        %v5083 = vand.u32 %v4947, 4294901760
        %5084 = vmatprep.subr.mxu0 %v5083
        %v5085 = vand.u32 %v4946, 4294901760
        %5086 = vmatpush2.msra.mxu0 %v5085
        %v5087 = vand.u32 %v4945, 4294901760
        %5088 = vmatprep.subr.mxu0 %v5087
        %v5089 = vand.u32 %v4944, 4294901760
        %5090 = vmatpush2.msra.mxu0 %v5089
        %v5091 = vand.u32 %v4943, 4294901760
        %5092 = vmatprep.subr.mxu0 %v5091
        %v5093 = vand.u32 %v4942, 4294901760
        %5094 = vmatpush2.msra.mxu0 %v5093
        %v5095 = vand.u32 %v4941, 4294901760
        %5096 = vmatprep.subr.mxu0 %v5095
        %v5097 = vand.u32 %v4940, 4294901760
        %5098 = vmatpush2.msra.mxu0 %v5097
        %v5099 = vand.u32 %v4939, 4294901760
        %5100 = vmatprep.subr.mxu0 %v5099
        %v5101 = vand.u32 %v4938, 4294901760
        %5102 = vmatpush2.msra.mxu0 %v5101
        %v5103 = vand.u32 %v4937, 4294901760
        %5104 = vmatprep.subr.mxu0 %v5103
        %v5105 = vand.u32 %v4936, 4294901760
        %5106 = vmatpush2.msra.mxu0 %v5105
        %v5107 = vand.u32 %v4262, 4294901760
        %v5108 = vsub.f32 %v4262, %v5107
        %v5109 = vand.u32 %v5108, 4294901760
        %v5110 = vsub.f32 %v5108, %v5109
        %v5111 = vand.u32 %v5110, 4294901760
        %5112 = vmatprep.mubr.f32.mxu0 %v5111
        %v5113 = vand.u32 %v4261, 4294901760
        %v5114 = vsub.f32 %v4261, %v5113
        %v5115 = vand.u32 %v5114, 4294901760
        %v5116 = vsub.f32 %v5114, %v5115
        %v5117 = vand.u32 %v5116, 4294901760
        %5118 = vmatmul.mubr.f32.gmra.mxu0 %v5117
        %v5119 = vpop.f32.mrf.mxu0
        %v5120 = vadd.f32 0.0, %v5119
        %v5121 = vpop.f32.mrf.mxu0
        %v5122 = vadd.f32 0.0, %v5121
        %5123 = vdwg.mxu0
        %v5124 = vand.u32 %v4935, 4294901760
        %v5125 = vsub.f32 %v4935, %v5124
        %v5126 = vand.u32 %v5125, 4294901760
        %v5127 = vsub.f32 %v5125, %v5126
        %v5128 = vand.u32 %v5127, 4294901760
        %5129 = vmatprep.subr.mxu0 %v5128
        %v5130 = vand.u32 %v4934, 4294901760
        %v5131 = vsub.f32 %v4934, %v5130
        %v5132 = vand.u32 %v5131, 4294901760
        %v5133 = vsub.f32 %v5131, %v5132
        %v5134 = vand.u32 %v5133, 4294901760
        %5135 = vmatpush1.msra.mxu0 %v5134
        %v5136 = vand.u32 %v4933, 4294901760
        %v5137 = vsub.f32 %v4933, %v5136
        %v5138 = vand.u32 %v5137, 4294901760
        %v5139 = vsub.f32 %v5137, %v5138
        %v5140 = vand.u32 %v5139, 4294901760
        %5141 = vmatprep.subr.mxu0 %v5140
        %v5142 = vand.u32 %v4932, 4294901760
        %v5143 = vsub.f32 %v4932, %v5142
        %v5144 = vand.u32 %v5143, 4294901760
        %v5145 = vsub.f32 %v5143, %v5144
        %v5146 = vand.u32 %v5145, 4294901760
        %5147 = vmatpush1.msra.mxu0 %v5146
        %v5148 = vand.u32 %v4931, 4294901760
        %v5149 = vsub.f32 %v4931, %v5148
        %v5150 = vand.u32 %v5149, 4294901760
        %v5151 = vsub.f32 %v5149, %v5150
        %v5152 = vand.u32 %v5151, 4294901760
        %5153 = vmatprep.subr.mxu0 %v5152
        %v5154 = vand.u32 %v4930, 4294901760
        %v5155 = vsub.f32 %v4930, %v5154
        %v5156 = vand.u32 %v5155, 4294901760
        %v5157 = vsub.f32 %v5155, %v5156
        %v5158 = vand.u32 %v5157, 4294901760
        %5159 = vmatpush1.msra.mxu0 %v5158
        %v5160 = vand.u32 %v4929, 4294901760
        %v5161 = vsub.f32 %v4929, %v5160
        %v5162 = vand.u32 %v5161, 4294901760
        %v5163 = vsub.f32 %v5161, %v5162
        %v5164 = vand.u32 %v5163, 4294901760
        %5165 = vmatprep.subr.mxu0 %v5164
        %v5166 = vand.u32 %v4928, 4294901760
        %v5167 = vsub.f32 %v4928, %v5166
        %v5168 = vand.u32 %v5167, 4294901760
        %v5169 = vsub.f32 %v5167, %v5168
        %v5170 = vand.u32 %v5169, 4294901760
        %5171 = vmatpush1.msra.mxu0 %v5170
        %v5172 = vand.u32 %v4927, 4294901760
        %v5173 = vsub.f32 %v4927, %v5172
        %v5174 = vand.u32 %v5173, 4294901760
        %v5175 = vsub.f32 %v5173, %v5174
        %v5176 = vand.u32 %v5175, 4294901760
        %5177 = vmatprep.subr.mxu0 %v5176
        %v5178 = vand.u32 %v4926, 4294901760
        %v5179 = vsub.f32 %v4926, %v5178
        %v5180 = vand.u32 %v5179, 4294901760
        %v5181 = vsub.f32 %v5179, %v5180
        %v5182 = vand.u32 %v5181, 4294901760
        %5183 = vmatpush1.msra.mxu0 %v5182
        %v5184 = vand.u32 %v4925, 4294901760
        %v5185 = vsub.f32 %v4925, %v5184
        %v5186 = vand.u32 %v5185, 4294901760
        %v5187 = vsub.f32 %v5185, %v5186
        %v5188 = vand.u32 %v5187, 4294901760
        %5189 = vmatprep.subr.mxu0 %v5188
        %v5190 = vand.u32 %v4924, 4294901760
        %v5191 = vsub.f32 %v4924, %v5190
        %v5192 = vand.u32 %v5191, 4294901760
        %v5193 = vsub.f32 %v5191, %v5192
        %v5194 = vand.u32 %v5193, 4294901760
        %5195 = vmatpush1.msra.mxu0 %v5194
        %v5196 = vand.u32 %v4923, 4294901760
        %v5197 = vsub.f32 %v4923, %v5196
        %v5198 = vand.u32 %v5197, 4294901760
        %v5199 = vsub.f32 %v5197, %v5198
        %v5200 = vand.u32 %v5199, 4294901760
        %5201 = vmatprep.subr.mxu0 %v5200
        %v5202 = vand.u32 %v4922, 4294901760
        %v5203 = vsub.f32 %v4922, %v5202
        %v5204 = vand.u32 %v5203, 4294901760
        %v5205 = vsub.f32 %v5203, %v5204
        %v5206 = vand.u32 %v5205, 4294901760
        %5207 = vmatpush1.msra.mxu0 %v5206
        %v5208 = vand.u32 %v4921, 4294901760
        %v5209 = vsub.f32 %v4921, %v5208
        %v5210 = vand.u32 %v5209, 4294901760
        %v5211 = vsub.f32 %v5209, %v5210
        %v5212 = vand.u32 %v5211, 4294901760
        %5213 = vmatprep.subr.mxu0 %v5212
        %v5214 = vand.u32 %v4920, 4294901760
        %v5215 = vsub.f32 %v4920, %v5214
        %v5216 = vand.u32 %v5215, 4294901760
        %v5217 = vsub.f32 %v5215, %v5216
        %v5218 = vand.u32 %v5217, 4294901760
        %5219 = vmatpush1.msra.mxu0 %v5218
        %v5220 = vand.u32 %v4919, 4294901760
        %v5221 = vsub.f32 %v4919, %v5220
        %v5222 = vand.u32 %v5221, 4294901760
        %v5223 = vsub.f32 %v5221, %v5222
        %v5224 = vand.u32 %v5223, 4294901760
        %5225 = vmatprep.subr.mxu0 %v5224
        %v5226 = vand.u32 %v4918, 4294901760
        %v5227 = vsub.f32 %v4918, %v5226
        %v5228 = vand.u32 %v5227, 4294901760
        %v5229 = vsub.f32 %v5227, %v5228
        %v5230 = vand.u32 %v5229, 4294901760
        %5231 = vmatpush1.msra.mxu0 %v5230
        %v5232 = vand.u32 %v4917, 4294901760
        %v5233 = vsub.f32 %v4917, %v5232
        %v5234 = vand.u32 %v5233, 4294901760
        %v5235 = vsub.f32 %v5233, %v5234
        %v5236 = vand.u32 %v5235, 4294901760
        %5237 = vmatprep.subr.mxu0 %v5236
        %v5238 = vand.u32 %v4916, 4294901760
        %v5239 = vsub.f32 %v4916, %v5238
        %v5240 = vand.u32 %v5239, 4294901760
        %v5241 = vsub.f32 %v5239, %v5240
        %v5242 = vand.u32 %v5241, 4294901760
        %5243 = vmatpush1.msra.mxu0 %v5242
        %v5244 = vand.u32 %v4915, 4294901760
        %v5245 = vsub.f32 %v4915, %v5244
        %v5246 = vand.u32 %v5245, 4294901760
        %v5247 = vsub.f32 %v5245, %v5246
        %v5248 = vand.u32 %v5247, 4294901760
        %5249 = vmatprep.subr.mxu0 %v5248
        %v5250 = vand.u32 %v4914, 4294901760
        %v5251 = vsub.f32 %v4914, %v5250
        %v5252 = vand.u32 %v5251, 4294901760
        %v5253 = vsub.f32 %v5251, %v5252
        %v5254 = vand.u32 %v5253, 4294901760
        %5255 = vmatpush1.msra.mxu0 %v5254
        %v5256 = vand.u32 %v4913, 4294901760
        %v5257 = vsub.f32 %v4913, %v5256
        %v5258 = vand.u32 %v5257, 4294901760
        %v5259 = vsub.f32 %v5257, %v5258
        %v5260 = vand.u32 %v5259, 4294901760
        %5261 = vmatprep.subr.mxu0 %v5260
        %v5262 = vand.u32 %v4912, 4294901760
        %v5263 = vsub.f32 %v4912, %v5262
        %v5264 = vand.u32 %v5263, 4294901760
        %v5265 = vsub.f32 %v5263, %v5264
        %v5266 = vand.u32 %v5265, 4294901760
        %5267 = vmatpush1.msra.mxu0 %v5266
        %v5268 = vand.u32 %v4911, 4294901760
        %v5269 = vsub.f32 %v4911, %v5268
        %v5270 = vand.u32 %v5269, 4294901760
        %v5271 = vsub.f32 %v5269, %v5270
        %v5272 = vand.u32 %v5271, 4294901760
        %5273 = vmatprep.subr.mxu0 %v5272
        %v5274 = vand.u32 %v4910, 4294901760
        %v5275 = vsub.f32 %v4910, %v5274
        %v5276 = vand.u32 %v5275, 4294901760
        %v5277 = vsub.f32 %v5275, %v5276
        %v5278 = vand.u32 %v5277, 4294901760
        %5279 = vmatpush1.msra.mxu0 %v5278
        %v5280 = vand.u32 %v4909, 4294901760
        %v5281 = vsub.f32 %v4909, %v5280
        %v5282 = vand.u32 %v5281, 4294901760
        %v5283 = vsub.f32 %v5281, %v5282
        %v5284 = vand.u32 %v5283, 4294901760
        %5285 = vmatprep.subr.mxu0 %v5284
        %v5286 = vand.u32 %v4908, 4294901760
        %v5287 = vsub.f32 %v4908, %v5286
        %v5288 = vand.u32 %v5287, 4294901760
        %v5289 = vsub.f32 %v5287, %v5288
        %v5290 = vand.u32 %v5289, 4294901760
        %5291 = vmatpush1.msra.mxu0 %v5290
        %v5292 = vand.u32 %v4907, 4294901760
        %v5293 = vsub.f32 %v4907, %v5292
        %v5294 = vand.u32 %v5293, 4294901760
        %v5295 = vsub.f32 %v5293, %v5294
        %v5296 = vand.u32 %v5295, 4294901760
        %5297 = vmatprep.subr.mxu0 %v5296
        %v5298 = vand.u32 %v4906, 4294901760
        %v5299 = vsub.f32 %v4906, %v5298
        %v5300 = vand.u32 %v5299, 4294901760
        %v5301 = vsub.f32 %v5299, %v5300
        %v5302 = vand.u32 %v5301, 4294901760
        %5303 = vmatpush1.msra.mxu0 %v5302
        %v5304 = vand.u32 %v4905, 4294901760
        %v5305 = vsub.f32 %v4905, %v5304
        %v5306 = vand.u32 %v5305, 4294901760
        %v5307 = vsub.f32 %v5305, %v5306
        %v5308 = vand.u32 %v5307, 4294901760
        %5309 = vmatprep.subr.mxu0 %v5308
        %v5310 = vand.u32 %v4904, 4294901760
        %v5311 = vsub.f32 %v4904, %v5310
        %v5312 = vand.u32 %v5311, 4294901760
        %v5313 = vsub.f32 %v5311, %v5312
        %v5314 = vand.u32 %v5313, 4294901760
        %5315 = vmatpush1.msra.mxu0 %v5314
        %v5316 = vand.u32 %v4967, 4294901760
        %v5317 = vsub.f32 %v4967, %v5316
        %v5318 = vand.u32 %v5317, 4294901760
        %v5319 = vsub.f32 %v5317, %v5318
        %v5320 = vand.u32 %v5319, 4294901760
        %5321 = vmatprep.subr.mxu0 %v5320
        %v5322 = vand.u32 %v4966, 4294901760
        %v5323 = vsub.f32 %v4966, %v5322
        %v5324 = vand.u32 %v5323, 4294901760
        %v5325 = vsub.f32 %v5323, %v5324
        %v5326 = vand.u32 %v5325, 4294901760
        %5327 = vmatpush2.msra.mxu0 %v5326
        %v5328 = vand.u32 %v4965, 4294901760
        %v5329 = vsub.f32 %v4965, %v5328
        %v5330 = vand.u32 %v5329, 4294901760
        %v5331 = vsub.f32 %v5329, %v5330
        %v5332 = vand.u32 %v5331, 4294901760
        %5333 = vmatprep.subr.mxu0 %v5332
        %v5334 = vand.u32 %v4964, 4294901760
        %v5335 = vsub.f32 %v4964, %v5334
        %v5336 = vand.u32 %v5335, 4294901760
        %v5337 = vsub.f32 %v5335, %v5336
        %v5338 = vand.u32 %v5337, 4294901760
        %5339 = vmatpush2.msra.mxu0 %v5338
        %v5340 = vand.u32 %v4963, 4294901760
        %v5341 = vsub.f32 %v4963, %v5340
        %v5342 = vand.u32 %v5341, 4294901760
        %v5343 = vsub.f32 %v5341, %v5342
        %v5344 = vand.u32 %v5343, 4294901760
        %5345 = vmatprep.subr.mxu0 %v5344
        %v5346 = vand.u32 %v4962, 4294901760
        %v5347 = vsub.f32 %v4962, %v5346
        %v5348 = vand.u32 %v5347, 4294901760
        %v5349 = vsub.f32 %v5347, %v5348
        %v5350 = vand.u32 %v5349, 4294901760
        %5351 = vmatpush2.msra.mxu0 %v5350
        %v5352 = vand.u32 %v4961, 4294901760
        %v5353 = vsub.f32 %v4961, %v5352
        %v5354 = vand.u32 %v5353, 4294901760
        %v5355 = vsub.f32 %v5353, %v5354
        %v5356 = vand.u32 %v5355, 4294901760
        %5357 = vmatprep.subr.mxu0 %v5356
        %v5358 = vand.u32 %v4960, 4294901760
        %v5359 = vsub.f32 %v4960, %v5358
        %v5360 = vand.u32 %v5359, 4294901760
        %v5361 = vsub.f32 %v5359, %v5360
        %v5362 = vand.u32 %v5361, 4294901760
        %5363 = vmatpush2.msra.mxu0 %v5362
        %v5364 = vand.u32 %v4959, 4294901760
        %v5365 = vsub.f32 %v4959, %v5364
        %v5366 = vand.u32 %v5365, 4294901760
        %v5367 = vsub.f32 %v5365, %v5366
        %v5368 = vand.u32 %v5367, 4294901760
        %5369 = vmatprep.subr.mxu0 %v5368
        %v5370 = vand.u32 %v4958, 4294901760
        %v5371 = vsub.f32 %v4958, %v5370
        %v5372 = vand.u32 %v5371, 4294901760
        %v5373 = vsub.f32 %v5371, %v5372
        %v5374 = vand.u32 %v5373, 4294901760
        %5375 = vmatpush2.msra.mxu0 %v5374
        %v5376 = vand.u32 %v4957, 4294901760
        %v5377 = vsub.f32 %v4957, %v5376
        %v5378 = vand.u32 %v5377, 4294901760
        %v5379 = vsub.f32 %v5377, %v5378
        %v5380 = vand.u32 %v5379, 4294901760
        %5381 = vmatprep.subr.mxu0 %v5380
        %v5382 = vand.u32 %v4956, 4294901760
        %v5383 = vsub.f32 %v4956, %v5382
        %v5384 = vand.u32 %v5383, 4294901760
        %v5385 = vsub.f32 %v5383, %v5384
        %v5386 = vand.u32 %v5385, 4294901760
        %5387 = vmatpush2.msra.mxu0 %v5386
        %v5388 = vand.u32 %v4955, 4294901760
        %v5389 = vsub.f32 %v4955, %v5388
        %v5390 = vand.u32 %v5389, 4294901760
        %v5391 = vsub.f32 %v5389, %v5390
        %v5392 = vand.u32 %v5391, 4294901760
        %5393 = vmatprep.subr.mxu0 %v5392
        %v5394 = vand.u32 %v4954, 4294901760
        %v5395 = vsub.f32 %v4954, %v5394
        %v5396 = vand.u32 %v5395, 4294901760
        %v5397 = vsub.f32 %v5395, %v5396
        %v5398 = vand.u32 %v5397, 4294901760
        %5399 = vmatpush2.msra.mxu0 %v5398
        %v5400 = vand.u32 %v4953, 4294901760
        %v5401 = vsub.f32 %v4953, %v5400
        %v5402 = vand.u32 %v5401, 4294901760
        %v5403 = vsub.f32 %v5401, %v5402
        %v5404 = vand.u32 %v5403, 4294901760
        %5405 = vmatprep.subr.mxu0 %v5404
        %v5406 = vand.u32 %v4952, 4294901760
        %v5407 = vsub.f32 %v4952, %v5406
        %v5408 = vand.u32 %v5407, 4294901760
        %v5409 = vsub.f32 %v5407, %v5408
        %v5410 = vand.u32 %v5409, 4294901760
        %5411 = vmatpush2.msra.mxu0 %v5410
        %v5412 = vand.u32 %v4951, 4294901760
        %v5413 = vsub.f32 %v4951, %v5412
        %v5414 = vand.u32 %v5413, 4294901760
        %v5415 = vsub.f32 %v5413, %v5414
        %v5416 = vand.u32 %v5415, 4294901760
        %5417 = vmatprep.subr.mxu0 %v5416
        %v5418 = vand.u32 %v4950, 4294901760
        %v5419 = vsub.f32 %v4950, %v5418
        %v5420 = vand.u32 %v5419, 4294901760
        %v5421 = vsub.f32 %v5419, %v5420
        %v5422 = vand.u32 %v5421, 4294901760
        %5423 = vmatpush2.msra.mxu0 %v5422
        %v5424 = vand.u32 %v4949, 4294901760
        %v5425 = vsub.f32 %v4949, %v5424
        %v5426 = vand.u32 %v5425, 4294901760
        %v5427 = vsub.f32 %v5425, %v5426
        %v5428 = vand.u32 %v5427, 4294901760
        %5429 = vmatprep.subr.mxu0 %v5428
        %v5430 = vand.u32 %v4948, 4294901760
        %v5431 = vsub.f32 %v4948, %v5430
        %v5432 = vand.u32 %v5431, 4294901760
        %v5433 = vsub.f32 %v5431, %v5432
        %v5434 = vand.u32 %v5433, 4294901760
        %5435 = vmatpush2.msra.mxu0 %v5434
        %v5436 = vand.u32 %v4947, 4294901760
        %v5437 = vsub.f32 %v4947, %v5436
        %v5438 = vand.u32 %v5437, 4294901760
        %v5439 = vsub.f32 %v5437, %v5438
        %v5440 = vand.u32 %v5439, 4294901760
        %5441 = vmatprep.subr.mxu0 %v5440
        %v5442 = vand.u32 %v4946, 4294901760
        %v5443 = vsub.f32 %v4946, %v5442
        %v5444 = vand.u32 %v5443, 4294901760
        %v5445 = vsub.f32 %v5443, %v5444
        %v5446 = vand.u32 %v5445, 4294901760
        %5447 = vmatpush2.msra.mxu0 %v5446
        %v5448 = vand.u32 %v4945, 4294901760
        %v5449 = vsub.f32 %v4945, %v5448
        %v5450 = vand.u32 %v5449, 4294901760
        %v5451 = vsub.f32 %v5449, %v5450
        %v5452 = vand.u32 %v5451, 4294901760
        %5453 = vmatprep.subr.mxu0 %v5452
        %v5454 = vand.u32 %v4944, 4294901760
        %v5455 = vsub.f32 %v4944, %v5454
        %v5456 = vand.u32 %v5455, 4294901760
        %v5457 = vsub.f32 %v5455, %v5456
        %v5458 = vand.u32 %v5457, 4294901760
        %5459 = vmatpush2.msra.mxu0 %v5458
        %v5460 = vand.u32 %v4943, 4294901760
        %v5461 = vsub.f32 %v4943, %v5460
        %v5462 = vand.u32 %v5461, 4294901760
        %v5463 = vsub.f32 %v5461, %v5462
        %v5464 = vand.u32 %v5463, 4294901760
        %5465 = vmatprep.subr.mxu0 %v5464
        %v5466 = vand.u32 %v4942, 4294901760
        %v5467 = vsub.f32 %v4942, %v5466
        %v5468 = vand.u32 %v5467, 4294901760
        %v5469 = vsub.f32 %v5467, %v5468
        %v5470 = vand.u32 %v5469, 4294901760
        %5471 = vmatpush2.msra.mxu0 %v5470
        %v5472 = vand.u32 %v4941, 4294901760
        %v5473 = vsub.f32 %v4941, %v5472
        %v5474 = vand.u32 %v5473, 4294901760
        %v5475 = vsub.f32 %v5473, %v5474
        %v5476 = vand.u32 %v5475, 4294901760
        %5477 = vmatprep.subr.mxu0 %v5476
        %v5478 = vand.u32 %v4940, 4294901760
        %v5479 = vsub.f32 %v4940, %v5478
        %v5480 = vand.u32 %v5479, 4294901760
        %v5481 = vsub.f32 %v5479, %v5480
        %v5482 = vand.u32 %v5481, 4294901760
        %5483 = vmatpush2.msra.mxu0 %v5482
        %v5484 = vand.u32 %v4939, 4294901760
        %v5485 = vsub.f32 %v4939, %v5484
        %v5486 = vand.u32 %v5485, 4294901760
        %v5487 = vsub.f32 %v5485, %v5486
        %v5488 = vand.u32 %v5487, 4294901760
        %5489 = vmatprep.subr.mxu0 %v5488
        %v5490 = vand.u32 %v4938, 4294901760
        %v5491 = vsub.f32 %v4938, %v5490
        %v5492 = vand.u32 %v5491, 4294901760
        %v5493 = vsub.f32 %v5491, %v5492
        %v5494 = vand.u32 %v5493, 4294901760
        %5495 = vmatpush2.msra.mxu0 %v5494
        %v5496 = vand.u32 %v4937, 4294901760
        %v5497 = vsub.f32 %v4937, %v5496
        %v5498 = vand.u32 %v5497, 4294901760
        %v5499 = vsub.f32 %v5497, %v5498
        %v5500 = vand.u32 %v5499, 4294901760
        %5501 = vmatprep.subr.mxu0 %v5500
        %v5502 = vand.u32 %v4936, 4294901760
        %v5503 = vsub.f32 %v4936, %v5502
        %v5504 = vand.u32 %v5503, 4294901760
        %v5505 = vsub.f32 %v5503, %v5504
        %v5506 = vand.u32 %v5505, 4294901760
        %5507 = vmatpush2.msra.mxu0 %v5506
        %v5508 = vand.u32 %v4262, 4294901760
        %5509 = vmatprep.mubr.f32.mxu0 %v5508
        %v5510 = vand.u32 %v4261, 4294901760
        %5511 = vmatmul.mubr.f32.gmra.mxu0 %v5510
        %v5512 = vpop.f32.mrf.mxu0
        %v5513 = vadd.f32 %v5120, %v5512
        %v5514 = vpop.f32.mrf.mxu0
        %v5515 = vadd.f32 %v5122, %v5514
        %5516 = vdwg.mxu0
        %v5517 = vand.u32 %v4935, 4294901760
        %v5518 = vsub.f32 %v4935, %v5517
        %5519 = vmatprep.subr.mxu0 %v5518
        %v5520 = vand.u32 %v4934, 4294901760
        %v5521 = vsub.f32 %v4934, %v5520
        %5522 = vmatpush1.msra.mxu0 %v5521
        %v5523 = vand.u32 %v4933, 4294901760
        %v5524 = vsub.f32 %v4933, %v5523
        %5525 = vmatprep.subr.mxu0 %v5524
        %v5526 = vand.u32 %v4932, 4294901760
        %v5527 = vsub.f32 %v4932, %v5526
        %5528 = vmatpush1.msra.mxu0 %v5527
        %v5529 = vand.u32 %v4931, 4294901760
        %v5530 = vsub.f32 %v4931, %v5529
        %5531 = vmatprep.subr.mxu0 %v5530
        %v5532 = vand.u32 %v4930, 4294901760
        %v5533 = vsub.f32 %v4930, %v5532
        %5534 = vmatpush1.msra.mxu0 %v5533
        %v5535 = vand.u32 %v4929, 4294901760
        %v5536 = vsub.f32 %v4929, %v5535
        %5537 = vmatprep.subr.mxu0 %v5536
        %v5538 = vand.u32 %v4928, 4294901760
        %v5539 = vsub.f32 %v4928, %v5538
        %5540 = vmatpush1.msra.mxu0 %v5539
        %v5541 = vand.u32 %v4927, 4294901760
        %v5542 = vsub.f32 %v4927, %v5541
        %5543 = vmatprep.subr.mxu0 %v5542
        %v5544 = vand.u32 %v4926, 4294901760
        %v5545 = vsub.f32 %v4926, %v5544
        %5546 = vmatpush1.msra.mxu0 %v5545
        %v5547 = vand.u32 %v4925, 4294901760
        %v5548 = vsub.f32 %v4925, %v5547
        %5549 = vmatprep.subr.mxu0 %v5548
        %v5550 = vand.u32 %v4924, 4294901760
        %v5551 = vsub.f32 %v4924, %v5550
        %5552 = vmatpush1.msra.mxu0 %v5551
        %v5553 = vand.u32 %v4923, 4294901760
        %v5554 = vsub.f32 %v4923, %v5553
        %5555 = vmatprep.subr.mxu0 %v5554
        %v5556 = vand.u32 %v4922, 4294901760
        %v5557 = vsub.f32 %v4922, %v5556
        %5558 = vmatpush1.msra.mxu0 %v5557
        %v5559 = vand.u32 %v4921, 4294901760
        %v5560 = vsub.f32 %v4921, %v5559
        %5561 = vmatprep.subr.mxu0 %v5560
        %v5562 = vand.u32 %v4920, 4294901760
        %v5563 = vsub.f32 %v4920, %v5562
        %5564 = vmatpush1.msra.mxu0 %v5563
        %v5565 = vand.u32 %v4919, 4294901760
        %v5566 = vsub.f32 %v4919, %v5565
        %5567 = vmatprep.subr.mxu0 %v5566
        %v5568 = vand.u32 %v4918, 4294901760
        %v5569 = vsub.f32 %v4918, %v5568
        %5570 = vmatpush1.msra.mxu0 %v5569
        %v5571 = vand.u32 %v4917, 4294901760
        %v5572 = vsub.f32 %v4917, %v5571
        %5573 = vmatprep.subr.mxu0 %v5572
        %v5574 = vand.u32 %v4916, 4294901760
        %v5575 = vsub.f32 %v4916, %v5574
        %5576 = vmatpush1.msra.mxu0 %v5575
        %v5577 = vand.u32 %v4915, 4294901760
        %v5578 = vsub.f32 %v4915, %v5577
        %5579 = vmatprep.subr.mxu0 %v5578
        %v5580 = vand.u32 %v4914, 4294901760
        %v5581 = vsub.f32 %v4914, %v5580
        %5582 = vmatpush1.msra.mxu0 %v5581
        %v5583 = vand.u32 %v4913, 4294901760
        %v5584 = vsub.f32 %v4913, %v5583
        %5585 = vmatprep.subr.mxu0 %v5584
        %v5586 = vand.u32 %v4912, 4294901760
        %v5587 = vsub.f32 %v4912, %v5586
        %5588 = vmatpush1.msra.mxu0 %v5587
        %v5589 = vand.u32 %v4911, 4294901760
        %v5590 = vsub.f32 %v4911, %v5589
        %5591 = vmatprep.subr.mxu0 %v5590
        %v5592 = vand.u32 %v4910, 4294901760
        %v5593 = vsub.f32 %v4910, %v5592
        %5594 = vmatpush1.msra.mxu0 %v5593
        %v5595 = vand.u32 %v4909, 4294901760
        %v5596 = vsub.f32 %v4909, %v5595
        %5597 = vmatprep.subr.mxu0 %v5596
        %v5598 = vand.u32 %v4908, 4294901760
        %v5599 = vsub.f32 %v4908, %v5598
        %5600 = vmatpush1.msra.mxu0 %v5599
        %v5601 = vand.u32 %v4907, 4294901760
        %v5602 = vsub.f32 %v4907, %v5601
        %5603 = vmatprep.subr.mxu0 %v5602
        %v5604 = vand.u32 %v4906, 4294901760
        %v5605 = vsub.f32 %v4906, %v5604
        %5606 = vmatpush1.msra.mxu0 %v5605
        %v5607 = vand.u32 %v4905, 4294901760
        %v5608 = vsub.f32 %v4905, %v5607
        %5609 = vmatprep.subr.mxu0 %v5608
        %v5610 = vand.u32 %v4904, 4294901760
        %v5611 = vsub.f32 %v4904, %v5610
        %5612 = vmatpush1.msra.mxu0 %v5611
        %v5613 = vand.u32 %v4967, 4294901760
        %v5614 = vsub.f32 %v4967, %v5613
        %5615 = vmatprep.subr.mxu0 %v5614
        %v5616 = vand.u32 %v4966, 4294901760
        %v5617 = vsub.f32 %v4966, %v5616
        %5618 = vmatpush2.msra.mxu0 %v5617
        %v5619 = vand.u32 %v4965, 4294901760
        %v5620 = vsub.f32 %v4965, %v5619
        %5621 = vmatprep.subr.mxu0 %v5620
        %v5622 = vand.u32 %v4964, 4294901760
        %v5623 = vsub.f32 %v4964, %v5622
        %5624 = vmatpush2.msra.mxu0 %v5623
        %v5625 = vand.u32 %v4963, 4294901760
        %v5626 = vsub.f32 %v4963, %v5625
        %5627 = vmatprep.subr.mxu0 %v5626
        %v5628 = vand.u32 %v4962, 4294901760
        %v5629 = vsub.f32 %v4962, %v5628
        %5630 = vmatpush2.msra.mxu0 %v5629
        %v5631 = vand.u32 %v4961, 4294901760
        %v5632 = vsub.f32 %v4961, %v5631
        %5633 = vmatprep.subr.mxu0 %v5632
        %v5634 = vand.u32 %v4960, 4294901760
        %v5635 = vsub.f32 %v4960, %v5634
        %5636 = vmatpush2.msra.mxu0 %v5635
        %v5637 = vand.u32 %v4959, 4294901760
        %v5638 = vsub.f32 %v4959, %v5637
        %5639 = vmatprep.subr.mxu0 %v5638
        %v5640 = vand.u32 %v4958, 4294901760
        %v5641 = vsub.f32 %v4958, %v5640
        %5642 = vmatpush2.msra.mxu0 %v5641
        %v5643 = vand.u32 %v4957, 4294901760
        %v5644 = vsub.f32 %v4957, %v5643
        %5645 = vmatprep.subr.mxu0 %v5644
        %v5646 = vand.u32 %v4956, 4294901760
        %v5647 = vsub.f32 %v4956, %v5646
        %5648 = vmatpush2.msra.mxu0 %v5647
        %v5649 = vand.u32 %v4955, 4294901760
        %v5650 = vsub.f32 %v4955, %v5649
        %5651 = vmatprep.subr.mxu0 %v5650
        %v5652 = vand.u32 %v4954, 4294901760
        %v5653 = vsub.f32 %v4954, %v5652
        %5654 = vmatpush2.msra.mxu0 %v5653
        %v5655 = vand.u32 %v4953, 4294901760
        %v5656 = vsub.f32 %v4953, %v5655
        %5657 = vmatprep.subr.mxu0 %v5656
        %v5658 = vand.u32 %v4952, 4294901760
        %v5659 = vsub.f32 %v4952, %v5658
        %5660 = vmatpush2.msra.mxu0 %v5659
        %v5661 = vand.u32 %v4951, 4294901760
        %v5662 = vsub.f32 %v4951, %v5661
        %5663 = vmatprep.subr.mxu0 %v5662
        %v5664 = vand.u32 %v4950, 4294901760
        %v5665 = vsub.f32 %v4950, %v5664
        %5666 = vmatpush2.msra.mxu0 %v5665
        %v5667 = vand.u32 %v4949, 4294901760
        %v5668 = vsub.f32 %v4949, %v5667
        %5669 = vmatprep.subr.mxu0 %v5668
        %v5670 = vand.u32 %v4948, 4294901760
        %v5671 = vsub.f32 %v4948, %v5670
        %5672 = vmatpush2.msra.mxu0 %v5671
        %v5673 = vand.u32 %v4947, 4294901760
        %v5674 = vsub.f32 %v4947, %v5673
        %5675 = vmatprep.subr.mxu0 %v5674
        %v5676 = vand.u32 %v4946, 4294901760
        %v5677 = vsub.f32 %v4946, %v5676
        %5678 = vmatpush2.msra.mxu0 %v5677
        %v5679 = vand.u32 %v4945, 4294901760
        %v5680 = vsub.f32 %v4945, %v5679
        %5681 = vmatprep.subr.mxu0 %v5680
        %v5682 = vand.u32 %v4944, 4294901760
        %v5683 = vsub.f32 %v4944, %v5682
        %5684 = vmatpush2.msra.mxu0 %v5683
        %v5685 = vand.u32 %v4943, 4294901760
        %v5686 = vsub.f32 %v4943, %v5685
        %5687 = vmatprep.subr.mxu0 %v5686
        %v5688 = vand.u32 %v4942, 4294901760
        %v5689 = vsub.f32 %v4942, %v5688
        %5690 = vmatpush2.msra.mxu0 %v5689
        %v5691 = vand.u32 %v4941, 4294901760
        %v5692 = vsub.f32 %v4941, %v5691
        %5693 = vmatprep.subr.mxu0 %v5692
        %v5694 = vand.u32 %v4940, 4294901760
        %v5695 = vsub.f32 %v4940, %v5694
        %5696 = vmatpush2.msra.mxu0 %v5695
        %v5697 = vand.u32 %v4939, 4294901760
        %v5698 = vsub.f32 %v4939, %v5697
        %5699 = vmatprep.subr.mxu0 %v5698
        %v5700 = vand.u32 %v4938, 4294901760
        %v5701 = vsub.f32 %v4938, %v5700
        %5702 = vmatpush2.msra.mxu0 %v5701
        %v5703 = vand.u32 %v4937, 4294901760
        %v5704 = vsub.f32 %v4937, %v5703
        %5705 = vmatprep.subr.mxu0 %v5704
        %v5706 = vand.u32 %v4936, 4294901760
        %v5707 = vsub.f32 %v4936, %v5706
        %5708 = vmatpush2.msra.mxu0 %v5707
        %v5709 = vand.u32 %v4262, 4294901760
        %v5710 = vsub.f32 %v4262, %v5709
        %5711 = vmatprep.mubr.f32.mxu0 %v5710
        %v5712 = vand.u32 %v4261, 4294901760
        %v5713 = vsub.f32 %v4261, %v5712
        %5714 = vmatmul.mubr.f32.gmra.mxu0 %v5713
        %v5715 = vpop.f32.mrf.mxu0
        %v5716 = vadd.f32 %v5513, %v5715
        %v5717 = vpop.f32.mrf.mxu0
        %v5718 = vadd.f32 %v5515, %v5717
        %5719 = vdwg.mxu0
        %v5720 = vand.u32 %v4935, 4294901760
        %5721 = vmatprep.subr.mxu0 %v5720
        %v5722 = vand.u32 %v4934, 4294901760
        %5723 = vmatpush1.msra.mxu0 %v5722
        %v5724 = vand.u32 %v4933, 4294901760
        %5725 = vmatprep.subr.mxu0 %v5724
        %v5726 = vand.u32 %v4932, 4294901760
        %5727 = vmatpush1.msra.mxu0 %v5726
        %v5728 = vand.u32 %v4931, 4294901760
        %5729 = vmatprep.subr.mxu0 %v5728
        %v5730 = vand.u32 %v4930, 4294901760
        %5731 = vmatpush1.msra.mxu0 %v5730
        %v5732 = vand.u32 %v4929, 4294901760
        %5733 = vmatprep.subr.mxu0 %v5732
        %v5734 = vand.u32 %v4928, 4294901760
        %5735 = vmatpush1.msra.mxu0 %v5734
        %v5736 = vand.u32 %v4927, 4294901760
        %5737 = vmatprep.subr.mxu0 %v5736
        %v5738 = vand.u32 %v4926, 4294901760
        %5739 = vmatpush1.msra.mxu0 %v5738
        %v5740 = vand.u32 %v4925, 4294901760
        %5741 = vmatprep.subr.mxu0 %v5740
        %v5742 = vand.u32 %v4924, 4294901760
        %5743 = vmatpush1.msra.mxu0 %v5742
        %v5744 = vand.u32 %v4923, 4294901760
        %5745 = vmatprep.subr.mxu0 %v5744
        %v5746 = vand.u32 %v4922, 4294901760
        %5747 = vmatpush1.msra.mxu0 %v5746
        %v5748 = vand.u32 %v4921, 4294901760
        %5749 = vmatprep.subr.mxu0 %v5748
        %v5750 = vand.u32 %v4920, 4294901760
        %5751 = vmatpush1.msra.mxu0 %v5750
        %v5752 = vand.u32 %v4919, 4294901760
        %5753 = vmatprep.subr.mxu0 %v5752
        %v5754 = vand.u32 %v4918, 4294901760
        %5755 = vmatpush1.msra.mxu0 %v5754
        %v5756 = vand.u32 %v4917, 4294901760
        %5757 = vmatprep.subr.mxu0 %v5756
        %v5758 = vand.u32 %v4916, 4294901760
        %5759 = vmatpush1.msra.mxu0 %v5758
        %v5760 = vand.u32 %v4915, 4294901760
        %5761 = vmatprep.subr.mxu0 %v5760
        %v5762 = vand.u32 %v4914, 4294901760
        %5763 = vmatpush1.msra.mxu0 %v5762
        %v5764 = vand.u32 %v4913, 4294901760
        %5765 = vmatprep.subr.mxu0 %v5764
        %v5766 = vand.u32 %v4912, 4294901760
        %5767 = vmatpush1.msra.mxu0 %v5766
        %v5768 = vand.u32 %v4911, 4294901760
        %5769 = vmatprep.subr.mxu0 %v5768
        %v5770 = vand.u32 %v4910, 4294901760
        %5771 = vmatpush1.msra.mxu0 %v5770
        %v5772 = vand.u32 %v4909, 4294901760
        %5773 = vmatprep.subr.mxu0 %v5772
        %v5774 = vand.u32 %v4908, 4294901760
        %5775 = vmatpush1.msra.mxu0 %v5774
        %v5776 = vand.u32 %v4907, 4294901760
        %5777 = vmatprep.subr.mxu0 %v5776
        %v5778 = vand.u32 %v4906, 4294901760
        %5779 = vmatpush1.msra.mxu0 %v5778
        %v5780 = vand.u32 %v4905, 4294901760
        %5781 = vmatprep.subr.mxu0 %v5780
        %v5782 = vand.u32 %v4904, 4294901760
        %5783 = vmatpush1.msra.mxu0 %v5782
        %v5784 = vand.u32 %v4967, 4294901760
        %5785 = vmatprep.subr.mxu0 %v5784
        %v5786 = vand.u32 %v4966, 4294901760
        %5787 = vmatpush2.msra.mxu0 %v5786
        %v5788 = vand.u32 %v4965, 4294901760
        %5789 = vmatprep.subr.mxu0 %v5788
        %v5790 = vand.u32 %v4964, 4294901760
        %5791 = vmatpush2.msra.mxu0 %v5790
        %v5792 = vand.u32 %v4963, 4294901760
        %5793 = vmatprep.subr.mxu0 %v5792
        %v5794 = vand.u32 %v4962, 4294901760
        %5795 = vmatpush2.msra.mxu0 %v5794
        %v5796 = vand.u32 %v4961, 4294901760
        %5797 = vmatprep.subr.mxu0 %v5796
        %v5798 = vand.u32 %v4960, 4294901760
        %5799 = vmatpush2.msra.mxu0 %v5798
        %v5800 = vand.u32 %v4959, 4294901760
        %5801 = vmatprep.subr.mxu0 %v5800
        %v5802 = vand.u32 %v4958, 4294901760
        %5803 = vmatpush2.msra.mxu0 %v5802
        %v5804 = vand.u32 %v4957, 4294901760
        %5805 = vmatprep.subr.mxu0 %v5804
        %v5806 = vand.u32 %v4956, 4294901760
        %5807 = vmatpush2.msra.mxu0 %v5806
        %v5808 = vand.u32 %v4955, 4294901760
        %5809 = vmatprep.subr.mxu0 %v5808
        %v5810 = vand.u32 %v4954, 4294901760
        %5811 = vmatpush2.msra.mxu0 %v5810
        %v5812 = vand.u32 %v4953, 4294901760
        %5813 = vmatprep.subr.mxu0 %v5812
        %v5814 = vand.u32 %v4952, 4294901760
        %5815 = vmatpush2.msra.mxu0 %v5814
        %v5816 = vand.u32 %v4951, 4294901760
        %5817 = vmatprep.subr.mxu0 %v5816
        %v5818 = vand.u32 %v4950, 4294901760
        %5819 = vmatpush2.msra.mxu0 %v5818
        %v5820 = vand.u32 %v4949, 4294901760
        %5821 = vmatprep.subr.mxu0 %v5820
        %v5822 = vand.u32 %v4948, 4294901760
        %5823 = vmatpush2.msra.mxu0 %v5822
        %v5824 = vand.u32 %v4947, 4294901760
        %5825 = vmatprep.subr.mxu0 %v5824
        %v5826 = vand.u32 %v4946, 4294901760
        %5827 = vmatpush2.msra.mxu0 %v5826
        %v5828 = vand.u32 %v4945, 4294901760
        %5829 = vmatprep.subr.mxu0 %v5828
        %v5830 = vand.u32 %v4944, 4294901760
        %5831 = vmatpush2.msra.mxu0 %v5830
        %v5832 = vand.u32 %v4943, 4294901760
        %5833 = vmatprep.subr.mxu0 %v5832
        %v5834 = vand.u32 %v4942, 4294901760
        %5835 = vmatpush2.msra.mxu0 %v5834
        %v5836 = vand.u32 %v4941, 4294901760
        %5837 = vmatprep.subr.mxu0 %v5836
        %v5838 = vand.u32 %v4940, 4294901760
        %5839 = vmatpush2.msra.mxu0 %v5838
        %v5840 = vand.u32 %v4939, 4294901760
        %5841 = vmatprep.subr.mxu0 %v5840
        %v5842 = vand.u32 %v4938, 4294901760
        %5843 = vmatpush2.msra.mxu0 %v5842
        %v5844 = vand.u32 %v4937, 4294901760
        %5845 = vmatprep.subr.mxu0 %v5844
        %v5846 = vand.u32 %v4936, 4294901760
        %5847 = vmatpush2.msra.mxu0 %v5846
        %v5848 = vand.u32 %v4262, 4294901760
        %v5849 = vsub.f32 %v4262, %v5848
        %v5850 = vand.u32 %v5849, 4294901760
        %5851 = vmatprep.mubr.f32.mxu0 %v5850
        %v5852 = vand.u32 %v4261, 4294901760
        %v5853 = vsub.f32 %v4261, %v5852
        %v5854 = vand.u32 %v5853, 4294901760
        %5855 = vmatmul.mubr.f32.gmra.mxu0 %v5854
        %v5856 = vpop.f32.mrf.mxu0
        %v5857 = vadd.f32 %v5716, %v5856
        %v5858 = vpop.f32.mrf.mxu0
        %v5859 = vadd.f32 %v5718, %v5858
        %5860 = vdwg.mxu0
        %v5861 = vand.u32 %v4935, 4294901760
        %v5862 = vsub.f32 %v4935, %v5861
        %v5863 = vand.u32 %v5862, 4294901760
        %5864 = vmatprep.subr.mxu0 %v5863
        %v5865 = vand.u32 %v4934, 4294901760
        %v5866 = vsub.f32 %v4934, %v5865
        %v5867 = vand.u32 %v5866, 4294901760
        %5868 = vmatpush1.msra.mxu0 %v5867
        %v5869 = vand.u32 %v4933, 4294901760
        %v5870 = vsub.f32 %v4933, %v5869
        %v5871 = vand.u32 %v5870, 4294901760
        %5872 = vmatprep.subr.mxu0 %v5871
        %v5873 = vand.u32 %v4932, 4294901760
        %v5874 = vsub.f32 %v4932, %v5873
        %v5875 = vand.u32 %v5874, 4294901760
        %5876 = vmatpush1.msra.mxu0 %v5875
        %v5877 = vand.u32 %v4931, 4294901760
        %v5878 = vsub.f32 %v4931, %v5877
        %v5879 = vand.u32 %v5878, 4294901760
        %5880 = vmatprep.subr.mxu0 %v5879
        %v5881 = vand.u32 %v4930, 4294901760
        %v5882 = vsub.f32 %v4930, %v5881
        %v5883 = vand.u32 %v5882, 4294901760
        %5884 = vmatpush1.msra.mxu0 %v5883
        %v5885 = vand.u32 %v4929, 4294901760
        %v5886 = vsub.f32 %v4929, %v5885
        %v5887 = vand.u32 %v5886, 4294901760
        %5888 = vmatprep.subr.mxu0 %v5887
        %v5889 = vand.u32 %v4928, 4294901760
        %v5890 = vsub.f32 %v4928, %v5889
        %v5891 = vand.u32 %v5890, 4294901760
        %5892 = vmatpush1.msra.mxu0 %v5891
        %v5893 = vand.u32 %v4927, 4294901760
        %v5894 = vsub.f32 %v4927, %v5893
        %v5895 = vand.u32 %v5894, 4294901760
        %5896 = vmatprep.subr.mxu0 %v5895
        %v5897 = vand.u32 %v4926, 4294901760
        %v5898 = vsub.f32 %v4926, %v5897
        %v5899 = vand.u32 %v5898, 4294901760
        %5900 = vmatpush1.msra.mxu0 %v5899
        %v5901 = vand.u32 %v4925, 4294901760
        %v5902 = vsub.f32 %v4925, %v5901
        %v5903 = vand.u32 %v5902, 4294901760
        %5904 = vmatprep.subr.mxu0 %v5903
        %v5905 = vand.u32 %v4924, 4294901760
        %v5906 = vsub.f32 %v4924, %v5905
        %v5907 = vand.u32 %v5906, 4294901760
        %5908 = vmatpush1.msra.mxu0 %v5907
        %v5909 = vand.u32 %v4923, 4294901760
        %v5910 = vsub.f32 %v4923, %v5909
        %v5911 = vand.u32 %v5910, 4294901760
        %5912 = vmatprep.subr.mxu0 %v5911
        %v5913 = vand.u32 %v4922, 4294901760
        %v5914 = vsub.f32 %v4922, %v5913
        %v5915 = vand.u32 %v5914, 4294901760
        %5916 = vmatpush1.msra.mxu0 %v5915
        %v5917 = vand.u32 %v4921, 4294901760
        %v5918 = vsub.f32 %v4921, %v5917
        %v5919 = vand.u32 %v5918, 4294901760
        %5920 = vmatprep.subr.mxu0 %v5919
        %v5921 = vand.u32 %v4920, 4294901760
        %v5922 = vsub.f32 %v4920, %v5921
        %v5923 = vand.u32 %v5922, 4294901760
        %5924 = vmatpush1.msra.mxu0 %v5923
        %v5925 = vand.u32 %v4919, 4294901760
        %v5926 = vsub.f32 %v4919, %v5925
        %v5927 = vand.u32 %v5926, 4294901760
        %5928 = vmatprep.subr.mxu0 %v5927
        %v5929 = vand.u32 %v4918, 4294901760
        %v5930 = vsub.f32 %v4918, %v5929
        %v5931 = vand.u32 %v5930, 4294901760
        %5932 = vmatpush1.msra.mxu0 %v5931
        %v5933 = vand.u32 %v4917, 4294901760
        %v5934 = vsub.f32 %v4917, %v5933
        %v5935 = vand.u32 %v5934, 4294901760
        %5936 = vmatprep.subr.mxu0 %v5935
        %v5937 = vand.u32 %v4916, 4294901760
        %v5938 = vsub.f32 %v4916, %v5937
        %v5939 = vand.u32 %v5938, 4294901760
        %5940 = vmatpush1.msra.mxu0 %v5939
        %v5941 = vand.u32 %v4915, 4294901760
        %v5942 = vsub.f32 %v4915, %v5941
        %v5943 = vand.u32 %v5942, 4294901760
        %5944 = vmatprep.subr.mxu0 %v5943
        %v5945 = vand.u32 %v4914, 4294901760
        %v5946 = vsub.f32 %v4914, %v5945
        %v5947 = vand.u32 %v5946, 4294901760
        %5948 = vmatpush1.msra.mxu0 %v5947
        %v5949 = vand.u32 %v4913, 4294901760
        %v5950 = vsub.f32 %v4913, %v5949
        %v5951 = vand.u32 %v5950, 4294901760
        %5952 = vmatprep.subr.mxu0 %v5951
        %v5953 = vand.u32 %v4912, 4294901760
        %v5954 = vsub.f32 %v4912, %v5953
        %v5955 = vand.u32 %v5954, 4294901760
        %5956 = vmatpush1.msra.mxu0 %v5955
        %v5957 = vand.u32 %v4911, 4294901760
        %v5958 = vsub.f32 %v4911, %v5957
        %v5959 = vand.u32 %v5958, 4294901760
        %5960 = vmatprep.subr.mxu0 %v5959
        %v5961 = vand.u32 %v4910, 4294901760
        %v5962 = vsub.f32 %v4910, %v5961
        %v5963 = vand.u32 %v5962, 4294901760
        %5964 = vmatpush1.msra.mxu0 %v5963
        %v5965 = vand.u32 %v4909, 4294901760
        %v5966 = vsub.f32 %v4909, %v5965
        %v5967 = vand.u32 %v5966, 4294901760
        %5968 = vmatprep.subr.mxu0 %v5967
        %v5969 = vand.u32 %v4908, 4294901760
        %v5970 = vsub.f32 %v4908, %v5969
        %v5971 = vand.u32 %v5970, 4294901760
        %5972 = vmatpush1.msra.mxu0 %v5971
        %v5973 = vand.u32 %v4907, 4294901760
        %v5974 = vsub.f32 %v4907, %v5973
        %v5975 = vand.u32 %v5974, 4294901760
        %5976 = vmatprep.subr.mxu0 %v5975
        %v5977 = vand.u32 %v4906, 4294901760
        %v5978 = vsub.f32 %v4906, %v5977
        %v5979 = vand.u32 %v5978, 4294901760
        %5980 = vmatpush1.msra.mxu0 %v5979
        %v5981 = vand.u32 %v4905, 4294901760
        %v5982 = vsub.f32 %v4905, %v5981
        %v5983 = vand.u32 %v5982, 4294901760
        %5984 = vmatprep.subr.mxu0 %v5983
        %v5985 = vand.u32 %v4904, 4294901760
        %v5986 = vsub.f32 %v4904, %v5985
        %v5987 = vand.u32 %v5986, 4294901760
        %5988 = vmatpush1.msra.mxu0 %v5987
        %v5989 = vand.u32 %v4967, 4294901760
        %v5990 = vsub.f32 %v4967, %v5989
        %v5991 = vand.u32 %v5990, 4294901760
        %5992 = vmatprep.subr.mxu0 %v5991
        %v5993 = vand.u32 %v4966, 4294901760
        %v5994 = vsub.f32 %v4966, %v5993
        %v5995 = vand.u32 %v5994, 4294901760
        %5996 = vmatpush2.msra.mxu0 %v5995
        %v5997 = vand.u32 %v4965, 4294901760
        %v5998 = vsub.f32 %v4965, %v5997
        %v5999 = vand.u32 %v5998, 4294901760
        %6000 = vmatprep.subr.mxu0 %v5999
        %v6001 = vand.u32 %v4964, 4294901760
        %v6002 = vsub.f32 %v4964, %v6001
        %v6003 = vand.u32 %v6002, 4294901760
        %6004 = vmatpush2.msra.mxu0 %v6003
        %v6005 = vand.u32 %v4963, 4294901760
        %v6006 = vsub.f32 %v4963, %v6005
        %v6007 = vand.u32 %v6006, 4294901760
        %6008 = vmatprep.subr.mxu0 %v6007
        %v6009 = vand.u32 %v4962, 4294901760
        %v6010 = vsub.f32 %v4962, %v6009
        %v6011 = vand.u32 %v6010, 4294901760
        %6012 = vmatpush2.msra.mxu0 %v6011
        %v6013 = vand.u32 %v4961, 4294901760
        %v6014 = vsub.f32 %v4961, %v6013
        %v6015 = vand.u32 %v6014, 4294901760
        %6016 = vmatprep.subr.mxu0 %v6015
        %v6017 = vand.u32 %v4960, 4294901760
        %v6018 = vsub.f32 %v4960, %v6017
        %v6019 = vand.u32 %v6018, 4294901760
        %6020 = vmatpush2.msra.mxu0 %v6019
        %v6021 = vand.u32 %v4959, 4294901760
        %v6022 = vsub.f32 %v4959, %v6021
        %v6023 = vand.u32 %v6022, 4294901760
        %6024 = vmatprep.subr.mxu0 %v6023
        %v6025 = vand.u32 %v4958, 4294901760
        %v6026 = vsub.f32 %v4958, %v6025
        %v6027 = vand.u32 %v6026, 4294901760
        %6028 = vmatpush2.msra.mxu0 %v6027
        %v6029 = vand.u32 %v4957, 4294901760
        %v6030 = vsub.f32 %v4957, %v6029
        %v6031 = vand.u32 %v6030, 4294901760
        %6032 = vmatprep.subr.mxu0 %v6031
        %v6033 = vand.u32 %v4956, 4294901760
        %v6034 = vsub.f32 %v4956, %v6033
        %v6035 = vand.u32 %v6034, 4294901760
        %6036 = vmatpush2.msra.mxu0 %v6035
        %v6037 = vand.u32 %v4955, 4294901760
        %v6038 = vsub.f32 %v4955, %v6037
        %v6039 = vand.u32 %v6038, 4294901760
        %6040 = vmatprep.subr.mxu0 %v6039
        %v6041 = vand.u32 %v4954, 4294901760
        %v6042 = vsub.f32 %v4954, %v6041
        %v6043 = vand.u32 %v6042, 4294901760
        %6044 = vmatpush2.msra.mxu0 %v6043
        %v6045 = vand.u32 %v4953, 4294901760
        %v6046 = vsub.f32 %v4953, %v6045
        %v6047 = vand.u32 %v6046, 4294901760
        %6048 = vmatprep.subr.mxu0 %v6047
        %v6049 = vand.u32 %v4952, 4294901760
        %v6050 = vsub.f32 %v4952, %v6049
        %v6051 = vand.u32 %v6050, 4294901760
        %6052 = vmatpush2.msra.mxu0 %v6051
        %v6053 = vand.u32 %v4951, 4294901760
        %v6054 = vsub.f32 %v4951, %v6053
        %v6055 = vand.u32 %v6054, 4294901760
        %6056 = vmatprep.subr.mxu0 %v6055
        %v6057 = vand.u32 %v4950, 4294901760
        %v6058 = vsub.f32 %v4950, %v6057
        %v6059 = vand.u32 %v6058, 4294901760
        %6060 = vmatpush2.msra.mxu0 %v6059
        %v6061 = vand.u32 %v4949, 4294901760
        %v6062 = vsub.f32 %v4949, %v6061
        %v6063 = vand.u32 %v6062, 4294901760
        %6064 = vmatprep.subr.mxu0 %v6063
        %v6065 = vand.u32 %v4948, 4294901760
        %v6066 = vsub.f32 %v4948, %v6065
        %v6067 = vand.u32 %v6066, 4294901760
        %6068 = vmatpush2.msra.mxu0 %v6067
        %v6069 = vand.u32 %v4947, 4294901760
        %v6070 = vsub.f32 %v4947, %v6069
        %v6071 = vand.u32 %v6070, 4294901760
        %6072 = vmatprep.subr.mxu0 %v6071
        %v6073 = vand.u32 %v4946, 4294901760
        %v6074 = vsub.f32 %v4946, %v6073
        %v6075 = vand.u32 %v6074, 4294901760
        %6076 = vmatpush2.msra.mxu0 %v6075
        %v6077 = vand.u32 %v4945, 4294901760
        %v6078 = vsub.f32 %v4945, %v6077
        %v6079 = vand.u32 %v6078, 4294901760
        %6080 = vmatprep.subr.mxu0 %v6079
        %v6081 = vand.u32 %v4944, 4294901760
        %v6082 = vsub.f32 %v4944, %v6081
        %v6083 = vand.u32 %v6082, 4294901760
        %6084 = vmatpush2.msra.mxu0 %v6083
        %v6085 = vand.u32 %v4943, 4294901760
        %v6086 = vsub.f32 %v4943, %v6085
        %v6087 = vand.u32 %v6086, 4294901760
        %6088 = vmatprep.subr.mxu0 %v6087
        %v6089 = vand.u32 %v4942, 4294901760
        %v6090 = vsub.f32 %v4942, %v6089
        %v6091 = vand.u32 %v6090, 4294901760
        %6092 = vmatpush2.msra.mxu0 %v6091
        %v6093 = vand.u32 %v4941, 4294901760
        %v6094 = vsub.f32 %v4941, %v6093
        %v6095 = vand.u32 %v6094, 4294901760
        %6096 = vmatprep.subr.mxu0 %v6095
        %v6097 = vand.u32 %v4940, 4294901760
        %v6098 = vsub.f32 %v4940, %v6097
        %v6099 = vand.u32 %v6098, 4294901760
        %6100 = vmatpush2.msra.mxu0 %v6099
        %v6101 = vand.u32 %v4939, 4294901760
        %v6102 = vsub.f32 %v4939, %v6101
        %v6103 = vand.u32 %v6102, 4294901760
        %6104 = vmatprep.subr.mxu0 %v6103
        %v6105 = vand.u32 %v4938, 4294901760
        %v6106 = vsub.f32 %v4938, %v6105
        %v6107 = vand.u32 %v6106, 4294901760
        %6108 = vmatpush2.msra.mxu0 %v6107
        %v6109 = vand.u32 %v4937, 4294901760
        %v6110 = vsub.f32 %v4937, %v6109
        %v6111 = vand.u32 %v6110, 4294901760
        %6112 = vmatprep.subr.mxu0 %v6111
        %v6113 = vand.u32 %v4936, 4294901760
        %v6114 = vsub.f32 %v4936, %v6113
        %v6115 = vand.u32 %v6114, 4294901760
        %6116 = vmatpush2.msra.mxu0 %v6115
        %v6117 = vand.u32 %v4262, 4294901760
        %6118 = vmatprep.mubr.f32.mxu0 %v6117
        %v6119 = vand.u32 %v4261, 4294901760
        %6120 = vmatmul.mubr.f32.gmra.mxu0 %v6119
        %v6121 = vpop.f32.mrf.mxu0
        %v6122 = vadd.f32 %v5857, %v6121
        %v6123 = vpop.f32.mrf.mxu0
        %v6124 = vadd.f32 %v5859, %v6123
        %6125 = vdwg.mxu0
        %v6126 = vand.u32 %v4935, 4294901760
        %6127 = vmatprep.subr.mxu0 %v6126
        %v6128 = vand.u32 %v4934, 4294901760
        %6129 = vmatpush1.msra.mxu0 %v6128
        %v6130 = vand.u32 %v4933, 4294901760
        %6131 = vmatprep.subr.mxu0 %v6130
        %v6132 = vand.u32 %v4932, 4294901760
        %6133 = vmatpush1.msra.mxu0 %v6132
        %v6134 = vand.u32 %v4931, 4294901760
        %6135 = vmatprep.subr.mxu0 %v6134
        %v6136 = vand.u32 %v4930, 4294901760
        %6137 = vmatpush1.msra.mxu0 %v6136
        %v6138 = vand.u32 %v4929, 4294901760
        %6139 = vmatprep.subr.mxu0 %v6138
        %v6140 = vand.u32 %v4928, 4294901760
        %6141 = vmatpush1.msra.mxu0 %v6140
        %v6142 = vand.u32 %v4927, 4294901760
        %6143 = vmatprep.subr.mxu0 %v6142
        %v6144 = vand.u32 %v4926, 4294901760
        %6145 = vmatpush1.msra.mxu0 %v6144
        %v6146 = vand.u32 %v4925, 4294901760
        %6147 = vmatprep.subr.mxu0 %v6146
        %v6148 = vand.u32 %v4924, 4294901760
        %6149 = vmatpush1.msra.mxu0 %v6148
        %v6150 = vand.u32 %v4923, 4294901760
        %6151 = vmatprep.subr.mxu0 %v6150
        %v6152 = vand.u32 %v4922, 4294901760
        %6153 = vmatpush1.msra.mxu0 %v6152
        %v6154 = vand.u32 %v4921, 4294901760
        %6155 = vmatprep.subr.mxu0 %v6154
        %v6156 = vand.u32 %v4920, 4294901760
        %6157 = vmatpush1.msra.mxu0 %v6156
        %v6158 = vand.u32 %v4919, 4294901760
        %6159 = vmatprep.subr.mxu0 %v6158
        %v6160 = vand.u32 %v4918, 4294901760
        %6161 = vmatpush1.msra.mxu0 %v6160
        %v6162 = vand.u32 %v4917, 4294901760
        %6163 = vmatprep.subr.mxu0 %v6162
        %v6164 = vand.u32 %v4916, 4294901760
        %6165 = vmatpush1.msra.mxu0 %v6164
        %v6166 = vand.u32 %v4915, 4294901760
        %6167 = vmatprep.subr.mxu0 %v6166
        %v6168 = vand.u32 %v4914, 4294901760
        %6169 = vmatpush1.msra.mxu0 %v6168
        %v6170 = vand.u32 %v4913, 4294901760
        %6171 = vmatprep.subr.mxu0 %v6170
        %v6172 = vand.u32 %v4912, 4294901760
        %6173 = vmatpush1.msra.mxu0 %v6172
        %v6174 = vand.u32 %v4911, 4294901760
        %6175 = vmatprep.subr.mxu0 %v6174
        %v6176 = vand.u32 %v4910, 4294901760
        %6177 = vmatpush1.msra.mxu0 %v6176
        %v6178 = vand.u32 %v4909, 4294901760
        %6179 = vmatprep.subr.mxu0 %v6178
        %v6180 = vand.u32 %v4908, 4294901760
        %6181 = vmatpush1.msra.mxu0 %v6180
        %v6182 = vand.u32 %v4907, 4294901760
        %6183 = vmatprep.subr.mxu0 %v6182
        %v6184 = vand.u32 %v4906, 4294901760
        %6185 = vmatpush1.msra.mxu0 %v6184
        %v6186 = vand.u32 %v4905, 4294901760
        %6187 = vmatprep.subr.mxu0 %v6186
        %v6188 = vand.u32 %v4904, 4294901760
        %6189 = vmatpush1.msra.mxu0 %v6188
        %v6190 = vand.u32 %v4967, 4294901760
        %6191 = vmatprep.subr.mxu0 %v6190
        %v6192 = vand.u32 %v4966, 4294901760
        %6193 = vmatpush2.msra.mxu0 %v6192
        %v6194 = vand.u32 %v4965, 4294901760
        %6195 = vmatprep.subr.mxu0 %v6194
        %v6196 = vand.u32 %v4964, 4294901760
        %6197 = vmatpush2.msra.mxu0 %v6196
        %v6198 = vand.u32 %v4963, 4294901760
        %6199 = vmatprep.subr.mxu0 %v6198
        %v6200 = vand.u32 %v4962, 4294901760
        %6201 = vmatpush2.msra.mxu0 %v6200
        %v6202 = vand.u32 %v4961, 4294901760
        %6203 = vmatprep.subr.mxu0 %v6202
        %v6204 = vand.u32 %v4960, 4294901760
        %6205 = vmatpush2.msra.mxu0 %v6204
        %v6206 = vand.u32 %v4959, 4294901760
        %6207 = vmatprep.subr.mxu0 %v6206
        %v6208 = vand.u32 %v4958, 4294901760
        %6209 = vmatpush2.msra.mxu0 %v6208
        %v6210 = vand.u32 %v4957, 4294901760
        %6211 = vmatprep.subr.mxu0 %v6210
        %v6212 = vand.u32 %v4956, 4294901760
        %6213 = vmatpush2.msra.mxu0 %v6212
        %v6214 = vand.u32 %v4955, 4294901760
        %6215 = vmatprep.subr.mxu0 %v6214
        %v6216 = vand.u32 %v4954, 4294901760
        %6217 = vmatpush2.msra.mxu0 %v6216
        %v6218 = vand.u32 %v4953, 4294901760
        %6219 = vmatprep.subr.mxu0 %v6218
        %v6220 = vand.u32 %v4952, 4294901760
        %6221 = vmatpush2.msra.mxu0 %v6220
        %v6222 = vand.u32 %v4951, 4294901760
        %6223 = vmatprep.subr.mxu0 %v6222
        %v6224 = vand.u32 %v4950, 4294901760
        %6225 = vmatpush2.msra.mxu0 %v6224
        %v6226 = vand.u32 %v4949, 4294901760
        %6227 = vmatprep.subr.mxu0 %v6226
        %v6228 = vand.u32 %v4948, 4294901760
        %6229 = vmatpush2.msra.mxu0 %v6228
        %v6230 = vand.u32 %v4947, 4294901760
        %6231 = vmatprep.subr.mxu0 %v6230
        %v6232 = vand.u32 %v4946, 4294901760
        %6233 = vmatpush2.msra.mxu0 %v6232
        %v6234 = vand.u32 %v4945, 4294901760
        %6235 = vmatprep.subr.mxu0 %v6234
        %v6236 = vand.u32 %v4944, 4294901760
        %6237 = vmatpush2.msra.mxu0 %v6236
        %v6238 = vand.u32 %v4943, 4294901760
        %6239 = vmatprep.subr.mxu0 %v6238
        %v6240 = vand.u32 %v4942, 4294901760
        %6241 = vmatpush2.msra.mxu0 %v6240
        %v6242 = vand.u32 %v4941, 4294901760
        %6243 = vmatprep.subr.mxu0 %v6242
        %v6244 = vand.u32 %v4940, 4294901760
        %6245 = vmatpush2.msra.mxu0 %v6244
        %v6246 = vand.u32 %v4939, 4294901760
        %6247 = vmatprep.subr.mxu0 %v6246
        %v6248 = vand.u32 %v4938, 4294901760
        %6249 = vmatpush2.msra.mxu0 %v6248
        %v6250 = vand.u32 %v4937, 4294901760
        %6251 = vmatprep.subr.mxu0 %v6250
        %v6252 = vand.u32 %v4936, 4294901760
        %6253 = vmatpush2.msra.mxu0 %v6252
        %v6254 = vand.u32 %v4262, 4294901760
        %6255 = vmatprep.mubr.f32.mxu0 %v6254
        %v6256 = vand.u32 %v4261, 4294901760
        %6257 = vmatmul.mubr.f32.gmra.mxu0 %v6256
        %v6258 = vpop.f32.mrf.mxu0
        %v6259 = vadd.f32 %v6122, %v6258
        %v6260 = vpop.f32.mrf.mxu0
        %v6261 = vadd.f32 %v6124, %v6260
        %6262 = vdwg.mxu0
        %6263 = vmatprep.subr.mxu0 0.0
        %6264 = vmatpush1.msra.mxu0 0.0
        %6265 = vmatprep.subr.mxu0 0.0
        %6266 = vmatpush1.msra.mxu0 0.0
        %6267 = vmatprep.subr.mxu0 0.0
        %6268 = vmatpush1.msra.mxu0 0.0
        %6269 = vmatprep.subr.mxu0 0.0
        %6270 = vmatpush1.msra.mxu0 0.0
        %6271 = vmatprep.subr.mxu0 0.0
        %6272 = vmatpush1.msra.mxu0 0.0
        %6273 = vmatprep.subr.mxu0 0.0
        %6274 = vmatpush1.msra.mxu0 0.0
        %6275 = vmatprep.subr.mxu0 0.0
        %6276 = vmatpush1.msra.mxu0 0.0
        %6277 = vmatprep.subr.mxu0 0.0
        %6278 = vmatpush1.msra.mxu0 0.0
        %6279 = vmatprep.subr.mxu0 0.0
        %6280 = vmatpush1.msra.mxu0 0.0
        %6281 = vmatprep.subr.mxu0 0.0
        %6282 = vmatpush1.msra.mxu0 0.0
        %6283 = vmatprep.subr.mxu0 0.0
        %6284 = vmatpush1.msra.mxu0 0.0
        %6285 = vmatprep.subr.mxu0 0.0
        %6286 = vmatpush1.msra.mxu0 0.0
        %v6287 = vand.u32 %v4975, 4294901760
        %6288 = vmatprep.subr.mxu0 %v6287
        %v6289 = vand.u32 %v4974, 4294901760
        %6290 = vmatpush1.msra.mxu0 %v6289
        %v6291 = vand.u32 %v4973, 4294901760
        %6292 = vmatprep.subr.mxu0 %v6291
        %v6293 = vand.u32 %v4972, 4294901760
        %6294 = vmatpush1.msra.mxu0 %v6293
        %v6295 = vand.u32 %v4971, 4294901760
        %6296 = vmatprep.subr.mxu0 %v6295
        %v6297 = vand.u32 %v4970, 4294901760
        %6298 = vmatpush1.msra.mxu0 %v6297
        %v6299 = vand.u32 %v4969, 4294901760
        %6300 = vmatprep.subr.mxu0 %v6299
        %v6301 = vand.u32 %v4968, 4294901760
        %6302 = vmatpush1.msra.mxu0 %v6301
        %6303 = vmatprep.subr.mxu0 0.0
        %6304 = vmatpush2.msra.mxu0 0.0
        %6305 = vmatprep.subr.mxu0 0.0
        %6306 = vmatpush2.msra.mxu0 0.0
        %6307 = vmatprep.subr.mxu0 0.0
        %6308 = vmatpush2.msra.mxu0 0.0
        %6309 = vmatprep.subr.mxu0 0.0
        %6310 = vmatpush2.msra.mxu0 0.0
        %6311 = vmatprep.subr.mxu0 0.0
        %6312 = vmatpush2.msra.mxu0 0.0
        %6313 = vmatprep.subr.mxu0 0.0
        %6314 = vmatpush2.msra.mxu0 0.0
        %6315 = vmatprep.subr.mxu0 0.0
        %6316 = vmatpush2.msra.mxu0 0.0
        %6317 = vmatprep.subr.mxu0 0.0
        %6318 = vmatpush2.msra.mxu0 0.0
        %6319 = vmatprep.subr.mxu0 0.0
        %6320 = vmatpush2.msra.mxu0 0.0
        %6321 = vmatprep.subr.mxu0 0.0
        %6322 = vmatpush2.msra.mxu0 0.0
        %6323 = vmatprep.subr.mxu0 0.0
        %6324 = vmatpush2.msra.mxu0 0.0
        %6325 = vmatprep.subr.mxu0 0.0
        %6326 = vmatpush2.msra.mxu0 0.0
        %6327 = vmatprep.subr.mxu0 0.0
        %6328 = vmatpush2.msra.mxu0 0.0
        %6329 = vmatprep.subr.mxu0 0.0
        %6330 = vmatpush2.msra.mxu0 0.0
        %6331 = vmatprep.subr.mxu0 0.0
        %6332 = vmatpush2.msra.mxu0 0.0
        %6333 = vmatprep.subr.mxu0 0.0
        %6334 = vmatpush2.msra.mxu0 0.0
        %6335 = vmatprep.mubr.f32.mxu0 0.0
        %v6336 = vand.u32 %v4977, 4294901760
        %v6337 = vsub.f32 %v4977, %v6336
        %v6338 = vand.u32 %v6337, 4294901760
        %v6339 = vsub.f32 %v6337, %v6338
        %v6340 = vand.u32 %v6339, 4294901760
        %6341 = vmatmul.mubr.f32.gmra.mxu0 %v6340
        %v6342 = vpop.f32.mrf.mxu0
        %v6343 = vadd.f32 %v6259, %v6342
        %v6344 = vpop.f32.mrf.mxu0
        %v6345 = vadd.f32 %v6261, %v6344
        %6346 = vdwg.mxu0
        %6347 = vmatprep.subr.mxu0 0.0
        %6348 = vmatpush1.msra.mxu0 0.0
        %6349 = vmatprep.subr.mxu0 0.0
        %6350 = vmatpush1.msra.mxu0 0.0
        %6351 = vmatprep.subr.mxu0 0.0
        %6352 = vmatpush1.msra.mxu0 0.0
        %6353 = vmatprep.subr.mxu0 0.0
        %6354 = vmatpush1.msra.mxu0 0.0
        %6355 = vmatprep.subr.mxu0 0.0
        %6356 = vmatpush1.msra.mxu0 0.0
        %6357 = vmatprep.subr.mxu0 0.0
        %6358 = vmatpush1.msra.mxu0 0.0
        %6359 = vmatprep.subr.mxu0 0.0
        %6360 = vmatpush1.msra.mxu0 0.0
        %6361 = vmatprep.subr.mxu0 0.0
        %6362 = vmatpush1.msra.mxu0 0.0
        %6363 = vmatprep.subr.mxu0 0.0
        %6364 = vmatpush1.msra.mxu0 0.0
        %6365 = vmatprep.subr.mxu0 0.0
        %6366 = vmatpush1.msra.mxu0 0.0
        %6367 = vmatprep.subr.mxu0 0.0
        %6368 = vmatpush1.msra.mxu0 0.0
        %6369 = vmatprep.subr.mxu0 0.0
        %6370 = vmatpush1.msra.mxu0 0.0
        %v6371 = vand.u32 %v4975, 4294901760
        %v6372 = vsub.f32 %v4975, %v6371
        %v6373 = vand.u32 %v6372, 4294901760
        %v6374 = vsub.f32 %v6372, %v6373
        %v6375 = vand.u32 %v6374, 4294901760
        %6376 = vmatprep.subr.mxu0 %v6375
        %v6377 = vand.u32 %v4974, 4294901760
        %v6378 = vsub.f32 %v4974, %v6377
        %v6379 = vand.u32 %v6378, 4294901760
        %v6380 = vsub.f32 %v6378, %v6379
        %v6381 = vand.u32 %v6380, 4294901760
        %6382 = vmatpush1.msra.mxu0 %v6381
        %v6383 = vand.u32 %v4973, 4294901760
        %v6384 = vsub.f32 %v4973, %v6383
        %v6385 = vand.u32 %v6384, 4294901760
        %v6386 = vsub.f32 %v6384, %v6385
        %v6387 = vand.u32 %v6386, 4294901760
        %6388 = vmatprep.subr.mxu0 %v6387
        %v6389 = vand.u32 %v4972, 4294901760
        %v6390 = vsub.f32 %v4972, %v6389
        %v6391 = vand.u32 %v6390, 4294901760
        %v6392 = vsub.f32 %v6390, %v6391
        %v6393 = vand.u32 %v6392, 4294901760
        %6394 = vmatpush1.msra.mxu0 %v6393
        %v6395 = vand.u32 %v4971, 4294901760
        %v6396 = vsub.f32 %v4971, %v6395
        %v6397 = vand.u32 %v6396, 4294901760
        %v6398 = vsub.f32 %v6396, %v6397
        %v6399 = vand.u32 %v6398, 4294901760
        %6400 = vmatprep.subr.mxu0 %v6399
        %v6401 = vand.u32 %v4970, 4294901760
        %v6402 = vsub.f32 %v4970, %v6401
        %v6403 = vand.u32 %v6402, 4294901760
        %v6404 = vsub.f32 %v6402, %v6403
        %v6405 = vand.u32 %v6404, 4294901760
        %6406 = vmatpush1.msra.mxu0 %v6405
        %v6407 = vand.u32 %v4969, 4294901760
        %v6408 = vsub.f32 %v4969, %v6407
        %v6409 = vand.u32 %v6408, 4294901760
        %v6410 = vsub.f32 %v6408, %v6409
        %v6411 = vand.u32 %v6410, 4294901760
        %6412 = vmatprep.subr.mxu0 %v6411
        %v6413 = vand.u32 %v4968, 4294901760
        %v6414 = vsub.f32 %v4968, %v6413
        %v6415 = vand.u32 %v6414, 4294901760
        %v6416 = vsub.f32 %v6414, %v6415
        %v6417 = vand.u32 %v6416, 4294901760
        %6418 = vmatpush1.msra.mxu0 %v6417
        %6419 = vmatprep.subr.mxu0 0.0
        %6420 = vmatpush2.msra.mxu0 0.0
        %6421 = vmatprep.subr.mxu0 0.0
        %6422 = vmatpush2.msra.mxu0 0.0
        %6423 = vmatprep.subr.mxu0 0.0
        %6424 = vmatpush2.msra.mxu0 0.0
        %6425 = vmatprep.subr.mxu0 0.0
        %6426 = vmatpush2.msra.mxu0 0.0
        %6427 = vmatprep.subr.mxu0 0.0
        %6428 = vmatpush2.msra.mxu0 0.0
        %6429 = vmatprep.subr.mxu0 0.0
        %6430 = vmatpush2.msra.mxu0 0.0
        %6431 = vmatprep.subr.mxu0 0.0
        %6432 = vmatpush2.msra.mxu0 0.0
        %6433 = vmatprep.subr.mxu0 0.0
        %6434 = vmatpush2.msra.mxu0 0.0
        %6435 = vmatprep.subr.mxu0 0.0
        %6436 = vmatpush2.msra.mxu0 0.0
        %6437 = vmatprep.subr.mxu0 0.0
        %6438 = vmatpush2.msra.mxu0 0.0
        %6439 = vmatprep.subr.mxu0 0.0
        %6440 = vmatpush2.msra.mxu0 0.0
        %6441 = vmatprep.subr.mxu0 0.0
        %6442 = vmatpush2.msra.mxu0 0.0
        %6443 = vmatprep.subr.mxu0 0.0
        %6444 = vmatpush2.msra.mxu0 0.0
        %6445 = vmatprep.subr.mxu0 0.0
        %6446 = vmatpush2.msra.mxu0 0.0
        %6447 = vmatprep.subr.mxu0 0.0
        %6448 = vmatpush2.msra.mxu0 0.0
        %6449 = vmatprep.subr.mxu0 0.0
        %6450 = vmatpush2.msra.mxu0 0.0
        %6451 = vmatprep.mubr.f32.mxu0 0.0
        %v6452 = vand.u32 %v4977, 4294901760
        %6453 = vmatmul.mubr.f32.gmra.mxu0 %v6452
        %v6454 = vpop.f32.mrf.mxu0
        %v6455 = vadd.f32 %v6343, %v6454
        %v6456 = vpop.f32.mrf.mxu0
        %v6457 = vadd.f32 %v6345, %v6456
        %6458 = vdwg.mxu0
        %6459 = vmatprep.subr.mxu0 0.0
        %6460 = vmatpush1.msra.mxu0 0.0
        %6461 = vmatprep.subr.mxu0 0.0
        %6462 = vmatpush1.msra.mxu0 0.0
        %6463 = vmatprep.subr.mxu0 0.0
        %6464 = vmatpush1.msra.mxu0 0.0
        %6465 = vmatprep.subr.mxu0 0.0
        %6466 = vmatpush1.msra.mxu0 0.0
        %6467 = vmatprep.subr.mxu0 0.0
        %6468 = vmatpush1.msra.mxu0 0.0
        %6469 = vmatprep.subr.mxu0 0.0
        %6470 = vmatpush1.msra.mxu0 0.0
        %6471 = vmatprep.subr.mxu0 0.0
        %6472 = vmatpush1.msra.mxu0 0.0
        %6473 = vmatprep.subr.mxu0 0.0
        %6474 = vmatpush1.msra.mxu0 0.0
        %6475 = vmatprep.subr.mxu0 0.0
        %6476 = vmatpush1.msra.mxu0 0.0
        %6477 = vmatprep.subr.mxu0 0.0
        %6478 = vmatpush1.msra.mxu0 0.0
        %6479 = vmatprep.subr.mxu0 0.0
        %6480 = vmatpush1.msra.mxu0 0.0
        %6481 = vmatprep.subr.mxu0 0.0
        %6482 = vmatpush1.msra.mxu0 0.0
        %v6483 = vand.u32 %v4975, 4294901760
        %v6484 = vsub.f32 %v4975, %v6483
        %6485 = vmatprep.subr.mxu0 %v6484
        %v6486 = vand.u32 %v4974, 4294901760
        %v6487 = vsub.f32 %v4974, %v6486
        %6488 = vmatpush1.msra.mxu0 %v6487
        %v6489 = vand.u32 %v4973, 4294901760
        %v6490 = vsub.f32 %v4973, %v6489
        %6491 = vmatprep.subr.mxu0 %v6490
        %v6492 = vand.u32 %v4972, 4294901760
        %v6493 = vsub.f32 %v4972, %v6492
        %6494 = vmatpush1.msra.mxu0 %v6493
        %v6495 = vand.u32 %v4971, 4294901760
        %v6496 = vsub.f32 %v4971, %v6495
        %6497 = vmatprep.subr.mxu0 %v6496
        %v6498 = vand.u32 %v4970, 4294901760
        %v6499 = vsub.f32 %v4970, %v6498
        %6500 = vmatpush1.msra.mxu0 %v6499
        %v6501 = vand.u32 %v4969, 4294901760
        %v6502 = vsub.f32 %v4969, %v6501
        %6503 = vmatprep.subr.mxu0 %v6502
        %v6504 = vand.u32 %v4968, 4294901760
        %v6505 = vsub.f32 %v4968, %v6504
        %6506 = vmatpush1.msra.mxu0 %v6505
        %6507 = vmatprep.subr.mxu0 0.0
        %6508 = vmatpush2.msra.mxu0 0.0
        %6509 = vmatprep.subr.mxu0 0.0
        %6510 = vmatpush2.msra.mxu0 0.0
        %6511 = vmatprep.subr.mxu0 0.0
        %6512 = vmatpush2.msra.mxu0 0.0
        %6513 = vmatprep.subr.mxu0 0.0
        %6514 = vmatpush2.msra.mxu0 0.0
        %6515 = vmatprep.subr.mxu0 0.0
        %6516 = vmatpush2.msra.mxu0 0.0
        %6517 = vmatprep.subr.mxu0 0.0
        %6518 = vmatpush2.msra.mxu0 0.0
        %6519 = vmatprep.subr.mxu0 0.0
        %6520 = vmatpush2.msra.mxu0 0.0
        %6521 = vmatprep.subr.mxu0 0.0
        %6522 = vmatpush2.msra.mxu0 0.0
        %6523 = vmatprep.subr.mxu0 0.0
        %6524 = vmatpush2.msra.mxu0 0.0
        %6525 = vmatprep.subr.mxu0 0.0
        %6526 = vmatpush2.msra.mxu0 0.0
        %6527 = vmatprep.subr.mxu0 0.0
        %6528 = vmatpush2.msra.mxu0 0.0
        %6529 = vmatprep.subr.mxu0 0.0
        %6530 = vmatpush2.msra.mxu0 0.0
        %6531 = vmatprep.subr.mxu0 0.0
        %6532 = vmatpush2.msra.mxu0 0.0
        %6533 = vmatprep.subr.mxu0 0.0
        %6534 = vmatpush2.msra.mxu0 0.0
        %6535 = vmatprep.subr.mxu0 0.0
        %6536 = vmatpush2.msra.mxu0 0.0
        %6537 = vmatprep.subr.mxu0 0.0
        %6538 = vmatpush2.msra.mxu0 0.0
        %6539 = vmatprep.mubr.f32.mxu0 0.0
        %v6540 = vand.u32 %v4977, 4294901760
        %v6541 = vsub.f32 %v4977, %v6540
        %6542 = vmatmul.mubr.f32.gmra.mxu0 %v6541
        %v6543 = vpop.f32.mrf.mxu0
        %v6544 = vadd.f32 %v6455, %v6543
        %v6545 = vpop.f32.mrf.mxu0
        %v6546 = vadd.f32 %v6457, %v6545
        %6547 = vdwg.mxu0
        %6548 = vmatprep.subr.mxu0 0.0
        %6549 = vmatpush1.msra.mxu0 0.0
        %6550 = vmatprep.subr.mxu0 0.0
        %6551 = vmatpush1.msra.mxu0 0.0
        %6552 = vmatprep.subr.mxu0 0.0
        %6553 = vmatpush1.msra.mxu0 0.0
        %6554 = vmatprep.subr.mxu0 0.0
        %6555 = vmatpush1.msra.mxu0 0.0
        %6556 = vmatprep.subr.mxu0 0.0
        %6557 = vmatpush1.msra.mxu0 0.0
        %6558 = vmatprep.subr.mxu0 0.0
        %6559 = vmatpush1.msra.mxu0 0.0
        %6560 = vmatprep.subr.mxu0 0.0
        %6561 = vmatpush1.msra.mxu0 0.0
        %6562 = vmatprep.subr.mxu0 0.0
        %6563 = vmatpush1.msra.mxu0 0.0
        %6564 = vmatprep.subr.mxu0 0.0
        %6565 = vmatpush1.msra.mxu0 0.0
        %6566 = vmatprep.subr.mxu0 0.0
        %6567 = vmatpush1.msra.mxu0 0.0
        %6568 = vmatprep.subr.mxu0 0.0
        %6569 = vmatpush1.msra.mxu0 0.0
        %6570 = vmatprep.subr.mxu0 0.0
        %6571 = vmatpush1.msra.mxu0 0.0
        %v6572 = vand.u32 %v4975, 4294901760
        %6573 = vmatprep.subr.mxu0 %v6572
        %v6574 = vand.u32 %v4974, 4294901760
        %6575 = vmatpush1.msra.mxu0 %v6574
        %v6576 = vand.u32 %v4973, 4294901760
        %6577 = vmatprep.subr.mxu0 %v6576
        %v6578 = vand.u32 %v4972, 4294901760
        %6579 = vmatpush1.msra.mxu0 %v6578
        %v6580 = vand.u32 %v4971, 4294901760
        %6581 = vmatprep.subr.mxu0 %v6580
        %v6582 = vand.u32 %v4970, 4294901760
        %6583 = vmatpush1.msra.mxu0 %v6582
        %v6584 = vand.u32 %v4969, 4294901760
        %6585 = vmatprep.subr.mxu0 %v6584
        %v6586 = vand.u32 %v4968, 4294901760
        %6587 = vmatpush1.msra.mxu0 %v6586
        %6588 = vmatprep.subr.mxu0 0.0
        %6589 = vmatpush2.msra.mxu0 0.0
        %6590 = vmatprep.subr.mxu0 0.0
        %6591 = vmatpush2.msra.mxu0 0.0
        %6592 = vmatprep.subr.mxu0 0.0
        %6593 = vmatpush2.msra.mxu0 0.0
        %6594 = vmatprep.subr.mxu0 0.0
        %6595 = vmatpush2.msra.mxu0 0.0
        %6596 = vmatprep.subr.mxu0 0.0
        %6597 = vmatpush2.msra.mxu0 0.0
        %6598 = vmatprep.subr.mxu0 0.0
        %6599 = vmatpush2.msra.mxu0 0.0
        %6600 = vmatprep.subr.mxu0 0.0
        %6601 = vmatpush2.msra.mxu0 0.0
        %6602 = vmatprep.subr.mxu0 0.0
        %6603 = vmatpush2.msra.mxu0 0.0
        %6604 = vmatprep.subr.mxu0 0.0
        %6605 = vmatpush2.msra.mxu0 0.0
        %6606 = vmatprep.subr.mxu0 0.0
        %6607 = vmatpush2.msra.mxu0 0.0
        %6608 = vmatprep.subr.mxu0 0.0
        %6609 = vmatpush2.msra.mxu0 0.0
        %6610 = vmatprep.subr.mxu0 0.0
        %6611 = vmatpush2.msra.mxu0 0.0
        %6612 = vmatprep.subr.mxu0 0.0
        %6613 = vmatpush2.msra.mxu0 0.0
        %6614 = vmatprep.subr.mxu0 0.0
        %6615 = vmatpush2.msra.mxu0 0.0
        %6616 = vmatprep.subr.mxu0 0.0
        %6617 = vmatpush2.msra.mxu0 0.0
        %6618 = vmatprep.subr.mxu0 0.0
        %6619 = vmatpush2.msra.mxu0 0.0
        %6620 = vmatprep.mubr.f32.mxu0 0.0
        %v6621 = vand.u32 %v4977, 4294901760
        %v6622 = vsub.f32 %v4977, %v6621
        %v6623 = vand.u32 %v6622, 4294901760
        %6624 = vmatmul.mubr.f32.gmra.mxu0 %v6623
        %v6625 = vpop.f32.mrf.mxu0
        %v6626 = vadd.f32 %v6544, %v6625
        %v6627 = vpop.f32.mrf.mxu0
        %v6628 = vadd.f32 %v6546, %v6627
        %6629 = vdwg.mxu0
        %6630 = vmatprep.subr.mxu0 0.0
        %6631 = vmatpush1.msra.mxu0 0.0
        %6632 = vmatprep.subr.mxu0 0.0
        %6633 = vmatpush1.msra.mxu0 0.0
        %6634 = vmatprep.subr.mxu0 0.0
        %6635 = vmatpush1.msra.mxu0 0.0
        %6636 = vmatprep.subr.mxu0 0.0
        %6637 = vmatpush1.msra.mxu0 0.0
        %6638 = vmatprep.subr.mxu0 0.0
        %6639 = vmatpush1.msra.mxu0 0.0
        %6640 = vmatprep.subr.mxu0 0.0
        %6641 = vmatpush1.msra.mxu0 0.0
        %6642 = vmatprep.subr.mxu0 0.0
        %6643 = vmatpush1.msra.mxu0 0.0
        %6644 = vmatprep.subr.mxu0 0.0
        %6645 = vmatpush1.msra.mxu0 0.0
        %6646 = vmatprep.subr.mxu0 0.0
        %6647 = vmatpush1.msra.mxu0 0.0
        %6648 = vmatprep.subr.mxu0 0.0
        %6649 = vmatpush1.msra.mxu0 0.0
        %6650 = vmatprep.subr.mxu0 0.0
        %6651 = vmatpush1.msra.mxu0 0.0
        %6652 = vmatprep.subr.mxu0 0.0
        %6653 = vmatpush1.msra.mxu0 0.0
        %v6654 = vand.u32 %v4975, 4294901760
        %v6655 = vsub.f32 %v4975, %v6654
        %v6656 = vand.u32 %v6655, 4294901760
        %6657 = vmatprep.subr.mxu0 %v6656
        %v6658 = vand.u32 %v4974, 4294901760
        %v6659 = vsub.f32 %v4974, %v6658
        %v6660 = vand.u32 %v6659, 4294901760
        %6661 = vmatpush1.msra.mxu0 %v6660
        %v6662 = vand.u32 %v4973, 4294901760
        %v6663 = vsub.f32 %v4973, %v6662
        %v6664 = vand.u32 %v6663, 4294901760
        %6665 = vmatprep.subr.mxu0 %v6664
        %v6666 = vand.u32 %v4972, 4294901760
        %v6667 = vsub.f32 %v4972, %v6666
        %v6668 = vand.u32 %v6667, 4294901760
        %6669 = vmatpush1.msra.mxu0 %v6668
        %v6670 = vand.u32 %v4971, 4294901760
        %v6671 = vsub.f32 %v4971, %v6670
        %v6672 = vand.u32 %v6671, 4294901760
        %6673 = vmatprep.subr.mxu0 %v6672
        %v6674 = vand.u32 %v4970, 4294901760
        %v6675 = vsub.f32 %v4970, %v6674
        %v6676 = vand.u32 %v6675, 4294901760
        %6677 = vmatpush1.msra.mxu0 %v6676
        %v6678 = vand.u32 %v4969, 4294901760
        %v6679 = vsub.f32 %v4969, %v6678
        %v6680 = vand.u32 %v6679, 4294901760
        %6681 = vmatprep.subr.mxu0 %v6680
        %v6682 = vand.u32 %v4968, 4294901760
        %v6683 = vsub.f32 %v4968, %v6682
        %v6684 = vand.u32 %v6683, 4294901760
        %6685 = vmatpush1.msra.mxu0 %v6684
        %6686 = vmatprep.subr.mxu0 0.0
        %6687 = vmatpush2.msra.mxu0 0.0
        %6688 = vmatprep.subr.mxu0 0.0
        %6689 = vmatpush2.msra.mxu0 0.0
        %6690 = vmatprep.subr.mxu0 0.0
        %6691 = vmatpush2.msra.mxu0 0.0
        %6692 = vmatprep.subr.mxu0 0.0
        %6693 = vmatpush2.msra.mxu0 0.0
        %6694 = vmatprep.subr.mxu0 0.0
        %6695 = vmatpush2.msra.mxu0 0.0
        %6696 = vmatprep.subr.mxu0 0.0
        %6697 = vmatpush2.msra.mxu0 0.0
        %6698 = vmatprep.subr.mxu0 0.0
        %6699 = vmatpush2.msra.mxu0 0.0
        %6700 = vmatprep.subr.mxu0 0.0
        %6701 = vmatpush2.msra.mxu0 0.0
        %6702 = vmatprep.subr.mxu0 0.0
        %6703 = vmatpush2.msra.mxu0 0.0
        %6704 = vmatprep.subr.mxu0 0.0
        %6705 = vmatpush2.msra.mxu0 0.0
        %6706 = vmatprep.subr.mxu0 0.0
        %6707 = vmatpush2.msra.mxu0 0.0
        %6708 = vmatprep.subr.mxu0 0.0
        %6709 = vmatpush2.msra.mxu0 0.0
        %6710 = vmatprep.subr.mxu0 0.0
        %6711 = vmatpush2.msra.mxu0 0.0
        %6712 = vmatprep.subr.mxu0 0.0
        %6713 = vmatpush2.msra.mxu0 0.0
        %6714 = vmatprep.subr.mxu0 0.0
        %6715 = vmatpush2.msra.mxu0 0.0
        %6716 = vmatprep.subr.mxu0 0.0
        %6717 = vmatpush2.msra.mxu0 0.0
        %6718 = vmatprep.mubr.f32.mxu0 0.0
        %v6719 = vand.u32 %v4977, 4294901760
        %6720 = vmatmul.mubr.f32.gmra.mxu0 %v6719
        %v6721 = vpop.f32.mrf.mxu0
        %v6722 = vadd.f32 %v6626, %v6721
        %v6723 = vpop.f32.mrf.mxu0
        %v6724 = vadd.f32 %v6628, %v6723
        %6725 = vdwg.mxu0
        %6726 = vmatprep.subr.mxu0 0.0
        %6727 = vmatpush1.msra.mxu0 0.0
        %6728 = vmatprep.subr.mxu0 0.0
        %6729 = vmatpush1.msra.mxu0 0.0
        %6730 = vmatprep.subr.mxu0 0.0
        %6731 = vmatpush1.msra.mxu0 0.0
        %6732 = vmatprep.subr.mxu0 0.0
        %6733 = vmatpush1.msra.mxu0 0.0
        %6734 = vmatprep.subr.mxu0 0.0
        %6735 = vmatpush1.msra.mxu0 0.0
        %6736 = vmatprep.subr.mxu0 0.0
        %6737 = vmatpush1.msra.mxu0 0.0
        %6738 = vmatprep.subr.mxu0 0.0
        %6739 = vmatpush1.msra.mxu0 0.0
        %6740 = vmatprep.subr.mxu0 0.0
        %6741 = vmatpush1.msra.mxu0 0.0
        %6742 = vmatprep.subr.mxu0 0.0
        %6743 = vmatpush1.msra.mxu0 0.0
        %6744 = vmatprep.subr.mxu0 0.0
        %6745 = vmatpush1.msra.mxu0 0.0
        %6746 = vmatprep.subr.mxu0 0.0
        %6747 = vmatpush1.msra.mxu0 0.0
        %6748 = vmatprep.subr.mxu0 0.0
        %6749 = vmatpush1.msra.mxu0 0.0
        %v6750 = vand.u32 %v4975, 4294901760
        %6751 = vmatprep.subr.mxu0 %v6750
        %v6752 = vand.u32 %v4974, 4294901760
        %6753 = vmatpush1.msra.mxu0 %v6752
        %v6754 = vand.u32 %v4973, 4294901760
        %6755 = vmatprep.subr.mxu0 %v6754
        %v6756 = vand.u32 %v4972, 4294901760
        %6757 = vmatpush1.msra.mxu0 %v6756
        %v6758 = vand.u32 %v4971, 4294901760
        %6759 = vmatprep.subr.mxu0 %v6758
        %v6760 = vand.u32 %v4970, 4294901760
        %6761 = vmatpush1.msra.mxu0 %v6760
        %v6762 = vand.u32 %v4969, 4294901760
        %6763 = vmatprep.subr.mxu0 %v6762
        %v6764 = vand.u32 %v4968, 4294901760
        %6765 = vmatpush1.msra.mxu0 %v6764
        %6766 = vmatprep.subr.mxu0 0.0
        %6767 = vmatpush2.msra.mxu0 0.0
        %6768 = vmatprep.subr.mxu0 0.0
        %6769 = vmatpush2.msra.mxu0 0.0
        %6770 = vmatprep.subr.mxu0 0.0
        %6771 = vmatpush2.msra.mxu0 0.0
        %6772 = vmatprep.subr.mxu0 0.0
        %6773 = vmatpush2.msra.mxu0 0.0
        %6774 = vmatprep.subr.mxu0 0.0
        %6775 = vmatpush2.msra.mxu0 0.0
        %6776 = vmatprep.subr.mxu0 0.0
        %6777 = vmatpush2.msra.mxu0 0.0
        %6778 = vmatprep.subr.mxu0 0.0
        %6779 = vmatpush2.msra.mxu0 0.0
        %6780 = vmatprep.subr.mxu0 0.0
        %6781 = vmatpush2.msra.mxu0 0.0
        %6782 = vmatprep.subr.mxu0 0.0
        %6783 = vmatpush2.msra.mxu0 0.0
        %6784 = vmatprep.subr.mxu0 0.0
        %6785 = vmatpush2.msra.mxu0 0.0
        %6786 = vmatprep.subr.mxu0 0.0
        %6787 = vmatpush2.msra.mxu0 0.0
        %6788 = vmatprep.subr.mxu0 0.0
        %6789 = vmatpush2.msra.mxu0 0.0
        %6790 = vmatprep.subr.mxu0 0.0
        %6791 = vmatpush2.msra.mxu0 0.0
        %6792 = vmatprep.subr.mxu0 0.0
        %6793 = vmatpush2.msra.mxu0 0.0
        %6794 = vmatprep.subr.mxu0 0.0
        %6795 = vmatpush2.msra.mxu0 0.0
        %6796 = vmatprep.subr.mxu0 0.0
        %6797 = vmatpush2.msra.mxu0 0.0
        %6798 = vmatprep.mubr.f32.mxu0 0.0
        %v6799 = vand.u32 %v4977, 4294901760
        %6800 = vmatmul.mubr.f32.gmra.mxu0 %v6799
        %v6801 = vpop.f32.mrf.mxu0
        %v6802 = vadd.f32 %v6722, %v6801
        %v6803 = vpop.f32.mrf.mxu0
        %v6804 = vadd.f32 %v6724, %v6803
        %6805 = vdwg.mxu0
        %v6806 = vsub.f32 0.0, %v6802
        %v6807 = vsub.f32 0.0, %v6804
        %v6808 = vmul.f32 %v6806, 1.442695
        %v6809 = vpow.pop %v6808
        %v6810 = vmul.f32 %v6807, 1.442695
        %v6811 = vpow.pop %v6810
        %v6812 = vadd.f32 %v6809, 1.0
        %v6813 = vadd.f32 %v6811, 1.0
        %v6814 = vrcp.pop %v6812
        %v6815 = vmul.f32 1.0, %v6814
        %v6816 = vrcp.pop %v6813
        %v6817 = vmul.f32 1.0, %v6816
        %vm6818 = vcmask 1044480
        %v6819 = vsel %vm6818, %v6815, 0.0
        %v6820 = vrot.slane %v6819, 4
        %v6821 = vadd.f32 %v6819, %v6820
        %v6822 = vrot.slane %v6821, 2
        %v6823 = vadd.f32 %v6821, %v6822
        %v6824 = vrot.slane %v6823, 1
        %v6825 = vadd.f32 %v6823, %v6824
        %v6826 = vsel %vm6818, %v6817, 0.0
        %v6827 = vrot.slane %v6826, 4
        %v6828 = vadd.f32 %v6826, %v6827
        %v6829 = vrot.slane %v6828, 2
        %v6830 = vadd.f32 %v6828, %v6829
        %v6831 = vrot.slane %v6830, 1
        %v6832 = vadd.f32 %v6830, %v6831
        %v6833 = vadd.f32 %v6825, 1e-09
        %v6834 = vadd.f32 %v6832, 1e-09
        %v6835 = vrcp.pop %v6833
        %v6836 = vmul.f32 %v6815, %v6835
        %v6837 = vrcp.pop %v6834
        %v6838 = vmul.f32 %v6817, %v6837
        %6839 = vst [vmem:[%s257] sm:$0x1f] %v6836
        %6840 = vst [vmem:[%s257 + $0x8] sm:$0x1f] %v6838
        %p6841 = scmp.lt.s32.totalorder %s20, 1
        %s6842 = scalar_select %p6841, %s20, 1
        %s6843 = smul.addr %s6842, 2
        %s6844 = smul.addr %s6843, 8
        %s6845 = scalar_lea.vmem %s4, %s6844
        // Predicated region
        $region53: #{tpu_custom_call.1} parent=35 // pred_check
          %p6846 = pneg %p127
        $region54: #{tpu_custom_call.1} parent=35 // pred_check_branch
          %6848 = sbr.rel (%p6846) target = $region56
        $region55: #{tpu_custom_call.1} parent=35 // pred_region
          _
        $region56: #{tpu_custom_call.1} parent=35 // pred_fallthru
          _
      $region36: #{tpu_custom_call.1} parent=5 // pred_fallthru
        _
      %p6849 = scmp.le.s32.totalorder 2, %s15
      // Predicated region
      $region57: #{tpu_custom_call.1} parent=5 // pred_check
        %p6850 = pneg %p6849
      $region58: #{tpu_custom_call.1} parent=5 // pred_check_branch
        %6852 = sbr.rel (%p6850) target = $region60
      $region59: #{tpu_custom_call.1} parent=5 // pred_region
        %s6853 = ssub.s32 %s15, 2
        // Predicated region
        $region61: #{tpu_custom_call.1} parent=59 // pred_check
          %p6854 = pneg %p133
        $region62: #{tpu_custom_call.1} parent=59 // pred_check_branch
          %6856 = sbr.rel (%p6854) target = $region64
        $region63: #{tpu_custom_call.1} parent=59 // pred_region
          %p6857 = scmp.lt.s32.totalorder %s21, 1
          %s6858 = scalar_select %p6857, %s21, 1
          %s6859 = smul.addr %s6858, 2
          %s6860 = smul.addr %s6859, 8
          %s6861 = scalar_lea.vmem %s4, %s6860
        $region64: #{tpu_custom_call.1} parent=59 // pred_fallthru
          _
      $region60: #{tpu_custom_call.1} parent=5 // pred_fallthru
        _
    $region6: #{tpu_custom_call.1} parent=1 // loop_footer
      %s19 = sadd.s32 1, %s15
    $region7: #{tpu_custom_call.1} parent=1 // loop_footer_branch
      %14 = sbr.rel target = $region3
    $region8: #{tpu_custom_call.1} parent=1 // loop_exit
      _
    %6862 = vsyncpa [#allocation5], 1
    %s6863 = scalar_lea.sflag [#allocation5], 1
    %6864 = vsyncpa %s6863, 1
    %6865 = vsyncpa [#allocation7], 1
    %6866 = vsyncpa [#allocation10], 1

</llo_original>
